<compile_context>
chip_gen: v7x
topology: tpu7x:2x2x1
jax: 0.10.0
libtpu: 0.0.40
codegen_flags: <defaults>
</compile_context>

<pallas_src>
import functools
import math

import jax
import jax.numpy as jnp
from jax.experimental import pallas as pl
from jax.experimental.pallas import tpu as pltpu

EPS = 1e-5  # nn.LayerNorm default


def transformer_block_kernel(
    x_ref,       # (R, E)  f32 rows of the flattened (B*S, E) input
    wqkv_ref,    # (3E, E) bf16: [q rows (d-major, 1/sqrt(D) & gamma1 folded); k; v]
    wo_ref,      # (E, E)  bf16, columns permuted d-major
    w1_ref,      # (2E, E) bf16, gamma2 folded into columns
    w2_ref,      # (E, 2E) bf16
    bias_ref,    # (3E, 3) f32 packed bias slab:
                 #   [:,0]=b_qkv ; [0:E,1]=b_o ; [E:3E,1]=b_ff1 ; [0:E,2]=b_ff2
    o_ref,       # (R, E)
    *, num_heads, qh_block, attn_dtype,
):
    f32, bf16 = jnp.float32, jnp.bfloat16
    H = num_heads

    x = x_ref[...].astype(f32)          # (R, E)
    x_t = x.T                           # (E, R): rows on the 128-lane axis
    E, R = x_t.shape
    D = E // H

    b_qkv = bias_ref[:, 0:1]            # (3E, 1)
    b_o   = bias_ref[0:E, 1:2]          # (E, 1)
    b_ff1 = bias_ref[E:3 * E, 1:2]      # (2E, 1)
    b_ff2 = bias_ref[0:E, 2:3]          # (E, 1)

    def layer_norm_t(y_t):
        # gamma/beta are folded into the following matmul weights/biases.
        mu = jnp.mean(y_t, axis=0, keepdims=True)
        msq = jnp.mean(y_t * y_t, axis=0, keepdims=True)
        return (y_t - mu) * jax.lax.rsqrt(msq - mu * mu + EPS)

    # ---- norm1 + fused QKV projection (gamma1/beta1 folded into wqkv / b_qkv) ----
    z1 = layer_norm_t(x_t)
    qkv = jnp.dot(wqkv_ref[...], z1.astype(bf16), preferred_element_type=f32) + b_qkv
    q_h = qkv[0:E]            # (E, R) rows laid out d*H + h (d-major); 1/sqrt(D) folded
    k_h = qkv[E:2 * E]
    v_h = qkv[2 * E:3 * E]

    # Per-d (H, R) K/V panels, cast once to the attention compute dtype.
    k_d = [k_h[d * H:(d + 1) * H, :].astype(attn_dtype) for d in range(D)]
    v_d = [v_h[d * H:(d + 1) * H, :].astype(attn_dtype) for d in range(D)]

    # ---- head-mixing attention, streamed over qh blocks (VPU math, lane-dense R) ----
    # scores[kh, qh, r]       = sum_d q[r, qh, d] * k[r, kh, d]
    # attended[d*H + qh, r]   = sum_kh softmax_kh(scores)[kh, qh, r] * v[r, kh, d]
    n_qb = H // qh_block
    att_pieces = [[None] * n_qb for _ in range(D)]          # [d][qb] -> (qh_block, R) f32
    for qb in range(n_qb):
        qs = qb * qh_block
        scores = None
        for d in range(D):                                   # D = 4, unrolled
            q_blk = q_h[d * H + qs:d * H + qs + qh_block, :].astype(attn_dtype)
            term = k_d[d][:, None, :] * q_blk[None, :, :]    # (H, qh_block, R)
            scores = term if scores is None else scores + term
        m = jnp.max(scores, axis=0, keepdims=True)           # (1, qh_block, R)
        p = jnp.exp(scores - m)                              # (H, qh_block, R)
        denom = jnp.sum(p.astype(f32), axis=0, keepdims=True)
        inv_denom = pl.reciprocal(denom, approx=True)[0]     # (qh_block, R), EUP slot
        for d in range(D):
            acc = jnp.sum((p * v_d[d][:, None, :]).astype(f32), axis=0)  # (qh_block, R)
            att_pieces[d][qb] = acc * inv_denom              # 1/denom folded here

    attended = jnp.concatenate(
        [jnp.concatenate(att_pieces[d], axis=0) for d in range(D)], axis=0)  # (E, R)

    attn_out = jnp.dot(wo_ref[...], attended.astype(bf16),
                       preferred_element_type=f32) + b_o

    # dropout1 = identity (eval mode)
    x1_t = x_t + attn_out

    # ---- norm2 + feed-forward (gamma2/beta2 folded into w1 / b_ff1) ----
    z2 = layer_norm_t(x1_t)
    h_t = jnp.dot(w1_ref[...], z2.astype(bf16), preferred_element_type=f32) + b_ff1
    h_t = jnp.maximum(h_t, 0.0)
    ff_t = jnp.dot(w2_ref[...], h_t.astype(bf16), preferred_element_type=f32) + b_ff2

    # dropout2 = identity; second residual uses the ORIGINAL `value` (reference quirk)
    out_t = x_t + ff_t
    o_ref[...] = out_t.T.astype(o_ref.dtype)


def prepare_params(raw, num_heads):
    """One-time preprocessing: head/dim permutation, scale/LN folds, bf16 cast, bias pack."""
    E = raw['wq'].shape[0]
    H = num_heads
    D = E // H
    f32, bf16 = jnp.float32, jnp.bfloat16

    # perm[d*H + h] = h*D + d : groups projection rows by head-dim index d so the kernel
    # slices contiguous aligned sublane blocks per d (no in-kernel relayouts).
    perm = jnp.arange(E).reshape(H, D).T.reshape(-1)
    scale = 1.0 / (D ** 0.5)

    g1 = raw['gamma1'].astype(f32); be1 = raw['beta1'].astype(f32)
    g2 = raw['gamma2'].astype(f32); be2 = raw['beta2'].astype(f32)

    wq_ps = raw['wq'].astype(f32)[perm, :] * scale
    wk_p  = raw['wk'].astype(f32)[perm, :]
    wv_p  = raw['wv'].astype(f32)[perm, :]
    wqkv_raw = jnp.concatenate([wq_ps, wk_p, wv_p], axis=0)      # (3E, E), f32

    b_qkv = wqkv_raw @ be1                                       # beta1 fold (f32)
    wqkv  = (wqkv_raw * g1[None, :]).astype(bf16)                # gamma1 fold

    w1_raw = raw['w1'].astype(f32)                               # (2E, E)
    b_ff1 = w1_raw @ be2 + raw['b1'].astype(f32)                 # beta2 fold
    w1 = (w1_raw * g2[None, :]).astype(bf16)                     # gamma2 fold

    # Pack all bias columns into one small lane-padded slab (single DMA).
    bias = jnp.zeros((3 * E, 3), f32)
    bias = bias.at[:, 0].set(b_qkv)
    bias = bias.at[0:E, 1].set(raw['bo'].astype(f32))
    bias = bias.at[E:3 * E, 1].set(b_ff1)
    bias = bias.at[0:E, 2].set(raw['b2'].astype(f32))

    return {
        'wqkv': wqkv,
        'wo': raw['wo'][:, perm].astype(bf16),
        'w1': w1,
        'w2': raw['w2'].astype(bf16),
        'bias': bias,
    }


def _has_bf16_vpu():
    """True on chips whose VPU/EUP are bf16-native (v6e / Trillium, v7x)."""
    try:
        kind = jax.devices()[0].device_kind.lower()
    except Exception:
        return False
    return ("v6" in kind) or ("v7" in kind)


def _resident_spec(arr):
    # Whole-array block with a constant index_map: DMA'd once, resident across grid steps.
    nd = arr.ndim
    return pl.BlockSpec(tuple(arr.shape), lambda i, _nd=nd: (0,) * _nd)


def transformer_block(value, prepared, num_heads, *, row_tile=None, attn_dtype=None):
    B, S, E = value.shape
    N = B * S
    assert E % num_heads == 0

    bf16_native = _has_bf16_vpu()
    if attn_dtype is None:
        # Review: bf16 attention elementwise math on v6e/v7x; keep f32 on v5e/v4.
        attn_dtype = jnp.bfloat16 if bf16_native else jnp.float32
    if row_tile is None:
        # Review: 256-row tiles feed the 256-wide MXU on v6e/v7x; 128 on v5e.
        row_tile = 256 if bf16_native else 128
    qh_block = math.gcd(num_heads, 8)

    x = value.reshape(N, E)
    n_tiles = pl.cdiv(N, row_tile)
    Np = n_tiles * row_tile
    if Np != N:
        x = jnp.pad(x, ((0, Np - N), (0, 0)))   # zero rows stay finite under LN(eps); sliced off

    order = ('wqkv', 'wo', 'w1', 'w2', 'bias')
    weights = [prepared[k] for k in order]

    rows_spec = pl.BlockSpec((row_tile, E), lambda i: (i, 0))

    # Advisory cost estimate for the XLA scheduler.
    D = E // num_heads
    matmul_flops = 2 * Np * E * E * 8            # 3E qkv + E wo + 2E up + 2E down
    attn_flops = Np * num_heads * num_heads * (4 * D + 6)
    bytes_accessed = 2 * Np * E * 4 + sum(int(w.size) * w.dtype.itemsize for w in weights)
    cost = pl.CostEstimate(flops=int(matmul_flops + attn_flops),
                           transcendentals=int(Np * num_heads * num_heads),
                           bytes_accessed=int(bytes_accessed))

    kernel = functools.partial(transformer_block_kernel, num_heads=num_heads,
                               qh_block=qh_block, attn_dtype=attn_dtype)
    out = pl.pallas_call(
        kernel,
        out_shape=jax.ShapeDtypeStruct((Np, E), value.dtype),
        grid=(n_tiles,),
        in_specs=[rows_spec] + [_resident_spec(w) for w in weights],
        out_specs=pl.BlockSpec((row_tile, E), lambda i: (i, 0)),
        compiler_params=pltpu.CompilerParams(
            # Independent row tiles: "parallel" lets v7x shard the grid over its 2 TCs.
            dimension_semantics=("parallel",),
            vmem_limit_bytes=32 * 1024 * 1024,
        ),
        cost_estimate=cost,
    )(x, *weights)
    # TODO(synk): for embed sizes where the resident bf16 weights approach v7x's 64 MiB
    # per-TC VMEM, tile w1/w2 over their 2E hidden axis with an extra "arbitrary" grid axis
    # instead of keeping them whole-array resident.
    return out[:N].reshape(B, S, E)


def reference_transformer_block(value, raw, num_heads, matmul_dtype=jnp.float32):
    """Pure-JAX mirror of the PyTorch forward (dropout = identity).

    matmul_dtype=bfloat16 reproduces the kernel's matmul precision policy
    (bf16 operands, f32 accumulation) for a tight kernel-correctness check."""
    B, S, E = value.shape
    D = E // num_heads

    def linear(x, w, b=None):
        y = jnp.dot(x.astype(matmul_dtype), w.T.astype(matmul_dtype),
                    preferred_element_type=jnp.float32)
        return y if b is None else y + b

    def layer_norm(x, g, b):
        mu = jnp.mean(x, axis=-1, keepdims=True)
        var = jnp.mean(jnp.square(x - mu), axis=-1, keepdims=True)
        return (x - mu) * jax.lax.rsqrt(var + EPS) * g + b

    xn = layer_norm(value, raw['gamma1'], raw['beta1'])
    q = linear(xn, raw['wq']).reshape(B, S, num_heads, D)
    k = linear(xn, raw['wk']).reshape(B, S, num_heads, D)
    v = linear(xn, raw['wv']).reshape(B, S, num_heads, D)
    scores = jnp.einsum('bnqh,bnkh->bnqk', q, k) / (D ** 0.5)
    attn = jax.nn.softmax(scores, axis=-1)
    attended = jnp.einsum('bnqk,bnkv->bnqv', attn, v).reshape(B, S, E)
    attn_out = linear(attended, raw['wo'], raw['bo'])
    x1 = value + attn_out
    x2 = layer_norm(x1, raw['gamma2'], raw['beta2'])
    h = jnp.maximum(linear(x2, raw['w1'], raw['b1']), 0.0)
    ff = linear(h, raw['w2'], raw['b2'])
    return value + ff


def init_raw_params(key, embed_size):
    E, H2 = embed_size, 2 * embed_size
    ks = jax.random.split(key, 12)
    s = 0.05
    n = lambda k, shape: jax.random.normal(k, shape, jnp.float32)
    return {
        'wq': n(ks[0], (E, E)) * s,      # (out, in); q/k/v have bias=False in the module
        'wk': n(ks[1], (E, E)) * s,
        'wv': n(ks[2], (E, E)) * s,
        'wo': n(ks[3], (E, E)) * s,
        'bo': n(ks[4], (E,)) * s,
        'gamma1': 1.0 + 0.1 * n(ks[5], (E,)),
        'beta1': 0.1 * n(ks[6], (E,)),
        'gamma2': 1.0 + 0.1 * n(ks[7], (E,)),
        'beta2': 0.1 * n(ks[8], (E,)),
        'w1': n(ks[9], (H2, E)) * s,
        'b1': n(ks[10], (H2,)) * s,
        'w2': n(ks[11], (E, H2)) * s,
        'b2': jnp.zeros((E,), jnp.float32),
    }


if __name__ == "__main__":
    E, H = 128, 32                      # embed_size / num_heads from the module
    key = jax.random.PRNGKey(0)
    k_p, k_a, k_b = jax.random.split(key, 3)

    raw = init_raw_params(k_p, E)
    prepared = prepare_params(raw, H)

    # (2, 8) exercises the row-padding path; (4, 64) a larger multi-/full-tile case.
    for (B, S), kx in (((2, 8), k_a), ((4, 64), k_b)):
        value = jax.random.normal(kx, (B, S, E), jnp.float32)

        out = jax.block_until_ready(transformer_block(value, prepared, H))
        assert out.shape == (B, S, E)
        assert bool(jnp.all(jnp.isfinite(out)))

        ref_same_prec = reference_transformer_block(value, raw, H, jnp.bfloat16)
        ref_f32 = reference_transformer_block(value, raw, H, jnp.float32)

        if not jnp.allclose(out, ref_same_prec, atol=2.5e-2, rtol=2.5e-2):
            raise AssertionError(f"mismatch vs bf16-matmul reference at B={B}, S={S}")
        if not jnp.allclose(out, ref_f32, atol=7e-2, rtol=7e-2):
            raise AssertionError(f"mismatch vs f32 module reference at B={B}, S={S}")

    print("KERNEL_OK")
</pallas_src>

<mosaic_0001>
module attributes {stable_mosaic.version = 11 : i64} {
  func.func @transformer_block_kernel(%arg0: i32, %arg1: memref<128x128xf32, #tpu.memory_space<vmem>>, %arg2: memref<384x128xbf16, #tpu.memory_space<vmem>>, %arg3: memref<128x128xbf16, #tpu.memory_space<vmem>>, %arg4: memref<256x128xbf16, #tpu.memory_space<vmem>>, %arg5: memref<128x256xbf16, #tpu.memory_space<vmem>>, %arg6: memref<384x3xf32, #tpu.memory_space<vmem>>, %arg7: memref<128x128xf32, #tpu.memory_space<vmem>>) attributes {dimension_semantics = [#tpu.dimension_semantics<parallel>], iteration_bounds = array<i64: 1>, scalar_prefetch = 0 : i64, scratch_operands = 0 : i64, tpu.core_type = #tpu.core_type<tc>, window_params = [{transform_indices = @transform_0, window_bounds = array<i64: 128, 128>}, {pipeline_mode = #tpu.pipeline_mode<synchronous>, transform_indices = @transform_1, window_bounds = array<i64: 384, 128>}, {pipeline_mode = #tpu.pipeline_mode<synchronous>, transform_indices = @transform_2, window_bounds = array<i64: 128, 128>}, {pipeline_mode = #tpu.pipeline_mode<synchronous>, transform_indices = @transform_3, window_bounds = array<i64: 256, 128>}, {pipeline_mode = #tpu.pipeline_mode<synchronous>, transform_indices = @transform_4, window_bounds = array<i64: 128, 256>}, {pipeline_mode = #tpu.pipeline_mode<synchronous>, transform_indices = @transform_5, window_bounds = array<i64: 384, 3>}, {transform_indices = @transform_6, window_bounds = array<i64: 128, 128>}]} {
    %c0 = arith.constant 0 : index
    %c0_0 = arith.constant 0 : index
    %0 = vector.load %arg1[%c0, %c0_0] : memref<128x128xf32, #tpu.memory_space<vmem>>, vector<128x128xf32>
    %1 = tpu.transpose %0, [1, 0] : vector<128x128xf32> -> vector<128x128xf32>
    %c0_1 = arith.constant 0 : index
    %c0_2 = arith.constant 0 : index
    %2 = vector.load %arg6[%c0_1, %c0_2] : memref<384x3xf32, #tpu.memory_space<vmem>>, vector<384x1xf32>
    %c0_3 = arith.constant 0 : index
    %c1 = arith.constant 1 : index
    %3 = vector.load %arg6[%c0_3, %c1] : memref<384x3xf32, #tpu.memory_space<vmem>>, vector<128x1xf32>
    %c128 = arith.constant 128 : index
    %c1_4 = arith.constant 1 : index
    %4 = vector.load %arg6[%c128, %c1_4] : memref<384x3xf32, #tpu.memory_space<vmem>>, vector<256x1xf32>
    %c0_5 = arith.constant 0 : index
    %c2 = arith.constant 2 : index
    %5 = vector.load %arg6[%c0_5, %c2] : memref<384x3xf32, #tpu.memory_space<vmem>>, vector<128x1xf32>
    %cst = arith.constant dense<0.000000e+00> : vector<128xf32>
    %6 = vector.multi_reduction <add>, %1, %cst [0] : vector<128x128xf32> to vector<128xf32>
    %7 = vector.shape_cast %6 : vector<128xf32> to vector<1x128xf32>
    %cst_6 = arith.constant 1.280000e+02 : f32
    %8 = vector.broadcast %cst_6 : f32 to vector<1x128xf32>
    %9 = arith.divf %7, %8 : vector<1x128xf32>
    %10 = arith.mulf %1, %1 : vector<128x128xf32>
    %cst_7 = arith.constant dense<0.000000e+00> : vector<128xf32>
    %11 = vector.multi_reduction <add>, %10, %cst_7 [0] : vector<128x128xf32> to vector<128xf32>
    %12 = vector.shape_cast %11 : vector<128xf32> to vector<1x128xf32>
    %cst_8 = arith.constant 1.280000e+02 : f32
    %13 = vector.broadcast %cst_8 : f32 to vector<1x128xf32>
    %14 = arith.divf %12, %13 : vector<1x128xf32>
    %15 = vector.broadcast %9 : vector<1x128xf32> to vector<128x128xf32>
    %16 = arith.subf %1, %15 : vector<128x128xf32>
    %17 = arith.mulf %9, %9 : vector<1x128xf32>
    %18 = arith.subf %14, %17 : vector<1x128xf32>
    %cst_9 = arith.constant 9.99999974E-6 : f32
    %19 = vector.broadcast %cst_9 : f32 to vector<1x128xf32>
    %20 = arith.addf %18, %19 : vector<1x128xf32>
    %21 = math.rsqrt %20 : vector<1x128xf32>
    %22 = vector.broadcast %21 : vector<1x128xf32> to vector<128x128xf32>
    %23 = arith.mulf %16, %22 : vector<128x128xf32>
    %c0_10 = arith.constant 0 : index
    %c0_11 = arith.constant 0 : index
    %24 = vector.load %arg2[%c0_10, %c0_11] : memref<384x128xbf16, #tpu.memory_space<vmem>>, vector<384x128xbf16>
    %25 = arith.truncf %23 : vector<128x128xf32> to vector<128x128xbf16>
    %cst_12 = arith.constant dense<0.000000e+00> : vector<384x128xf32>
    %26 = tpu.matmul %24, %25, %cst_12 {dimension_numbers = #tpu.dot_dimension_numbers<[1], [0], [0], [1], [0, 0, 1, 1], [], []>} : vector<384x128xbf16>, vector<128x128xbf16>, vector<384x128xf32> -> vector<384x128xf32>
    %27 = vector.broadcast %2 : vector<384x1xf32> to vector<384x128xf32>
    %28 = arith.addf %26, %27 : vector<384x128xf32>
    %29 = vector.extract_strided_slice %28 {offsets = [0, 0], sizes = [128, 128], strides = [1, 1]} : vector<384x128xf32> to vector<128x128xf32>
    %30 = vector.extract_strided_slice %28 {offsets = [128, 0], sizes = [128, 128], strides = [1, 1]} : vector<384x128xf32> to vector<128x128xf32>
    %31 = vector.extract_strided_slice %28 {offsets = [256, 0], sizes = [128, 128], strides = [1, 1]} : vector<384x128xf32> to vector<128x128xf32>
    %32 = vector.extract_strided_slice %30 {offsets = [0, 0], sizes = [32, 128], strides = [1, 1]} : vector<128x128xf32> to vector<32x128xf32>
    %33 = vector.extract_strided_slice %30 {offsets = [32, 0], sizes = [32, 128], strides = [1, 1]} : vector<128x128xf32> to vector<32x128xf32>
    %34 = vector.extract_strided_slice %30 {offsets = [64, 0], sizes = [32, 128], strides = [1, 1]} : vector<128x128xf32> to vector<32x128xf32>
    %35 = vector.extract_strided_slice %30 {offsets = [96, 0], sizes = [32, 128], strides = [1, 1]} : vector<128x128xf32> to vector<32x128xf32>
    %36 = vector.extract_strided_slice %31 {offsets = [0, 0], sizes = [32, 128], strides = [1, 1]} : vector<128x128xf32> to vector<32x128xf32>
    %37 = vector.extract_strided_slice %31 {offsets = [32, 0], sizes = [32, 128], strides = [1, 1]} : vector<128x128xf32> to vector<32x128xf32>
    %38 = vector.extract_strided_slice %31 {offsets = [64, 0], sizes = [32, 128], strides = [1, 1]} : vector<128x128xf32> to vector<32x128xf32>
    %39 = vector.extract_strided_slice %31 {offsets = [96, 0], sizes = [32, 128], strides = [1, 1]} : vector<128x128xf32> to vector<32x128xf32>
    %40 = vector.extract_strided_slice %29 {offsets = [0, 0], sizes = [8, 128], strides = [1, 1]} : vector<128x128xf32> to vector<8x128xf32>
    %41 = vector.shape_cast %32 : vector<32x128xf32> to vector<32x1x128xf32>
    %42 = vector.shape_cast %40 : vector<8x128xf32> to vector<1x8x128xf32>
    %43 = vector.broadcast %41 : vector<32x1x128xf32> to vector<32x8x128xf32>
    %44 = vector.broadcast %42 : vector<1x8x128xf32> to vector<32x8x128xf32>
    %45 = arith.mulf %43, %44 : vector<32x8x128xf32>
    %46 = vector.extract_strided_slice %29 {offsets = [32, 0], sizes = [8, 128], strides = [1, 1]} : vector<128x128xf32> to vector<8x128xf32>
    %47 = vector.shape_cast %33 : vector<32x128xf32> to vector<32x1x128xf32>
    %48 = vector.shape_cast %46 : vector<8x128xf32> to vector<1x8x128xf32>
    %49 = vector.broadcast %47 : vector<32x1x128xf32> to vector<32x8x128xf32>
    %50 = vector.broadcast %48 : vector<1x8x128xf32> to vector<32x8x128xf32>
    %51 = arith.mulf %49, %50 : vector<32x8x128xf32>
    %52 = arith.addf %45, %51 : vector<32x8x128xf32>
    %53 = vector.extract_strided_slice %29 {offsets = [64, 0], sizes = [8, 128], strides = [1, 1]} : vector<128x128xf32> to vector<8x128xf32>
    %54 = vector.shape_cast %34 : vector<32x128xf32> to vector<32x1x128xf32>
    %55 = vector.shape_cast %53 : vector<8x128xf32> to vector<1x8x128xf32>
    %56 = vector.broadcast %54 : vector<32x1x128xf32> to vector<32x8x128xf32>
    %57 = vector.broadcast %55 : vector<1x8x128xf32> to vector<32x8x128xf32>
    %58 = arith.mulf %56, %57 : vector<32x8x128xf32>
    %59 = arith.addf %52, %58 : vector<32x8x128xf32>
    %60 = vector.extract_strided_slice %29 {offsets = [96, 0], sizes = [8, 128], strides = [1, 1]} : vector<128x128xf32> to vector<8x128xf32>
    %61 = vector.shape_cast %35 : vector<32x128xf32> to vector<32x1x128xf32>
    %62 = vector.shape_cast %60 : vector<8x128xf32> to vector<1x8x128xf32>
    %63 = vector.broadcast %61 : vector<32x1x128xf32> to vector<32x8x128xf32>
    %64 = vector.broadcast %62 : vector<1x8x128xf32> to vector<32x8x128xf32>
    %65 = arith.mulf %63, %64 : vector<32x8x128xf32>
    %66 = arith.addf %59, %65 : vector<32x8x128xf32>
    %cst_13 = arith.constant dense<0xFF800000> : vector<8x128xf32>
    %67 = vector.multi_reduction <maximumf>, %66, %cst_13 [0] : vector<32x8x128xf32> to vector<8x128xf32>
    %68 = vector.shape_cast %67 : vector<8x128xf32> to vector<1x8x128xf32>
    %69 = vector.broadcast %68 : vector<1x8x128xf32> to vector<32x8x128xf32>
    %70 = arith.subf %66, %69 : vector<32x8x128xf32>
    %71 = math.exp %70 : vector<32x8x128xf32>
    %cst_14 = arith.constant dense<0.000000e+00> : vector<8x128xf32>
    %72 = vector.multi_reduction <add>, %71, %cst_14 [0] : vector<32x8x128xf32> to vector<8x128xf32>
    %73 = vector.shape_cast %72 : vector<8x128xf32> to vector<1x8x128xf32>
    %74 = tpu.reciprocal %73 {approx = true} : vector<1x8x128xf32> -> vector<1x8x128xf32>
    %75 = vector.shape_cast %74 : vector<1x8x128xf32> to vector<8x128xf32>
    %76 = vector.shape_cast %36 : vector<32x128xf32> to vector<32x1x128xf32>
    %77 = vector.broadcast %76 : vector<32x1x128xf32> to vector<32x8x128xf32>
    %78 = arith.mulf %71, %77 : vector<32x8x128xf32>
    %cst_15 = arith.constant dense<0.000000e+00> : vector<8x128xf32>
    %79 = vector.multi_reduction <add>, %78, %cst_15 [0] : vector<32x8x128xf32> to vector<8x128xf32>
    %80 = arith.mulf %79, %75 : vector<8x128xf32>
    %81 = vector.shape_cast %37 : vector<32x128xf32> to vector<32x1x128xf32>
    %82 = vector.broadcast %81 : vector<32x1x128xf32> to vector<32x8x128xf32>
    %83 = arith.mulf %71, %82 : vector<32x8x128xf32>
    %cst_16 = arith.constant dense<0.000000e+00> : vector<8x128xf32>
    %84 = vector.multi_reduction <add>, %83, %cst_16 [0] : vector<32x8x128xf32> to vector<8x128xf32>
    %85 = arith.mulf %84, %75 : vector<8x128xf32>
    %86 = vector.shape_cast %38 : vector<32x128xf32> to vector<32x1x128xf32>
    %87 = vector.broadcast %86 : vector<32x1x128xf32> to vector<32x8x128xf32>
    %88 = arith.mulf %71, %87 : vector<32x8x128xf32>
    %cst_17 = arith.constant dense<0.000000e+00> : vector<8x128xf32>
    %89 = vector.multi_reduction <add>, %88, %cst_17 [0] : vector<32x8x128xf32> to vector<8x128xf32>
    %90 = arith.mulf %89, %75 : vector<8x128xf32>
    %91 = vector.shape_cast %39 : vector<32x128xf32> to vector<32x1x128xf32>
    %92 = vector.broadcast %91 : vector<32x1x128xf32> to vector<32x8x128xf32>
    %93 = arith.mulf %71, %92 : vector<32x8x128xf32>
    %cst_18 = arith.constant dense<0.000000e+00> : vector<8x128xf32>
    %94 = vector.multi_reduction <add>, %93, %cst_18 [0] : vector<32x8x128xf32> to vector<8x128xf32>
    %95 = arith.mulf %94, %75 : vector<8x128xf32>
    %96 = vector.extract_strided_slice %29 {offsets = [8, 0], sizes = [8, 128], strides = [1, 1]} : vector<128x128xf32> to vector<8x128xf32>
    %97 = vector.shape_cast %32 : vector<32x128xf32> to vector<32x1x128xf32>
    %98 = vector.shape_cast %96 : vector<8x128xf32> to vector<1x8x128xf32>
    %99 = vector.broadcast %97 : vector<32x1x128xf32> to vector<32x8x128xf32>
    %100 = vector.broadcast %98 : vector<1x8x128xf32> to vector<32x8x128xf32>
    %101 = arith.mulf %99, %100 : vector<32x8x128xf32>
    %102 = vector.extract_strided_slice %29 {offsets = [40, 0], sizes = [8, 128], strides = [1, 1]} : vector<128x128xf32> to vector<8x128xf32>
    %103 = vector.shape_cast %33 : vector<32x128xf32> to vector<32x1x128xf32>
    %104 = vector.shape_cast %102 : vector<8x128xf32> to vector<1x8x128xf32>
    %105 = vector.broadcast %103 : vector<32x1x128xf32> to vector<32x8x128xf32>
    %106 = vector.broadcast %104 : vector<1x8x128xf32> to vector<32x8x128xf32>
    %107 = arith.mulf %105, %106 : vector<32x8x128xf32>
    %108 = arith.addf %101, %107 : vector<32x8x128xf32>
    %109 = vector.extract_strided_slice %29 {offsets = [72, 0], sizes = [8, 128], strides = [1, 1]} : vector<128x128xf32> to vector<8x128xf32>
    %110 = vector.shape_cast %34 : vector<32x128xf32> to vector<32x1x128xf32>
    %111 = vector.shape_cast %109 : vector<8x128xf32> to vector<1x8x128xf32>
    %112 = vector.broadcast %110 : vector<32x1x128xf32> to vector<32x8x128xf32>
    %113 = vector.broadcast %111 : vector<1x8x128xf32> to vector<32x8x128xf32>
    %114 = arith.mulf %112, %113 : vector<32x8x128xf32>
    %115 = arith.addf %108, %114 : vector<32x8x128xf32>
    %116 = vector.extract_strided_slice %29 {offsets = [104, 0], sizes = [8, 128], strides = [1, 1]} : vector<128x128xf32> to vector<8x128xf32>
    %117 = vector.shape_cast %35 : vector<32x128xf32> to vector<32x1x128xf32>
    %118 = vector.shape_cast %116 : vector<8x128xf32> to vector<1x8x128xf32>
    %119 = vector.broadcast %117 : vector<32x1x128xf32> to vector<32x8x128xf32>
    %120 = vector.broadcast %118 : vector<1x8x128xf32> to vector<32x8x128xf32>
    %121 = arith.mulf %119, %120 : vector<32x8x128xf32>
    %122 = arith.addf %115, %121 : vector<32x8x128xf32>
    %cst_19 = arith.constant dense<0xFF800000> : vector<8x128xf32>
    %123 = vector.multi_reduction <maximumf>, %122, %cst_19 [0] : vector<32x8x128xf32> to vector<8x128xf32>
    %124 = vector.shape_cast %123 : vector<8x128xf32> to vector<1x8x128xf32>
    %125 = vector.broadcast %124 : vector<1x8x128xf32> to vector<32x8x128xf32>
    %126 = arith.subf %122, %125 : vector<32x8x128xf32>
    %127 = math.exp %126 : vector<32x8x128xf32>
    %cst_20 = arith.constant dense<0.000000e+00> : vector<8x128xf32>
    %128 = vector.multi_reduction <add>, %127, %cst_20 [0] : vector<32x8x128xf32> to vector<8x128xf32>
    %129 = vector.shape_cast %128 : vector<8x128xf32> to vector<1x8x128xf32>
    %130 = tpu.reciprocal %129 {approx = true} : vector<1x8x128xf32> -> vector<1x8x128xf32>
    %131 = vector.shape_cast %130 : vector<1x8x128xf32> to vector<8x128xf32>
    %132 = vector.shape_cast %36 : vector<32x128xf32> to vector<32x1x128xf32>
    %133 = vector.broadcast %132 : vector<32x1x128xf32> to vector<32x8x128xf32>
    %134 = arith.mulf %127, %133 : vector<32x8x128xf32>
    %cst_21 = arith.constant dense<0.000000e+00> : vector<8x128xf32>
    %135 = vector.multi_reduction <add>, %134, %cst_21 [0] : vector<32x8x128xf32> to vector<8x128xf32>
    %136 = arith.mulf %135, %131 : vector<8x128xf32>
    %137 = vector.shape_cast %37 : vector<32x128xf32> to vector<32x1x128xf32>
    %138 = vector.broadcast %137 : vector<32x1x128xf32> to vector<32x8x128xf32>
    %139 = arith.mulf %127, %138 : vector<32x8x128xf32>
    %cst_22 = arith.constant dense<0.000000e+00> : vector<8x128xf32>
    %140 = vector.multi_reduction <add>, %139, %cst_22 [0] : vector<32x8x128xf32> to vector<8x128xf32>
    %141 = arith.mulf %140, %131 : vector<8x128xf32>
    %142 = vector.shape_cast %38 : vector<32x128xf32> to vector<32x1x128xf32>
    %143 = vector.broadcast %142 : vector<32x1x128xf32> to vector<32x8x128xf32>
    %144 = arith.mulf %127, %143 : vector<32x8x128xf32>
    %cst_23 = arith.constant dense<0.000000e+00> : vector<8x128xf32>
    %145 = vector.multi_reduction <add>, %144, %cst_23 [0] : vector<32x8x128xf32> to vector<8x128xf32>
    %146 = arith.mulf %145, %131 : vector<8x128xf32>
    %147 = vector.shape_cast %39 : vector<32x128xf32> to vector<32x1x128xf32>
    %148 = vector.broadcast %147 : vector<32x1x128xf32> to vector<32x8x128xf32>
    %149 = arith.mulf %127, %148 : vector<32x8x128xf32>
    %cst_24 = arith.constant dense<0.000000e+00> : vector<8x128xf32>
    %150 = vector.multi_reduction <add>, %149, %cst_24 [0] : vector<32x8x128xf32> to vector<8x128xf32>
    %151 = arith.mulf %150, %131 : vector<8x128xf32>
    %152 = vector.extract_strided_slice %29 {offsets = [16, 0], sizes = [8, 128], strides = [1, 1]} : vector<128x128xf32> to vector<8x128xf32>
    %153 = vector.shape_cast %32 : vector<32x128xf32> to vector<32x1x128xf32>
    %154 = vector.shape_cast %152 : vector<8x128xf32> to vector<1x8x128xf32>
    %155 = vector.broadcast %153 : vector<32x1x128xf32> to vector<32x8x128xf32>
    %156 = vector.broadcast %154 : vector<1x8x128xf32> to vector<32x8x128xf32>
    %157 = arith.mulf %155, %156 : vector<32x8x128xf32>
    %158 = vector.extract_strided_slice %29 {offsets = [48, 0], sizes = [8, 128], strides = [1, 1]} : vector<128x128xf32> to vector<8x128xf32>
    %159 = vector.shape_cast %33 : vector<32x128xf32> to vector<32x1x128xf32>
    %160 = vector.shape_cast %158 : vector<8x128xf32> to vector<1x8x128xf32>
    %161 = vector.broadcast %159 : vector<32x1x128xf32> to vector<32x8x128xf32>
    %162 = vector.broadcast %160 : vector<1x8x128xf32> to vector<32x8x128xf32>
    %163 = arith.mulf %161, %162 : vector<32x8x128xf32>
    %164 = arith.addf %157, %163 : vector<32x8x128xf32>
    %165 = vector.extract_strided_slice %29 {offsets = [80, 0], sizes = [8, 128], strides = [1, 1]} : vector<128x128xf32> to vector<8x128xf32>
    %166 = vector.shape_cast %34 : vector<32x128xf32> to vector<32x1x128xf32>
    %167 = vector.shape_cast %165 : vector<8x128xf32> to vector<1x8x128xf32>
    %168 = vector.broadcast %166 : vector<32x1x128xf32> to vector<32x8x128xf32>
    %169 = vector.broadcast %167 : vector<1x8x128xf32> to vector<32x8x128xf32>
    %170 = arith.mulf %168, %169 : vector<32x8x128xf32>
    %171 = arith.addf %164, %170 : vector<32x8x128xf32>
    %172 = vector.extract_strided_slice %29 {offsets = [112, 0], sizes = [8, 128], strides = [1, 1]} : vector<128x128xf32> to vector<8x128xf32>
    %173 = vector.shape_cast %35 : vector<32x128xf32> to vector<32x1x128xf32>
    %174 = vector.shape_cast %172 : vector<8x128xf32> to vector<1x8x128xf32>
    %175 = vector.broadcast %173 : vector<32x1x128xf32> to vector<32x8x128xf32>
    %176 = vector.broadcast %174 : vector<1x8x128xf32> to vector<32x8x128xf32>
    %177 = arith.mulf %175, %176 : vector<32x8x128xf32>
    %178 = arith.addf %171, %177 : vector<32x8x128xf32>
    %cst_25 = arith.constant dense<0xFF800000> : vector<8x128xf32>
    %179 = vector.multi_reduction <maximumf>, %178, %cst_25 [0] : vector<32x8x128xf32> to vector<8x128xf32>
    %180 = vector.shape_cast %179 : vector<8x128xf32> to vector<1x8x128xf32>
    %181 = vector.broadcast %180 : vector<1x8x128xf32> to vector<32x8x128xf32>
    %182 = arith.subf %178, %181 : vector<32x8x128xf32>
    %183 = math.exp %182 : vector<32x8x128xf32>
    %cst_26 = arith.constant dense<0.000000e+00> : vector<8x128xf32>
    %184 = vector.multi_reduction <add>, %183, %cst_26 [0] : vector<32x8x128xf32> to vector<8x128xf32>
    %185 = vector.shape_cast %184 : vector<8x128xf32> to vector<1x8x128xf32>
    %186 = tpu.reciprocal %185 {approx = true} : vector<1x8x128xf32> -> vector<1x8x128xf32>
    %187 = vector.shape_cast %186 : vector<1x8x128xf32> to vector<8x128xf32>
    %188 = vector.shape_cast %36 : vector<32x128xf32> to vector<32x1x128xf32>
    %189 = vector.broadcast %188 : vector<32x1x128xf32> to vector<32x8x128xf32>
    %190 = arith.mulf %183, %189 : vector<32x8x128xf32>
    %cst_27 = arith.constant dense<0.000000e+00> : vector<8x128xf32>
    %191 = vector.multi_reduction <add>, %190, %cst_27 [0] : vector<32x8x128xf32> to vector<8x128xf32>
    %192 = arith.mulf %191, %187 : vector<8x128xf32>
    %193 = vector.shape_cast %37 : vector<32x128xf32> to vector<32x1x128xf32>
    %194 = vector.broadcast %193 : vector<32x1x128xf32> to vector<32x8x128xf32>
    %195 = arith.mulf %183, %194 : vector<32x8x128xf32>
    %cst_28 = arith.constant dense<0.000000e+00> : vector<8x128xf32>
    %196 = vector.multi_reduction <add>, %195, %cst_28 [0] : vector<32x8x128xf32> to vector<8x128xf32>
    %197 = arith.mulf %196, %187 : vector<8x128xf32>
    %198 = vector.shape_cast %38 : vector<32x128xf32> to vector<32x1x128xf32>
    %199 = vector.broadcast %198 : vector<32x1x128xf32> to vector<32x8x128xf32>
    %200 = arith.mulf %183, %199 : vector<32x8x128xf32>
    %cst_29 = arith.constant dense<0.000000e+00> : vector<8x128xf32>
    %201 = vector.multi_reduction <add>, %200, %cst_29 [0] : vector<32x8x128xf32> to vector<8x128xf32>
    %202 = arith.mulf %201, %187 : vector<8x128xf32>
    %203 = vector.shape_cast %39 : vector<32x128xf32> to vector<32x1x128xf32>
    %204 = vector.broadcast %203 : vector<32x1x128xf32> to vector<32x8x128xf32>
    %205 = arith.mulf %183, %204 : vector<32x8x128xf32>
    %cst_30 = arith.constant dense<0.000000e+00> : vector<8x128xf32>
    %206 = vector.multi_reduction <add>, %205, %cst_30 [0] : vector<32x8x128xf32> to vector<8x128xf32>
    %207 = arith.mulf %206, %187 : vector<8x128xf32>
    %208 = vector.extract_strided_slice %29 {offsets = [24, 0], sizes = [8, 128], strides = [1, 1]} : vector<128x128xf32> to vector<8x128xf32>
    %209 = vector.shape_cast %32 : vector<32x128xf32> to vector<32x1x128xf32>
    %210 = vector.shape_cast %208 : vector<8x128xf32> to vector<1x8x128xf32>
    %211 = vector.broadcast %209 : vector<32x1x128xf32> to vector<32x8x128xf32>
    %212 = vector.broadcast %210 : vector<1x8x128xf32> to vector<32x8x128xf32>
    %213 = arith.mulf %211, %212 : vector<32x8x128xf32>
    %214 = vector.extract_strided_slice %29 {offsets = [56, 0], sizes = [8, 128], strides = [1, 1]} : vector<128x128xf32> to vector<8x128xf32>
    %215 = vector.shape_cast %33 : vector<32x128xf32> to vector<32x1x128xf32>
    %216 = vector.shape_cast %214 : vector<8x128xf32> to vector<1x8x128xf32>
    %217 = vector.broadcast %215 : vector<32x1x128xf32> to vector<32x8x128xf32>
    %218 = vector.broadcast %216 : vector<1x8x128xf32> to vector<32x8x128xf32>
    %219 = arith.mulf %217, %218 : vector<32x8x128xf32>
    %220 = arith.addf %213, %219 : vector<32x8x128xf32>
    %221 = vector.extract_strided_slice %29 {offsets = [88, 0], sizes = [8, 128], strides = [1, 1]} : vector<128x128xf32> to vector<8x128xf32>
    %222 = vector.shape_cast %34 : vector<32x128xf32> to vector<32x1x128xf32>
    %223 = vector.shape_cast %221 : vector<8x128xf32> to vector<1x8x128xf32>
    %224 = vector.broadcast %222 : vector<32x1x128xf32> to vector<32x8x128xf32>
    %225 = vector.broadcast %223 : vector<1x8x128xf32> to vector<32x8x128xf32>
    %226 = arith.mulf %224, %225 : vector<32x8x128xf32>
    %227 = arith.addf %220, %226 : vector<32x8x128xf32>
    %228 = vector.extract_strided_slice %29 {offsets = [120, 0], sizes = [8, 128], strides = [1, 1]} : vector<128x128xf32> to vector<8x128xf32>
    %229 = vector.shape_cast %35 : vector<32x128xf32> to vector<32x1x128xf32>
    %230 = vector.shape_cast %228 : vector<8x128xf32> to vector<1x8x128xf32>
    %231 = vector.broadcast %229 : vector<32x1x128xf32> to vector<32x8x128xf32>
    %232 = vector.broadcast %230 : vector<1x8x128xf32> to vector<32x8x128xf32>
    %233 = arith.mulf %231, %232 : vector<32x8x128xf32>
    %234 = arith.addf %227, %233 : vector<32x8x128xf32>
    %cst_31 = arith.constant dense<0xFF800000> : vector<8x128xf32>
    %235 = vector.multi_reduction <maximumf>, %234, %cst_31 [0] : vector<32x8x128xf32> to vector<8x128xf32>
    %236 = vector.shape_cast %235 : vector<8x128xf32> to vector<1x8x128xf32>
    %237 = vector.broadcast %236 : vector<1x8x128xf32> to vector<32x8x128xf32>
    %238 = arith.subf %234, %237 : vector<32x8x128xf32>
    %239 = math.exp %238 : vector<32x8x128xf32>
    %cst_32 = arith.constant dense<0.000000e+00> : vector<8x128xf32>
    %240 = vector.multi_reduction <add>, %239, %cst_32 [0] : vector<32x8x128xf32> to vector<8x128xf32>
    %241 = vector.shape_cast %240 : vector<8x128xf32> to vector<1x8x128xf32>
    %242 = tpu.reciprocal %241 {approx = true} : vector<1x8x128xf32> -> vector<1x8x128xf32>
    %243 = vector.shape_cast %242 : vector<1x8x128xf32> to vector<8x128xf32>
    %244 = vector.shape_cast %36 : vector<32x128xf32> to vector<32x1x128xf32>
    %245 = vector.broadcast %244 : vector<32x1x128xf32> to vector<32x8x128xf32>
    %246 = arith.mulf %239, %245 : vector<32x8x128xf32>
    %cst_33 = arith.constant dense<0.000000e+00> : vector<8x128xf32>
    %247 = vector.multi_reduction <add>, %246, %cst_33 [0] : vector<32x8x128xf32> to vector<8x128xf32>
    %248 = arith.mulf %247, %243 : vector<8x128xf32>
    %249 = vector.shape_cast %37 : vector<32x128xf32> to vector<32x1x128xf32>
    %250 = vector.broadcast %249 : vector<32x1x128xf32> to vector<32x8x128xf32>
    %251 = arith.mulf %239, %250 : vector<32x8x128xf32>
    %cst_34 = arith.constant dense<0.000000e+00> : vector<8x128xf32>
    %252 = vector.multi_reduction <add>, %251, %cst_34 [0] : vector<32x8x128xf32> to vector<8x128xf32>
    %253 = arith.mulf %252, %243 : vector<8x128xf32>
    %254 = vector.shape_cast %38 : vector<32x128xf32> to vector<32x1x128xf32>
    %255 = vector.broadcast %254 : vector<32x1x128xf32> to vector<32x8x128xf32>
    %256 = arith.mulf %239, %255 : vector<32x8x128xf32>
    %cst_35 = arith.constant dense<0.000000e+00> : vector<8x128xf32>
    %257 = vector.multi_reduction <add>, %256, %cst_35 [0] : vector<32x8x128xf32> to vector<8x128xf32>
    %258 = arith.mulf %257, %243 : vector<8x128xf32>
    %259 = vector.shape_cast %39 : vector<32x128xf32> to vector<32x1x128xf32>
    %260 = vector.broadcast %259 : vector<32x1x128xf32> to vector<32x8x128xf32>
    %261 = arith.mulf %239, %260 : vector<32x8x128xf32>
    %cst_36 = arith.constant dense<0.000000e+00> : vector<8x128xf32>
    %262 = vector.multi_reduction <add>, %261, %cst_36 [0] : vector<32x8x128xf32> to vector<8x128xf32>
    %263 = arith.mulf %262, %243 : vector<8x128xf32>
    %264 = tpu.concatenate %80, %136, %192, %248 in 0 : vector<8x128xf32>, vector<8x128xf32>, vector<8x128xf32>, vector<8x128xf32> -> vector<32x128xf32>
    %265 = tpu.concatenate %85, %141, %197, %253 in 0 : vector<8x128xf32>, vector<8x128xf32>, vector<8x128xf32>, vector<8x128xf32> -> vector<32x128xf32>
    %266 = tpu.concatenate %90, %146, %202, %258 in 0 : vector<8x128xf32>, vector<8x128xf32>, vector<8x128xf32>, vector<8x128xf32> -> vector<32x128xf32>
    %267 = tpu.concatenate %95, %151, %207, %263 in 0 : vector<8x128xf32>, vector<8x128xf32>, vector<8x128xf32>, vector<8x128xf32> -> vector<32x128xf32>
    %268 = tpu.concatenate %264, %265, %266, %267 in 0 : vector<32x128xf32>, vector<32x128xf32>, vector<32x128xf32>, vector<32x128xf32> -> vector<128x128xf32>
    %c0_37 = arith.constant 0 : index
    %c0_38 = arith.constant 0 : index
    %269 = vector.load %arg3[%c0_37, %c0_38] : memref<128x128xbf16, #tpu.memory_space<vmem>>, vector<128x128xbf16>
    %270 = arith.truncf %268 : vector<128x128xf32> to vector<128x128xbf16>
    %cst_39 = arith.constant dense<0.000000e+00> : vector<128x128xf32>
    %271 = tpu.matmul %269, %270, %cst_39 {dimension_numbers = #tpu.dot_dimension_numbers<[1], [0], [0], [1], [0, 0, 1, 1], [], []>} : vector<128x128xbf16>, vector<128x128xbf16>, vector<128x128xf32> -> vector<128x128xf32>
    %272 = vector.broadcast %3 : vector<128x1xf32> to vector<128x128xf32>
    %273 = arith.addf %271, %272 : vector<128x128xf32>
    %274 = arith.addf %1, %273 : vector<128x128xf32>
    %cst_40 = arith.constant dense<0.000000e+00> : vector<128xf32>
    %275 = vector.multi_reduction <add>, %274, %cst_40 [0] : vector<128x128xf32> to vector<128xf32>
    %276 = vector.shape_cast %275 : vector<128xf32> to vector<1x128xf32>
    %cst_41 = arith.constant 1.280000e+02 : f32
    %277 = vector.broadcast %cst_41 : f32 to vector<1x128xf32>
    %278 = arith.divf %276, %277 : vector<1x128xf32>
    %279 = arith.mulf %274, %274 : vector<128x128xf32>
    %cst_42 = arith.constant dense<0.000000e+00> : vector<128xf32>
    %280 = vector.multi_reduction <add>, %279, %cst_42 [0] : vector<128x128xf32> to vector<128xf32>
    %281 = vector.shape_cast %280 : vector<128xf32> to vector<1x128xf32>
    %cst_43 = arith.constant 1.280000e+02 : f32
    %282 = vector.broadcast %cst_43 : f32 to vector<1x128xf32>
    %283 = arith.divf %281, %282 : vector<1x128xf32>
    %284 = vector.broadcast %278 : vector<1x128xf32> to vector<128x128xf32>
    %285 = arith.subf %274, %284 : vector<128x128xf32>
    %286 = arith.mulf %278, %278 : vector<1x128xf32>
    %287 = arith.subf %283, %286 : vector<1x128xf32>
    %cst_44 = arith.constant 9.99999974E-6 : f32
    %288 = vector.broadcast %cst_44 : f32 to vector<1x128xf32>
    %289 = arith.addf %287, %288 : vector<1x128xf32>
    %290 = math.rsqrt %289 : vector<1x128xf32>
    %291 = vector.broadcast %290 : vector<1x128xf32> to vector<128x128xf32>
    %292 = arith.mulf %285, %291 : vector<128x128xf32>
    %c0_45 = arith.constant 0 : index
    %c0_46 = arith.constant 0 : index
    %293 = vector.load %arg4[%c0_45, %c0_46] : memref<256x128xbf16, #tpu.memory_space<vmem>>, vector<256x128xbf16>
    %294 = arith.truncf %292 : vector<128x128xf32> to vector<128x128xbf16>
    %cst_47 = arith.constant dense<0.000000e+00> : vector<256x128xf32>
    %295 = tpu.matmul %293, %294, %cst_47 {dimension_numbers = #tpu.dot_dimension_numbers<[1], [0], [0], [1], [0, 0, 1, 1], [], []>} : vector<256x128xbf16>, vector<128x128xbf16>, vector<256x128xf32> -> vector<256x128xf32>
    %296 = vector.broadcast %4 : vector<256x1xf32> to vector<256x128xf32>
    %297 = arith.addf %295, %296 : vector<256x128xf32>
    %cst_48 = arith.constant 0.000000e+00 : f32
    %298 = vector.broadcast %cst_48 : f32 to vector<256x128xf32>
    %299 = arith.maximumf %297, %298 : vector<256x128xf32>
    %c0_49 = arith.constant 0 : index
    %c0_50 = arith.constant 0 : index
    %300 = vector.load %arg5[%c0_49, %c0_50] : memref<128x256xbf16, #tpu.memory_space<vmem>>, vector<128x256xbf16>
    %301 = arith.truncf %299 : vector<256x128xf32> to vector<256x128xbf16>
    %cst_51 = arith.constant dense<0.000000e+00> : vector<128x128xf32>
    %302 = tpu.matmul %300, %301, %cst_51 {dimension_numbers = #tpu.dot_dimension_numbers<[1], [0], [0], [1], [0, 0, 1, 1], [], []>} : vector<128x256xbf16>, vector<256x128xbf16>, vector<128x128xf32> -> vector<128x128xf32>
    %303 = vector.broadcast %5 : vector<128x1xf32> to vector<128x128xf32>
    %304 = arith.addf %302, %303 : vector<128x128xf32>
    %305 = arith.addf %1, %304 : vector<128x128xf32>
    %306 = tpu.transpose %305, [1, 0] : vector<128x128xf32> -> vector<128x128xf32>
    %c0_52 = arith.constant 0 : index
    %c0_53 = arith.constant 0 : index
    %307 = vector.load %arg7[%c0_52, %c0_53] : memref<128x128xf32, #tpu.memory_space<vmem>>, vector<128x128xf32>
    tpu.vector_store %arg7[%c0_52, %c0_53], %306 {strides = array<i32>} : memref<128x128xf32, #tpu.memory_space<vmem>>, vector<128x128xf32>,
    return
  }
  func.func @transform_0(%arg0: i32) -> (i32, i32) {
    %c0_i32 = arith.constant 0 : i32
    %c0_i32_0 = arith.constant 0 : i32
    return %arg0, %c0_i32 : i32, i32
  }
  func.func @transform_1(%arg0: i32) -> (i32, i32) {
    %c0_i32 = arith.constant 0 : i32
    %c0_i32_0 = arith.constant 0 : i32
    %c0_i32_1 = arith.constant 0 : i32
    return %c0_i32, %c0_i32_0 : i32, i32
  }
  func.func @transform_2(%arg0: i32) -> (i32, i32) {
    %c0_i32 = arith.constant 0 : i32
    %c0_i32_0 = arith.constant 0 : i32
    %c0_i32_1 = arith.constant 0 : i32
    return %c0_i32, %c0_i32_0 : i32, i32
  }
  func.func @transform_3(%arg0: i32) -> (i32, i32) {
    %c0_i32 = arith.constant 0 : i32
    %c0_i32_0 = arith.constant 0 : i32
    %c0_i32_1 = arith.constant 0 : i32
    return %c0_i32, %c0_i32_0 : i32, i32
  }
  func.func @transform_4(%arg0: i32) -> (i32, i32) {
    %c0_i32 = arith.constant 0 : i32
    %c0_i32_0 = arith.constant 0 : i32
    %c0_i32_1 = arith.constant 0 : i32
    return %c0_i32, %c0_i32_0 : i32, i32
  }
  func.func @transform_5(%arg0: i32) -> (i32, i32) {
    %c0_i32 = arith.constant 0 : i32
    %c0_i32_0 = arith.constant 0 : i32
    %c0_i32_1 = arith.constant 0 : i32
    return %c0_i32, %c0_i32_0 : i32, i32
  }
  func.func @transform_6(%arg0: i32) -> (i32, i32) {
    %c0_i32 = arith.constant 0 : i32
    %c0_i32_0 = arith.constant 0 : i32
    return %arg0, %c0_i32 : i32, i32
  }
}

</mosaic_0001>

<llo_original>
// kernel: tpu_custom_call.1
$region0: #{tpu_custom_call.1}
  #allocation0 [shape = 'u32[]', space=smem, size = 0x4, offset = 0x4, fixed_abs, tag = 'smem constant byte address 0x4 - core index']
  #allocation1 [shape = 'u32[144,128]{1,0:T(1,128)}', space=vmem, size = 0x12000, scoped, tag = 'internal scratch']
  %s0 = inlined_call_operand.vmem [shape: f32[128,128], index: 0, kind: input, shape index: {}]
  %s1 = inlined_call_operand.vmem [shape: bf16[384,128], index: 1, kind: input, shape index: {}]
  %s2 = inlined_call_operand.vmem [shape: bf16[128,128], index: 2, kind: input, shape index: {}]
  %s3 = inlined_call_operand.hbm [shape: bf16[256,128], index: 3, kind: input, shape index: {}]
  %s4 = inlined_call_operand.hbm [shape: bf16[128,256], index: 4, kind: input, shape index: {}]
  %s5 = inlined_call_operand.vmem [shape: f32[384,3], index: 5, kind: input, shape index: {}]
  %s6 = inlined_call_operand.hbm [shape: f32[128,128], index: 6, kind: output, shape index: {}]
  %s7 = sld [smem:[#allocation0]]
  $region42: #{tpu_custom_call.1} parent=0
    _
  %s9 = ssub.s32 1, %s7
  %s10 = scalar_select 0, %s9, %s7
  $region1: #{tpu_custom_call.1} parent=0
    #allocation2 [shape = 'u8[65536]{0}', space=vmem, size = 0x10000, scoped, tag = 'input window, operand 3, single buffered']
    #allocation3 [shape = 's32[1]{0}', space=sflag, size = 0x4, scoped, tag = 'scoped memory for tpu_custom_call.1']
    #allocation4 [shape = 's32[1]{0}', space=sflag, size = 0x4, scoped, tag = 'scoped memory for tpu_custom_call.1']
    #allocation5 [shape = 'u8[65536]{0}', space=vmem, size = 0x10000, scoped, tag = 'input window, operand 4, single buffered']
    #allocation6 [shape = 's32[1]{0}', space=sflag, size = 0x4, scoped, tag = 'scoped memory for tpu_custom_call.1']
    #allocation7 [shape = 'u8[65536]{0}', space=vmem, size = 0x10000, scoped, tag = 'output window, operand 0, single buffered']
    %11 = vsyncpa [#allocation3], 0
    %12 = vsyncpa [#allocation6], 0
    %13 = vsyncpa [#allocation4], 0
    // Predicated region
    $region2: #{tpu_custom_call.1} parent=1 // pred_check
      _
    $region3: #{tpu_custom_call.1} parent=1 // pred_check_branch
      %15 = sbr.rel (0) target = $region5
    $region4: #{tpu_custom_call.1} parent=1 // pred_region
      _
    $region5: #{tpu_custom_call.1} parent=1 // pred_fallthru
      _
    // Predicated region
    $region6: #{tpu_custom_call.1} parent=1 // pred_check
      _
    $region7: #{tpu_custom_call.1} parent=1 // pred_check_branch
      %17 = sbr.rel (0) target = $region9
    $region8: #{tpu_custom_call.1} parent=1 // pred_region
      _
    $region9: #{tpu_custom_call.1} parent=1 // pred_fallthru
      _
    // Predicated region
    $region10: #{tpu_custom_call.1} parent=1 // pred_check
      _
    $region11: #{tpu_custom_call.1} parent=1 // pred_check_branch
      %19 = sbr.rel (0) target = $region13
    $region12: #{tpu_custom_call.1} parent=1 // pred_region
      _
    $region13: #{tpu_custom_call.1} parent=1 // pred_fallthru
      _
    // Predicated region
    $region14: #{tpu_custom_call.1} parent=1 // pred_check
      _
    $region15: #{tpu_custom_call.1} parent=1 // pred_check_branch
      %21 = sbr.rel (0) target = $region17
    $region16: #{tpu_custom_call.1} parent=1 // pred_region
      %s23 = ssub.s32 2048, 2048
      %24 = vsyncadd [#allocation3], %s23
      %s25 = sshll.u32 [#allocation2], 4
      %s26 = int_to_ptr.vmem [resolvable:$true] %s25
      %31 = dma.hbm_to_vmem [thread:$0]  %s3, 2048, %s26, [#allocation3], 64, 64, 4
    $region17: #{tpu_custom_call.1} parent=1 // pred_fallthru
      _
    // Predicated region
    $region18: #{tpu_custom_call.1} parent=1 // pred_check
      _
    $region19: #{tpu_custom_call.1} parent=1 // pred_check_branch
      %33 = sbr.rel (0) target = $region21
    $region20: #{tpu_custom_call.1} parent=1 // pred_region
      %s35 = ssub.s32 2048, 2048
      %36 = vsyncadd [#allocation6], %s35
      %s37 = sshll.u32 [#allocation5], 4
      %s38 = int_to_ptr.vmem [resolvable:$true] %s37
      %43 = dma.hbm_to_vmem [thread:$0]  %s4, 2048, %s38, [#allocation6], 128, 128, 8
    $region21: #{tpu_custom_call.1} parent=1 // pred_fallthru
      _
    // Predicated region
    $region22: #{tpu_custom_call.1} parent=1 // pred_check
      _
    $region23: #{tpu_custom_call.1} parent=1 // pred_check_branch
      %45 = sbr.rel (0) target = $region25
    $region24: #{tpu_custom_call.1} parent=1 // pred_region
      _
    $region25: #{tpu_custom_call.1} parent=1 // pred_fallthru
      _
    // Predicated region
    $region26: #{tpu_custom_call.1} parent=1 // pred_check
      _
    $region27: #{tpu_custom_call.1} parent=1 // pred_check_branch
      %47 = sbr.rel (0) target = $region29
    $region28: #{tpu_custom_call.1} parent=1 // pred_region
      %48 = dma.done [#allocation3], 2048
    $region29: #{tpu_custom_call.1} parent=1 // pred_fallthru
      _
    // Predicated region
    $region30: #{tpu_custom_call.1} parent=1 // pred_check
      _
    $region31: #{tpu_custom_call.1} parent=1 // pred_check_branch
      %50 = sbr.rel (0) target = $region33
    $region32: #{tpu_custom_call.1} parent=1 // pred_region
      %51 = dma.done [#allocation6], 2048
    $region33: #{tpu_custom_call.1} parent=1 // pred_fallthru
      _
    %v53 = vld [vmem:[%s0] sm:$0xff]
    %v54 = vld [vmem:[%s0 + $0x8] sm:$0xff]
    %v55 = vld [vmem:[%s0 + $0x10] sm:$0xff]
    %v56 = vld [vmem:[%s0 + $0x18] sm:$0xff]
    %v57 = vld [vmem:[%s0 + $0x20] sm:$0xff]
    %v58 = vld [vmem:[%s0 + $0x28] sm:$0xff]
    %v59 = vld [vmem:[%s0 + $0x30] sm:$0xff]
    %v60 = vld [vmem:[%s0 + $0x38] sm:$0xff]
    %v61 = vld [vmem:[%s0 + $0x40] sm:$0xff]
    %v62 = vld [vmem:[%s0 + $0x48] sm:$0xff]
    %v63 = vld [vmem:[%s0 + $0x50] sm:$0xff]
    %v64 = vld [vmem:[%s0 + $0x58] sm:$0xff]
    %v65 = vld [vmem:[%s0 + $0x60] sm:$0xff]
    %v66 = vld [vmem:[%s0 + $0x68] sm:$0xff]
    %v67 = vld [vmem:[%s0 + $0x70] sm:$0xff]
    %v68 = vld [vmem:[%s0 + $0x78] sm:$0xff]
    %69 = vxpose.xlu0.b32.start [1/16] %v53, 128
    %70 = vxpose.xlu0.b32.cont [2/16] %v54, 128
    %71 = vxpose.xlu0.b32.cont [3/16] %v55, 128
    %72 = vxpose.xlu0.b32.cont [4/16] %v56, 128
    %73 = vxpose.xlu0.b32.cont [5/16] %v57, 128
    %74 = vxpose.xlu0.b32.cont [6/16] %v58, 128
    %75 = vxpose.xlu0.b32.cont [7/16] %v59, 128
    %76 = vxpose.xlu0.b32.cont [8/16] %v60, 128
    %77 = vxpose.xlu0.b32.cont [9/16] %v61, 128
    %78 = vxpose.xlu0.b32.cont [10/16] %v62, 128
    %79 = vxpose.xlu0.b32.cont [11/16] %v63, 128
    %80 = vxpose.xlu0.b32.cont [12/16] %v64, 128
    %81 = vxpose.xlu0.b32.cont [13/16] %v65, 128
    %82 = vxpose.xlu0.b32.cont [14/16] %v66, 128
    %83 = vxpose.xlu0.b32.cont [15/16] %v67, 128
    %84 = vxpose.xlu0.b32.end [16/16] %v68, 128
    %v85 = vpop.trf.xlu0
    %v86 = vpop.trf.xlu0
    %v87 = vpop.trf.xlu0
    %v88 = vpop.trf.xlu0
    %v89 = vpop.trf.xlu0
    %v90 = vpop.trf.xlu0
    %v91 = vpop.trf.xlu0
    %v92 = vpop.trf.xlu0
    %v93 = vpop.trf.xlu0
    %v94 = vpop.trf.xlu0
    %v95 = vpop.trf.xlu0
    %v96 = vpop.trf.xlu0
    %v97 = vpop.trf.xlu0
    %v98 = vpop.trf.xlu0
    %v99 = vpop.trf.xlu0
    %v100 = vpop.trf.xlu0
    %v101 = vld [vmem:[%s5] sm:$0xff]
    %v102 = vld [vmem:[%s5 + $0x8] sm:$0xff]
    %v103 = vld [vmem:[%s5 + $0x10] sm:$0xff]
    %v104 = vld [vmem:[%s5 + $0x18] sm:$0xff]
    %v105 = vld [vmem:[%s5 + $0x20] sm:$0xff]
    %v106 = vld [vmem:[%s5 + $0x28] sm:$0xff]
    %v107 = vld [vmem:[%s5 + $0x30] sm:$0xff]
    %v108 = vld [vmem:[%s5 + $0x38] sm:$0xff]
    %v109 = vld [vmem:[%s5 + $0x40] sm:$0xff]
    %v110 = vld [vmem:[%s5 + $0x48] sm:$0xff]
    %v111 = vld [vmem:[%s5 + $0x50] sm:$0xff]
    %v112 = vld [vmem:[%s5 + $0x58] sm:$0xff]
    %v113 = vld [vmem:[%s5 + $0x60] sm:$0xff]
    %v114 = vld [vmem:[%s5 + $0x68] sm:$0xff]
    %v115 = vld [vmem:[%s5 + $0x70] sm:$0xff]
    %v116 = vld [vmem:[%s5 + $0x78] sm:$0xff]
    %v117 = vld [vmem:[%s5 + $0x80] sm:$0xff]
    %v118 = vld [vmem:[%s5 + $0x88] sm:$0xff]
    %v119 = vld [vmem:[%s5 + $0x90] sm:$0xff]
    %v120 = vld [vmem:[%s5 + $0x98] sm:$0xff]
    %v121 = vld [vmem:[%s5 + $0xa0] sm:$0xff]
    %v122 = vld [vmem:[%s5 + $0xa8] sm:$0xff]
    %v123 = vld [vmem:[%s5 + $0xb0] sm:$0xff]
    %v124 = vld [vmem:[%s5 + $0xb8] sm:$0xff]
    %v125 = vld [vmem:[%s5 + $0xc0] sm:$0xff]
    %v126 = vld [vmem:[%s5 + $0xc8] sm:$0xff]
    %v127 = vld [vmem:[%s5 + $0xd0] sm:$0xff]
    %v128 = vld [vmem:[%s5 + $0xd8] sm:$0xff]
    %v129 = vld [vmem:[%s5 + $0xe0] sm:$0xff]
    %v130 = vld [vmem:[%s5 + $0xe8] sm:$0xff]
    %v131 = vld [vmem:[%s5 + $0xf0] sm:$0xff]
    %v132 = vld [vmem:[%s5 + $0xf8] sm:$0xff]
    %v133 = vld [vmem:[%s5 + $0x100] sm:$0xff]
    %v134 = vld [vmem:[%s5 + $0x108] sm:$0xff]
    %v135 = vld [vmem:[%s5 + $0x110] sm:$0xff]
    %v136 = vld [vmem:[%s5 + $0x118] sm:$0xff]
    %v137 = vld [vmem:[%s5 + $0x120] sm:$0xff]
    %v138 = vld [vmem:[%s5 + $0x128] sm:$0xff]
    %v139 = vld [vmem:[%s5 + $0x130] sm:$0xff]
    %v140 = vld [vmem:[%s5 + $0x138] sm:$0xff]
    %v141 = vld [vmem:[%s5 + $0x140] sm:$0xff]
    %v142 = vld [vmem:[%s5 + $0x148] sm:$0xff]
    %v143 = vld [vmem:[%s5 + $0x150] sm:$0xff]
    %v144 = vld [vmem:[%s5 + $0x158] sm:$0xff]
    %v145 = vld [vmem:[%s5 + $0x160] sm:$0xff]
    %v146 = vld [vmem:[%s5 + $0x168] sm:$0xff]
    %v147 = vld [vmem:[%s5 + $0x170] sm:$0xff]
    %v148 = vld [vmem:[%s5 + $0x178] sm:$0xff]
    %v149 = vadd.f32 %v85, %v86
    %v150 = vadd.f32 %v149, %v87
    %v151 = vadd.f32 %v150, %v88
    %v152 = vadd.f32 %v151, %v89
    %v153 = vadd.f32 %v152, %v90
    %v154 = vadd.f32 %v153, %v91
    %v155 = vadd.f32 %v154, %v92
    %v156 = vadd.f32 %v155, %v93
    %v157 = vadd.f32 %v156, %v94
    %v158 = vadd.f32 %v157, %v95
    %v159 = vadd.f32 %v158, %v96
    %v160 = vadd.f32 %v159, %v97
    %v161 = vadd.f32 %v160, %v98
    %v162 = vadd.f32 %v161, %v99
    %v163 = vadd.f32 %v162, %v100
    %v164 = vrot.slane %v163, 4
    %v165 = vadd.f32 %v163, %v164
    %v166 = vrot.slane %v165, 2
    %v167 = vadd.f32 %v165, %v166
    %v168 = vrot.slane %v167, 1
    %v169 = vadd.f32 %v167, %v168
    %v170 = vrcp.pop 128.0
    %v171 = vmul.f32 %v169, %v170
    %v172 = vmul.f32 %v85, %v85
    %v173 = vmul.f32 %v86, %v86
    %v174 = vmul.f32 %v87, %v87
    %v175 = vmul.f32 %v88, %v88
    %v176 = vmul.f32 %v89, %v89
    %v177 = vmul.f32 %v90, %v90
    %v178 = vmul.f32 %v91, %v91
    %v179 = vmul.f32 %v92, %v92
    %v180 = vmul.f32 %v93, %v93
    %v181 = vmul.f32 %v94, %v94
    %v182 = vmul.f32 %v95, %v95
    %v183 = vmul.f32 %v96, %v96
    %v184 = vmul.f32 %v97, %v97
    %v185 = vmul.f32 %v98, %v98
    %v186 = vmul.f32 %v99, %v99
    %v187 = vmul.f32 %v100, %v100
    %v188 = vadd.f32 %v172, %v173
    %v189 = vadd.f32 %v188, %v174
    %v190 = vadd.f32 %v189, %v175
    %v191 = vadd.f32 %v190, %v176
    %v192 = vadd.f32 %v191, %v177
    %v193 = vadd.f32 %v192, %v178
    %v194 = vadd.f32 %v193, %v179
    %v195 = vadd.f32 %v194, %v180
    %v196 = vadd.f32 %v195, %v181
    %v197 = vadd.f32 %v196, %v182
    %v198 = vadd.f32 %v197, %v183
    %v199 = vadd.f32 %v198, %v184
    %v200 = vadd.f32 %v199, %v185
    %v201 = vadd.f32 %v200, %v186
    %v202 = vadd.f32 %v201, %v187
    %v203 = vrot.slane %v202, 4
    %v204 = vadd.f32 %v202, %v203
    %v205 = vrot.slane %v204, 2
    %v206 = vadd.f32 %v204, %v205
    %v207 = vrot.slane %v206, 1
    %v208 = vadd.f32 %v206, %v207
    %v209 = vmul.f32 %v208, %v170
    %v210 = vsub.f32 %v85, %v171
    %v211 = vsub.f32 %v86, %v171
    %v212 = vsub.f32 %v87, %v171
    %v213 = vsub.f32 %v88, %v171
    %v214 = vsub.f32 %v89, %v171
    %v215 = vsub.f32 %v90, %v171
    %v216 = vsub.f32 %v91, %v171
    %v217 = vsub.f32 %v92, %v171
    %v218 = vsub.f32 %v93, %v171
    %v219 = vsub.f32 %v94, %v171
    %v220 = vsub.f32 %v95, %v171
    %v221 = vsub.f32 %v96, %v171
    %v222 = vsub.f32 %v97, %v171
    %v223 = vsub.f32 %v98, %v171
    %v224 = vsub.f32 %v99, %v171
    %v225 = vsub.f32 %v100, %v171
    %v226 = vmul.f32 %v171, %v171
    %v227 = vsub.f32 %v209, %v226
    %v228 = vadd.f32 %v227, 1e-05
    %v229 = vrsqrt.pop %v228
    %v230 = vmul.f32 %v210, %v229
    %v231 = vmul.f32 %v211, %v229
    %v232 = vmul.f32 %v212, %v229
    %v233 = vmul.f32 %v213, %v229
    %v234 = vmul.f32 %v214, %v229
    %v235 = vmul.f32 %v215, %v229
    %v236 = vmul.f32 %v216, %v229
    %v237 = vmul.f32 %v217, %v229
    %v238 = vmul.f32 %v218, %v229
    %v239 = vmul.f32 %v219, %v229
    %v240 = vmul.f32 %v220, %v229
    %v241 = vmul.f32 %v221, %v229
    %v242 = vmul.f32 %v222, %v229
    %v243 = vmul.f32 %v223, %v229
    %v244 = vmul.f32 %v224, %v229
    %v245 = vmul.f32 %v225, %v229
    %v246 = vld [vmem:[%s1] sm:$0xf]
    %v247 = vld [vmem:[%s1 + $0x4] sm:$0xf]
    %v248 = vld [vmem:[%s1 + $0x8] sm:$0xf]
    %v249 = vld [vmem:[%s1 + $0xc] sm:$0xf]
    %v250 = vld [vmem:[%s1 + $0x10] sm:$0xf]
    %v251 = vld [vmem:[%s1 + $0x14] sm:$0xf]
    %v252 = vld [vmem:[%s1 + $0x18] sm:$0xf]
    %v253 = vld [vmem:[%s1 + $0x1c] sm:$0xf]
    %v254 = vld [vmem:[%s1 + $0x20] sm:$0xf]
    %v255 = vld [vmem:[%s1 + $0x24] sm:$0xf]
    %v256 = vld [vmem:[%s1 + $0x28] sm:$0xf]
    %v257 = vld [vmem:[%s1 + $0x2c] sm:$0xf]
    %v258 = vld [vmem:[%s1 + $0x30] sm:$0xf]
    %v259 = vld [vmem:[%s1 + $0x34] sm:$0xf]
    %v260 = vld [vmem:[%s1 + $0x38] sm:$0xf]
    %v261 = vld [vmem:[%s1 + $0x3c] sm:$0xf]
    %v262 = vld [vmem:[%s1 + $0x40] sm:$0xf]
    %v263 = vld [vmem:[%s1 + $0x44] sm:$0xf]
    %v264 = vld [vmem:[%s1 + $0x48] sm:$0xf]
    %v265 = vld [vmem:[%s1 + $0x4c] sm:$0xf]
    %v266 = vld [vmem:[%s1 + $0x50] sm:$0xf]
    %v267 = vld [vmem:[%s1 + $0x54] sm:$0xf]
    %v268 = vld [vmem:[%s1 + $0x58] sm:$0xf]
    %v269 = vld [vmem:[%s1 + $0x5c] sm:$0xf]
    %v270 = vld [vmem:[%s1 + $0x60] sm:$0xf]
    %v271 = vld [vmem:[%s1 + $0x64] sm:$0xf]
    %v272 = vld [vmem:[%s1 + $0x68] sm:$0xf]
    %v273 = vld [vmem:[%s1 + $0x6c] sm:$0xf]
    %v274 = vld [vmem:[%s1 + $0x70] sm:$0xf]
    %v275 = vld [vmem:[%s1 + $0x74] sm:$0xf]
    %v276 = vld [vmem:[%s1 + $0x78] sm:$0xf]
    %v277 = vld [vmem:[%s1 + $0x7c] sm:$0xf]
    %v278 = vld [vmem:[%s1 + $0x80] sm:$0xf]
    %v279 = vld [vmem:[%s1 + $0x84] sm:$0xf]
    %v280 = vld [vmem:[%s1 + $0x88] sm:$0xf]
    %v281 = vld [vmem:[%s1 + $0x8c] sm:$0xf]
    %v282 = vld [vmem:[%s1 + $0x90] sm:$0xf]
    %v283 = vld [vmem:[%s1 + $0x94] sm:$0xf]
    %v284 = vld [vmem:[%s1 + $0x98] sm:$0xf]
    %v285 = vld [vmem:[%s1 + $0x9c] sm:$0xf]
    %v286 = vld [vmem:[%s1 + $0xa0] sm:$0xf]
    %v287 = vld [vmem:[%s1 + $0xa4] sm:$0xf]
    %v288 = vld [vmem:[%s1 + $0xa8] sm:$0xf]
    %v289 = vld [vmem:[%s1 + $0xac] sm:$0xf]
    %v290 = vld [vmem:[%s1 + $0xb0] sm:$0xf]
    %v291 = vld [vmem:[%s1 + $0xb4] sm:$0xf]
    %v292 = vld [vmem:[%s1 + $0xb8] sm:$0xf]
    %v293 = vld [vmem:[%s1 + $0xbc] sm:$0xf]
    %v294 = vpack.c.bf16 %v231, %v230
    %v295 = vpack.c.bf16 %v233, %v232
    %v296 = vpack.c.bf16 %v235, %v234
    %v297 = vpack.c.bf16 %v237, %v236
    %v298 = vpack.c.bf16 %v239, %v238
    %v299 = vpack.c.bf16 %v241, %v240
    %v300 = vpack.c.bf16 %v243, %v242
    %v301 = vpack.c.bf16 %v245, %v244
    %303 = vset.pattern.permute.xlu0 0
    %304 = vperm.xlu0 %303, %v101
    %v305 = vpop.permute.xlu0 %304
    %308 = vset.pattern.permute.xlu0 0
    %309 = vperm.xlu0 %308, %v102
    %v310 = vpop.permute.xlu0 %309
    %313 = vset.pattern.permute.xlu0 0
    %314 = vperm.xlu0 %313, %v103
    %v315 = vpop.permute.xlu0 %314
    %318 = vset.pattern.permute.xlu0 0
    %319 = vperm.xlu0 %318, %v104
    %v320 = vpop.permute.xlu0 %319
    %323 = vset.pattern.permute.xlu0 0
    %324 = vperm.xlu0 %323, %v105
    %v325 = vpop.permute.xlu0 %324
    %328 = vset.pattern.permute.xlu0 0
    %329 = vperm.xlu0 %328, %v106
    %v330 = vpop.permute.xlu0 %329
    %333 = vset.pattern.permute.xlu0 0
    %334 = vperm.xlu0 %333, %v107
    %v335 = vpop.permute.xlu0 %334
    %338 = vset.pattern.permute.xlu0 0
    %339 = vperm.xlu0 %338, %v108
    %v340 = vpop.permute.xlu0 %339
    %343 = vset.pattern.permute.xlu0 0
    %344 = vperm.xlu0 %343, %v109
    %v345 = vpop.permute.xlu0 %344
    %348 = vset.pattern.permute.xlu0 0
    %349 = vperm.xlu0 %348, %v110
    %v350 = vpop.permute.xlu0 %349
    %353 = vset.pattern.permute.xlu0 0
    %354 = vperm.xlu0 %353, %v111
    %v355 = vpop.permute.xlu0 %354
    %358 = vset.pattern.permute.xlu0 0
    %359 = vperm.xlu0 %358, %v112
    %v360 = vpop.permute.xlu0 %359
    %363 = vset.pattern.permute.xlu0 0
    %364 = vperm.xlu0 %363, %v113
    %v365 = vpop.permute.xlu0 %364
    %368 = vset.pattern.permute.xlu0 0
    %369 = vperm.xlu0 %368, %v114
    %v370 = vpop.permute.xlu0 %369
    %373 = vset.pattern.permute.xlu0 0
    %374 = vperm.xlu0 %373, %v115
    %v375 = vpop.permute.xlu0 %374
    %378 = vset.pattern.permute.xlu0 0
    %379 = vperm.xlu0 %378, %v116
    %v380 = vpop.permute.xlu0 %379
    %383 = vset.pattern.permute.xlu0 0
    %384 = vperm.xlu0 %383, %v117
    %v385 = vpop.permute.xlu0 %384
    %388 = vset.pattern.permute.xlu0 0
    %389 = vperm.xlu0 %388, %v118
    %v390 = vpop.permute.xlu0 %389
    %393 = vset.pattern.permute.xlu0 0
    %394 = vperm.xlu0 %393, %v119
    %v395 = vpop.permute.xlu0 %394
    %398 = vset.pattern.permute.xlu0 0
    %399 = vperm.xlu0 %398, %v120
    %v400 = vpop.permute.xlu0 %399
    %403 = vset.pattern.permute.xlu0 0
    %404 = vperm.xlu0 %403, %v121
    %v405 = vpop.permute.xlu0 %404
    %408 = vset.pattern.permute.xlu0 0
    %409 = vperm.xlu0 %408, %v122
    %v410 = vpop.permute.xlu0 %409
    %413 = vset.pattern.permute.xlu0 0
    %414 = vperm.xlu0 %413, %v123
    %v415 = vpop.permute.xlu0 %414
    %418 = vset.pattern.permute.xlu0 0
    %419 = vperm.xlu0 %418, %v124
    %v420 = vpop.permute.xlu0 %419
    %423 = vset.pattern.permute.xlu0 0
    %424 = vperm.xlu0 %423, %v125
    %v425 = vpop.permute.xlu0 %424
    %428 = vset.pattern.permute.xlu0 0
    %429 = vperm.xlu0 %428, %v126
    %v430 = vpop.permute.xlu0 %429
    %433 = vset.pattern.permute.xlu0 0
    %434 = vperm.xlu0 %433, %v127
    %v435 = vpop.permute.xlu0 %434
    %438 = vset.pattern.permute.xlu0 0
    %439 = vperm.xlu0 %438, %v128
    %v440 = vpop.permute.xlu0 %439
    %443 = vset.pattern.permute.xlu0 0
    %444 = vperm.xlu0 %443, %v129
    %v445 = vpop.permute.xlu0 %444
    %448 = vset.pattern.permute.xlu0 0
    %449 = vperm.xlu0 %448, %v130
    %v450 = vpop.permute.xlu0 %449
    %453 = vset.pattern.permute.xlu0 0
    %454 = vperm.xlu0 %453, %v131
    %v455 = vpop.permute.xlu0 %454
    %458 = vset.pattern.permute.xlu0 0
    %459 = vperm.xlu0 %458, %v132
    %v460 = vpop.permute.xlu0 %459
    %463 = vset.pattern.permute.xlu0 0
    %464 = vperm.xlu0 %463, %v133
    %v465 = vpop.permute.xlu0 %464
    %468 = vset.pattern.permute.xlu0 0
    %469 = vperm.xlu0 %468, %v134
    %v470 = vpop.permute.xlu0 %469
    %473 = vset.pattern.permute.xlu0 0
    %474 = vperm.xlu0 %473, %v135
    %v475 = vpop.permute.xlu0 %474
    %478 = vset.pattern.permute.xlu0 0
    %479 = vperm.xlu0 %478, %v136
    %v480 = vpop.permute.xlu0 %479
    %483 = vset.pattern.permute.xlu0 0
    %484 = vperm.xlu0 %483, %v137
    %v485 = vpop.permute.xlu0 %484
    %488 = vset.pattern.permute.xlu0 0
    %489 = vperm.xlu0 %488, %v138
    %v490 = vpop.permute.xlu0 %489
    %493 = vset.pattern.permute.xlu0 0
    %494 = vperm.xlu0 %493, %v139
    %v495 = vpop.permute.xlu0 %494
    %498 = vset.pattern.permute.xlu0 0
    %499 = vperm.xlu0 %498, %v140
    %v500 = vpop.permute.xlu0 %499
    %503 = vset.pattern.permute.xlu0 0
    %504 = vperm.xlu0 %503, %v141
    %v505 = vpop.permute.xlu0 %504
    %508 = vset.pattern.permute.xlu0 0
    %509 = vperm.xlu0 %508, %v142
    %v510 = vpop.permute.xlu0 %509
    %513 = vset.pattern.permute.xlu0 0
    %514 = vperm.xlu0 %513, %v143
    %v515 = vpop.permute.xlu0 %514
    %518 = vset.pattern.permute.xlu0 0
    %519 = vperm.xlu0 %518, %v144
    %v520 = vpop.permute.xlu0 %519
    %523 = vset.pattern.permute.xlu0 0
    %524 = vperm.xlu0 %523, %v145
    %v525 = vpop.permute.xlu0 %524
    %528 = vset.pattern.permute.xlu0 0
    %529 = vperm.xlu0 %528, %v146
    %v530 = vpop.permute.xlu0 %529
    %533 = vset.pattern.permute.xlu0 0
    %534 = vperm.xlu0 %533, %v147
    %v535 = vpop.permute.xlu0 %534
    %538 = vset.pattern.permute.xlu0 0
    %539 = vperm.xlu0 %538, %v148
    %v540 = vpop.permute.xlu0 %539
    %v590 = vunpack.c.l.b16 %v246
    %v591 = vunpack.c.l.b16 %v247
    %v592 = vunpack.c.l.b16 %v248
    %v593 = vunpack.c.l.b16 %v249
    %v594 = vunpack.c.l.b16 %v250
    %v595 = vunpack.c.l.b16 %v251
    %v596 = vunpack.c.l.b16 %v252
    %v597 = vunpack.c.l.b16 %v253
    %v598 = vunpack.c.l.b16 %v254
    %v599 = vunpack.c.l.b16 %v255
    %v600 = vunpack.c.l.b16 %v256
    %v601 = vunpack.c.l.b16 %v257
    %v602 = vunpack.c.l.b16 %v258
    %v603 = vunpack.c.l.b16 %v259
    %v604 = vunpack.c.l.b16 %v260
    %v605 = vunpack.c.l.b16 %v261
    %v606 = vunpack.c.l.b16 %v262
    %v607 = vunpack.c.l.b16 %v263
    %v608 = vunpack.c.l.b16 %v264
    %v609 = vunpack.c.l.b16 %v265
    %v610 = vunpack.c.l.b16 %v266
    %v611 = vunpack.c.l.b16 %v267
    %v612 = vunpack.c.l.b16 %v268
    %v613 = vunpack.c.l.b16 %v269
    %v614 = vunpack.c.l.b16 %v270
    %v615 = vunpack.c.l.b16 %v271
    %v616 = vunpack.c.l.b16 %v272
    %v617 = vunpack.c.l.b16 %v273
    %v618 = vunpack.c.l.b16 %v274
    %v619 = vunpack.c.l.b16 %v275
    %v620 = vunpack.c.l.b16 %v276
    %v621 = vunpack.c.l.b16 %v277
    %v622 = vunpack.c.l.b16 %v278
    %v623 = vunpack.c.l.b16 %v279
    %v624 = vunpack.c.l.b16 %v280
    %v625 = vunpack.c.l.b16 %v281
    %v626 = vunpack.c.l.b16 %v282
    %v627 = vunpack.c.l.b16 %v283
    %v628 = vunpack.c.l.b16 %v284
    %v629 = vunpack.c.l.b16 %v285
    %v630 = vunpack.c.l.b16 %v286
    %v631 = vunpack.c.l.b16 %v287
    %v632 = vunpack.c.l.b16 %v288
    %v633 = vunpack.c.l.b16 %v289
    %v634 = vunpack.c.l.b16 %v290
    %v635 = vunpack.c.l.b16 %v291
    %v636 = vunpack.c.l.b16 %v292
    %v637 = vunpack.c.l.b16 %v293
    %v638 = vpack.c.b16 %v591, %v590
    %v639 = vpack.c.b16 %v593, %v592
    %v640 = vpack.c.b16 %v595, %v594
    %v641 = vpack.c.b16 %v597, %v596
    %v642 = vpack.c.b16 %v599, %v598
    %v643 = vpack.c.b16 %v601, %v600
    %v644 = vpack.c.b16 %v603, %v602
    %v645 = vpack.c.b16 %v605, %v604
    %v646 = vpack.c.b16 %v607, %v606
    %v647 = vpack.c.b16 %v609, %v608
    %v648 = vpack.c.b16 %v611, %v610
    %v649 = vpack.c.b16 %v613, %v612
    %v650 = vpack.c.b16 %v615, %v614
    %v651 = vpack.c.b16 %v617, %v616
    %v652 = vpack.c.b16 %v619, %v618
    %v653 = vpack.c.b16 %v621, %v620
    %v654 = vpack.c.b16 %v623, %v622
    %v655 = vpack.c.b16 %v625, %v624
    %v656 = vpack.c.b16 %v627, %v626
    %v657 = vpack.c.b16 %v629, %v628
    %v658 = vpack.c.b16 %v631, %v630
    %v659 = vpack.c.b16 %v633, %v632
    %v660 = vpack.c.b16 %v635, %v634
    %v661 = vpack.c.b16 %v637, %v636
    %686 = vmatprep.subr.bf16.mxu0 0
    %687 = vmatpush1.bf16.msra.mxu0 %v294
    %688 = vmatprep.subr.bf16.mxu0 0
    %689 = vmatpush1.bf16.msra.mxu0 %v295
    %690 = vmatprep.subr.bf16.mxu0 0
    %691 = vmatpush1.bf16.msra.mxu0 %v296
    %692 = vmatprep.subr.bf16.mxu0 0
    %693 = vmatpush1.bf16.msra.mxu0 %v297
    %694 = vmatprep.subr.bf16.mxu0 0
    %695 = vmatpush1.bf16.msra.mxu0 %v298
    %696 = vmatprep.subr.bf16.mxu0 0
    %697 = vmatpush1.bf16.msra.mxu0 %v299
    %698 = vmatprep.subr.bf16.mxu0 0
    %699 = vmatpush1.bf16.msra.mxu0 %v300
    %700 = vmatprep.subr.bf16.mxu0 0
    %701 = vmatpush1.bf16.msra.mxu0 %v301
    %702 = vmatprep.subr.bf16.mxu0 0
    %703 = vmatpush1.bf16.msra.mxu0 0
    %704 = vmatprep.subr.bf16.mxu0 0
    %705 = vmatpush1.bf16.msra.mxu0 0
    %706 = vmatprep.subr.bf16.mxu0 0
    %707 = vmatpush1.bf16.msra.mxu0 0
    %708 = vmatprep.subr.bf16.mxu0 0
    %709 = vmatpush1.bf16.msra.mxu0 0
    %710 = vmatprep.subr.bf16.mxu0 0
    %711 = vmatpush1.bf16.msra.mxu0 0
    %712 = vmatprep.subr.bf16.mxu0 0
    %713 = vmatpush1.bf16.msra.mxu0 0
    %714 = vmatprep.subr.bf16.mxu0 0
    %715 = vmatpush1.bf16.msra.mxu0 0
    %716 = vmatprep.subr.bf16.mxu0 0
    %717 = vmatpush1.bf16.msra.mxu0 0
    %718 = vmatprep.mubr.bf16.mxu0 0
    %719 = vmatmul.mubr.bf16.gmra.mrb[0].mxu0 %v638
    %v720 = vpop.f32.mrb[0].mxu0
    %v721 = vadd.f32 %v305, %v720
    %v722 = vpop.f32.mrb[0].mxu0
    %v723 = vpop.f32.mrb[0].mxu0
    %v724 = vadd.f32 %v310, %v723
    %v725 = vpop.f32.mrb[0].mxu0
    %726 = vmatprep.mubr.bf16.mxu0 0
    %727 = vmatmul.mubr.bf16.gmra.mrb[0].mxu0 %v639
    %v728 = vpop.f32.mrb[0].mxu0
    %v729 = vadd.f32 %v315, %v728
    %v730 = vpop.f32.mrb[0].mxu0
    %v731 = vpop.f32.mrb[0].mxu0
    %v732 = vadd.f32 %v320, %v731
    %v733 = vpop.f32.mrb[0].mxu0
    %734 = vmatprep.mubr.bf16.mxu0 0
    %735 = vmatmul.mubr.bf16.gmra.mrb[0].mxu0 %v640
    %v736 = vpop.f32.mrb[0].mxu0
    %v737 = vadd.f32 %v325, %v736
    %v738 = vpop.f32.mrb[0].mxu0
    %v739 = vpop.f32.mrb[0].mxu0
    %v740 = vadd.f32 %v330, %v739
    %v741 = vpop.f32.mrb[0].mxu0
    %742 = vmatprep.mubr.bf16.mxu0 0
    %743 = vmatmul.mubr.bf16.gmra.mrb[0].mxu0 %v641
    %v744 = vpop.f32.mrb[0].mxu0
    %v745 = vadd.f32 %v335, %v744
    %v746 = vpop.f32.mrb[0].mxu0
    %v747 = vpop.f32.mrb[0].mxu0
    %v748 = vadd.f32 %v340, %v747
    %v749 = vpop.f32.mrb[0].mxu0
    %750 = vmatprep.mubr.bf16.mxu0 0
    %751 = vmatmul.mubr.bf16.gmra.mrb[0].mxu0 %v642
    %v752 = vpop.f32.mrb[0].mxu0
    %v753 = vadd.f32 %v345, %v752
    %v754 = vpop.f32.mrb[0].mxu0
    %v755 = vpop.f32.mrb[0].mxu0
    %v756 = vadd.f32 %v350, %v755
    %v757 = vpop.f32.mrb[0].mxu0
    %758 = vmatprep.mubr.bf16.mxu0 0
    %759 = vmatmul.mubr.bf16.gmra.mrb[0].mxu0 %v643
    %v760 = vpop.f32.mrb[0].mxu0
    %v761 = vadd.f32 %v355, %v760
    %v762 = vpop.f32.mrb[0].mxu0
    %v763 = vpop.f32.mrb[0].mxu0
    %v764 = vadd.f32 %v360, %v763
    %v765 = vpop.f32.mrb[0].mxu0
    %766 = vmatprep.mubr.bf16.mxu0 0
    %767 = vmatmul.mubr.bf16.gmra.mrb[0].mxu0 %v644
    %v768 = vpop.f32.mrb[0].mxu0
    %v769 = vadd.f32 %v365, %v768
    %v770 = vpop.f32.mrb[0].mxu0
    %v771 = vpop.f32.mrb[0].mxu0
    %v772 = vadd.f32 %v370, %v771
    %v773 = vpop.f32.mrb[0].mxu0
    %774 = vmatprep.mubr.bf16.mxu0 0
    %775 = vmatmul.mubr.bf16.gmra.mrb[0].mxu0 %v645
    %v776 = vpop.f32.mrb[0].mxu0
    %v777 = vadd.f32 %v375, %v776
    %v778 = vpop.f32.mrb[0].mxu0
    %v779 = vpop.f32.mrb[0].mxu0
    %v780 = vadd.f32 %v380, %v779
    %v781 = vpop.f32.mrb[0].mxu0
    %782 = vmatprep.mubr.bf16.mxu0 0
    %783 = vmatmul.mubr.bf16.gmra.mrb[0].mxu0 %v646
    %v784 = vpop.f32.mrb[0].mxu0
    %v785 = vadd.f32 %v385, %v784
    %v786 = vpop.f32.mrb[0].mxu0
    %v787 = vpop.f32.mrb[0].mxu0
    %v788 = vadd.f32 %v390, %v787
    %v789 = vpop.f32.mrb[0].mxu0
    %790 = vmatprep.mubr.bf16.mxu0 0
    %791 = vmatmul.mubr.bf16.gmra.mrb[0].mxu0 %v647
    %v792 = vpop.f32.mrb[0].mxu0
    %v793 = vadd.f32 %v395, %v792
    %v794 = vpop.f32.mrb[0].mxu0
    %v795 = vpop.f32.mrb[0].mxu0
    %v796 = vadd.f32 %v400, %v795
    %v797 = vpop.f32.mrb[0].mxu0
    %798 = vmatprep.mubr.bf16.mxu0 0
    %799 = vmatmul.mubr.bf16.gmra.mrb[0].mxu0 %v648
    %v800 = vpop.f32.mrb[0].mxu0
    %v801 = vadd.f32 %v405, %v800
    %v802 = vpop.f32.mrb[0].mxu0
    %v803 = vpop.f32.mrb[0].mxu0
    %v804 = vadd.f32 %v410, %v803
    %v805 = vpop.f32.mrb[0].mxu0
    %806 = vmatprep.mubr.bf16.mxu0 0
    %807 = vmatmul.mubr.bf16.gmra.mrb[0].mxu0 %v649
    %v808 = vpop.f32.mrb[0].mxu0
    %v809 = vadd.f32 %v415, %v808
    %v810 = vpop.f32.mrb[0].mxu0
    %v811 = vpop.f32.mrb[0].mxu0
    %v812 = vadd.f32 %v420, %v811
    %v813 = vpop.f32.mrb[0].mxu0
    %814 = vmatprep.mubr.bf16.mxu0 0
    %815 = vmatmul.mubr.bf16.gmra.mrb[0].mxu0 %v650
    %v816 = vpop.f32.mrb[0].mxu0
    %v817 = vadd.f32 %v425, %v816
    %v818 = vpop.f32.mrb[0].mxu0
    %v819 = vpop.f32.mrb[0].mxu0
    %v820 = vadd.f32 %v430, %v819
    %v821 = vpop.f32.mrb[0].mxu0
    %822 = vmatprep.mubr.bf16.mxu0 0
    %823 = vmatmul.mubr.bf16.gmra.mrb[0].mxu0 %v651
    %v824 = vpop.f32.mrb[0].mxu0
    %v825 = vadd.f32 %v435, %v824
    %v826 = vpop.f32.mrb[0].mxu0
    %v827 = vpop.f32.mrb[0].mxu0
    %v828 = vadd.f32 %v440, %v827
    %v829 = vpop.f32.mrb[0].mxu0
    %830 = vmatprep.mubr.bf16.mxu0 0
    %831 = vmatmul.mubr.bf16.gmra.mrb[0].mxu0 %v652
    %v832 = vpop.f32.mrb[0].mxu0
    %v833 = vadd.f32 %v445, %v832
    %v834 = vpop.f32.mrb[0].mxu0
    %v835 = vpop.f32.mrb[0].mxu0
    %v836 = vadd.f32 %v450, %v835
    %v837 = vpop.f32.mrb[0].mxu0
    %838 = vmatprep.mubr.bf16.mxu0 0
    %839 = vmatmul.mubr.bf16.gmra.mrb[0].mxu0 %v653
    %v840 = vpop.f32.mrb[0].mxu0
    %v841 = vadd.f32 %v455, %v840
    %v842 = vpop.f32.mrb[0].mxu0
    %v843 = vpop.f32.mrb[0].mxu0
    %v844 = vadd.f32 %v460, %v843
    %v845 = vpop.f32.mrb[0].mxu0
    %846 = vmatprep.mubr.bf16.mxu0 0
    %847 = vmatmul.mubr.bf16.gmra.mrb[0].mxu0 %v654
    %v848 = vpop.f32.mrb[0].mxu0
    %v849 = vadd.f32 %v465, %v848
    %v850 = vpop.f32.mrb[0].mxu0
    %v851 = vpop.f32.mrb[0].mxu0
    %v852 = vadd.f32 %v470, %v851
    %v853 = vpop.f32.mrb[0].mxu0
    %854 = vmatprep.mubr.bf16.mxu0 0
    %855 = vmatmul.mubr.bf16.gmra.mrb[0].mxu0 %v655
    %v856 = vpop.f32.mrb[0].mxu0
    %v857 = vadd.f32 %v475, %v856
    %v858 = vpop.f32.mrb[0].mxu0
    %v859 = vpop.f32.mrb[0].mxu0
    %v860 = vadd.f32 %v480, %v859
    %v861 = vpop.f32.mrb[0].mxu0
    %862 = vmatprep.mubr.bf16.mxu0 0
    %863 = vmatmul.mubr.bf16.gmra.mrb[0].mxu0 %v656
    %v864 = vpop.f32.mrb[0].mxu0
    %v865 = vadd.f32 %v485, %v864
    %v866 = vpop.f32.mrb[0].mxu0
    %v867 = vpop.f32.mrb[0].mxu0
    %v868 = vadd.f32 %v490, %v867
    %v869 = vpop.f32.mrb[0].mxu0
    %870 = vmatprep.mubr.bf16.mxu0 0
    %871 = vmatmul.mubr.bf16.gmra.mrb[0].mxu0 %v657
    %v872 = vpop.f32.mrb[0].mxu0
    %v873 = vadd.f32 %v495, %v872
    %v874 = vpop.f32.mrb[0].mxu0
    %v875 = vpop.f32.mrb[0].mxu0
    %v876 = vadd.f32 %v500, %v875
    %v877 = vpop.f32.mrb[0].mxu0
    %878 = vmatprep.mubr.bf16.mxu0 0
    %879 = vmatmul.mubr.bf16.gmra.mrb[0].mxu0 %v658
    %v880 = vpop.f32.mrb[0].mxu0
    %v881 = vadd.f32 %v505, %v880
    %v882 = vpop.f32.mrb[0].mxu0
    %v883 = vpop.f32.mrb[0].mxu0
    %v884 = vadd.f32 %v510, %v883
    %v885 = vpop.f32.mrb[0].mxu0
    %886 = vmatprep.mubr.bf16.mxu0 0
    %887 = vmatmul.mubr.bf16.gmra.mrb[0].mxu0 %v659
    %v888 = vpop.f32.mrb[0].mxu0
    %v889 = vadd.f32 %v515, %v888
    %v890 = vpop.f32.mrb[0].mxu0
    %v891 = vpop.f32.mrb[0].mxu0
    %v892 = vadd.f32 %v520, %v891
    %v893 = vpop.f32.mrb[0].mxu0
    %894 = vmatprep.mubr.bf16.mxu0 0
    %895 = vmatmul.mubr.bf16.gmra.mrb[0].mxu0 %v660
    %v896 = vpop.f32.mrb[0].mxu0
    %v897 = vadd.f32 %v525, %v896
    %v898 = vpop.f32.mrb[0].mxu0
    %v899 = vpop.f32.mrb[0].mxu0
    %v900 = vadd.f32 %v530, %v899
    %v901 = vpop.f32.mrb[0].mxu0
    %902 = vmatprep.mubr.bf16.mxu0 0
    %903 = vmatmul.mubr.bf16.gmra.mrb[0].mxu0 %v661
    %v904 = vpop.f32.mrb[0].mxu0
    %v905 = vadd.f32 %v535, %v904
    %v906 = vpop.f32.mrb[0].mxu0
    %v907 = vpop.f32.mrb[0].mxu0
    %v908 = vadd.f32 %v540, %v907
    %v909 = vpop.f32.mrb[0].mxu0
    %910 = vdwg.mxu0
    %v915 = vcombine.high %v785, %v785
    %v917 = vunpack.c.l.s4 1966171168
    %v918 = vunpack.c.0.s8 %v917
    %v919 = vlaneseq
    %v920 = vshrl.u32 %v919, 7
    %v921 = vsub.s32 %v918, %v920
    %v922 = vrot.slane %v785, %v921
    %v924 = vunpack.c.l.s4 1966171168
    %v925 = vunpack.c.0.s8 %v924
    %v926 = vlaneseq
    %v927 = vshrl.u32 %v926, 7
    %v928 = vsub.s32 %v925, %v927
    %v929 = vrot.slane %v915, %v928
    %v930 = vcombine.high %v922, %v922
    %v931 = vcombine.high %v929, %v929
    %v933 = vunpack.c.l.s4 1966171168
    %v934 = vunpack.c.0.s8 %v933
    %v935 = vlaneseq
    %v936 = vshrl.u32 %v935, 7
    %v937 = vsub.s32 %v934, %v936
    %v938 = vrot.slane %v922, %v937
    %v940 = vunpack.c.l.s4 1966171168
    %v941 = vunpack.c.0.s8 %v940
    %v942 = vlaneseq
    %v943 = vshrl.u32 %v942, 7
    %v944 = vsub.s32 %v941, %v943
    %v945 = vrot.slane %v929, %v944
    %v947 = vunpack.c.l.s4 1966171168
    %v948 = vunpack.c.0.s8 %v947
    %v949 = vlaneseq
    %v950 = vshrl.u32 %v949, 7
    %v951 = vsub.s32 %v948, %v950
    %v952 = vrot.slane %v930, %v951
    %v954 = vunpack.c.l.s4 1966171168
    %v955 = vunpack.c.0.s8 %v954
    %v956 = vlaneseq
    %v957 = vshrl.u32 %v956, 7
    %v958 = vsub.s32 %v955, %v957
    %v959 = vrot.slane %v931, %v958
    %v960 = vcombine.high %v938, %v938
    %v961 = vcombine.high %v945, %v945
    %v962 = vcombine.high %v952, %v952
    %v963 = vcombine.high %v959, %v959
    %v964 = vcombine.high %v788, %v788
    %v966 = vunpack.c.l.s4 1966171168
    %v967 = vunpack.c.0.s8 %v966
    %v968 = vlaneseq
    %v969 = vshrl.u32 %v968, 7
    %v970 = vsub.s32 %v967, %v969
    %v971 = vrot.slane %v788, %v970
    %v973 = vunpack.c.l.s4 1966171168
    %v974 = vunpack.c.0.s8 %v973
    %v975 = vlaneseq
    %v976 = vshrl.u32 %v975, 7
    %v977 = vsub.s32 %v974, %v976
    %v978 = vrot.slane %v964, %v977
    %v979 = vcombine.high %v971, %v971
    %v980 = vcombine.high %v978, %v978
    %v982 = vunpack.c.l.s4 1966171168
    %v983 = vunpack.c.0.s8 %v982
    %v984 = vlaneseq
    %v985 = vshrl.u32 %v984, 7
    %v986 = vsub.s32 %v983, %v985
    %v987 = vrot.slane %v971, %v986
    %v989 = vunpack.c.l.s4 1966171168
    %v990 = vunpack.c.0.s8 %v989
    %v991 = vlaneseq
    %v992 = vshrl.u32 %v991, 7
    %v993 = vsub.s32 %v990, %v992
    %v994 = vrot.slane %v978, %v993
    %v996 = vunpack.c.l.s4 1966171168
    %v997 = vunpack.c.0.s8 %v996
    %v998 = vlaneseq
    %v999 = vshrl.u32 %v998, 7
    %v1000 = vsub.s32 %v997, %v999
    %v1001 = vrot.slane %v979, %v1000
    %v1003 = vunpack.c.l.s4 1966171168
    %v1004 = vunpack.c.0.s8 %v1003
    %v1005 = vlaneseq
    %v1006 = vshrl.u32 %v1005, 7
    %v1007 = vsub.s32 %v1004, %v1006
    %v1008 = vrot.slane %v980, %v1007
    %v1009 = vcombine.high %v987, %v987
    %v1010 = vcombine.high %v994, %v994
    %v1011 = vcombine.high %v1001, %v1001
    %v1012 = vcombine.high %v1008, %v1008
    %v1013 = vcombine.high %v793, %v793
    %v1015 = vunpack.c.l.s4 1966171168
    %v1016 = vunpack.c.0.s8 %v1015
    %v1017 = vlaneseq
    %v1018 = vshrl.u32 %v1017, 7
    %v1019 = vsub.s32 %v1016, %v1018
    %v1020 = vrot.slane %v793, %v1019
    %v1022 = vunpack.c.l.s4 1966171168
    %v1023 = vunpack.c.0.s8 %v1022
    %v1024 = vlaneseq
    %v1025 = vshrl.u32 %v1024, 7
    %v1026 = vsub.s32 %v1023, %v1025
    %v1027 = vrot.slane %v1013, %v1026
    %v1028 = vcombine.high %v1020, %v1020
    %v1029 = vcombine.high %v1027, %v1027
    %v1031 = vunpack.c.l.s4 1966171168
    %v1032 = vunpack.c.0.s8 %v1031
    %v1033 = vlaneseq
    %v1034 = vshrl.u32 %v1033, 7
    %v1035 = vsub.s32 %v1032, %v1034
    %v1036 = vrot.slane %v1020, %v1035
    %v1038 = vunpack.c.l.s4 1966171168
    %v1039 = vunpack.c.0.s8 %v1038
    %v1040 = vlaneseq
    %v1041 = vshrl.u32 %v1040, 7
    %v1042 = vsub.s32 %v1039, %v1041
    %v1043 = vrot.slane %v1027, %v1042
    %v1045 = vunpack.c.l.s4 1966171168
    %v1046 = vunpack.c.0.s8 %v1045
    %v1047 = vlaneseq
    %v1048 = vshrl.u32 %v1047, 7
    %v1049 = vsub.s32 %v1046, %v1048
    %v1050 = vrot.slane %v1028, %v1049
    %v1052 = vunpack.c.l.s4 1966171168
    %v1053 = vunpack.c.0.s8 %v1052
    %v1054 = vlaneseq
    %v1055 = vshrl.u32 %v1054, 7
    %v1056 = vsub.s32 %v1053, %v1055
    %v1057 = vrot.slane %v1029, %v1056
    %v1058 = vcombine.high %v1036, %v1036
    %v1059 = vcombine.high %v1043, %v1043
    %v1060 = vcombine.high %v1050, %v1050
    %v1061 = vcombine.high %v1057, %v1057
    %v1062 = vcombine.high %v796, %v796
    %v1064 = vunpack.c.l.s4 1966171168
    %v1065 = vunpack.c.0.s8 %v1064
    %v1066 = vlaneseq
    %v1067 = vshrl.u32 %v1066, 7
    %v1068 = vsub.s32 %v1065, %v1067
    %v1069 = vrot.slane %v796, %v1068
    %v1071 = vunpack.c.l.s4 1966171168
    %v1072 = vunpack.c.0.s8 %v1071
    %v1073 = vlaneseq
    %v1074 = vshrl.u32 %v1073, 7
    %v1075 = vsub.s32 %v1072, %v1074
    %v1076 = vrot.slane %v1062, %v1075
    %v1077 = vcombine.high %v1069, %v1069
    %v1078 = vcombine.high %v1076, %v1076
    %v1080 = vunpack.c.l.s4 1966171168
    %v1081 = vunpack.c.0.s8 %v1080
    %v1082 = vlaneseq
    %v1083 = vshrl.u32 %v1082, 7
    %v1084 = vsub.s32 %v1081, %v1083
    %v1085 = vrot.slane %v1069, %v1084
    %v1087 = vunpack.c.l.s4 1966171168
    %v1088 = vunpack.c.0.s8 %v1087
    %v1089 = vlaneseq
    %v1090 = vshrl.u32 %v1089, 7
    %v1091 = vsub.s32 %v1088, %v1090
    %v1092 = vrot.slane %v1076, %v1091
    %v1094 = vunpack.c.l.s4 1966171168
    %v1095 = vunpack.c.0.s8 %v1094
    %v1096 = vlaneseq
    %v1097 = vshrl.u32 %v1096, 7
    %v1098 = vsub.s32 %v1095, %v1097
    %v1099 = vrot.slane %v1077, %v1098
    %v1101 = vunpack.c.l.s4 1966171168
    %v1102 = vunpack.c.0.s8 %v1101
    %v1103 = vlaneseq
    %v1104 = vshrl.u32 %v1103, 7
    %v1105 = vsub.s32 %v1102, %v1104
    %v1106 = vrot.slane %v1078, %v1105
    %v1107 = vcombine.high %v1085, %v1085
    %v1108 = vcombine.high %v1092, %v1092
    %v1109 = vcombine.high %v1099, %v1099
    %v1110 = vcombine.high %v1106, %v1106
    %v1111 = vlaneseq
    %v1112 = vshrl.u32 %v1111, 7
    %v1113 = vsub.s32 0, %v1112
    %v1114 = vrot.slane %v938, %v1113
    %v1115 = vlaneseq
    %v1116 = vshrl.u32 %v1115, 7
    %v1117 = vsub.s32 0, %v1116
    %v1118 = vrot.slane %v952, %v1117
    %v1119 = vlaneseq
    %v1120 = vshrl.u32 %v1119, 7
    %v1121 = vsub.s32 0, %v1120
    %v1122 = vrot.slane %v960, %v1121
    %v1123 = vlaneseq
    %v1124 = vshrl.u32 %v1123, 7
    %v1125 = vsub.s32 0, %v1124
    %v1126 = vrot.slane %v962, %v1125
    %v1127 = vlaneseq
    %v1128 = vshrl.u32 %v1127, 7
    %v1129 = vsub.s32 0, %v1128
    %v1130 = vrot.slane %v945, %v1129
    %v1131 = vlaneseq
    %v1132 = vshrl.u32 %v1131, 7
    %v1133 = vsub.s32 0, %v1132
    %v1134 = vrot.slane %v959, %v1133
    %v1135 = vlaneseq
    %v1136 = vshrl.u32 %v1135, 7
    %v1137 = vsub.s32 0, %v1136
    %v1138 = vrot.slane %v961, %v1137
    %v1139 = vlaneseq
    %v1140 = vshrl.u32 %v1139, 7
    %v1141 = vsub.s32 0, %v1140
    %v1142 = vrot.slane %v963, %v1141
    %v1143 = vlaneseq
    %v1144 = vshrl.u32 %v1143, 7
    %v1145 = vsub.s32 0, %v1144
    %v1146 = vrot.slane %v987, %v1145
    %v1147 = vlaneseq
    %v1148 = vshrl.u32 %v1147, 7
    %v1149 = vsub.s32 0, %v1148
    %v1150 = vrot.slane %v1001, %v1149
    %v1151 = vlaneseq
    %v1152 = vshrl.u32 %v1151, 7
    %v1153 = vsub.s32 0, %v1152
    %v1154 = vrot.slane %v1009, %v1153
    %v1155 = vlaneseq
    %v1156 = vshrl.u32 %v1155, 7
    %v1157 = vsub.s32 0, %v1156
    %v1158 = vrot.slane %v1011, %v1157
    %v1159 = vlaneseq
    %v1160 = vshrl.u32 %v1159, 7
    %v1161 = vsub.s32 0, %v1160
    %v1162 = vrot.slane %v994, %v1161
    %v1163 = vlaneseq
    %v1164 = vshrl.u32 %v1163, 7
    %v1165 = vsub.s32 0, %v1164
    %v1166 = vrot.slane %v1008, %v1165
    %v1167 = vlaneseq
    %v1168 = vshrl.u32 %v1167, 7
    %v1169 = vsub.s32 0, %v1168
    %v1170 = vrot.slane %v1010, %v1169
    %v1171 = vlaneseq
    %v1172 = vshrl.u32 %v1171, 7
    %v1173 = vsub.s32 0, %v1172
    %v1174 = vrot.slane %v1012, %v1173
    %v1175 = vlaneseq
    %v1176 = vshrl.u32 %v1175, 7
    %v1177 = vsub.s32 0, %v1176
    %v1178 = vrot.slane %v1036, %v1177
    %v1179 = vlaneseq
    %v1180 = vshrl.u32 %v1179, 7
    %v1181 = vsub.s32 0, %v1180
    %v1182 = vrot.slane %v1050, %v1181
    %v1183 = vlaneseq
    %v1184 = vshrl.u32 %v1183, 7
    %v1185 = vsub.s32 0, %v1184
    %v1186 = vrot.slane %v1058, %v1185
    %v1187 = vlaneseq
    %v1188 = vshrl.u32 %v1187, 7
    %v1189 = vsub.s32 0, %v1188
    %v1190 = vrot.slane %v1060, %v1189
    %v1191 = vlaneseq
    %v1192 = vshrl.u32 %v1191, 7
    %v1193 = vsub.s32 0, %v1192
    %v1194 = vrot.slane %v1043, %v1193
    %v1195 = vlaneseq
    %v1196 = vshrl.u32 %v1195, 7
    %v1197 = vsub.s32 0, %v1196
    %v1198 = vrot.slane %v1057, %v1197
    %v1199 = vlaneseq
    %v1200 = vshrl.u32 %v1199, 7
    %v1201 = vsub.s32 0, %v1200
    %v1202 = vrot.slane %v1059, %v1201
    %v1203 = vlaneseq
    %v1204 = vshrl.u32 %v1203, 7
    %v1205 = vsub.s32 0, %v1204
    %v1206 = vrot.slane %v1061, %v1205
    %v1207 = vlaneseq
    %v1208 = vshrl.u32 %v1207, 7
    %v1209 = vsub.s32 0, %v1208
    %v1210 = vrot.slane %v1085, %v1209
    %v1211 = vlaneseq
    %v1212 = vshrl.u32 %v1211, 7
    %v1213 = vsub.s32 0, %v1212
    %v1214 = vrot.slane %v1099, %v1213
    %v1215 = vlaneseq
    %v1216 = vshrl.u32 %v1215, 7
    %v1217 = vsub.s32 0, %v1216
    %v1218 = vrot.slane %v1107, %v1217
    %v1219 = vlaneseq
    %v1220 = vshrl.u32 %v1219, 7
    %v1221 = vsub.s32 0, %v1220
    %v1222 = vrot.slane %v1109, %v1221
    %v1223 = vlaneseq
    %v1224 = vshrl.u32 %v1223, 7
    %v1225 = vsub.s32 0, %v1224
    %v1226 = vrot.slane %v1092, %v1225
    %v1227 = vlaneseq
    %v1228 = vshrl.u32 %v1227, 7
    %v1229 = vsub.s32 0, %v1228
    %v1230 = vrot.slane %v1106, %v1229
    %v1231 = vlaneseq
    %v1232 = vshrl.u32 %v1231, 7
    %v1233 = vsub.s32 0, %v1232
    %v1234 = vrot.slane %v1108, %v1233
    %v1235 = vlaneseq
    %v1236 = vshrl.u32 %v1235, 7
    %v1237 = vsub.s32 0, %v1236
    %v1238 = vrot.slane %v1110, %v1237
    %v1271 = vmul.f32 %v1114, %v721
    %v1272 = vmul.f32 %v1118, %v721
    %v1273 = vmul.f32 %v1122, %v721
    %v1274 = vmul.f32 %v1126, %v721
    %v1275 = vmul.f32 %v1130, %v721
    %v1276 = vmul.f32 %v1134, %v721
    %v1277 = vmul.f32 %v1138, %v721
    %v1278 = vmul.f32 %v1142, %v721
    %v1279 = vmul.f32 %v1146, %v721
    %v1280 = vmul.f32 %v1150, %v721
    %v1281 = vmul.f32 %v1154, %v721
    %v1282 = vmul.f32 %v1158, %v721
    %v1283 = vmul.f32 %v1162, %v721
    %v1284 = vmul.f32 %v1166, %v721
    %v1285 = vmul.f32 %v1170, %v721
    %v1286 = vmul.f32 %v1174, %v721
    %v1287 = vmul.f32 %v1178, %v721
    %v1288 = vmul.f32 %v1182, %v721
    %v1289 = vmul.f32 %v1186, %v721
    %v1290 = vmul.f32 %v1190, %v721
    %v1291 = vmul.f32 %v1194, %v721
    %v1292 = vmul.f32 %v1198, %v721
    %v1293 = vmul.f32 %v1202, %v721
    %v1294 = vmul.f32 %v1206, %v721
    %v1295 = vmul.f32 %v1210, %v721
    %v1296 = vmul.f32 %v1214, %v721
    %v1297 = vmul.f32 %v1218, %v721
    %v1298 = vmul.f32 %v1222, %v721
    %v1299 = vmul.f32 %v1226, %v721
    %v1300 = vmul.f32 %v1230, %v721
    %v1301 = vmul.f32 %v1234, %v721
    %v1302 = vmul.f32 %v1238, %v721
    %v1307 = vcombine.high %v801, %v801
    %v1309 = vunpack.c.l.s4 1966171168
    %v1310 = vunpack.c.0.s8 %v1309
    %v1311 = vlaneseq
    %v1312 = vshrl.u32 %v1311, 7
    %v1313 = vsub.s32 %v1310, %v1312
    %v1314 = vrot.slane %v801, %v1313
    %v1316 = vunpack.c.l.s4 1966171168
    %v1317 = vunpack.c.0.s8 %v1316
    %v1318 = vlaneseq
    %v1319 = vshrl.u32 %v1318, 7
    %v1320 = vsub.s32 %v1317, %v1319
    %v1321 = vrot.slane %v1307, %v1320
    %v1322 = vcombine.high %v1314, %v1314
    %v1323 = vcombine.high %v1321, %v1321
    %v1325 = vunpack.c.l.s4 1966171168
    %v1326 = vunpack.c.0.s8 %v1325
    %v1327 = vlaneseq
    %v1328 = vshrl.u32 %v1327, 7
    %v1329 = vsub.s32 %v1326, %v1328
    %v1330 = vrot.slane %v1314, %v1329
    %v1332 = vunpack.c.l.s4 1966171168
    %v1333 = vunpack.c.0.s8 %v1332
    %v1334 = vlaneseq
    %v1335 = vshrl.u32 %v1334, 7
    %v1336 = vsub.s32 %v1333, %v1335
    %v1337 = vrot.slane %v1321, %v1336
    %v1339 = vunpack.c.l.s4 1966171168
    %v1340 = vunpack.c.0.s8 %v1339
    %v1341 = vlaneseq
    %v1342 = vshrl.u32 %v1341, 7
    %v1343 = vsub.s32 %v1340, %v1342
    %v1344 = vrot.slane %v1322, %v1343
    %v1346 = vunpack.c.l.s4 1966171168
    %v1347 = vunpack.c.0.s8 %v1346
    %v1348 = vlaneseq
    %v1349 = vshrl.u32 %v1348, 7
    %v1350 = vsub.s32 %v1347, %v1349
    %v1351 = vrot.slane %v1323, %v1350
    %v1352 = vcombine.high %v1330, %v1330
    %v1353 = vcombine.high %v1337, %v1337
    %v1354 = vcombine.high %v1344, %v1344
    %v1355 = vcombine.high %v1351, %v1351
    %v1356 = vcombine.high %v804, %v804
    %v1358 = vunpack.c.l.s4 1966171168
    %v1359 = vunpack.c.0.s8 %v1358
    %v1360 = vlaneseq
    %v1361 = vshrl.u32 %v1360, 7
    %v1362 = vsub.s32 %v1359, %v1361
    %v1363 = vrot.slane %v804, %v1362
    %v1365 = vunpack.c.l.s4 1966171168
    %v1366 = vunpack.c.0.s8 %v1365
    %v1367 = vlaneseq
    %v1368 = vshrl.u32 %v1367, 7
    %v1369 = vsub.s32 %v1366, %v1368
    %v1370 = vrot.slane %v1356, %v1369
    %v1371 = vcombine.high %v1363, %v1363
    %v1372 = vcombine.high %v1370, %v1370
    %v1374 = vunpack.c.l.s4 1966171168
    %v1375 = vunpack.c.0.s8 %v1374
    %v1376 = vlaneseq
    %v1377 = vshrl.u32 %v1376, 7
    %v1378 = vsub.s32 %v1375, %v1377
    %v1379 = vrot.slane %v1363, %v1378
    %v1381 = vunpack.c.l.s4 1966171168
    %v1382 = vunpack.c.0.s8 %v1381
    %v1383 = vlaneseq
    %v1384 = vshrl.u32 %v1383, 7
    %v1385 = vsub.s32 %v1382, %v1384
    %v1386 = vrot.slane %v1370, %v1385
    %v1388 = vunpack.c.l.s4 1966171168
    %v1389 = vunpack.c.0.s8 %v1388
    %v1390 = vlaneseq
    %v1391 = vshrl.u32 %v1390, 7
    %v1392 = vsub.s32 %v1389, %v1391
    %v1393 = vrot.slane %v1371, %v1392
    %v1395 = vunpack.c.l.s4 1966171168
    %v1396 = vunpack.c.0.s8 %v1395
    %v1397 = vlaneseq
    %v1398 = vshrl.u32 %v1397, 7
    %v1399 = vsub.s32 %v1396, %v1398
    %v1400 = vrot.slane %v1372, %v1399
    %v1401 = vcombine.high %v1379, %v1379
    %v1402 = vcombine.high %v1386, %v1386
    %v1403 = vcombine.high %v1393, %v1393
    %v1404 = vcombine.high %v1400, %v1400
    %v1405 = vcombine.high %v809, %v809
    %v1407 = vunpack.c.l.s4 1966171168
    %v1408 = vunpack.c.0.s8 %v1407
    %v1409 = vlaneseq
    %v1410 = vshrl.u32 %v1409, 7
    %v1411 = vsub.s32 %v1408, %v1410
    %v1412 = vrot.slane %v809, %v1411
    %v1414 = vunpack.c.l.s4 1966171168
    %v1415 = vunpack.c.0.s8 %v1414
    %v1416 = vlaneseq
    %v1417 = vshrl.u32 %v1416, 7
    %v1418 = vsub.s32 %v1415, %v1417
    %v1419 = vrot.slane %v1405, %v1418
    %v1420 = vcombine.high %v1412, %v1412
    %v1421 = vcombine.high %v1419, %v1419
    %v1423 = vunpack.c.l.s4 1966171168
    %v1424 = vunpack.c.0.s8 %v1423
    %v1425 = vlaneseq
    %v1426 = vshrl.u32 %v1425, 7
    %v1427 = vsub.s32 %v1424, %v1426
    %v1428 = vrot.slane %v1412, %v1427
    %v1430 = vunpack.c.l.s4 1966171168
    %v1431 = vunpack.c.0.s8 %v1430
    %v1432 = vlaneseq
    %v1433 = vshrl.u32 %v1432, 7
    %v1434 = vsub.s32 %v1431, %v1433
    %v1435 = vrot.slane %v1419, %v1434
    %v1437 = vunpack.c.l.s4 1966171168
    %v1438 = vunpack.c.0.s8 %v1437
    %v1439 = vlaneseq
    %v1440 = vshrl.u32 %v1439, 7
    %v1441 = vsub.s32 %v1438, %v1440
    %v1442 = vrot.slane %v1420, %v1441
    %v1444 = vunpack.c.l.s4 1966171168
    %v1445 = vunpack.c.0.s8 %v1444
    %v1446 = vlaneseq
    %v1447 = vshrl.u32 %v1446, 7
    %v1448 = vsub.s32 %v1445, %v1447
    %v1449 = vrot.slane %v1421, %v1448
    %v1450 = vcombine.high %v1428, %v1428
    %v1451 = vcombine.high %v1435, %v1435
    %v1452 = vcombine.high %v1442, %v1442
    %v1453 = vcombine.high %v1449, %v1449
    %v1454 = vcombine.high %v812, %v812
    %v1456 = vunpack.c.l.s4 1966171168
    %v1457 = vunpack.c.0.s8 %v1456
    %v1458 = vlaneseq
    %v1459 = vshrl.u32 %v1458, 7
    %v1460 = vsub.s32 %v1457, %v1459
    %v1461 = vrot.slane %v812, %v1460
    %v1463 = vunpack.c.l.s4 1966171168
    %v1464 = vunpack.c.0.s8 %v1463
    %v1465 = vlaneseq
    %v1466 = vshrl.u32 %v1465, 7
    %v1467 = vsub.s32 %v1464, %v1466
    %v1468 = vrot.slane %v1454, %v1467
    %v1469 = vcombine.high %v1461, %v1461
    %v1470 = vcombine.high %v1468, %v1468
    %v1472 = vunpack.c.l.s4 1966171168
    %v1473 = vunpack.c.0.s8 %v1472
    %v1474 = vlaneseq
    %v1475 = vshrl.u32 %v1474, 7
    %v1476 = vsub.s32 %v1473, %v1475
    %v1477 = vrot.slane %v1461, %v1476
    %v1479 = vunpack.c.l.s4 1966171168
    %v1480 = vunpack.c.0.s8 %v1479
    %v1481 = vlaneseq
    %v1482 = vshrl.u32 %v1481, 7
    %v1483 = vsub.s32 %v1480, %v1482
    %v1484 = vrot.slane %v1468, %v1483
    %v1486 = vunpack.c.l.s4 1966171168
    %v1487 = vunpack.c.0.s8 %v1486
    %v1488 = vlaneseq
    %v1489 = vshrl.u32 %v1488, 7
    %v1490 = vsub.s32 %v1487, %v1489
    %v1491 = vrot.slane %v1469, %v1490
    %v1493 = vunpack.c.l.s4 1966171168
    %v1494 = vunpack.c.0.s8 %v1493
    %v1495 = vlaneseq
    %v1496 = vshrl.u32 %v1495, 7
    %v1497 = vsub.s32 %v1494, %v1496
    %v1498 = vrot.slane %v1470, %v1497
    %v1499 = vcombine.high %v1477, %v1477
    %v1500 = vcombine.high %v1484, %v1484
    %v1501 = vcombine.high %v1491, %v1491
    %v1502 = vcombine.high %v1498, %v1498
    %v1503 = vlaneseq
    %v1504 = vshrl.u32 %v1503, 7
    %v1505 = vsub.s32 0, %v1504
    %v1506 = vrot.slane %v1330, %v1505
    %v1507 = vlaneseq
    %v1508 = vshrl.u32 %v1507, 7
    %v1509 = vsub.s32 0, %v1508
    %v1510 = vrot.slane %v1344, %v1509
    %v1511 = vlaneseq
    %v1512 = vshrl.u32 %v1511, 7
    %v1513 = vsub.s32 0, %v1512
    %v1514 = vrot.slane %v1352, %v1513
    %v1515 = vlaneseq
    %v1516 = vshrl.u32 %v1515, 7
    %v1517 = vsub.s32 0, %v1516
    %v1518 = vrot.slane %v1354, %v1517
    %v1519 = vlaneseq
    %v1520 = vshrl.u32 %v1519, 7
    %v1521 = vsub.s32 0, %v1520
    %v1522 = vrot.slane %v1337, %v1521
    %v1523 = vlaneseq
    %v1524 = vshrl.u32 %v1523, 7
    %v1525 = vsub.s32 0, %v1524
    %v1526 = vrot.slane %v1351, %v1525
    %v1527 = vlaneseq
    %v1528 = vshrl.u32 %v1527, 7
    %v1529 = vsub.s32 0, %v1528
    %v1530 = vrot.slane %v1353, %v1529
    %v1531 = vlaneseq
    %v1532 = vshrl.u32 %v1531, 7
    %v1533 = vsub.s32 0, %v1532
    %v1534 = vrot.slane %v1355, %v1533
    %v1535 = vlaneseq
    %v1536 = vshrl.u32 %v1535, 7
    %v1537 = vsub.s32 0, %v1536
    %v1538 = vrot.slane %v1379, %v1537
    %v1539 = vlaneseq
    %v1540 = vshrl.u32 %v1539, 7
    %v1541 = vsub.s32 0, %v1540
    %v1542 = vrot.slane %v1393, %v1541
    %v1543 = vlaneseq
    %v1544 = vshrl.u32 %v1543, 7
    %v1545 = vsub.s32 0, %v1544
    %v1546 = vrot.slane %v1401, %v1545
    %v1547 = vlaneseq
    %v1548 = vshrl.u32 %v1547, 7
    %v1549 = vsub.s32 0, %v1548
    %v1550 = vrot.slane %v1403, %v1549
    %v1551 = vlaneseq
    %v1552 = vshrl.u32 %v1551, 7
    %v1553 = vsub.s32 0, %v1552
    %v1554 = vrot.slane %v1386, %v1553
    %v1555 = vlaneseq
    %v1556 = vshrl.u32 %v1555, 7
    %v1557 = vsub.s32 0, %v1556
    %v1558 = vrot.slane %v1400, %v1557
    %v1559 = vlaneseq
    %v1560 = vshrl.u32 %v1559, 7
    %v1561 = vsub.s32 0, %v1560
    %v1562 = vrot.slane %v1402, %v1561
    %v1563 = vlaneseq
    %v1564 = vshrl.u32 %v1563, 7
    %v1565 = vsub.s32 0, %v1564
    %v1566 = vrot.slane %v1404, %v1565
    %v1567 = vlaneseq
    %v1568 = vshrl.u32 %v1567, 7
    %v1569 = vsub.s32 0, %v1568
    %v1570 = vrot.slane %v1428, %v1569
    %v1571 = vlaneseq
    %v1572 = vshrl.u32 %v1571, 7
    %v1573 = vsub.s32 0, %v1572
    %v1574 = vrot.slane %v1442, %v1573
    %v1575 = vlaneseq
    %v1576 = vshrl.u32 %v1575, 7
    %v1577 = vsub.s32 0, %v1576
    %v1578 = vrot.slane %v1450, %v1577
    %v1579 = vlaneseq
    %v1580 = vshrl.u32 %v1579, 7
    %v1581 = vsub.s32 0, %v1580
    %v1582 = vrot.slane %v1452, %v1581
    %v1583 = vlaneseq
    %v1584 = vshrl.u32 %v1583, 7
    %v1585 = vsub.s32 0, %v1584
    %v1586 = vrot.slane %v1435, %v1585
    %v1587 = vlaneseq
    %v1588 = vshrl.u32 %v1587, 7
    %v1589 = vsub.s32 0, %v1588
    %v1590 = vrot.slane %v1449, %v1589
    %v1591 = vlaneseq
    %v1592 = vshrl.u32 %v1591, 7
    %v1593 = vsub.s32 0, %v1592
    %v1594 = vrot.slane %v1451, %v1593
    %v1595 = vlaneseq
    %v1596 = vshrl.u32 %v1595, 7
    %v1597 = vsub.s32 0, %v1596
    %v1598 = vrot.slane %v1453, %v1597
    %v1599 = vlaneseq
    %v1600 = vshrl.u32 %v1599, 7
    %v1601 = vsub.s32 0, %v1600
    %v1602 = vrot.slane %v1477, %v1601
    %v1603 = vlaneseq
    %v1604 = vshrl.u32 %v1603, 7
    %v1605 = vsub.s32 0, %v1604
    %v1606 = vrot.slane %v1491, %v1605
    %v1607 = vlaneseq
    %v1608 = vshrl.u32 %v1607, 7
    %v1609 = vsub.s32 0, %v1608
    %v1610 = vrot.slane %v1499, %v1609
    %v1611 = vlaneseq
    %v1612 = vshrl.u32 %v1611, 7
    %v1613 = vsub.s32 0, %v1612
    %v1614 = vrot.slane %v1501, %v1613
    %v1615 = vlaneseq
    %v1616 = vshrl.u32 %v1615, 7
    %v1617 = vsub.s32 0, %v1616
    %v1618 = vrot.slane %v1484, %v1617
    %v1619 = vlaneseq
    %v1620 = vshrl.u32 %v1619, 7
    %v1621 = vsub.s32 0, %v1620
    %v1622 = vrot.slane %v1498, %v1621
    %v1623 = vlaneseq
    %v1624 = vshrl.u32 %v1623, 7
    %v1625 = vsub.s32 0, %v1624
    %v1626 = vrot.slane %v1500, %v1625
    %v1627 = vlaneseq
    %v1628 = vshrl.u32 %v1627, 7
    %v1629 = vsub.s32 0, %v1628
    %v1630 = vrot.slane %v1502, %v1629
    %v1663 = vmul.f32 %v1506, %v737
    %v1664 = vmul.f32 %v1510, %v737
    %v1665 = vmul.f32 %v1514, %v737
    %v1666 = vmul.f32 %v1518, %v737
    %v1667 = vmul.f32 %v1522, %v737
    %v1668 = vmul.f32 %v1526, %v737
    %v1669 = vmul.f32 %v1530, %v737
    %v1670 = vmul.f32 %v1534, %v737
    %v1671 = vmul.f32 %v1538, %v737
    %v1672 = vmul.f32 %v1542, %v737
    %v1673 = vmul.f32 %v1546, %v737
    %v1674 = vmul.f32 %v1550, %v737
    %v1675 = vmul.f32 %v1554, %v737
    %v1676 = vmul.f32 %v1558, %v737
    %v1677 = vmul.f32 %v1562, %v737
    %v1678 = vmul.f32 %v1566, %v737
    %v1679 = vmul.f32 %v1570, %v737
    %v1680 = vmul.f32 %v1574, %v737
    %v1681 = vmul.f32 %v1578, %v737
    %v1682 = vmul.f32 %v1582, %v737
    %v1683 = vmul.f32 %v1586, %v737
    %v1684 = vmul.f32 %v1590, %v737
    %v1685 = vmul.f32 %v1594, %v737
    %v1686 = vmul.f32 %v1598, %v737
    %v1687 = vmul.f32 %v1602, %v737
    %v1688 = vmul.f32 %v1606, %v737
    %v1689 = vmul.f32 %v1610, %v737
    %v1690 = vmul.f32 %v1614, %v737
    %v1691 = vmul.f32 %v1618, %v737
    %v1692 = vmul.f32 %v1622, %v737
    %v1693 = vmul.f32 %v1626, %v737
    %v1694 = vmul.f32 %v1630, %v737
    %v1695 = vadd.f32 %v1271, %v1663
    %v1696 = vadd.f32 %v1272, %v1664
    %v1697 = vadd.f32 %v1273, %v1665
    %v1698 = vadd.f32 %v1274, %v1666
    %v1699 = vadd.f32 %v1275, %v1667
    %v1700 = vadd.f32 %v1276, %v1668
    %v1701 = vadd.f32 %v1277, %v1669
    %v1702 = vadd.f32 %v1278, %v1670
    %v1703 = vadd.f32 %v1279, %v1671
    %v1704 = vadd.f32 %v1280, %v1672
    %v1705 = vadd.f32 %v1281, %v1673
    %v1706 = vadd.f32 %v1282, %v1674
    %v1707 = vadd.f32 %v1283, %v1675
    %v1708 = vadd.f32 %v1284, %v1676
    %v1709 = vadd.f32 %v1285, %v1677
    %v1710 = vadd.f32 %v1286, %v1678
    %v1711 = vadd.f32 %v1287, %v1679
    %v1712 = vadd.f32 %v1288, %v1680
    %v1713 = vadd.f32 %v1289, %v1681
    %v1714 = vadd.f32 %v1290, %v1682
    %v1715 = vadd.f32 %v1291, %v1683
    %v1716 = vadd.f32 %v1292, %v1684
    %v1717 = vadd.f32 %v1293, %v1685
    %v1718 = vadd.f32 %v1294, %v1686
    %v1719 = vadd.f32 %v1295, %v1687
    %v1720 = vadd.f32 %v1296, %v1688
    %v1721 = vadd.f32 %v1297, %v1689
    %v1722 = vadd.f32 %v1298, %v1690
    %v1723 = vadd.f32 %v1299, %v1691
    %v1724 = vadd.f32 %v1300, %v1692
    %v1725 = vadd.f32 %v1301, %v1693
    %v1726 = vadd.f32 %v1302, %v1694
    %v1731 = vcombine.high %v817, %v817
    %v1733 = vunpack.c.l.s4 1966171168
    %v1734 = vunpack.c.0.s8 %v1733
    %v1735 = vlaneseq
    %v1736 = vshrl.u32 %v1735, 7
    %v1737 = vsub.s32 %v1734, %v1736
    %v1738 = vrot.slane %v817, %v1737
    %v1740 = vunpack.c.l.s4 1966171168
    %v1741 = vunpack.c.0.s8 %v1740
    %v1742 = vlaneseq
    %v1743 = vshrl.u32 %v1742, 7
    %v1744 = vsub.s32 %v1741, %v1743
    %v1745 = vrot.slane %v1731, %v1744
    %v1746 = vcombine.high %v1738, %v1738
    %v1747 = vcombine.high %v1745, %v1745
    %v1749 = vunpack.c.l.s4 1966171168
    %v1750 = vunpack.c.0.s8 %v1749
    %v1751 = vlaneseq
    %v1752 = vshrl.u32 %v1751, 7
    %v1753 = vsub.s32 %v1750, %v1752
    %v1754 = vrot.slane %v1738, %v1753
    %v1756 = vunpack.c.l.s4 1966171168
    %v1757 = vunpack.c.0.s8 %v1756
    %v1758 = vlaneseq
    %v1759 = vshrl.u32 %v1758, 7
    %v1760 = vsub.s32 %v1757, %v1759
    %v1761 = vrot.slane %v1745, %v1760
    %v1763 = vunpack.c.l.s4 1966171168
    %v1764 = vunpack.c.0.s8 %v1763
    %v1765 = vlaneseq
    %v1766 = vshrl.u32 %v1765, 7
    %v1767 = vsub.s32 %v1764, %v1766
    %v1768 = vrot.slane %v1746, %v1767
    %v1770 = vunpack.c.l.s4 1966171168
    %v1771 = vunpack.c.0.s8 %v1770
    %v1772 = vlaneseq
    %v1773 = vshrl.u32 %v1772, 7
    %v1774 = vsub.s32 %v1771, %v1773
    %v1775 = vrot.slane %v1747, %v1774
    %v1776 = vcombine.high %v1754, %v1754
    %v1777 = vcombine.high %v1761, %v1761
    %v1778 = vcombine.high %v1768, %v1768
    %v1779 = vcombine.high %v1775, %v1775
    %v1780 = vcombine.high %v820, %v820
    %v1782 = vunpack.c.l.s4 1966171168
    %v1783 = vunpack.c.0.s8 %v1782
    %v1784 = vlaneseq
    %v1785 = vshrl.u32 %v1784, 7
    %v1786 = vsub.s32 %v1783, %v1785
    %v1787 = vrot.slane %v820, %v1786
    %v1789 = vunpack.c.l.s4 1966171168
    %v1790 = vunpack.c.0.s8 %v1789
    %v1791 = vlaneseq
    %v1792 = vshrl.u32 %v1791, 7
    %v1793 = vsub.s32 %v1790, %v1792
    %v1794 = vrot.slane %v1780, %v1793
    %v1795 = vcombine.high %v1787, %v1787
    %v1796 = vcombine.high %v1794, %v1794
    %v1798 = vunpack.c.l.s4 1966171168
    %v1799 = vunpack.c.0.s8 %v1798
    %v1800 = vlaneseq
    %v1801 = vshrl.u32 %v1800, 7
    %v1802 = vsub.s32 %v1799, %v1801
    %v1803 = vrot.slane %v1787, %v1802
    %v1805 = vunpack.c.l.s4 1966171168
    %v1806 = vunpack.c.0.s8 %v1805
    %v1807 = vlaneseq
    %v1808 = vshrl.u32 %v1807, 7
    %v1809 = vsub.s32 %v1806, %v1808
    %v1810 = vrot.slane %v1794, %v1809
    %v1812 = vunpack.c.l.s4 1966171168
    %v1813 = vunpack.c.0.s8 %v1812
    %v1814 = vlaneseq
    %v1815 = vshrl.u32 %v1814, 7
    %v1816 = vsub.s32 %v1813, %v1815
    %v1817 = vrot.slane %v1795, %v1816
    %v1819 = vunpack.c.l.s4 1966171168
    %v1820 = vunpack.c.0.s8 %v1819
    %v1821 = vlaneseq
    %v1822 = vshrl.u32 %v1821, 7
    %v1823 = vsub.s32 %v1820, %v1822
    %v1824 = vrot.slane %v1796, %v1823
    %v1825 = vcombine.high %v1803, %v1803
    %v1826 = vcombine.high %v1810, %v1810
    %v1827 = vcombine.high %v1817, %v1817
    %v1828 = vcombine.high %v1824, %v1824
    %v1829 = vcombine.high %v825, %v825
    %v1831 = vunpack.c.l.s4 1966171168
    %v1832 = vunpack.c.0.s8 %v1831
    %v1833 = vlaneseq
    %v1834 = vshrl.u32 %v1833, 7
    %v1835 = vsub.s32 %v1832, %v1834
    %v1836 = vrot.slane %v825, %v1835
    %v1838 = vunpack.c.l.s4 1966171168
    %v1839 = vunpack.c.0.s8 %v1838
    %v1840 = vlaneseq
    %v1841 = vshrl.u32 %v1840, 7
    %v1842 = vsub.s32 %v1839, %v1841
    %v1843 = vrot.slane %v1829, %v1842
    %v1844 = vcombine.high %v1836, %v1836
    %v1845 = vcombine.high %v1843, %v1843
    %v1847 = vunpack.c.l.s4 1966171168
    %v1848 = vunpack.c.0.s8 %v1847
    %v1849 = vlaneseq
    %v1850 = vshrl.u32 %v1849, 7
    %v1851 = vsub.s32 %v1848, %v1850
    %v1852 = vrot.slane %v1836, %v1851
    %v1854 = vunpack.c.l.s4 1966171168
    %v1855 = vunpack.c.0.s8 %v1854
    %v1856 = vlaneseq
    %v1857 = vshrl.u32 %v1856, 7
    %v1858 = vsub.s32 %v1855, %v1857
    %v1859 = vrot.slane %v1843, %v1858
    %v1861 = vunpack.c.l.s4 1966171168
    %v1862 = vunpack.c.0.s8 %v1861
    %v1863 = vlaneseq
    %v1864 = vshrl.u32 %v1863, 7
    %v1865 = vsub.s32 %v1862, %v1864
    %v1866 = vrot.slane %v1844, %v1865
    %v1868 = vunpack.c.l.s4 1966171168
    %v1869 = vunpack.c.0.s8 %v1868
    %v1870 = vlaneseq
    %v1871 = vshrl.u32 %v1870, 7
    %v1872 = vsub.s32 %v1869, %v1871
    %v1873 = vrot.slane %v1845, %v1872
    %v1874 = vcombine.high %v1852, %v1852
    %v1875 = vcombine.high %v1859, %v1859
    %v1876 = vcombine.high %v1866, %v1866
    %v1877 = vcombine.high %v1873, %v1873
    %v1878 = vcombine.high %v828, %v828
    %v1880 = vunpack.c.l.s4 1966171168
    %v1881 = vunpack.c.0.s8 %v1880
    %v1882 = vlaneseq
    %v1883 = vshrl.u32 %v1882, 7
    %v1884 = vsub.s32 %v1881, %v1883
    %v1885 = vrot.slane %v828, %v1884
    %v1887 = vunpack.c.l.s4 1966171168
    %v1888 = vunpack.c.0.s8 %v1887
    %v1889 = vlaneseq
    %v1890 = vshrl.u32 %v1889, 7
    %v1891 = vsub.s32 %v1888, %v1890
    %v1892 = vrot.slane %v1878, %v1891
    %v1893 = vcombine.high %v1885, %v1885
    %v1894 = vcombine.high %v1892, %v1892
    %v1896 = vunpack.c.l.s4 1966171168
    %v1897 = vunpack.c.0.s8 %v1896
    %v1898 = vlaneseq
    %v1899 = vshrl.u32 %v1898, 7
    %v1900 = vsub.s32 %v1897, %v1899
    %v1901 = vrot.slane %v1885, %v1900
    %v1903 = vunpack.c.l.s4 1966171168
    %v1904 = vunpack.c.0.s8 %v1903
    %v1905 = vlaneseq
    %v1906 = vshrl.u32 %v1905, 7
    %v1907 = vsub.s32 %v1904, %v1906
    %v1908 = vrot.slane %v1892, %v1907
    %v1910 = vunpack.c.l.s4 1966171168
    %v1911 = vunpack.c.0.s8 %v1910
    %v1912 = vlaneseq
    %v1913 = vshrl.u32 %v1912, 7
    %v1914 = vsub.s32 %v1911, %v1913
    %v1915 = vrot.slane %v1893, %v1914
    %v1917 = vunpack.c.l.s4 1966171168
    %v1918 = vunpack.c.0.s8 %v1917
    %v1919 = vlaneseq
    %v1920 = vshrl.u32 %v1919, 7
    %v1921 = vsub.s32 %v1918, %v1920
    %v1922 = vrot.slane %v1894, %v1921
    %v1923 = vcombine.high %v1901, %v1901
    %v1924 = vcombine.high %v1908, %v1908
    %v1925 = vcombine.high %v1915, %v1915
    %v1926 = vcombine.high %v1922, %v1922
    %v1927 = vlaneseq
    %v1928 = vshrl.u32 %v1927, 7
    %v1929 = vsub.s32 0, %v1928
    %v1930 = vrot.slane %v1754, %v1929
    %v1931 = vlaneseq
    %v1932 = vshrl.u32 %v1931, 7
    %v1933 = vsub.s32 0, %v1932
    %v1934 = vrot.slane %v1768, %v1933
    %v1935 = vlaneseq
    %v1936 = vshrl.u32 %v1935, 7
    %v1937 = vsub.s32 0, %v1936
    %v1938 = vrot.slane %v1776, %v1937
    %v1939 = vlaneseq
    %v1940 = vshrl.u32 %v1939, 7
    %v1941 = vsub.s32 0, %v1940
    %v1942 = vrot.slane %v1778, %v1941
    %v1943 = vlaneseq
    %v1944 = vshrl.u32 %v1943, 7
    %v1945 = vsub.s32 0, %v1944
    %v1946 = vrot.slane %v1761, %v1945
    %v1947 = vlaneseq
    %v1948 = vshrl.u32 %v1947, 7
    %v1949 = vsub.s32 0, %v1948
    %v1950 = vrot.slane %v1775, %v1949
    %v1951 = vlaneseq
    %v1952 = vshrl.u32 %v1951, 7
    %v1953 = vsub.s32 0, %v1952
    %v1954 = vrot.slane %v1777, %v1953
    %v1955 = vlaneseq
    %v1956 = vshrl.u32 %v1955, 7
    %v1957 = vsub.s32 0, %v1956
    %v1958 = vrot.slane %v1779, %v1957
    %v1959 = vlaneseq
    %v1960 = vshrl.u32 %v1959, 7
    %v1961 = vsub.s32 0, %v1960
    %v1962 = vrot.slane %v1803, %v1961
    %v1963 = vlaneseq
    %v1964 = vshrl.u32 %v1963, 7
    %v1965 = vsub.s32 0, %v1964
    %v1966 = vrot.slane %v1817, %v1965
    %v1967 = vlaneseq
    %v1968 = vshrl.u32 %v1967, 7
    %v1969 = vsub.s32 0, %v1968
    %v1970 = vrot.slane %v1825, %v1969
    %v1971 = vlaneseq
    %v1972 = vshrl.u32 %v1971, 7
    %v1973 = vsub.s32 0, %v1972
    %v1974 = vrot.slane %v1827, %v1973
    %v1975 = vlaneseq
    %v1976 = vshrl.u32 %v1975, 7
    %v1977 = vsub.s32 0, %v1976
    %v1978 = vrot.slane %v1810, %v1977
    %v1979 = vlaneseq
    %v1980 = vshrl.u32 %v1979, 7
    %v1981 = vsub.s32 0, %v1980
    %v1982 = vrot.slane %v1824, %v1981
    %v1983 = vlaneseq
    %v1984 = vshrl.u32 %v1983, 7
    %v1985 = vsub.s32 0, %v1984
    %v1986 = vrot.slane %v1826, %v1985
    %v1987 = vlaneseq
    %v1988 = vshrl.u32 %v1987, 7
    %v1989 = vsub.s32 0, %v1988
    %v1990 = vrot.slane %v1828, %v1989
    %v1991 = vlaneseq
    %v1992 = vshrl.u32 %v1991, 7
    %v1993 = vsub.s32 0, %v1992
    %v1994 = vrot.slane %v1852, %v1993
    %v1995 = vlaneseq
    %v1996 = vshrl.u32 %v1995, 7
    %v1997 = vsub.s32 0, %v1996
    %v1998 = vrot.slane %v1866, %v1997
    %v1999 = vlaneseq
    %v2000 = vshrl.u32 %v1999, 7
    %v2001 = vsub.s32 0, %v2000
    %v2002 = vrot.slane %v1874, %v2001
    %v2003 = vlaneseq
    %v2004 = vshrl.u32 %v2003, 7
    %v2005 = vsub.s32 0, %v2004
    %v2006 = vrot.slane %v1876, %v2005
    %v2007 = vlaneseq
    %v2008 = vshrl.u32 %v2007, 7
    %v2009 = vsub.s32 0, %v2008
    %v2010 = vrot.slane %v1859, %v2009
    %v2011 = vlaneseq
    %v2012 = vshrl.u32 %v2011, 7
    %v2013 = vsub.s32 0, %v2012
    %v2014 = vrot.slane %v1873, %v2013
    %v2015 = vlaneseq
    %v2016 = vshrl.u32 %v2015, 7
    %v2017 = vsub.s32 0, %v2016
    %v2018 = vrot.slane %v1875, %v2017
    %v2019 = vlaneseq
    %v2020 = vshrl.u32 %v2019, 7
    %v2021 = vsub.s32 0, %v2020
    %v2022 = vrot.slane %v1877, %v2021
    %v2023 = vlaneseq
    %v2024 = vshrl.u32 %v2023, 7
    %v2025 = vsub.s32 0, %v2024
    %v2026 = vrot.slane %v1901, %v2025
    %v2027 = vlaneseq
    %v2028 = vshrl.u32 %v2027, 7
    %v2029 = vsub.s32 0, %v2028
    %v2030 = vrot.slane %v1915, %v2029
    %v2031 = vlaneseq
    %v2032 = vshrl.u32 %v2031, 7
    %v2033 = vsub.s32 0, %v2032
    %v2034 = vrot.slane %v1923, %v2033
    %v2035 = vlaneseq
    %v2036 = vshrl.u32 %v2035, 7
    %v2037 = vsub.s32 0, %v2036
    %v2038 = vrot.slane %v1925, %v2037
    %v2039 = vlaneseq
    %v2040 = vshrl.u32 %v2039, 7
    %v2041 = vsub.s32 0, %v2040
    %v2042 = vrot.slane %v1908, %v2041
    %v2043 = vlaneseq
    %v2044 = vshrl.u32 %v2043, 7
    %v2045 = vsub.s32 0, %v2044
    %v2046 = vrot.slane %v1922, %v2045
    %v2047 = vlaneseq
    %v2048 = vshrl.u32 %v2047, 7
    %v2049 = vsub.s32 0, %v2048
    %v2050 = vrot.slane %v1924, %v2049
    %v2051 = vlaneseq
    %v2052 = vshrl.u32 %v2051, 7
    %v2053 = vsub.s32 0, %v2052
    %v2054 = vrot.slane %v1926, %v2053
    %v2087 = vmul.f32 %v1930, %v753
    %v2088 = vmul.f32 %v1934, %v753
    %v2089 = vmul.f32 %v1938, %v753
    %v2090 = vmul.f32 %v1942, %v753
    %v2091 = vmul.f32 %v1946, %v753
    %v2092 = vmul.f32 %v1950, %v753
    %v2093 = vmul.f32 %v1954, %v753
    %v2094 = vmul.f32 %v1958, %v753
    %v2095 = vmul.f32 %v1962, %v753
    %v2096 = vmul.f32 %v1966, %v753
    %v2097 = vmul.f32 %v1970, %v753
    %v2098 = vmul.f32 %v1974, %v753
    %v2099 = vmul.f32 %v1978, %v753
    %v2100 = vmul.f32 %v1982, %v753
    %v2101 = vmul.f32 %v1986, %v753
    %v2102 = vmul.f32 %v1990, %v753
    %v2103 = vmul.f32 %v1994, %v753
    %v2104 = vmul.f32 %v1998, %v753
    %v2105 = vmul.f32 %v2002, %v753
    %v2106 = vmul.f32 %v2006, %v753
    %v2107 = vmul.f32 %v2010, %v753
    %v2108 = vmul.f32 %v2014, %v753
    %v2109 = vmul.f32 %v2018, %v753
    %v2110 = vmul.f32 %v2022, %v753
    %v2111 = vmul.f32 %v2026, %v753
    %v2112 = vmul.f32 %v2030, %v753
    %v2113 = vmul.f32 %v2034, %v753
    %v2114 = vmul.f32 %v2038, %v753
    %v2115 = vmul.f32 %v2042, %v753
    %v2116 = vmul.f32 %v2046, %v753
    %v2117 = vmul.f32 %v2050, %v753
    %v2118 = vmul.f32 %v2054, %v753
    %v2119 = vadd.f32 %v1695, %v2087
    %v2120 = vadd.f32 %v1696, %v2088
    %v2121 = vadd.f32 %v1697, %v2089
    %v2122 = vadd.f32 %v1698, %v2090
    %v2123 = vadd.f32 %v1699, %v2091
    %v2124 = vadd.f32 %v1700, %v2092
    %v2125 = vadd.f32 %v1701, %v2093
    %v2126 = vadd.f32 %v1702, %v2094
    %v2127 = vadd.f32 %v1703, %v2095
    %v2128 = vadd.f32 %v1704, %v2096
    %v2129 = vadd.f32 %v1705, %v2097
    %v2130 = vadd.f32 %v1706, %v2098
    %v2131 = vadd.f32 %v1707, %v2099
    %v2132 = vadd.f32 %v1708, %v2100
    %v2133 = vadd.f32 %v1709, %v2101
    %v2134 = vadd.f32 %v1710, %v2102
    %v2135 = vadd.f32 %v1711, %v2103
    %v2136 = vadd.f32 %v1712, %v2104
    %v2137 = vadd.f32 %v1713, %v2105
    %v2138 = vadd.f32 %v1714, %v2106
    %v2139 = vadd.f32 %v1715, %v2107
    %v2140 = vadd.f32 %v1716, %v2108
    %v2141 = vadd.f32 %v1717, %v2109
    %v2142 = vadd.f32 %v1718, %v2110
    %v2143 = vadd.f32 %v1719, %v2111
    %v2144 = vadd.f32 %v1720, %v2112
    %v2145 = vadd.f32 %v1721, %v2113
    %v2146 = vadd.f32 %v1722, %v2114
    %v2147 = vadd.f32 %v1723, %v2115
    %v2148 = vadd.f32 %v1724, %v2116
    %v2149 = vadd.f32 %v1725, %v2117
    %v2150 = vadd.f32 %v1726, %v2118
    %v2155 = vcombine.high %v833, %v833
    %v2157 = vunpack.c.l.s4 1966171168
    %v2158 = vunpack.c.0.s8 %v2157
    %v2159 = vlaneseq
    %v2160 = vshrl.u32 %v2159, 7
    %v2161 = vsub.s32 %v2158, %v2160
    %v2162 = vrot.slane %v833, %v2161
    %v2164 = vunpack.c.l.s4 1966171168
    %v2165 = vunpack.c.0.s8 %v2164
    %v2166 = vlaneseq
    %v2167 = vshrl.u32 %v2166, 7
    %v2168 = vsub.s32 %v2165, %v2167
    %v2169 = vrot.slane %v2155, %v2168
    %v2170 = vcombine.high %v2162, %v2162
    %v2171 = vcombine.high %v2169, %v2169
    %v2173 = vunpack.c.l.s4 1966171168
    %v2174 = vunpack.c.0.s8 %v2173
    %v2175 = vlaneseq
    %v2176 = vshrl.u32 %v2175, 7
    %v2177 = vsub.s32 %v2174, %v2176
    %v2178 = vrot.slane %v2162, %v2177
    %v2180 = vunpack.c.l.s4 1966171168
    %v2181 = vunpack.c.0.s8 %v2180
    %v2182 = vlaneseq
    %v2183 = vshrl.u32 %v2182, 7
    %v2184 = vsub.s32 %v2181, %v2183
    %v2185 = vrot.slane %v2169, %v2184
    %v2187 = vunpack.c.l.s4 1966171168
    %v2188 = vunpack.c.0.s8 %v2187
    %v2189 = vlaneseq
    %v2190 = vshrl.u32 %v2189, 7
    %v2191 = vsub.s32 %v2188, %v2190
    %v2192 = vrot.slane %v2170, %v2191
    %v2194 = vunpack.c.l.s4 1966171168
    %v2195 = vunpack.c.0.s8 %v2194
    %v2196 = vlaneseq
    %v2197 = vshrl.u32 %v2196, 7
    %v2198 = vsub.s32 %v2195, %v2197
    %v2199 = vrot.slane %v2171, %v2198
    %v2200 = vcombine.high %v2178, %v2178
    %v2201 = vcombine.high %v2185, %v2185
    %v2202 = vcombine.high %v2192, %v2192
    %v2203 = vcombine.high %v2199, %v2199
    %v2204 = vcombine.high %v836, %v836
    %v2206 = vunpack.c.l.s4 1966171168
    %v2207 = vunpack.c.0.s8 %v2206
    %v2208 = vlaneseq
    %v2209 = vshrl.u32 %v2208, 7
    %v2210 = vsub.s32 %v2207, %v2209
    %v2211 = vrot.slane %v836, %v2210
    %v2213 = vunpack.c.l.s4 1966171168
    %v2214 = vunpack.c.0.s8 %v2213
    %v2215 = vlaneseq
    %v2216 = vshrl.u32 %v2215, 7
    %v2217 = vsub.s32 %v2214, %v2216
    %v2218 = vrot.slane %v2204, %v2217
    %v2219 = vcombine.high %v2211, %v2211
    %v2220 = vcombine.high %v2218, %v2218
    %v2222 = vunpack.c.l.s4 1966171168
    %v2223 = vunpack.c.0.s8 %v2222
    %v2224 = vlaneseq
    %v2225 = vshrl.u32 %v2224, 7
    %v2226 = vsub.s32 %v2223, %v2225
    %v2227 = vrot.slane %v2211, %v2226
    %v2229 = vunpack.c.l.s4 1966171168
    %v2230 = vunpack.c.0.s8 %v2229
    %v2231 = vlaneseq
    %v2232 = vshrl.u32 %v2231, 7
    %v2233 = vsub.s32 %v2230, %v2232
    %v2234 = vrot.slane %v2218, %v2233
    %v2236 = vunpack.c.l.s4 1966171168
    %v2237 = vunpack.c.0.s8 %v2236
    %v2238 = vlaneseq
    %v2239 = vshrl.u32 %v2238, 7
    %v2240 = vsub.s32 %v2237, %v2239
    %v2241 = vrot.slane %v2219, %v2240
    %v2243 = vunpack.c.l.s4 1966171168
    %v2244 = vunpack.c.0.s8 %v2243
    %v2245 = vlaneseq
    %v2246 = vshrl.u32 %v2245, 7
    %v2247 = vsub.s32 %v2244, %v2246
    %v2248 = vrot.slane %v2220, %v2247
    %v2249 = vcombine.high %v2227, %v2227
    %v2250 = vcombine.high %v2234, %v2234
    %v2251 = vcombine.high %v2241, %v2241
    %v2252 = vcombine.high %v2248, %v2248
    %v2253 = vcombine.high %v841, %v841
    %v2255 = vunpack.c.l.s4 1966171168
    %v2256 = vunpack.c.0.s8 %v2255
    %v2257 = vlaneseq
    %v2258 = vshrl.u32 %v2257, 7
    %v2259 = vsub.s32 %v2256, %v2258
    %v2260 = vrot.slane %v841, %v2259
    %v2262 = vunpack.c.l.s4 1966171168
    %v2263 = vunpack.c.0.s8 %v2262
    %v2264 = vlaneseq
    %v2265 = vshrl.u32 %v2264, 7
    %v2266 = vsub.s32 %v2263, %v2265
    %v2267 = vrot.slane %v2253, %v2266
    %v2268 = vcombine.high %v2260, %v2260
    %v2269 = vcombine.high %v2267, %v2267
    %v2271 = vunpack.c.l.s4 1966171168
    %v2272 = vunpack.c.0.s8 %v2271
    %v2273 = vlaneseq
    %v2274 = vshrl.u32 %v2273, 7
    %v2275 = vsub.s32 %v2272, %v2274
    %v2276 = vrot.slane %v2260, %v2275
    %v2278 = vunpack.c.l.s4 1966171168
    %v2279 = vunpack.c.0.s8 %v2278
    %v2280 = vlaneseq
    %v2281 = vshrl.u32 %v2280, 7
    %v2282 = vsub.s32 %v2279, %v2281
    %v2283 = vrot.slane %v2267, %v2282
    %v2285 = vunpack.c.l.s4 1966171168
    %v2286 = vunpack.c.0.s8 %v2285
    %v2287 = vlaneseq
    %v2288 = vshrl.u32 %v2287, 7
    %v2289 = vsub.s32 %v2286, %v2288
    %v2290 = vrot.slane %v2268, %v2289
    %v2292 = vunpack.c.l.s4 1966171168
    %v2293 = vunpack.c.0.s8 %v2292
    %v2294 = vlaneseq
    %v2295 = vshrl.u32 %v2294, 7
    %v2296 = vsub.s32 %v2293, %v2295
    %v2297 = vrot.slane %v2269, %v2296
    %v2298 = vcombine.high %v2276, %v2276
    %v2299 = vcombine.high %v2283, %v2283
    %v2300 = vcombine.high %v2290, %v2290
    %v2301 = vcombine.high %v2297, %v2297
    %v2302 = vcombine.high %v844, %v844
    %v2304 = vunpack.c.l.s4 1966171168
    %v2305 = vunpack.c.0.s8 %v2304
    %v2306 = vlaneseq
    %v2307 = vshrl.u32 %v2306, 7
    %v2308 = vsub.s32 %v2305, %v2307
    %v2309 = vrot.slane %v844, %v2308
    %v2311 = vunpack.c.l.s4 1966171168
    %v2312 = vunpack.c.0.s8 %v2311
    %v2313 = vlaneseq
    %v2314 = vshrl.u32 %v2313, 7
    %v2315 = vsub.s32 %v2312, %v2314
    %v2316 = vrot.slane %v2302, %v2315
    %v2317 = vcombine.high %v2309, %v2309
    %v2318 = vcombine.high %v2316, %v2316
    %v2320 = vunpack.c.l.s4 1966171168
    %v2321 = vunpack.c.0.s8 %v2320
    %v2322 = vlaneseq
    %v2323 = vshrl.u32 %v2322, 7
    %v2324 = vsub.s32 %v2321, %v2323
    %v2325 = vrot.slane %v2309, %v2324
    %v2327 = vunpack.c.l.s4 1966171168
    %v2328 = vunpack.c.0.s8 %v2327
    %v2329 = vlaneseq
    %v2330 = vshrl.u32 %v2329, 7
    %v2331 = vsub.s32 %v2328, %v2330
    %v2332 = vrot.slane %v2316, %v2331
    %v2334 = vunpack.c.l.s4 1966171168
    %v2335 = vunpack.c.0.s8 %v2334
    %v2336 = vlaneseq
    %v2337 = vshrl.u32 %v2336, 7
    %v2338 = vsub.s32 %v2335, %v2337
    %v2339 = vrot.slane %v2317, %v2338
    %v2341 = vunpack.c.l.s4 1966171168
    %v2342 = vunpack.c.0.s8 %v2341
    %v2343 = vlaneseq
    %v2344 = vshrl.u32 %v2343, 7
    %v2345 = vsub.s32 %v2342, %v2344
    %v2346 = vrot.slane %v2318, %v2345
    %v2347 = vcombine.high %v2325, %v2325
    %v2348 = vcombine.high %v2332, %v2332
    %v2349 = vcombine.high %v2339, %v2339
    %v2350 = vcombine.high %v2346, %v2346
    %v2351 = vlaneseq
    %v2352 = vshrl.u32 %v2351, 7
    %v2353 = vsub.s32 0, %v2352
    %v2354 = vrot.slane %v2178, %v2353
    %v2355 = vlaneseq
    %v2356 = vshrl.u32 %v2355, 7
    %v2357 = vsub.s32 0, %v2356
    %v2358 = vrot.slane %v2192, %v2357
    %v2359 = vlaneseq
    %v2360 = vshrl.u32 %v2359, 7
    %v2361 = vsub.s32 0, %v2360
    %v2362 = vrot.slane %v2200, %v2361
    %v2363 = vlaneseq
    %v2364 = vshrl.u32 %v2363, 7
    %v2365 = vsub.s32 0, %v2364
    %v2366 = vrot.slane %v2202, %v2365
    %v2367 = vlaneseq
    %v2368 = vshrl.u32 %v2367, 7
    %v2369 = vsub.s32 0, %v2368
    %v2370 = vrot.slane %v2185, %v2369
    %v2371 = vlaneseq
    %v2372 = vshrl.u32 %v2371, 7
    %v2373 = vsub.s32 0, %v2372
    %v2374 = vrot.slane %v2199, %v2373
    %v2375 = vlaneseq
    %v2376 = vshrl.u32 %v2375, 7
    %v2377 = vsub.s32 0, %v2376
    %v2378 = vrot.slane %v2201, %v2377
    %v2379 = vlaneseq
    %v2380 = vshrl.u32 %v2379, 7
    %v2381 = vsub.s32 0, %v2380
    %v2382 = vrot.slane %v2203, %v2381
    %v2383 = vlaneseq
    %v2384 = vshrl.u32 %v2383, 7
    %v2385 = vsub.s32 0, %v2384
    %v2386 = vrot.slane %v2227, %v2385
    %v2387 = vlaneseq
    %v2388 = vshrl.u32 %v2387, 7
    %v2389 = vsub.s32 0, %v2388
    %v2390 = vrot.slane %v2241, %v2389
    %v2391 = vlaneseq
    %v2392 = vshrl.u32 %v2391, 7
    %v2393 = vsub.s32 0, %v2392
    %v2394 = vrot.slane %v2249, %v2393
    %v2395 = vlaneseq
    %v2396 = vshrl.u32 %v2395, 7
    %v2397 = vsub.s32 0, %v2396
    %v2398 = vrot.slane %v2251, %v2397
    %v2399 = vlaneseq
    %v2400 = vshrl.u32 %v2399, 7
    %v2401 = vsub.s32 0, %v2400
    %v2402 = vrot.slane %v2234, %v2401
    %v2403 = vlaneseq
    %v2404 = vshrl.u32 %v2403, 7
    %v2405 = vsub.s32 0, %v2404
    %v2406 = vrot.slane %v2248, %v2405
    %v2407 = vlaneseq
    %v2408 = vshrl.u32 %v2407, 7
    %v2409 = vsub.s32 0, %v2408
    %v2410 = vrot.slane %v2250, %v2409
    %v2411 = vlaneseq
    %v2412 = vshrl.u32 %v2411, 7
    %v2413 = vsub.s32 0, %v2412
    %v2414 = vrot.slane %v2252, %v2413
    %v2415 = vlaneseq
    %v2416 = vshrl.u32 %v2415, 7
    %v2417 = vsub.s32 0, %v2416
    %v2418 = vrot.slane %v2276, %v2417
    %v2419 = vlaneseq
    %v2420 = vshrl.u32 %v2419, 7
    %v2421 = vsub.s32 0, %v2420
    %v2422 = vrot.slane %v2290, %v2421
    %v2423 = vlaneseq
    %v2424 = vshrl.u32 %v2423, 7
    %v2425 = vsub.s32 0, %v2424
    %v2426 = vrot.slane %v2298, %v2425
    %v2427 = vlaneseq
    %v2428 = vshrl.u32 %v2427, 7
    %v2429 = vsub.s32 0, %v2428
    %v2430 = vrot.slane %v2300, %v2429
    %v2431 = vlaneseq
    %v2432 = vshrl.u32 %v2431, 7
    %v2433 = vsub.s32 0, %v2432
    %v2434 = vrot.slane %v2283, %v2433
    %v2435 = vlaneseq
    %v2436 = vshrl.u32 %v2435, 7
    %v2437 = vsub.s32 0, %v2436
    %v2438 = vrot.slane %v2297, %v2437
    %v2439 = vlaneseq
    %v2440 = vshrl.u32 %v2439, 7
    %v2441 = vsub.s32 0, %v2440
    %v2442 = vrot.slane %v2299, %v2441
    %v2443 = vlaneseq
    %v2444 = vshrl.u32 %v2443, 7
    %v2445 = vsub.s32 0, %v2444
    %v2446 = vrot.slane %v2301, %v2445
    %v2447 = vlaneseq
    %v2448 = vshrl.u32 %v2447, 7
    %v2449 = vsub.s32 0, %v2448
    %v2450 = vrot.slane %v2325, %v2449
    %v2451 = vlaneseq
    %v2452 = vshrl.u32 %v2451, 7
    %v2453 = vsub.s32 0, %v2452
    %v2454 = vrot.slane %v2339, %v2453
    %v2455 = vlaneseq
    %v2456 = vshrl.u32 %v2455, 7
    %v2457 = vsub.s32 0, %v2456
    %v2458 = vrot.slane %v2347, %v2457
    %v2459 = vlaneseq
    %v2460 = vshrl.u32 %v2459, 7
    %v2461 = vsub.s32 0, %v2460
    %v2462 = vrot.slane %v2349, %v2461
    %v2463 = vlaneseq
    %v2464 = vshrl.u32 %v2463, 7
    %v2465 = vsub.s32 0, %v2464
    %v2466 = vrot.slane %v2332, %v2465
    %v2467 = vlaneseq
    %v2468 = vshrl.u32 %v2467, 7
    %v2469 = vsub.s32 0, %v2468
    %v2470 = vrot.slane %v2346, %v2469
    %v2471 = vlaneseq
    %v2472 = vshrl.u32 %v2471, 7
    %v2473 = vsub.s32 0, %v2472
    %v2474 = vrot.slane %v2348, %v2473
    %v2475 = vlaneseq
    %v2476 = vshrl.u32 %v2475, 7
    %v2477 = vsub.s32 0, %v2476
    %v2478 = vrot.slane %v2350, %v2477
    %v2511 = vmul.f32 %v2354, %v769
    %v2512 = vmul.f32 %v2358, %v769
    %v2513 = vmul.f32 %v2362, %v769
    %v2514 = vmul.f32 %v2366, %v769
    %v2515 = vmul.f32 %v2370, %v769
    %v2516 = vmul.f32 %v2374, %v769
    %v2517 = vmul.f32 %v2378, %v769
    %v2518 = vmul.f32 %v2382, %v769
    %v2519 = vmul.f32 %v2386, %v769
    %v2520 = vmul.f32 %v2390, %v769
    %v2521 = vmul.f32 %v2394, %v769
    %v2522 = vmul.f32 %v2398, %v769
    %v2523 = vmul.f32 %v2402, %v769
    %v2524 = vmul.f32 %v2406, %v769
    %v2525 = vmul.f32 %v2410, %v769
    %v2526 = vmul.f32 %v2414, %v769
    %v2527 = vmul.f32 %v2418, %v769
    %v2528 = vmul.f32 %v2422, %v769
    %v2529 = vmul.f32 %v2426, %v769
    %v2530 = vmul.f32 %v2430, %v769
    %v2531 = vmul.f32 %v2434, %v769
    %v2532 = vmul.f32 %v2438, %v769
    %v2533 = vmul.f32 %v2442, %v769
    %v2534 = vmul.f32 %v2446, %v769
    %v2535 = vmul.f32 %v2450, %v769
    %v2536 = vmul.f32 %v2454, %v769
    %v2537 = vmul.f32 %v2458, %v769
    %v2538 = vmul.f32 %v2462, %v769
    %v2539 = vmul.f32 %v2466, %v769
    %v2540 = vmul.f32 %v2470, %v769
    %v2541 = vmul.f32 %v2474, %v769
    %v2542 = vmul.f32 %v2478, %v769
    %v2543 = vadd.f32 %v2119, %v2511
    %v2544 = vadd.f32 %v2120, %v2512
    %v2545 = vadd.f32 %v2121, %v2513
    %v2546 = vadd.f32 %v2122, %v2514
    %v2547 = vadd.f32 %v2123, %v2515
    %v2548 = vadd.f32 %v2124, %v2516
    %v2549 = vadd.f32 %v2125, %v2517
    %v2550 = vadd.f32 %v2126, %v2518
    %v2551 = vadd.f32 %v2127, %v2519
    %v2552 = vadd.f32 %v2128, %v2520
    %v2553 = vadd.f32 %v2129, %v2521
    %v2554 = vadd.f32 %v2130, %v2522
    %v2555 = vadd.f32 %v2131, %v2523
    %v2556 = vadd.f32 %v2132, %v2524
    %v2557 = vadd.f32 %v2133, %v2525
    %v2558 = vadd.f32 %v2134, %v2526
    %v2559 = vadd.f32 %v2135, %v2527
    %v2560 = vadd.f32 %v2136, %v2528
    %v2561 = vadd.f32 %v2137, %v2529
    %v2562 = vadd.f32 %v2138, %v2530
    %v2563 = vadd.f32 %v2139, %v2531
    %v2564 = vadd.f32 %v2140, %v2532
    %v2565 = vadd.f32 %v2141, %v2533
    %v2566 = vadd.f32 %v2142, %v2534
    %v2567 = vadd.f32 %v2143, %v2535
    %v2568 = vadd.f32 %v2144, %v2536
    %v2569 = vadd.f32 %v2145, %v2537
    %v2570 = vadd.f32 %v2146, %v2538
    %v2571 = vadd.f32 %v2147, %v2539
    %v2572 = vadd.f32 %v2148, %v2540
    %v2573 = vadd.f32 %v2149, %v2541
    %v2574 = vadd.f32 %v2150, %v2542
    %v2575 = vmax.f32 %v2543, %v2547
    %v2576 = vmax.f32 %v2544, %v2548
    %v2577 = vmax.f32 %v2545, %v2549
    %v2578 = vmax.f32 %v2546, %v2550
    %v2579 = vmax.f32 %v2575, %v2551
    %v2580 = vmax.f32 %v2576, %v2552
    %v2581 = vmax.f32 %v2577, %v2553
    %v2582 = vmax.f32 %v2578, %v2554
    %v2583 = vmax.f32 %v2579, %v2555
    %v2584 = vmax.f32 %v2580, %v2556
    %v2585 = vmax.f32 %v2581, %v2557
    %v2586 = vmax.f32 %v2582, %v2558
    %v2587 = vmax.f32 %v2583, %v2559
    %v2588 = vmax.f32 %v2584, %v2560
    %v2589 = vmax.f32 %v2585, %v2561
    %v2590 = vmax.f32 %v2586, %v2562
    %v2591 = vmax.f32 %v2587, %v2563
    %v2592 = vmax.f32 %v2588, %v2564
    %v2593 = vmax.f32 %v2589, %v2565
    %v2594 = vmax.f32 %v2590, %v2566
    %v2595 = vmax.f32 %v2591, %v2567
    %v2596 = vmax.f32 %v2592, %v2568
    %v2597 = vmax.f32 %v2593, %v2569
    %v2598 = vmax.f32 %v2594, %v2570
    %v2599 = vmax.f32 %v2595, %v2571
    %v2600 = vmax.f32 %v2596, %v2572
    %v2601 = vmax.f32 %v2597, %v2573
    %v2602 = vmax.f32 %v2598, %v2574
    %v2603 = vmax.f32 %v2599, %v2600
    %v2604 = vmax.f32 %v2601, %v2602
    %v2605 = vmax.f32 %v2603, %v2604
    %v2606 = vsub.f32 %v2543, %v2605
    %v2607 = vsub.f32 %v2544, %v2605
    %v2608 = vsub.f32 %v2545, %v2605
    %v2609 = vsub.f32 %v2546, %v2605
    %v2610 = vsub.f32 %v2547, %v2605
    %v2611 = vsub.f32 %v2548, %v2605
    %v2612 = vsub.f32 %v2549, %v2605
    %v2613 = vsub.f32 %v2550, %v2605
    %v2614 = vsub.f32 %v2551, %v2605
    %v2615 = vsub.f32 %v2552, %v2605
    %v2616 = vsub.f32 %v2553, %v2605
    %v2617 = vsub.f32 %v2554, %v2605
    %v2618 = vsub.f32 %v2555, %v2605
    %v2619 = vsub.f32 %v2556, %v2605
    %v2620 = vsub.f32 %v2557, %v2605
    %v2621 = vsub.f32 %v2558, %v2605
    %v2622 = vsub.f32 %v2559, %v2605
    %v2623 = vsub.f32 %v2560, %v2605
    %v2624 = vsub.f32 %v2561, %v2605
    %v2625 = vsub.f32 %v2562, %v2605
    %v2626 = vsub.f32 %v2563, %v2605
    %v2627 = vsub.f32 %v2564, %v2605
    %v2628 = vsub.f32 %v2565, %v2605
    %v2629 = vsub.f32 %v2566, %v2605
    %v2630 = vsub.f32 %v2567, %v2605
    %v2631 = vsub.f32 %v2568, %v2605
    %v2632 = vsub.f32 %v2569, %v2605
    %v2633 = vsub.f32 %v2570, %v2605
    %v2634 = vsub.f32 %v2571, %v2605
    %v2635 = vsub.f32 %v2572, %v2605
    %v2636 = vsub.f32 %v2573, %v2605
    %v2637 = vsub.f32 %v2574, %v2605
    %v2638 = vmul.f32 %v2606, 1.442695
    %v2639 = vpow.pop %v2638
    %v2640 = vmul.f32 %v2607, 1.442695
    %v2641 = vpow.pop %v2640
    %v2642 = vmul.f32 %v2608, 1.442695
    %v2643 = vpow.pop %v2642
    %v2644 = vmul.f32 %v2609, 1.442695
    %v2645 = vpow.pop %v2644
    %v2646 = vmul.f32 %v2610, 1.442695
    %v2647 = vpow.pop %v2646
    %v2648 = vmul.f32 %v2611, 1.442695
    %v2649 = vpow.pop %v2648
    %v2650 = vmul.f32 %v2612, 1.442695
    %v2651 = vpow.pop %v2650
    %v2652 = vmul.f32 %v2613, 1.442695
    %v2653 = vpow.pop %v2652
    %v2654 = vmul.f32 %v2614, 1.442695
    %v2655 = vpow.pop %v2654
    %v2656 = vmul.f32 %v2615, 1.442695
    %v2657 = vpow.pop %v2656
    %v2658 = vmul.f32 %v2616, 1.442695
    %v2659 = vpow.pop %v2658
    %v2660 = vmul.f32 %v2617, 1.442695
    %v2661 = vpow.pop %v2660
    %v2662 = vmul.f32 %v2618, 1.442695
    %v2663 = vpow.pop %v2662
    %v2664 = vmul.f32 %v2619, 1.442695
    %v2665 = vpow.pop %v2664
    %v2666 = vmul.f32 %v2620, 1.442695
    %v2667 = vpow.pop %v2666
    %v2668 = vmul.f32 %v2621, 1.442695
    %v2669 = vpow.pop %v2668
    %v2670 = vmul.f32 %v2622, 1.442695
    %v2671 = vpow.pop %v2670
    %v2672 = vmul.f32 %v2623, 1.442695
    %v2673 = vpow.pop %v2672
    %v2674 = vmul.f32 %v2624, 1.442695
    %v2675 = vpow.pop %v2674
    %v2676 = vmul.f32 %v2625, 1.442695
    %v2677 = vpow.pop %v2676
    %v2678 = vmul.f32 %v2626, 1.442695
    %v2679 = vpow.pop %v2678
    %v2680 = vmul.f32 %v2627, 1.442695
    %v2681 = vpow.pop %v2680
    %v2682 = vmul.f32 %v2628, 1.442695
    %v2683 = vpow.pop %v2682
    %v2684 = vmul.f32 %v2629, 1.442695
    %v2685 = vpow.pop %v2684
    %v2686 = vmul.f32 %v2630, 1.442695
    %v2687 = vpow.pop %v2686
    %v2688 = vmul.f32 %v2631, 1.442695
    %v2689 = vpow.pop %v2688
    %v2690 = vmul.f32 %v2632, 1.442695
    %v2691 = vpow.pop %v2690
    %v2692 = vmul.f32 %v2633, 1.442695
    %v2693 = vpow.pop %v2692
    %v2694 = vmul.f32 %v2634, 1.442695
    %v2695 = vpow.pop %v2694
    %v2696 = vmul.f32 %v2635, 1.442695
    %v2697 = vpow.pop %v2696
    %v2698 = vmul.f32 %v2636, 1.442695
    %v2699 = vpow.pop %v2698
    %v2700 = vmul.f32 %v2637, 1.442695
    %v2701 = vpow.pop %v2700
    %v2702 = vadd.f32 %v2639, %v2641
    %v2703 = vadd.f32 %v2702, %v2643
    %v2704 = vadd.f32 %v2703, %v2645
    %v2705 = vadd.f32 %v2704, %v2647
    %v2706 = vadd.f32 %v2705, %v2649
    %v2707 = vadd.f32 %v2706, %v2651
    %v2708 = vadd.f32 %v2707, %v2653
    %v2709 = vadd.f32 %v2708, %v2655
    %v2710 = vadd.f32 %v2709, %v2657
    %v2711 = vadd.f32 %v2710, %v2659
    %v2712 = vadd.f32 %v2711, %v2661
    %v2713 = vadd.f32 %v2712, %v2663
    %v2714 = vadd.f32 %v2713, %v2665
    %v2715 = vadd.f32 %v2714, %v2667
    %v2716 = vadd.f32 %v2715, %v2669
    %v2717 = vadd.f32 %v2716, %v2671
    %v2718 = vadd.f32 %v2717, %v2673
    %v2719 = vadd.f32 %v2718, %v2675
    %v2720 = vadd.f32 %v2719, %v2677
    %v2721 = vadd.f32 %v2720, %v2679
    %v2722 = vadd.f32 %v2721, %v2681
    %v2723 = vadd.f32 %v2722, %v2683
    %v2724 = vadd.f32 %v2723, %v2685
    %v2725 = vadd.f32 %v2724, %v2687
    %v2726 = vadd.f32 %v2725, %v2689
    %v2727 = vadd.f32 %v2726, %v2691
    %v2728 = vadd.f32 %v2727, %v2693
    %v2729 = vadd.f32 %v2728, %v2695
    %v2730 = vadd.f32 %v2729, %v2697
    %v2731 = vadd.f32 %v2730, %v2699
    %v2732 = vadd.f32 %v2731, %v2701
    %v2733 = vrcp.pop %v2732
    %v2738 = vcombine.high %v849, %v849
    %v2740 = vunpack.c.l.s4 1966171168
    %v2741 = vunpack.c.0.s8 %v2740
    %v2742 = vlaneseq
    %v2743 = vshrl.u32 %v2742, 7
    %v2744 = vsub.s32 %v2741, %v2743
    %v2745 = vrot.slane %v849, %v2744
    %v2747 = vunpack.c.l.s4 1966171168
    %v2748 = vunpack.c.0.s8 %v2747
    %v2749 = vlaneseq
    %v2750 = vshrl.u32 %v2749, 7
    %v2751 = vsub.s32 %v2748, %v2750
    %v2752 = vrot.slane %v2738, %v2751
    %v2753 = vcombine.high %v2745, %v2745
    %v2754 = vcombine.high %v2752, %v2752
    %v2756 = vunpack.c.l.s4 1966171168
    %v2757 = vunpack.c.0.s8 %v2756
    %v2758 = vlaneseq
    %v2759 = vshrl.u32 %v2758, 7
    %v2760 = vsub.s32 %v2757, %v2759
    %v2761 = vrot.slane %v2745, %v2760
    %v2763 = vunpack.c.l.s4 1966171168
    %v2764 = vunpack.c.0.s8 %v2763
    %v2765 = vlaneseq
    %v2766 = vshrl.u32 %v2765, 7
    %v2767 = vsub.s32 %v2764, %v2766
    %v2768 = vrot.slane %v2752, %v2767
    %v2770 = vunpack.c.l.s4 1966171168
    %v2771 = vunpack.c.0.s8 %v2770
    %v2772 = vlaneseq
    %v2773 = vshrl.u32 %v2772, 7
    %v2774 = vsub.s32 %v2771, %v2773
    %v2775 = vrot.slane %v2753, %v2774
    %v2777 = vunpack.c.l.s4 1966171168
    %v2778 = vunpack.c.0.s8 %v2777
    %v2779 = vlaneseq
    %v2780 = vshrl.u32 %v2779, 7
    %v2781 = vsub.s32 %v2778, %v2780
    %v2782 = vrot.slane %v2754, %v2781
    %v2783 = vcombine.high %v2761, %v2761
    %v2784 = vcombine.high %v2768, %v2768
    %v2785 = vcombine.high %v2775, %v2775
    %v2786 = vcombine.high %v2782, %v2782
    %v2787 = vcombine.high %v852, %v852
    %v2789 = vunpack.c.l.s4 1966171168
    %v2790 = vunpack.c.0.s8 %v2789
    %v2791 = vlaneseq
    %v2792 = vshrl.u32 %v2791, 7
    %v2793 = vsub.s32 %v2790, %v2792
    %v2794 = vrot.slane %v852, %v2793
    %v2796 = vunpack.c.l.s4 1966171168
    %v2797 = vunpack.c.0.s8 %v2796
    %v2798 = vlaneseq
    %v2799 = vshrl.u32 %v2798, 7
    %v2800 = vsub.s32 %v2797, %v2799
    %v2801 = vrot.slane %v2787, %v2800
    %v2802 = vcombine.high %v2794, %v2794
    %v2803 = vcombine.high %v2801, %v2801
    %v2805 = vunpack.c.l.s4 1966171168
    %v2806 = vunpack.c.0.s8 %v2805
    %v2807 = vlaneseq
    %v2808 = vshrl.u32 %v2807, 7
    %v2809 = vsub.s32 %v2806, %v2808
    %v2810 = vrot.slane %v2794, %v2809
    %v2812 = vunpack.c.l.s4 1966171168
    %v2813 = vunpack.c.0.s8 %v2812
    %v2814 = vlaneseq
    %v2815 = vshrl.u32 %v2814, 7
    %v2816 = vsub.s32 %v2813, %v2815
    %v2817 = vrot.slane %v2801, %v2816
    %v2819 = vunpack.c.l.s4 1966171168
    %v2820 = vunpack.c.0.s8 %v2819
    %v2821 = vlaneseq
    %v2822 = vshrl.u32 %v2821, 7
    %v2823 = vsub.s32 %v2820, %v2822
    %v2824 = vrot.slane %v2802, %v2823
    %v2826 = vunpack.c.l.s4 1966171168
    %v2827 = vunpack.c.0.s8 %v2826
    %v2828 = vlaneseq
    %v2829 = vshrl.u32 %v2828, 7
    %v2830 = vsub.s32 %v2827, %v2829
    %v2831 = vrot.slane %v2803, %v2830
    %v2832 = vcombine.high %v2810, %v2810
    %v2833 = vcombine.high %v2817, %v2817
    %v2834 = vcombine.high %v2824, %v2824
    %v2835 = vcombine.high %v2831, %v2831
    %v2836 = vcombine.high %v857, %v857
    %v2838 = vunpack.c.l.s4 1966171168
    %v2839 = vunpack.c.0.s8 %v2838
    %v2840 = vlaneseq
    %v2841 = vshrl.u32 %v2840, 7
    %v2842 = vsub.s32 %v2839, %v2841
    %v2843 = vrot.slane %v857, %v2842
    %v2845 = vunpack.c.l.s4 1966171168
    %v2846 = vunpack.c.0.s8 %v2845
    %v2847 = vlaneseq
    %v2848 = vshrl.u32 %v2847, 7
    %v2849 = vsub.s32 %v2846, %v2848
    %v2850 = vrot.slane %v2836, %v2849
    %v2851 = vcombine.high %v2843, %v2843
    %v2852 = vcombine.high %v2850, %v2850
    %v2854 = vunpack.c.l.s4 1966171168
    %v2855 = vunpack.c.0.s8 %v2854
    %v2856 = vlaneseq
    %v2857 = vshrl.u32 %v2856, 7
    %v2858 = vsub.s32 %v2855, %v2857
    %v2859 = vrot.slane %v2843, %v2858
    %v2861 = vunpack.c.l.s4 1966171168
    %v2862 = vunpack.c.0.s8 %v2861
    %v2863 = vlaneseq
    %v2864 = vshrl.u32 %v2863, 7
    %v2865 = vsub.s32 %v2862, %v2864
    %v2866 = vrot.slane %v2850, %v2865
    %v2868 = vunpack.c.l.s4 1966171168
    %v2869 = vunpack.c.0.s8 %v2868
    %v2870 = vlaneseq
    %v2871 = vshrl.u32 %v2870, 7
    %v2872 = vsub.s32 %v2869, %v2871
    %v2873 = vrot.slane %v2851, %v2872
    %v2875 = vunpack.c.l.s4 1966171168
    %v2876 = vunpack.c.0.s8 %v2875
    %v2877 = vlaneseq
    %v2878 = vshrl.u32 %v2877, 7
    %v2879 = vsub.s32 %v2876, %v2878
    %v2880 = vrot.slane %v2852, %v2879
    %v2881 = vcombine.high %v2859, %v2859
    %v2882 = vcombine.high %v2866, %v2866
    %v2883 = vcombine.high %v2873, %v2873
    %v2884 = vcombine.high %v2880, %v2880
    %v2885 = vcombine.high %v860, %v860
    %v2887 = vunpack.c.l.s4 1966171168
    %v2888 = vunpack.c.0.s8 %v2887
    %v2889 = vlaneseq
    %v2890 = vshrl.u32 %v2889, 7
    %v2891 = vsub.s32 %v2888, %v2890
    %v2892 = vrot.slane %v860, %v2891
    %v2894 = vunpack.c.l.s4 1966171168
    %v2895 = vunpack.c.0.s8 %v2894
    %v2896 = vlaneseq
    %v2897 = vshrl.u32 %v2896, 7
    %v2898 = vsub.s32 %v2895, %v2897
    %v2899 = vrot.slane %v2885, %v2898
    %v2900 = vcombine.high %v2892, %v2892
    %v2901 = vcombine.high %v2899, %v2899
    %v2903 = vunpack.c.l.s4 1966171168
    %v2904 = vunpack.c.0.s8 %v2903
    %v2905 = vlaneseq
    %v2906 = vshrl.u32 %v2905, 7
    %v2907 = vsub.s32 %v2904, %v2906
    %v2908 = vrot.slane %v2892, %v2907
    %v2910 = vunpack.c.l.s4 1966171168
    %v2911 = vunpack.c.0.s8 %v2910
    %v2912 = vlaneseq
    %v2913 = vshrl.u32 %v2912, 7
    %v2914 = vsub.s32 %v2911, %v2913
    %v2915 = vrot.slane %v2899, %v2914
    %v2917 = vunpack.c.l.s4 1966171168
    %v2918 = vunpack.c.0.s8 %v2917
    %v2919 = vlaneseq
    %v2920 = vshrl.u32 %v2919, 7
    %v2921 = vsub.s32 %v2918, %v2920
    %v2922 = vrot.slane %v2900, %v2921
    %v2924 = vunpack.c.l.s4 1966171168
    %v2925 = vunpack.c.0.s8 %v2924
    %v2926 = vlaneseq
    %v2927 = vshrl.u32 %v2926, 7
    %v2928 = vsub.s32 %v2925, %v2927
    %v2929 = vrot.slane %v2901, %v2928
    %v2930 = vcombine.high %v2908, %v2908
    %v2931 = vcombine.high %v2915, %v2915
    %v2932 = vcombine.high %v2922, %v2922
    %v2933 = vcombine.high %v2929, %v2929
    %v2934 = vlaneseq
    %v2935 = vshrl.u32 %v2934, 7
    %v2936 = vsub.s32 0, %v2935
    %v2937 = vrot.slane %v2761, %v2936
    %v2938 = vlaneseq
    %v2939 = vshrl.u32 %v2938, 7
    %v2940 = vsub.s32 0, %v2939
    %v2941 = vrot.slane %v2775, %v2940
    %v2942 = vlaneseq
    %v2943 = vshrl.u32 %v2942, 7
    %v2944 = vsub.s32 0, %v2943
    %v2945 = vrot.slane %v2783, %v2944
    %v2946 = vlaneseq
    %v2947 = vshrl.u32 %v2946, 7
    %v2948 = vsub.s32 0, %v2947
    %v2949 = vrot.slane %v2785, %v2948
    %v2950 = vlaneseq
    %v2951 = vshrl.u32 %v2950, 7
    %v2952 = vsub.s32 0, %v2951
    %v2953 = vrot.slane %v2768, %v2952
    %v2954 = vlaneseq
    %v2955 = vshrl.u32 %v2954, 7
    %v2956 = vsub.s32 0, %v2955
    %v2957 = vrot.slane %v2782, %v2956
    %v2958 = vlaneseq
    %v2959 = vshrl.u32 %v2958, 7
    %v2960 = vsub.s32 0, %v2959
    %v2961 = vrot.slane %v2784, %v2960
    %v2962 = vlaneseq
    %v2963 = vshrl.u32 %v2962, 7
    %v2964 = vsub.s32 0, %v2963
    %v2965 = vrot.slane %v2786, %v2964
    %v2966 = vlaneseq
    %v2967 = vshrl.u32 %v2966, 7
    %v2968 = vsub.s32 0, %v2967
    %v2969 = vrot.slane %v2810, %v2968
    %v2970 = vlaneseq
    %v2971 = vshrl.u32 %v2970, 7
    %v2972 = vsub.s32 0, %v2971
    %v2973 = vrot.slane %v2824, %v2972
    %v2974 = vlaneseq
    %v2975 = vshrl.u32 %v2974, 7
    %v2976 = vsub.s32 0, %v2975
    %v2977 = vrot.slane %v2832, %v2976
    %v2978 = vlaneseq
    %v2979 = vshrl.u32 %v2978, 7
    %v2980 = vsub.s32 0, %v2979
    %v2981 = vrot.slane %v2834, %v2980
    %v2982 = vlaneseq
    %v2983 = vshrl.u32 %v2982, 7
    %v2984 = vsub.s32 0, %v2983
    %v2985 = vrot.slane %v2817, %v2984
    %v2986 = vlaneseq
    %v2987 = vshrl.u32 %v2986, 7
    %v2988 = vsub.s32 0, %v2987
    %v2989 = vrot.slane %v2831, %v2988
    %v2990 = vlaneseq
    %v2991 = vshrl.u32 %v2990, 7
    %v2992 = vsub.s32 0, %v2991
    %v2993 = vrot.slane %v2833, %v2992
    %v2994 = vlaneseq
    %v2995 = vshrl.u32 %v2994, 7
    %v2996 = vsub.s32 0, %v2995
    %v2997 = vrot.slane %v2835, %v2996
    %v2998 = vlaneseq
    %v2999 = vshrl.u32 %v2998, 7
    %v3000 = vsub.s32 0, %v2999
    %v3001 = vrot.slane %v2859, %v3000
    %v3002 = vlaneseq
    %v3003 = vshrl.u32 %v3002, 7
    %v3004 = vsub.s32 0, %v3003
    %v3005 = vrot.slane %v2873, %v3004
    %v3006 = vlaneseq
    %v3007 = vshrl.u32 %v3006, 7
    %v3008 = vsub.s32 0, %v3007
    %v3009 = vrot.slane %v2881, %v3008
    %v3010 = vlaneseq
    %v3011 = vshrl.u32 %v3010, 7
    %v3012 = vsub.s32 0, %v3011
    %v3013 = vrot.slane %v2883, %v3012
    %v3014 = vlaneseq
    %v3015 = vshrl.u32 %v3014, 7
    %v3016 = vsub.s32 0, %v3015
    %v3017 = vrot.slane %v2866, %v3016
    %v3018 = vlaneseq
    %v3019 = vshrl.u32 %v3018, 7
    %v3020 = vsub.s32 0, %v3019
    %v3021 = vrot.slane %v2880, %v3020
    %v3022 = vlaneseq
    %v3023 = vshrl.u32 %v3022, 7
    %v3024 = vsub.s32 0, %v3023
    %v3025 = vrot.slane %v2882, %v3024
    %v3026 = vlaneseq
    %v3027 = vshrl.u32 %v3026, 7
    %v3028 = vsub.s32 0, %v3027
    %v3029 = vrot.slane %v2884, %v3028
    %v3030 = vlaneseq
    %v3031 = vshrl.u32 %v3030, 7
    %v3032 = vsub.s32 0, %v3031
    %v3033 = vrot.slane %v2908, %v3032
    %v3034 = vlaneseq
    %v3035 = vshrl.u32 %v3034, 7
    %v3036 = vsub.s32 0, %v3035
    %v3037 = vrot.slane %v2922, %v3036
    %v3038 = vlaneseq
    %v3039 = vshrl.u32 %v3038, 7
    %v3040 = vsub.s32 0, %v3039
    %v3041 = vrot.slane %v2930, %v3040
    %v3042 = vlaneseq
    %v3043 = vshrl.u32 %v3042, 7
    %v3044 = vsub.s32 0, %v3043
    %v3045 = vrot.slane %v2932, %v3044
    %v3046 = vlaneseq
    %v3047 = vshrl.u32 %v3046, 7
    %v3048 = vsub.s32 0, %v3047
    %v3049 = vrot.slane %v2915, %v3048
    %v3050 = vlaneseq
    %v3051 = vshrl.u32 %v3050, 7
    %v3052 = vsub.s32 0, %v3051
    %v3053 = vrot.slane %v2929, %v3052
    %v3054 = vlaneseq
    %v3055 = vshrl.u32 %v3054, 7
    %v3056 = vsub.s32 0, %v3055
    %v3057 = vrot.slane %v2931, %v3056
    %v3058 = vlaneseq
    %v3059 = vshrl.u32 %v3058, 7
    %v3060 = vsub.s32 0, %v3059
    %v3061 = vrot.slane %v2933, %v3060
    %v3094 = vmul.f32 %v2639, %v2937
    %v3095 = vmul.f32 %v2641, %v2941
    %v3096 = vmul.f32 %v2643, %v2945
    %v3097 = vmul.f32 %v2645, %v2949
    %v3098 = vmul.f32 %v2647, %v2953
    %v3099 = vmul.f32 %v2649, %v2957
    %v3100 = vmul.f32 %v2651, %v2961
    %v3101 = vmul.f32 %v2653, %v2965
    %v3102 = vmul.f32 %v2655, %v2969
    %v3103 = vmul.f32 %v2657, %v2973
    %v3104 = vmul.f32 %v2659, %v2977
    %v3105 = vmul.f32 %v2661, %v2981
    %v3106 = vmul.f32 %v2663, %v2985
    %v3107 = vmul.f32 %v2665, %v2989
    %v3108 = vmul.f32 %v2667, %v2993
    %v3109 = vmul.f32 %v2669, %v2997
    %v3110 = vmul.f32 %v2671, %v3001
    %v3111 = vmul.f32 %v2673, %v3005
    %v3112 = vmul.f32 %v2675, %v3009
    %v3113 = vmul.f32 %v2677, %v3013
    %v3114 = vmul.f32 %v2679, %v3017
    %v3115 = vmul.f32 %v2681, %v3021
    %v3116 = vmul.f32 %v2683, %v3025
    %v3117 = vmul.f32 %v2685, %v3029
    %v3118 = vmul.f32 %v2687, %v3033
    %v3119 = vmul.f32 %v2689, %v3037
    %v3120 = vmul.f32 %v2691, %v3041
    %v3121 = vmul.f32 %v2693, %v3045
    %v3122 = vmul.f32 %v2695, %v3049
    %v3123 = vmul.f32 %v2697, %v3053
    %v3124 = vmul.f32 %v2699, %v3057
    %v3125 = vmul.f32 %v2701, %v3061
    %v3126 = vadd.f32 %v3094, %v3095
    %v3127 = vadd.f32 %v3126, %v3096
    %v3128 = vadd.f32 %v3127, %v3097
    %v3129 = vadd.f32 %v3128, %v3098
    %v3130 = vadd.f32 %v3129, %v3099
    %v3131 = vadd.f32 %v3130, %v3100
    %v3132 = vadd.f32 %v3131, %v3101
    %v3133 = vadd.f32 %v3132, %v3102
    %v3134 = vadd.f32 %v3133, %v3103
    %v3135 = vadd.f32 %v3134, %v3104
    %v3136 = vadd.f32 %v3135, %v3105
    %v3137 = vadd.f32 %v3136, %v3106
    %v3138 = vadd.f32 %v3137, %v3107
    %v3139 = vadd.f32 %v3138, %v3108
    %v3140 = vadd.f32 %v3139, %v3109
    %v3141 = vadd.f32 %v3140, %v3110
    %v3142 = vadd.f32 %v3141, %v3111
    %v3143 = vadd.f32 %v3142, %v3112
    %v3144 = vadd.f32 %v3143, %v3113
    %v3145 = vadd.f32 %v3144, %v3114
    %v3146 = vadd.f32 %v3145, %v3115
    %v3147 = vadd.f32 %v3146, %v3116
    %v3148 = vadd.f32 %v3147, %v3117
    %v3149 = vadd.f32 %v3148, %v3118
    %v3150 = vadd.f32 %v3149, %v3119
    %v3151 = vadd.f32 %v3150, %v3120
    %v3152 = vadd.f32 %v3151, %v3121
    %v3153 = vadd.f32 %v3152, %v3122
    %v3154 = vadd.f32 %v3153, %v3123
    %v3155 = vadd.f32 %v3154, %v3124
    %v3156 = vadd.f32 %v3155, %v3125
    %v3157 = vmul.f32 %v3156, %v2733
    %v3162 = vcombine.high %v865, %v865
    %v3164 = vunpack.c.l.s4 1966171168
    %v3165 = vunpack.c.0.s8 %v3164
    %v3166 = vlaneseq
    %v3167 = vshrl.u32 %v3166, 7
    %v3168 = vsub.s32 %v3165, %v3167
    %v3169 = vrot.slane %v865, %v3168
    %v3171 = vunpack.c.l.s4 1966171168
    %v3172 = vunpack.c.0.s8 %v3171
    %v3173 = vlaneseq
    %v3174 = vshrl.u32 %v3173, 7
    %v3175 = vsub.s32 %v3172, %v3174
    %v3176 = vrot.slane %v3162, %v3175
    %v3177 = vcombine.high %v3169, %v3169
    %v3178 = vcombine.high %v3176, %v3176
    %v3180 = vunpack.c.l.s4 1966171168
    %v3181 = vunpack.c.0.s8 %v3180
    %v3182 = vlaneseq
    %v3183 = vshrl.u32 %v3182, 7
    %v3184 = vsub.s32 %v3181, %v3183
    %v3185 = vrot.slane %v3169, %v3184
    %v3187 = vunpack.c.l.s4 1966171168
    %v3188 = vunpack.c.0.s8 %v3187
    %v3189 = vlaneseq
    %v3190 = vshrl.u32 %v3189, 7
    %v3191 = vsub.s32 %v3188, %v3190
    %v3192 = vrot.slane %v3176, %v3191
    %v3194 = vunpack.c.l.s4 1966171168
    %v3195 = vunpack.c.0.s8 %v3194
    %v3196 = vlaneseq
    %v3197 = vshrl.u32 %v3196, 7
    %v3198 = vsub.s32 %v3195, %v3197
    %v3199 = vrot.slane %v3177, %v3198
    %v3201 = vunpack.c.l.s4 1966171168
    %v3202 = vunpack.c.0.s8 %v3201
    %v3203 = vlaneseq
    %v3204 = vshrl.u32 %v3203, 7
    %v3205 = vsub.s32 %v3202, %v3204
    %v3206 = vrot.slane %v3178, %v3205
    %v3207 = vcombine.high %v3185, %v3185
    %v3208 = vcombine.high %v3192, %v3192
    %v3209 = vcombine.high %v3199, %v3199
    %v3210 = vcombine.high %v3206, %v3206
    %v3211 = vcombine.high %v868, %v868
    %v3213 = vunpack.c.l.s4 1966171168
    %v3214 = vunpack.c.0.s8 %v3213
    %v3215 = vlaneseq
    %v3216 = vshrl.u32 %v3215, 7
    %v3217 = vsub.s32 %v3214, %v3216
    %v3218 = vrot.slane %v868, %v3217
    %v3220 = vunpack.c.l.s4 1966171168
    %v3221 = vunpack.c.0.s8 %v3220
    %v3222 = vlaneseq
    %v3223 = vshrl.u32 %v3222, 7
    %v3224 = vsub.s32 %v3221, %v3223
    %v3225 = vrot.slane %v3211, %v3224
    %v3226 = vcombine.high %v3218, %v3218
    %v3227 = vcombine.high %v3225, %v3225
    %v3229 = vunpack.c.l.s4 1966171168
    %v3230 = vunpack.c.0.s8 %v3229
    %v3231 = vlaneseq
    %v3232 = vshrl.u32 %v3231, 7
    %v3233 = vsub.s32 %v3230, %v3232
    %v3234 = vrot.slane %v3218, %v3233
    %v3236 = vunpack.c.l.s4 1966171168
    %v3237 = vunpack.c.0.s8 %v3236
    %v3238 = vlaneseq
    %v3239 = vshrl.u32 %v3238, 7
    %v3240 = vsub.s32 %v3237, %v3239
    %v3241 = vrot.slane %v3225, %v3240
    %v3243 = vunpack.c.l.s4 1966171168
    %v3244 = vunpack.c.0.s8 %v3243
    %v3245 = vlaneseq
    %v3246 = vshrl.u32 %v3245, 7
    %v3247 = vsub.s32 %v3244, %v3246
    %v3248 = vrot.slane %v3226, %v3247
    %v3250 = vunpack.c.l.s4 1966171168
    %v3251 = vunpack.c.0.s8 %v3250
    %v3252 = vlaneseq
    %v3253 = vshrl.u32 %v3252, 7
    %v3254 = vsub.s32 %v3251, %v3253
    %v3255 = vrot.slane %v3227, %v3254
    %v3256 = vcombine.high %v3234, %v3234
    %v3257 = vcombine.high %v3241, %v3241
    %v3258 = vcombine.high %v3248, %v3248
    %v3259 = vcombine.high %v3255, %v3255
    %v3260 = vcombine.high %v873, %v873
    %v3262 = vunpack.c.l.s4 1966171168
    %v3263 = vunpack.c.0.s8 %v3262
    %v3264 = vlaneseq
    %v3265 = vshrl.u32 %v3264, 7
    %v3266 = vsub.s32 %v3263, %v3265
    %v3267 = vrot.slane %v873, %v3266
    %v3269 = vunpack.c.l.s4 1966171168
    %v3270 = vunpack.c.0.s8 %v3269
    %v3271 = vlaneseq
    %v3272 = vshrl.u32 %v3271, 7
    %v3273 = vsub.s32 %v3270, %v3272
    %v3274 = vrot.slane %v3260, %v3273
    %v3275 = vcombine.high %v3267, %v3267
    %v3276 = vcombine.high %v3274, %v3274
    %v3278 = vunpack.c.l.s4 1966171168
    %v3279 = vunpack.c.0.s8 %v3278
    %v3280 = vlaneseq
    %v3281 = vshrl.u32 %v3280, 7
    %v3282 = vsub.s32 %v3279, %v3281
    %v3283 = vrot.slane %v3267, %v3282
    %v3285 = vunpack.c.l.s4 1966171168
    %v3286 = vunpack.c.0.s8 %v3285
    %v3287 = vlaneseq
    %v3288 = vshrl.u32 %v3287, 7
    %v3289 = vsub.s32 %v3286, %v3288
    %v3290 = vrot.slane %v3274, %v3289
    %v3292 = vunpack.c.l.s4 1966171168
    %v3293 = vunpack.c.0.s8 %v3292
    %v3294 = vlaneseq
    %v3295 = vshrl.u32 %v3294, 7
    %v3296 = vsub.s32 %v3293, %v3295
    %v3297 = vrot.slane %v3275, %v3296
    %v3299 = vunpack.c.l.s4 1966171168
    %v3300 = vunpack.c.0.s8 %v3299
    %v3301 = vlaneseq
    %v3302 = vshrl.u32 %v3301, 7
    %v3303 = vsub.s32 %v3300, %v3302
    %v3304 = vrot.slane %v3276, %v3303
    %v3305 = vcombine.high %v3283, %v3283
    %v3306 = vcombine.high %v3290, %v3290
    %v3307 = vcombine.high %v3297, %v3297
    %v3308 = vcombine.high %v3304, %v3304
    %v3309 = vcombine.high %v876, %v876
    %v3311 = vunpack.c.l.s4 1966171168
    %v3312 = vunpack.c.0.s8 %v3311
    %v3313 = vlaneseq
    %v3314 = vshrl.u32 %v3313, 7
    %v3315 = vsub.s32 %v3312, %v3314
    %v3316 = vrot.slane %v876, %v3315
    %v3318 = vunpack.c.l.s4 1966171168
    %v3319 = vunpack.c.0.s8 %v3318
    %v3320 = vlaneseq
    %v3321 = vshrl.u32 %v3320, 7
    %v3322 = vsub.s32 %v3319, %v3321
    %v3323 = vrot.slane %v3309, %v3322
    %v3324 = vcombine.high %v3316, %v3316
    %v3325 = vcombine.high %v3323, %v3323
    %v3327 = vunpack.c.l.s4 1966171168
    %v3328 = vunpack.c.0.s8 %v3327
    %v3329 = vlaneseq
    %v3330 = vshrl.u32 %v3329, 7
    %v3331 = vsub.s32 %v3328, %v3330
    %v3332 = vrot.slane %v3316, %v3331
    %v3334 = vunpack.c.l.s4 1966171168
    %v3335 = vunpack.c.0.s8 %v3334
    %v3336 = vlaneseq
    %v3337 = vshrl.u32 %v3336, 7
    %v3338 = vsub.s32 %v3335, %v3337
    %v3339 = vrot.slane %v3323, %v3338
    %v3341 = vunpack.c.l.s4 1966171168
    %v3342 = vunpack.c.0.s8 %v3341
    %v3343 = vlaneseq
    %v3344 = vshrl.u32 %v3343, 7
    %v3345 = vsub.s32 %v3342, %v3344
    %v3346 = vrot.slane %v3324, %v3345
    %v3348 = vunpack.c.l.s4 1966171168
    %v3349 = vunpack.c.0.s8 %v3348
    %v3350 = vlaneseq
    %v3351 = vshrl.u32 %v3350, 7
    %v3352 = vsub.s32 %v3349, %v3351
    %v3353 = vrot.slane %v3325, %v3352
    %v3354 = vcombine.high %v3332, %v3332
    %v3355 = vcombine.high %v3339, %v3339
    %v3356 = vcombine.high %v3346, %v3346
    %v3357 = vcombine.high %v3353, %v3353
    %v3358 = vlaneseq
    %v3359 = vshrl.u32 %v3358, 7
    %v3360 = vsub.s32 0, %v3359
    %v3361 = vrot.slane %v3185, %v3360
    %v3362 = vlaneseq
    %v3363 = vshrl.u32 %v3362, 7
    %v3364 = vsub.s32 0, %v3363
    %v3365 = vrot.slane %v3199, %v3364
    %v3366 = vlaneseq
    %v3367 = vshrl.u32 %v3366, 7
    %v3368 = vsub.s32 0, %v3367
    %v3369 = vrot.slane %v3207, %v3368
    %v3370 = vlaneseq
    %v3371 = vshrl.u32 %v3370, 7
    %v3372 = vsub.s32 0, %v3371
    %v3373 = vrot.slane %v3209, %v3372
    %v3374 = vlaneseq
    %v3375 = vshrl.u32 %v3374, 7
    %v3376 = vsub.s32 0, %v3375
    %v3377 = vrot.slane %v3192, %v3376
    %v3378 = vlaneseq
    %v3379 = vshrl.u32 %v3378, 7
    %v3380 = vsub.s32 0, %v3379
    %v3381 = vrot.slane %v3206, %v3380
    %v3382 = vlaneseq
    %v3383 = vshrl.u32 %v3382, 7
    %v3384 = vsub.s32 0, %v3383
    %v3385 = vrot.slane %v3208, %v3384
    %v3386 = vlaneseq
    %v3387 = vshrl.u32 %v3386, 7
    %v3388 = vsub.s32 0, %v3387
    %v3389 = vrot.slane %v3210, %v3388
    %v3390 = vlaneseq
    %v3391 = vshrl.u32 %v3390, 7
    %v3392 = vsub.s32 0, %v3391
    %v3393 = vrot.slane %v3234, %v3392
    %v3394 = vlaneseq
    %v3395 = vshrl.u32 %v3394, 7
    %v3396 = vsub.s32 0, %v3395
    %v3397 = vrot.slane %v3248, %v3396
    %v3398 = vlaneseq
    %v3399 = vshrl.u32 %v3398, 7
    %v3400 = vsub.s32 0, %v3399
    %v3401 = vrot.slane %v3256, %v3400
    %v3402 = vlaneseq
    %v3403 = vshrl.u32 %v3402, 7
    %v3404 = vsub.s32 0, %v3403
    %v3405 = vrot.slane %v3258, %v3404
    %v3406 = vlaneseq
    %v3407 = vshrl.u32 %v3406, 7
    %v3408 = vsub.s32 0, %v3407
    %v3409 = vrot.slane %v3241, %v3408
    %v3410 = vlaneseq
    %v3411 = vshrl.u32 %v3410, 7
    %v3412 = vsub.s32 0, %v3411
    %v3413 = vrot.slane %v3255, %v3412
    %v3414 = vlaneseq
    %v3415 = vshrl.u32 %v3414, 7
    %v3416 = vsub.s32 0, %v3415
    %v3417 = vrot.slane %v3257, %v3416
    %v3418 = vlaneseq
    %v3419 = vshrl.u32 %v3418, 7
    %v3420 = vsub.s32 0, %v3419
    %v3421 = vrot.slane %v3259, %v3420
    %v3422 = vlaneseq
    %v3423 = vshrl.u32 %v3422, 7
    %v3424 = vsub.s32 0, %v3423
    %v3425 = vrot.slane %v3283, %v3424
    %v3426 = vlaneseq
    %v3427 = vshrl.u32 %v3426, 7
    %v3428 = vsub.s32 0, %v3427
    %v3429 = vrot.slane %v3297, %v3428
    %v3430 = vlaneseq
    %v3431 = vshrl.u32 %v3430, 7
    %v3432 = vsub.s32 0, %v3431
    %v3433 = vrot.slane %v3305, %v3432
    %v3434 = vlaneseq
    %v3435 = vshrl.u32 %v3434, 7
    %v3436 = vsub.s32 0, %v3435
    %v3437 = vrot.slane %v3307, %v3436
    %v3438 = vlaneseq
    %v3439 = vshrl.u32 %v3438, 7
    %v3440 = vsub.s32 0, %v3439
    %v3441 = vrot.slane %v3290, %v3440
    %v3442 = vlaneseq
    %v3443 = vshrl.u32 %v3442, 7
    %v3444 = vsub.s32 0, %v3443
    %v3445 = vrot.slane %v3304, %v3444
    %v3446 = vlaneseq
    %v3447 = vshrl.u32 %v3446, 7
    %v3448 = vsub.s32 0, %v3447
    %v3449 = vrot.slane %v3306, %v3448
    %v3450 = vlaneseq
    %v3451 = vshrl.u32 %v3450, 7
    %v3452 = vsub.s32 0, %v3451
    %v3453 = vrot.slane %v3308, %v3452
    %v3454 = vlaneseq
    %v3455 = vshrl.u32 %v3454, 7
    %v3456 = vsub.s32 0, %v3455
    %v3457 = vrot.slane %v3332, %v3456
    %v3458 = vlaneseq
    %v3459 = vshrl.u32 %v3458, 7
    %v3460 = vsub.s32 0, %v3459
    %v3461 = vrot.slane %v3346, %v3460
    %v3462 = vlaneseq
    %v3463 = vshrl.u32 %v3462, 7
    %v3464 = vsub.s32 0, %v3463
    %v3465 = vrot.slane %v3354, %v3464
    %v3466 = vlaneseq
    %v3467 = vshrl.u32 %v3466, 7
    %v3468 = vsub.s32 0, %v3467
    %v3469 = vrot.slane %v3356, %v3468
    %v3470 = vlaneseq
    %v3471 = vshrl.u32 %v3470, 7
    %v3472 = vsub.s32 0, %v3471
    %v3473 = vrot.slane %v3339, %v3472
    %v3474 = vlaneseq
    %v3475 = vshrl.u32 %v3474, 7
    %v3476 = vsub.s32 0, %v3475
    %v3477 = vrot.slane %v3353, %v3476
    %v3478 = vlaneseq
    %v3479 = vshrl.u32 %v3478, 7
    %v3480 = vsub.s32 0, %v3479
    %v3481 = vrot.slane %v3355, %v3480
    %v3482 = vlaneseq
    %v3483 = vshrl.u32 %v3482, 7
    %v3484 = vsub.s32 0, %v3483
    %v3485 = vrot.slane %v3357, %v3484
    %v3518 = vmul.f32 %v2639, %v3361
    %v3519 = vmul.f32 %v2641, %v3365
    %v3520 = vmul.f32 %v2643, %v3369
    %v3521 = vmul.f32 %v2645, %v3373
    %v3522 = vmul.f32 %v2647, %v3377
    %v3523 = vmul.f32 %v2649, %v3381
    %v3524 = vmul.f32 %v2651, %v3385
    %v3525 = vmul.f32 %v2653, %v3389
    %v3526 = vmul.f32 %v2655, %v3393
    %v3527 = vmul.f32 %v2657, %v3397
    %v3528 = vmul.f32 %v2659, %v3401
    %v3529 = vmul.f32 %v2661, %v3405
    %v3530 = vmul.f32 %v2663, %v3409
    %v3531 = vmul.f32 %v2665, %v3413
    %v3532 = vmul.f32 %v2667, %v3417
    %v3533 = vmul.f32 %v2669, %v3421
    %v3534 = vmul.f32 %v2671, %v3425
    %v3535 = vmul.f32 %v2673, %v3429
    %v3536 = vmul.f32 %v2675, %v3433
    %v3537 = vmul.f32 %v2677, %v3437
    %v3538 = vmul.f32 %v2679, %v3441
    %v3539 = vmul.f32 %v2681, %v3445
    %v3540 = vmul.f32 %v2683, %v3449
    %v3541 = vmul.f32 %v2685, %v3453
    %v3542 = vmul.f32 %v2687, %v3457
    %v3543 = vmul.f32 %v2689, %v3461
    %v3544 = vmul.f32 %v2691, %v3465
    %v3545 = vmul.f32 %v2693, %v3469
    %v3546 = vmul.f32 %v2695, %v3473
    %v3547 = vmul.f32 %v2697, %v3477
    %v3548 = vmul.f32 %v2699, %v3481
    %v3549 = vmul.f32 %v2701, %v3485
    %v3550 = vadd.f32 %v3518, %v3519
    %v3551 = vadd.f32 %v3550, %v3520
    %v3552 = vadd.f32 %v3551, %v3521
    %v3553 = vadd.f32 %v3552, %v3522
    %v3554 = vadd.f32 %v3553, %v3523
    %v3555 = vadd.f32 %v3554, %v3524
    %v3556 = vadd.f32 %v3555, %v3525
    %v3557 = vadd.f32 %v3556, %v3526
    %v3558 = vadd.f32 %v3557, %v3527
    %v3559 = vadd.f32 %v3558, %v3528
    %v3560 = vadd.f32 %v3559, %v3529
    %v3561 = vadd.f32 %v3560, %v3530
    %v3562 = vadd.f32 %v3561, %v3531
    %v3563 = vadd.f32 %v3562, %v3532
    %v3564 = vadd.f32 %v3563, %v3533
    %v3565 = vadd.f32 %v3564, %v3534
    %v3566 = vadd.f32 %v3565, %v3535
    %v3567 = vadd.f32 %v3566, %v3536
    %v3568 = vadd.f32 %v3567, %v3537
    %v3569 = vadd.f32 %v3568, %v3538
    %v3570 = vadd.f32 %v3569, %v3539
    %v3571 = vadd.f32 %v3570, %v3540
    %v3572 = vadd.f32 %v3571, %v3541
    %v3573 = vadd.f32 %v3572, %v3542
    %v3574 = vadd.f32 %v3573, %v3543
    %v3575 = vadd.f32 %v3574, %v3544
    %v3576 = vadd.f32 %v3575, %v3545
    %v3577 = vadd.f32 %v3576, %v3546
    %v3578 = vadd.f32 %v3577, %v3547
    %v3579 = vadd.f32 %v3578, %v3548
    %v3580 = vadd.f32 %v3579, %v3549
    %v3581 = vmul.f32 %v3580, %v2733
    %v3586 = vcombine.high %v881, %v881
    %v3588 = vunpack.c.l.s4 1966171168
    %v3589 = vunpack.c.0.s8 %v3588
    %v3590 = vlaneseq
    %v3591 = vshrl.u32 %v3590, 7
    %v3592 = vsub.s32 %v3589, %v3591
    %v3593 = vrot.slane %v881, %v3592
    %v3595 = vunpack.c.l.s4 1966171168
    %v3596 = vunpack.c.0.s8 %v3595
    %v3597 = vlaneseq
    %v3598 = vshrl.u32 %v3597, 7
    %v3599 = vsub.s32 %v3596, %v3598
    %v3600 = vrot.slane %v3586, %v3599
    %v3601 = vcombine.high %v3593, %v3593
    %v3602 = vcombine.high %v3600, %v3600
    %v3604 = vunpack.c.l.s4 1966171168
    %v3605 = vunpack.c.0.s8 %v3604
    %v3606 = vlaneseq
    %v3607 = vshrl.u32 %v3606, 7
    %v3608 = vsub.s32 %v3605, %v3607
    %v3609 = vrot.slane %v3593, %v3608
    %v3611 = vunpack.c.l.s4 1966171168
    %v3612 = vunpack.c.0.s8 %v3611
    %v3613 = vlaneseq
    %v3614 = vshrl.u32 %v3613, 7
    %v3615 = vsub.s32 %v3612, %v3614
    %v3616 = vrot.slane %v3600, %v3615
    %v3618 = vunpack.c.l.s4 1966171168
    %v3619 = vunpack.c.0.s8 %v3618
    %v3620 = vlaneseq
    %v3621 = vshrl.u32 %v3620, 7
    %v3622 = vsub.s32 %v3619, %v3621
    %v3623 = vrot.slane %v3601, %v3622
    %v3625 = vunpack.c.l.s4 1966171168
    %v3626 = vunpack.c.0.s8 %v3625
    %v3627 = vlaneseq
    %v3628 = vshrl.u32 %v3627, 7
    %v3629 = vsub.s32 %v3626, %v3628
    %v3630 = vrot.slane %v3602, %v3629
    %v3631 = vcombine.high %v3609, %v3609
    %v3632 = vcombine.high %v3616, %v3616
    %v3633 = vcombine.high %v3623, %v3623
    %v3634 = vcombine.high %v3630, %v3630
    %v3635 = vcombine.high %v884, %v884
    %v3637 = vunpack.c.l.s4 1966171168
    %v3638 = vunpack.c.0.s8 %v3637
    %v3639 = vlaneseq
    %v3640 = vshrl.u32 %v3639, 7
    %v3641 = vsub.s32 %v3638, %v3640
    %v3642 = vrot.slane %v884, %v3641
    %v3644 = vunpack.c.l.s4 1966171168
    %v3645 = vunpack.c.0.s8 %v3644
    %v3646 = vlaneseq
    %v3647 = vshrl.u32 %v3646, 7
    %v3648 = vsub.s32 %v3645, %v3647
    %v3649 = vrot.slane %v3635, %v3648
    %v3650 = vcombine.high %v3642, %v3642
    %v3651 = vcombine.high %v3649, %v3649
    %v3653 = vunpack.c.l.s4 1966171168
    %v3654 = vunpack.c.0.s8 %v3653
    %v3655 = vlaneseq
    %v3656 = vshrl.u32 %v3655, 7
    %v3657 = vsub.s32 %v3654, %v3656
    %v3658 = vrot.slane %v3642, %v3657
    %v3660 = vunpack.c.l.s4 1966171168
    %v3661 = vunpack.c.0.s8 %v3660
    %v3662 = vlaneseq
    %v3663 = vshrl.u32 %v3662, 7
    %v3664 = vsub.s32 %v3661, %v3663
    %v3665 = vrot.slane %v3649, %v3664
    %v3667 = vunpack.c.l.s4 1966171168
    %v3668 = vunpack.c.0.s8 %v3667
    %v3669 = vlaneseq
    %v3670 = vshrl.u32 %v3669, 7
    %v3671 = vsub.s32 %v3668, %v3670
    %v3672 = vrot.slane %v3650, %v3671
    %v3674 = vunpack.c.l.s4 1966171168
    %v3675 = vunpack.c.0.s8 %v3674
    %v3676 = vlaneseq
    %v3677 = vshrl.u32 %v3676, 7
    %v3678 = vsub.s32 %v3675, %v3677
    %v3679 = vrot.slane %v3651, %v3678
    %v3680 = vcombine.high %v3658, %v3658
    %v3681 = vcombine.high %v3665, %v3665
    %v3682 = vcombine.high %v3672, %v3672
    %v3683 = vcombine.high %v3679, %v3679
    %v3684 = vcombine.high %v889, %v889
    %v3686 = vunpack.c.l.s4 1966171168
    %v3687 = vunpack.c.0.s8 %v3686
    %v3688 = vlaneseq
    %v3689 = vshrl.u32 %v3688, 7
    %v3690 = vsub.s32 %v3687, %v3689
    %v3691 = vrot.slane %v889, %v3690
    %v3693 = vunpack.c.l.s4 1966171168
    %v3694 = vunpack.c.0.s8 %v3693
    %v3695 = vlaneseq
    %v3696 = vshrl.u32 %v3695, 7
    %v3697 = vsub.s32 %v3694, %v3696
    %v3698 = vrot.slane %v3684, %v3697
    %v3699 = vcombine.high %v3691, %v3691
    %v3700 = vcombine.high %v3698, %v3698
    %v3702 = vunpack.c.l.s4 1966171168
    %v3703 = vunpack.c.0.s8 %v3702
    %v3704 = vlaneseq
    %v3705 = vshrl.u32 %v3704, 7
    %v3706 = vsub.s32 %v3703, %v3705
    %v3707 = vrot.slane %v3691, %v3706
    %v3709 = vunpack.c.l.s4 1966171168
    %v3710 = vunpack.c.0.s8 %v3709
    %v3711 = vlaneseq
    %v3712 = vshrl.u32 %v3711, 7
    %v3713 = vsub.s32 %v3710, %v3712
    %v3714 = vrot.slane %v3698, %v3713
    %v3716 = vunpack.c.l.s4 1966171168
    %v3717 = vunpack.c.0.s8 %v3716
    %v3718 = vlaneseq
    %v3719 = vshrl.u32 %v3718, 7
    %v3720 = vsub.s32 %v3717, %v3719
    %v3721 = vrot.slane %v3699, %v3720
    %v3723 = vunpack.c.l.s4 1966171168
    %v3724 = vunpack.c.0.s8 %v3723
    %v3725 = vlaneseq
    %v3726 = vshrl.u32 %v3725, 7
    %v3727 = vsub.s32 %v3724, %v3726
    %v3728 = vrot.slane %v3700, %v3727
    %v3729 = vcombine.high %v3707, %v3707
    %v3730 = vcombine.high %v3714, %v3714
    %v3731 = vcombine.high %v3721, %v3721
    %v3732 = vcombine.high %v3728, %v3728
    %v3733 = vcombine.high %v892, %v892
    %v3735 = vunpack.c.l.s4 1966171168
    %v3736 = vunpack.c.0.s8 %v3735
    %v3737 = vlaneseq
    %v3738 = vshrl.u32 %v3737, 7
    %v3739 = vsub.s32 %v3736, %v3738
    %v3740 = vrot.slane %v892, %v3739
    %v3742 = vunpack.c.l.s4 1966171168
    %v3743 = vunpack.c.0.s8 %v3742
    %v3744 = vlaneseq
    %v3745 = vshrl.u32 %v3744, 7
    %v3746 = vsub.s32 %v3743, %v3745
    %v3747 = vrot.slane %v3733, %v3746
    %v3748 = vcombine.high %v3740, %v3740
    %v3749 = vcombine.high %v3747, %v3747
    %v3751 = vunpack.c.l.s4 1966171168
    %v3752 = vunpack.c.0.s8 %v3751
    %v3753 = vlaneseq
    %v3754 = vshrl.u32 %v3753, 7
    %v3755 = vsub.s32 %v3752, %v3754
    %v3756 = vrot.slane %v3740, %v3755
    %v3758 = vunpack.c.l.s4 1966171168
    %v3759 = vunpack.c.0.s8 %v3758
    %v3760 = vlaneseq
    %v3761 = vshrl.u32 %v3760, 7
    %v3762 = vsub.s32 %v3759, %v3761
    %v3763 = vrot.slane %v3747, %v3762
    %v3765 = vunpack.c.l.s4 1966171168
    %v3766 = vunpack.c.0.s8 %v3765
    %v3767 = vlaneseq
    %v3768 = vshrl.u32 %v3767, 7
    %v3769 = vsub.s32 %v3766, %v3768
    %v3770 = vrot.slane %v3748, %v3769
    %v3772 = vunpack.c.l.s4 1966171168
    %v3773 = vunpack.c.0.s8 %v3772
    %v3774 = vlaneseq
    %v3775 = vshrl.u32 %v3774, 7
    %v3776 = vsub.s32 %v3773, %v3775
    %v3777 = vrot.slane %v3749, %v3776
    %v3778 = vcombine.high %v3756, %v3756
    %v3779 = vcombine.high %v3763, %v3763
    %v3780 = vcombine.high %v3770, %v3770
    %v3781 = vcombine.high %v3777, %v3777
    %v3782 = vlaneseq
    %v3783 = vshrl.u32 %v3782, 7
    %v3784 = vsub.s32 0, %v3783
    %v3785 = vrot.slane %v3609, %v3784
    %v3786 = vlaneseq
    %v3787 = vshrl.u32 %v3786, 7
    %v3788 = vsub.s32 0, %v3787
    %v3789 = vrot.slane %v3623, %v3788
    %v3790 = vlaneseq
    %v3791 = vshrl.u32 %v3790, 7
    %v3792 = vsub.s32 0, %v3791
    %v3793 = vrot.slane %v3631, %v3792
    %v3794 = vlaneseq
    %v3795 = vshrl.u32 %v3794, 7
    %v3796 = vsub.s32 0, %v3795
    %v3797 = vrot.slane %v3633, %v3796
    %v3798 = vlaneseq
    %v3799 = vshrl.u32 %v3798, 7
    %v3800 = vsub.s32 0, %v3799
    %v3801 = vrot.slane %v3616, %v3800
    %v3802 = vlaneseq
    %v3803 = vshrl.u32 %v3802, 7
    %v3804 = vsub.s32 0, %v3803
    %v3805 = vrot.slane %v3630, %v3804
    %v3806 = vlaneseq
    %v3807 = vshrl.u32 %v3806, 7
    %v3808 = vsub.s32 0, %v3807
    %v3809 = vrot.slane %v3632, %v3808
    %v3810 = vlaneseq
    %v3811 = vshrl.u32 %v3810, 7
    %v3812 = vsub.s32 0, %v3811
    %v3813 = vrot.slane %v3634, %v3812
    %v3814 = vlaneseq
    %v3815 = vshrl.u32 %v3814, 7
    %v3816 = vsub.s32 0, %v3815
    %v3817 = vrot.slane %v3658, %v3816
    %v3818 = vlaneseq
    %v3819 = vshrl.u32 %v3818, 7
    %v3820 = vsub.s32 0, %v3819
    %v3821 = vrot.slane %v3672, %v3820
    %v3822 = vlaneseq
    %v3823 = vshrl.u32 %v3822, 7
    %v3824 = vsub.s32 0, %v3823
    %v3825 = vrot.slane %v3680, %v3824
    %v3826 = vlaneseq
    %v3827 = vshrl.u32 %v3826, 7
    %v3828 = vsub.s32 0, %v3827
    %v3829 = vrot.slane %v3682, %v3828
    %v3830 = vlaneseq
    %v3831 = vshrl.u32 %v3830, 7
    %v3832 = vsub.s32 0, %v3831
    %v3833 = vrot.slane %v3665, %v3832
    %v3834 = vlaneseq
    %v3835 = vshrl.u32 %v3834, 7
    %v3836 = vsub.s32 0, %v3835
    %v3837 = vrot.slane %v3679, %v3836
    %v3838 = vlaneseq
    %v3839 = vshrl.u32 %v3838, 7
    %v3840 = vsub.s32 0, %v3839
    %v3841 = vrot.slane %v3681, %v3840
    %v3842 = vlaneseq
    %v3843 = vshrl.u32 %v3842, 7
    %v3844 = vsub.s32 0, %v3843
    %v3845 = vrot.slane %v3683, %v3844
    %v3846 = vlaneseq
    %v3847 = vshrl.u32 %v3846, 7
    %v3848 = vsub.s32 0, %v3847
    %v3849 = vrot.slane %v3707, %v3848
    %v3850 = vlaneseq
    %v3851 = vshrl.u32 %v3850, 7
    %v3852 = vsub.s32 0, %v3851
    %v3853 = vrot.slane %v3721, %v3852
    %v3854 = vlaneseq
    %v3855 = vshrl.u32 %v3854, 7
    %v3856 = vsub.s32 0, %v3855
    %v3857 = vrot.slane %v3729, %v3856
    %v3858 = vlaneseq
    %v3859 = vshrl.u32 %v3858, 7
    %v3860 = vsub.s32 0, %v3859
    %v3861 = vrot.slane %v3731, %v3860
    %v3862 = vlaneseq
    %v3863 = vshrl.u32 %v3862, 7
    %v3864 = vsub.s32 0, %v3863
    %v3865 = vrot.slane %v3714, %v3864
    %v3866 = vlaneseq
    %v3867 = vshrl.u32 %v3866, 7
    %v3868 = vsub.s32 0, %v3867
    %v3869 = vrot.slane %v3728, %v3868
    %v3870 = vlaneseq
    %v3871 = vshrl.u32 %v3870, 7
    %v3872 = vsub.s32 0, %v3871
    %v3873 = vrot.slane %v3730, %v3872
    %v3874 = vlaneseq
    %v3875 = vshrl.u32 %v3874, 7
    %v3876 = vsub.s32 0, %v3875
    %v3877 = vrot.slane %v3732, %v3876
    %v3878 = vlaneseq
    %v3879 = vshrl.u32 %v3878, 7
    %v3880 = vsub.s32 0, %v3879
    %v3881 = vrot.slane %v3756, %v3880
    %v3882 = vlaneseq
    %v3883 = vshrl.u32 %v3882, 7
    %v3884 = vsub.s32 0, %v3883
    %v3885 = vrot.slane %v3770, %v3884
    %v3886 = vlaneseq
    %v3887 = vshrl.u32 %v3886, 7
    %v3888 = vsub.s32 0, %v3887
    %v3889 = vrot.slane %v3778, %v3888
    %v3890 = vlaneseq
    %v3891 = vshrl.u32 %v3890, 7
    %v3892 = vsub.s32 0, %v3891
    %v3893 = vrot.slane %v3780, %v3892
    %v3894 = vlaneseq
    %v3895 = vshrl.u32 %v3894, 7
    %v3896 = vsub.s32 0, %v3895
    %v3897 = vrot.slane %v3763, %v3896
    %v3898 = vlaneseq
    %v3899 = vshrl.u32 %v3898, 7
    %v3900 = vsub.s32 0, %v3899
    %v3901 = vrot.slane %v3777, %v3900
    %v3902 = vlaneseq
    %v3903 = vshrl.u32 %v3902, 7
    %v3904 = vsub.s32 0, %v3903
    %v3905 = vrot.slane %v3779, %v3904
    %v3906 = vlaneseq
    %v3907 = vshrl.u32 %v3906, 7
    %v3908 = vsub.s32 0, %v3907
    %v3909 = vrot.slane %v3781, %v3908
    %v3942 = vmul.f32 %v2639, %v3785
    %v3943 = vmul.f32 %v2641, %v3789
    %v3944 = vmul.f32 %v2643, %v3793
    %v3945 = vmul.f32 %v2645, %v3797
    %v3946 = vmul.f32 %v2647, %v3801
    %v3947 = vmul.f32 %v2649, %v3805
    %v3948 = vmul.f32 %v2651, %v3809
    %v3949 = vmul.f32 %v2653, %v3813
    %v3950 = vmul.f32 %v2655, %v3817
    %v3951 = vmul.f32 %v2657, %v3821
    %v3952 = vmul.f32 %v2659, %v3825
    %v3953 = vmul.f32 %v2661, %v3829
    %v3954 = vmul.f32 %v2663, %v3833
    %v3955 = vmul.f32 %v2665, %v3837
    %v3956 = vmul.f32 %v2667, %v3841
    %v3957 = vmul.f32 %v2669, %v3845
    %v3958 = vmul.f32 %v2671, %v3849
    %v3959 = vmul.f32 %v2673, %v3853
    %v3960 = vmul.f32 %v2675, %v3857
    %v3961 = vmul.f32 %v2677, %v3861
    %v3962 = vmul.f32 %v2679, %v3865
    %v3963 = vmul.f32 %v2681, %v3869
    %v3964 = vmul.f32 %v2683, %v3873
    %v3965 = vmul.f32 %v2685, %v3877
    %v3966 = vmul.f32 %v2687, %v3881
    %v3967 = vmul.f32 %v2689, %v3885
    %v3968 = vmul.f32 %v2691, %v3889
    %v3969 = vmul.f32 %v2693, %v3893
    %v3970 = vmul.f32 %v2695, %v3897
    %v3971 = vmul.f32 %v2697, %v3901
    %v3972 = vmul.f32 %v2699, %v3905
    %v3973 = vmul.f32 %v2701, %v3909
    %v3974 = vadd.f32 %v3942, %v3943
    %v3975 = vadd.f32 %v3974, %v3944
    %v3976 = vadd.f32 %v3975, %v3945
    %v3977 = vadd.f32 %v3976, %v3946
    %v3978 = vadd.f32 %v3977, %v3947
    %v3979 = vadd.f32 %v3978, %v3948
    %v3980 = vadd.f32 %v3979, %v3949
    %v3981 = vadd.f32 %v3980, %v3950
    %v3982 = vadd.f32 %v3981, %v3951
    %v3983 = vadd.f32 %v3982, %v3952
    %v3984 = vadd.f32 %v3983, %v3953
    %v3985 = vadd.f32 %v3984, %v3954
    %v3986 = vadd.f32 %v3985, %v3955
    %v3987 = vadd.f32 %v3986, %v3956
    %v3988 = vadd.f32 %v3987, %v3957
    %v3989 = vadd.f32 %v3988, %v3958
    %v3990 = vadd.f32 %v3989, %v3959
    %v3991 = vadd.f32 %v3990, %v3960
    %v3992 = vadd.f32 %v3991, %v3961
    %v3993 = vadd.f32 %v3992, %v3962
    %v3994 = vadd.f32 %v3993, %v3963
    %v3995 = vadd.f32 %v3994, %v3964
    %v3996 = vadd.f32 %v3995, %v3965
    %v3997 = vadd.f32 %v3996, %v3966
    %v3998 = vadd.f32 %v3997, %v3967
    %v3999 = vadd.f32 %v3998, %v3968
    %v4000 = vadd.f32 %v3999, %v3969
    %v4001 = vadd.f32 %v4000, %v3970
    %v4002 = vadd.f32 %v4001, %v3971
    %v4003 = vadd.f32 %v4002, %v3972
    %v4004 = vadd.f32 %v4003, %v3973
    %v4005 = vmul.f32 %v4004, %v2733
    %v4010 = vcombine.high %v897, %v897
    %v4012 = vunpack.c.l.s4 1966171168
    %v4013 = vunpack.c.0.s8 %v4012
    %v4014 = vlaneseq
    %v4015 = vshrl.u32 %v4014, 7
    %v4016 = vsub.s32 %v4013, %v4015
    %v4017 = vrot.slane %v897, %v4016
    %v4019 = vunpack.c.l.s4 1966171168
    %v4020 = vunpack.c.0.s8 %v4019
    %v4021 = vlaneseq
    %v4022 = vshrl.u32 %v4021, 7
    %v4023 = vsub.s32 %v4020, %v4022
    %v4024 = vrot.slane %v4010, %v4023
    %v4025 = vcombine.high %v4017, %v4017
    %v4026 = vcombine.high %v4024, %v4024
    %v4028 = vunpack.c.l.s4 1966171168
    %v4029 = vunpack.c.0.s8 %v4028
    %v4030 = vlaneseq
    %v4031 = vshrl.u32 %v4030, 7
    %v4032 = vsub.s32 %v4029, %v4031
    %v4033 = vrot.slane %v4017, %v4032
    %v4035 = vunpack.c.l.s4 1966171168
    %v4036 = vunpack.c.0.s8 %v4035
    %v4037 = vlaneseq
    %v4038 = vshrl.u32 %v4037, 7
    %v4039 = vsub.s32 %v4036, %v4038
    %v4040 = vrot.slane %v4024, %v4039
    %v4042 = vunpack.c.l.s4 1966171168
    %v4043 = vunpack.c.0.s8 %v4042
    %v4044 = vlaneseq
    %v4045 = vshrl.u32 %v4044, 7
    %v4046 = vsub.s32 %v4043, %v4045
    %v4047 = vrot.slane %v4025, %v4046
    %v4049 = vunpack.c.l.s4 1966171168
    %v4050 = vunpack.c.0.s8 %v4049
    %v4051 = vlaneseq
    %v4052 = vshrl.u32 %v4051, 7
    %v4053 = vsub.s32 %v4050, %v4052
    %v4054 = vrot.slane %v4026, %v4053
    %v4055 = vcombine.high %v4033, %v4033
    %v4056 = vcombine.high %v4040, %v4040
    %v4057 = vcombine.high %v4047, %v4047
    %v4058 = vcombine.high %v4054, %v4054
    %v4059 = vcombine.high %v900, %v900
    %v4061 = vunpack.c.l.s4 1966171168
    %v4062 = vunpack.c.0.s8 %v4061
    %v4063 = vlaneseq
    %v4064 = vshrl.u32 %v4063, 7
    %v4065 = vsub.s32 %v4062, %v4064
    %v4066 = vrot.slane %v900, %v4065
    %v4068 = vunpack.c.l.s4 1966171168
    %v4069 = vunpack.c.0.s8 %v4068
    %v4070 = vlaneseq
    %v4071 = vshrl.u32 %v4070, 7
    %v4072 = vsub.s32 %v4069, %v4071
    %v4073 = vrot.slane %v4059, %v4072
    %v4074 = vcombine.high %v4066, %v4066
    %v4075 = vcombine.high %v4073, %v4073
    %v4077 = vunpack.c.l.s4 1966171168
    %v4078 = vunpack.c.0.s8 %v4077
    %v4079 = vlaneseq
    %v4080 = vshrl.u32 %v4079, 7
    %v4081 = vsub.s32 %v4078, %v4080
    %v4082 = vrot.slane %v4066, %v4081
    %v4084 = vunpack.c.l.s4 1966171168
    %v4085 = vunpack.c.0.s8 %v4084
    %v4086 = vlaneseq
    %v4087 = vshrl.u32 %v4086, 7
    %v4088 = vsub.s32 %v4085, %v4087
    %v4089 = vrot.slane %v4073, %v4088
    %v4091 = vunpack.c.l.s4 1966171168
    %v4092 = vunpack.c.0.s8 %v4091
    %v4093 = vlaneseq
    %v4094 = vshrl.u32 %v4093, 7
    %v4095 = vsub.s32 %v4092, %v4094
    %v4096 = vrot.slane %v4074, %v4095
    %v4098 = vunpack.c.l.s4 1966171168
    %v4099 = vunpack.c.0.s8 %v4098
    %v4100 = vlaneseq
    %v4101 = vshrl.u32 %v4100, 7
    %v4102 = vsub.s32 %v4099, %v4101
    %v4103 = vrot.slane %v4075, %v4102
    %v4104 = vcombine.high %v4082, %v4082
    %v4105 = vcombine.high %v4089, %v4089
    %v4106 = vcombine.high %v4096, %v4096
    %v4107 = vcombine.high %v4103, %v4103
    %v4108 = vcombine.high %v905, %v905
    %v4110 = vunpack.c.l.s4 1966171168
    %v4111 = vunpack.c.0.s8 %v4110
    %v4112 = vlaneseq
    %v4113 = vshrl.u32 %v4112, 7
    %v4114 = vsub.s32 %v4111, %v4113
    %v4115 = vrot.slane %v905, %v4114
    %v4117 = vunpack.c.l.s4 1966171168
    %v4118 = vunpack.c.0.s8 %v4117
    %v4119 = vlaneseq
    %v4120 = vshrl.u32 %v4119, 7
    %v4121 = vsub.s32 %v4118, %v4120
    %v4122 = vrot.slane %v4108, %v4121
    %v4123 = vcombine.high %v4115, %v4115
    %v4124 = vcombine.high %v4122, %v4122
    %v4126 = vunpack.c.l.s4 1966171168
    %v4127 = vunpack.c.0.s8 %v4126
    %v4128 = vlaneseq
    %v4129 = vshrl.u32 %v4128, 7
    %v4130 = vsub.s32 %v4127, %v4129
    %v4131 = vrot.slane %v4115, %v4130
    %v4133 = vunpack.c.l.s4 1966171168
    %v4134 = vunpack.c.0.s8 %v4133
    %v4135 = vlaneseq
    %v4136 = vshrl.u32 %v4135, 7
    %v4137 = vsub.s32 %v4134, %v4136
    %v4138 = vrot.slane %v4122, %v4137
    %v4140 = vunpack.c.l.s4 1966171168
    %v4141 = vunpack.c.0.s8 %v4140
    %v4142 = vlaneseq
    %v4143 = vshrl.u32 %v4142, 7
    %v4144 = vsub.s32 %v4141, %v4143
    %v4145 = vrot.slane %v4123, %v4144
    %v4147 = vunpack.c.l.s4 1966171168
    %v4148 = vunpack.c.0.s8 %v4147
    %v4149 = vlaneseq
    %v4150 = vshrl.u32 %v4149, 7
    %v4151 = vsub.s32 %v4148, %v4150
    %v4152 = vrot.slane %v4124, %v4151
    %v4153 = vcombine.high %v4131, %v4131
    %v4154 = vcombine.high %v4138, %v4138
    %v4155 = vcombine.high %v4145, %v4145
    %v4156 = vcombine.high %v4152, %v4152
    %v4157 = vcombine.high %v908, %v908
    %v4159 = vunpack.c.l.s4 1966171168
    %v4160 = vunpack.c.0.s8 %v4159
    %v4161 = vlaneseq
    %v4162 = vshrl.u32 %v4161, 7
    %v4163 = vsub.s32 %v4160, %v4162
    %v4164 = vrot.slane %v908, %v4163
    %v4166 = vunpack.c.l.s4 1966171168
    %v4167 = vunpack.c.0.s8 %v4166
    %v4168 = vlaneseq
    %v4169 = vshrl.u32 %v4168, 7
    %v4170 = vsub.s32 %v4167, %v4169
    %v4171 = vrot.slane %v4157, %v4170
    %v4172 = vcombine.high %v4164, %v4164
    %v4173 = vcombine.high %v4171, %v4171
    %v4175 = vunpack.c.l.s4 1966171168
    %v4176 = vunpack.c.0.s8 %v4175
    %v4177 = vlaneseq
    %v4178 = vshrl.u32 %v4177, 7
    %v4179 = vsub.s32 %v4176, %v4178
    %v4180 = vrot.slane %v4164, %v4179
    %v4182 = vunpack.c.l.s4 1966171168
    %v4183 = vunpack.c.0.s8 %v4182
    %v4184 = vlaneseq
    %v4185 = vshrl.u32 %v4184, 7
    %v4186 = vsub.s32 %v4183, %v4185
    %v4187 = vrot.slane %v4171, %v4186
    %v4189 = vunpack.c.l.s4 1966171168
    %v4190 = vunpack.c.0.s8 %v4189
    %v4191 = vlaneseq
    %v4192 = vshrl.u32 %v4191, 7
    %v4193 = vsub.s32 %v4190, %v4192
    %v4194 = vrot.slane %v4172, %v4193
    %v4196 = vunpack.c.l.s4 1966171168
    %v4197 = vunpack.c.0.s8 %v4196
    %v4198 = vlaneseq
    %v4199 = vshrl.u32 %v4198, 7
    %v4200 = vsub.s32 %v4197, %v4199
    %v4201 = vrot.slane %v4173, %v4200
    %v4202 = vcombine.high %v4180, %v4180
    %v4203 = vcombine.high %v4187, %v4187
    %v4204 = vcombine.high %v4194, %v4194
    %v4205 = vcombine.high %v4201, %v4201
    %v4206 = vlaneseq
    %v4207 = vshrl.u32 %v4206, 7
    %v4208 = vsub.s32 0, %v4207
    %v4209 = vrot.slane %v4033, %v4208
    %v4210 = vlaneseq
    %v4211 = vshrl.u32 %v4210, 7
    %v4212 = vsub.s32 0, %v4211
    %v4213 = vrot.slane %v4047, %v4212
    %v4214 = vlaneseq
    %v4215 = vshrl.u32 %v4214, 7
    %v4216 = vsub.s32 0, %v4215
    %v4217 = vrot.slane %v4055, %v4216
    %v4218 = vlaneseq
    %v4219 = vshrl.u32 %v4218, 7
    %v4220 = vsub.s32 0, %v4219
    %v4221 = vrot.slane %v4057, %v4220
    %v4222 = vlaneseq
    %v4223 = vshrl.u32 %v4222, 7
    %v4224 = vsub.s32 0, %v4223
    %v4225 = vrot.slane %v4040, %v4224
    %v4226 = vlaneseq
    %v4227 = vshrl.u32 %v4226, 7
    %v4228 = vsub.s32 0, %v4227
    %v4229 = vrot.slane %v4054, %v4228
    %v4230 = vlaneseq
    %v4231 = vshrl.u32 %v4230, 7
    %v4232 = vsub.s32 0, %v4231
    %v4233 = vrot.slane %v4056, %v4232
    %v4234 = vlaneseq
    %v4235 = vshrl.u32 %v4234, 7
    %v4236 = vsub.s32 0, %v4235
    %v4237 = vrot.slane %v4058, %v4236
    %v4238 = vlaneseq
    %v4239 = vshrl.u32 %v4238, 7
    %v4240 = vsub.s32 0, %v4239
    %v4241 = vrot.slane %v4082, %v4240
    %v4242 = vlaneseq
    %v4243 = vshrl.u32 %v4242, 7
    %v4244 = vsub.s32 0, %v4243
    %v4245 = vrot.slane %v4096, %v4244
    %v4246 = vlaneseq
    %v4247 = vshrl.u32 %v4246, 7
    %v4248 = vsub.s32 0, %v4247
    %v4249 = vrot.slane %v4104, %v4248
    %v4250 = vlaneseq
    %v4251 = vshrl.u32 %v4250, 7
    %v4252 = vsub.s32 0, %v4251
    %v4253 = vrot.slane %v4106, %v4252
    %v4254 = vlaneseq
    %v4255 = vshrl.u32 %v4254, 7
    %v4256 = vsub.s32 0, %v4255
    %v4257 = vrot.slane %v4089, %v4256
    %v4258 = vlaneseq
    %v4259 = vshrl.u32 %v4258, 7
    %v4260 = vsub.s32 0, %v4259
    %v4261 = vrot.slane %v4103, %v4260
    %v4262 = vlaneseq
    %v4263 = vshrl.u32 %v4262, 7
    %v4264 = vsub.s32 0, %v4263
    %v4265 = vrot.slane %v4105, %v4264
    %v4266 = vlaneseq
    %v4267 = vshrl.u32 %v4266, 7
    %v4268 = vsub.s32 0, %v4267
    %v4269 = vrot.slane %v4107, %v4268
    %v4270 = vlaneseq
    %v4271 = vshrl.u32 %v4270, 7
    %v4272 = vsub.s32 0, %v4271
    %v4273 = vrot.slane %v4131, %v4272
    %v4274 = vlaneseq
    %v4275 = vshrl.u32 %v4274, 7
    %v4276 = vsub.s32 0, %v4275
    %v4277 = vrot.slane %v4145, %v4276
    %v4278 = vlaneseq
    %v4279 = vshrl.u32 %v4278, 7
    %v4280 = vsub.s32 0, %v4279
    %v4281 = vrot.slane %v4153, %v4280
    %v4282 = vlaneseq
    %v4283 = vshrl.u32 %v4282, 7
    %v4284 = vsub.s32 0, %v4283
    %v4285 = vrot.slane %v4155, %v4284
    %v4286 = vlaneseq
    %v4287 = vshrl.u32 %v4286, 7
    %v4288 = vsub.s32 0, %v4287
    %v4289 = vrot.slane %v4138, %v4288
    %v4290 = vlaneseq
    %v4291 = vshrl.u32 %v4290, 7
    %v4292 = vsub.s32 0, %v4291
    %v4293 = vrot.slane %v4152, %v4292
    %v4294 = vlaneseq
    %v4295 = vshrl.u32 %v4294, 7
    %v4296 = vsub.s32 0, %v4295
    %v4297 = vrot.slane %v4154, %v4296
    %v4298 = vlaneseq
    %v4299 = vshrl.u32 %v4298, 7
    %v4300 = vsub.s32 0, %v4299
    %v4301 = vrot.slane %v4156, %v4300
    %v4302 = vlaneseq
    %v4303 = vshrl.u32 %v4302, 7
    %v4304 = vsub.s32 0, %v4303
    %v4305 = vrot.slane %v4180, %v4304
    %v4306 = vlaneseq
    %v4307 = vshrl.u32 %v4306, 7
    %v4308 = vsub.s32 0, %v4307
    %v4309 = vrot.slane %v4194, %v4308
    %v4310 = vlaneseq
    %v4311 = vshrl.u32 %v4310, 7
    %v4312 = vsub.s32 0, %v4311
    %v4313 = vrot.slane %v4202, %v4312
    %v4314 = vlaneseq
    %v4315 = vshrl.u32 %v4314, 7
    %v4316 = vsub.s32 0, %v4315
    %v4317 = vrot.slane %v4204, %v4316
    %v4318 = vlaneseq
    %v4319 = vshrl.u32 %v4318, 7
    %v4320 = vsub.s32 0, %v4319
    %v4321 = vrot.slane %v4187, %v4320
    %v4322 = vlaneseq
    %v4323 = vshrl.u32 %v4322, 7
    %v4324 = vsub.s32 0, %v4323
    %v4325 = vrot.slane %v4201, %v4324
    %v4326 = vlaneseq
    %v4327 = vshrl.u32 %v4326, 7
    %v4328 = vsub.s32 0, %v4327
    %v4329 = vrot.slane %v4203, %v4328
    %v4330 = vlaneseq
    %v4331 = vshrl.u32 %v4330, 7
    %v4332 = vsub.s32 0, %v4331
    %v4333 = vrot.slane %v4205, %v4332
    %v4366 = vmul.f32 %v2639, %v4209
    %v4367 = vmul.f32 %v2641, %v4213
    %v4368 = vmul.f32 %v2643, %v4217
    %v4369 = vmul.f32 %v2645, %v4221
    %v4370 = vmul.f32 %v2647, %v4225
    %v4371 = vmul.f32 %v2649, %v4229
    %v4372 = vmul.f32 %v2651, %v4233
    %v4373 = vmul.f32 %v2653, %v4237
    %v4374 = vmul.f32 %v2655, %v4241
    %v4375 = vmul.f32 %v2657, %v4245
    %v4376 = vmul.f32 %v2659, %v4249
    %v4377 = vmul.f32 %v2661, %v4253
    %v4378 = vmul.f32 %v2663, %v4257
    %v4379 = vmul.f32 %v2665, %v4261
    %v4380 = vmul.f32 %v2667, %v4265
    %v4381 = vmul.f32 %v2669, %v4269
    %v4382 = vmul.f32 %v2671, %v4273
    %v4383 = vmul.f32 %v2673, %v4277
    %v4384 = vmul.f32 %v2675, %v4281
    %v4385 = vmul.f32 %v2677, %v4285
    %v4386 = vmul.f32 %v2679, %v4289
    %v4387 = vmul.f32 %v2681, %v4293
    %v4388 = vmul.f32 %v2683, %v4297
    %v4389 = vmul.f32 %v2685, %v4301
    %v4390 = vmul.f32 %v2687, %v4305
    %v4391 = vmul.f32 %v2689, %v4309
    %v4392 = vmul.f32 %v2691, %v4313
    %v4393 = vmul.f32 %v2693, %v4317
    %v4394 = vmul.f32 %v2695, %v4321
    %v4395 = vmul.f32 %v2697, %v4325
    %v4396 = vmul.f32 %v2699, %v4329
    %v4397 = vmul.f32 %v2701, %v4333
    %v4398 = vadd.f32 %v4366, %v4367
    %v4399 = vadd.f32 %v4398, %v4368
    %v4400 = vadd.f32 %v4399, %v4369
    %v4401 = vadd.f32 %v4400, %v4370
    %v4402 = vadd.f32 %v4401, %v4371
    %v4403 = vadd.f32 %v4402, %v4372
    %v4404 = vadd.f32 %v4403, %v4373
    %v4405 = vadd.f32 %v4404, %v4374
    %v4406 = vadd.f32 %v4405, %v4375
    %v4407 = vadd.f32 %v4406, %v4376
    %v4408 = vadd.f32 %v4407, %v4377
    %v4409 = vadd.f32 %v4408, %v4378
    %v4410 = vadd.f32 %v4409, %v4379
    %v4411 = vadd.f32 %v4410, %v4380
    %v4412 = vadd.f32 %v4411, %v4381
    %v4413 = vadd.f32 %v4412, %v4382
    %v4414 = vadd.f32 %v4413, %v4383
    %v4415 = vadd.f32 %v4414, %v4384
    %v4416 = vadd.f32 %v4415, %v4385
    %v4417 = vadd.f32 %v4416, %v4386
    %v4418 = vadd.f32 %v4417, %v4387
    %v4419 = vadd.f32 %v4418, %v4388
    %v4420 = vadd.f32 %v4419, %v4389
    %v4421 = vadd.f32 %v4420, %v4390
    %v4422 = vadd.f32 %v4421, %v4391
    %v4423 = vadd.f32 %v4422, %v4392
    %v4424 = vadd.f32 %v4423, %v4393
    %v4425 = vadd.f32 %v4424, %v4394
    %v4426 = vadd.f32 %v4425, %v4395
    %v4427 = vadd.f32 %v4426, %v4396
    %v4428 = vadd.f32 %v4427, %v4397
    %v4429 = vmul.f32 %v4428, %v2733
    %v4430 = vmul.f32 %v1114, %v724
    %v4431 = vmul.f32 %v1118, %v724
    %v4432 = vmul.f32 %v1122, %v724
    %v4433 = vmul.f32 %v1126, %v724
    %v4434 = vmul.f32 %v1130, %v724
    %v4435 = vmul.f32 %v1134, %v724
    %v4436 = vmul.f32 %v1138, %v724
    %v4437 = vmul.f32 %v1142, %v724
    %v4438 = vmul.f32 %v1146, %v724
    %v4439 = vmul.f32 %v1150, %v724
    %v4440 = vmul.f32 %v1154, %v724
    %v4441 = vmul.f32 %v1158, %v724
    %v4442 = vmul.f32 %v1162, %v724
    %v4443 = vmul.f32 %v1166, %v724
    %v4444 = vmul.f32 %v1170, %v724
    %v4445 = vmul.f32 %v1174, %v724
    %v4446 = vmul.f32 %v1178, %v724
    %v4447 = vmul.f32 %v1182, %v724
    %v4448 = vmul.f32 %v1186, %v724
    %v4449 = vmul.f32 %v1190, %v724
    %v4450 = vmul.f32 %v1194, %v724
    %v4451 = vmul.f32 %v1198, %v724
    %v4452 = vmul.f32 %v1202, %v724
    %v4453 = vmul.f32 %v1206, %v724
    %v4454 = vmul.f32 %v1210, %v724
    %v4455 = vmul.f32 %v1214, %v724
    %v4456 = vmul.f32 %v1218, %v724
    %v4457 = vmul.f32 %v1222, %v724
    %v4458 = vmul.f32 %v1226, %v724
    %v4459 = vmul.f32 %v1230, %v724
    %v4460 = vmul.f32 %v1234, %v724
    %v4461 = vmul.f32 %v1238, %v724
    %v4462 = vmul.f32 %v1506, %v740
    %v4463 = vmul.f32 %v1510, %v740
    %v4464 = vmul.f32 %v1514, %v740
    %v4465 = vmul.f32 %v1518, %v740
    %v4466 = vmul.f32 %v1522, %v740
    %v4467 = vmul.f32 %v1526, %v740
    %v4468 = vmul.f32 %v1530, %v740
    %v4469 = vmul.f32 %v1534, %v740
    %v4470 = vmul.f32 %v1538, %v740
    %v4471 = vmul.f32 %v1542, %v740
    %v4472 = vmul.f32 %v1546, %v740
    %v4473 = vmul.f32 %v1550, %v740
    %v4474 = vmul.f32 %v1554, %v740
    %v4475 = vmul.f32 %v1558, %v740
    %v4476 = vmul.f32 %v1562, %v740
    %v4477 = vmul.f32 %v1566, %v740
    %v4478 = vmul.f32 %v1570, %v740
    %v4479 = vmul.f32 %v1574, %v740
    %v4480 = vmul.f32 %v1578, %v740
    %v4481 = vmul.f32 %v1582, %v740
    %v4482 = vmul.f32 %v1586, %v740
    %v4483 = vmul.f32 %v1590, %v740
    %v4484 = vmul.f32 %v1594, %v740
    %v4485 = vmul.f32 %v1598, %v740
    %v4486 = vmul.f32 %v1602, %v740
    %v4487 = vmul.f32 %v1606, %v740
    %v4488 = vmul.f32 %v1610, %v740
    %v4489 = vmul.f32 %v1614, %v740
    %v4490 = vmul.f32 %v1618, %v740
    %v4491 = vmul.f32 %v1622, %v740
    %v4492 = vmul.f32 %v1626, %v740
    %v4493 = vmul.f32 %v1630, %v740
    %v4494 = vadd.f32 %v4430, %v4462
    %v4495 = vadd.f32 %v4431, %v4463
    %v4496 = vadd.f32 %v4432, %v4464
    %v4497 = vadd.f32 %v4433, %v4465
    %v4498 = vadd.f32 %v4434, %v4466
    %v4499 = vadd.f32 %v4435, %v4467
    %v4500 = vadd.f32 %v4436, %v4468
    %v4501 = vadd.f32 %v4437, %v4469
    %v4502 = vadd.f32 %v4438, %v4470
    %v4503 = vadd.f32 %v4439, %v4471
    %v4504 = vadd.f32 %v4440, %v4472
    %v4505 = vadd.f32 %v4441, %v4473
    %v4506 = vadd.f32 %v4442, %v4474
    %v4507 = vadd.f32 %v4443, %v4475
    %v4508 = vadd.f32 %v4444, %v4476
    %v4509 = vadd.f32 %v4445, %v4477
    %v4510 = vadd.f32 %v4446, %v4478
    %v4511 = vadd.f32 %v4447, %v4479
    %v4512 = vadd.f32 %v4448, %v4480
    %v4513 = vadd.f32 %v4449, %v4481
    %v4514 = vadd.f32 %v4450, %v4482
    %v4515 = vadd.f32 %v4451, %v4483
    %v4516 = vadd.f32 %v4452, %v4484
    %v4517 = vadd.f32 %v4453, %v4485
    %v4518 = vadd.f32 %v4454, %v4486
    %v4519 = vadd.f32 %v4455, %v4487
    %v4520 = vadd.f32 %v4456, %v4488
    %v4521 = vadd.f32 %v4457, %v4489
    %v4522 = vadd.f32 %v4458, %v4490
    %v4523 = vadd.f32 %v4459, %v4491
    %v4524 = vadd.f32 %v4460, %v4492
    %v4525 = vadd.f32 %v4461, %v4493
    %v4526 = vmul.f32 %v1930, %v756
    %v4527 = vmul.f32 %v1934, %v756
    %v4528 = vmul.f32 %v1938, %v756
    %v4529 = vmul.f32 %v1942, %v756
    %v4530 = vmul.f32 %v1946, %v756
    %v4531 = vmul.f32 %v1950, %v756
    %v4532 = vmul.f32 %v1954, %v756
    %v4533 = vmul.f32 %v1958, %v756
    %v4534 = vmul.f32 %v1962, %v756
    %v4535 = vmul.f32 %v1966, %v756
    %v4536 = vmul.f32 %v1970, %v756
    %v4537 = vmul.f32 %v1974, %v756
    %v4538 = vmul.f32 %v1978, %v756
    %v4539 = vmul.f32 %v1982, %v756
    %v4540 = vmul.f32 %v1986, %v756
    %v4541 = vmul.f32 %v1990, %v756
    %v4542 = vmul.f32 %v1994, %v756
    %v4543 = vmul.f32 %v1998, %v756
    %v4544 = vmul.f32 %v2002, %v756
    %v4545 = vmul.f32 %v2006, %v756
    %v4546 = vmul.f32 %v2010, %v756
    %v4547 = vmul.f32 %v2014, %v756
    %v4548 = vmul.f32 %v2018, %v756
    %v4549 = vmul.f32 %v2022, %v756
    %v4550 = vmul.f32 %v2026, %v756
    %v4551 = vmul.f32 %v2030, %v756
    %v4552 = vmul.f32 %v2034, %v756
    %v4553 = vmul.f32 %v2038, %v756
    %v4554 = vmul.f32 %v2042, %v756
    %v4555 = vmul.f32 %v2046, %v756
    %v4556 = vmul.f32 %v2050, %v756
    %v4557 = vmul.f32 %v2054, %v756
    %v4558 = vadd.f32 %v4494, %v4526
    %v4559 = vadd.f32 %v4495, %v4527
    %v4560 = vadd.f32 %v4496, %v4528
    %v4561 = vadd.f32 %v4497, %v4529
    %v4562 = vadd.f32 %v4498, %v4530
    %v4563 = vadd.f32 %v4499, %v4531
    %v4564 = vadd.f32 %v4500, %v4532
    %v4565 = vadd.f32 %v4501, %v4533
    %v4566 = vadd.f32 %v4502, %v4534
    %v4567 = vadd.f32 %v4503, %v4535
    %v4568 = vadd.f32 %v4504, %v4536
    %v4569 = vadd.f32 %v4505, %v4537
    %v4570 = vadd.f32 %v4506, %v4538
    %v4571 = vadd.f32 %v4507, %v4539
    %v4572 = vadd.f32 %v4508, %v4540
    %v4573 = vadd.f32 %v4509, %v4541
    %v4574 = vadd.f32 %v4510, %v4542
    %v4575 = vadd.f32 %v4511, %v4543
    %v4576 = vadd.f32 %v4512, %v4544
    %v4577 = vadd.f32 %v4513, %v4545
    %v4578 = vadd.f32 %v4514, %v4546
    %v4579 = vadd.f32 %v4515, %v4547
    %v4580 = vadd.f32 %v4516, %v4548
    %v4581 = vadd.f32 %v4517, %v4549
    %v4582 = vadd.f32 %v4518, %v4550
    %v4583 = vadd.f32 %v4519, %v4551
    %v4584 = vadd.f32 %v4520, %v4552
    %v4585 = vadd.f32 %v4521, %v4553
    %v4586 = vadd.f32 %v4522, %v4554
    %v4587 = vadd.f32 %v4523, %v4555
    %v4588 = vadd.f32 %v4524, %v4556
    %v4589 = vadd.f32 %v4525, %v4557
    %v4590 = vmul.f32 %v2354, %v772
    %v4591 = vmul.f32 %v2358, %v772
    %v4592 = vmul.f32 %v2362, %v772
    %v4593 = vmul.f32 %v2366, %v772
    %v4594 = vmul.f32 %v2370, %v772
    %v4595 = vmul.f32 %v2374, %v772
    %v4596 = vmul.f32 %v2378, %v772
    %v4597 = vmul.f32 %v2382, %v772
    %v4598 = vmul.f32 %v2386, %v772
    %v4599 = vmul.f32 %v2390, %v772
    %v4600 = vmul.f32 %v2394, %v772
    %v4601 = vmul.f32 %v2398, %v772
    %v4602 = vmul.f32 %v2402, %v772
    %v4603 = vmul.f32 %v2406, %v772
    %v4604 = vmul.f32 %v2410, %v772
    %v4605 = vmul.f32 %v2414, %v772
    %v4606 = vmul.f32 %v2418, %v772
    %v4607 = vmul.f32 %v2422, %v772
    %v4608 = vmul.f32 %v2426, %v772
    %v4609 = vmul.f32 %v2430, %v772
    %v4610 = vmul.f32 %v2434, %v772
    %v4611 = vmul.f32 %v2438, %v772
    %v4612 = vmul.f32 %v2442, %v772
    %v4613 = vmul.f32 %v2446, %v772
    %v4614 = vmul.f32 %v2450, %v772
    %v4615 = vmul.f32 %v2454, %v772
    %v4616 = vmul.f32 %v2458, %v772
    %v4617 = vmul.f32 %v2462, %v772
    %v4618 = vmul.f32 %v2466, %v772
    %v4619 = vmul.f32 %v2470, %v772
    %v4620 = vmul.f32 %v2474, %v772
    %v4621 = vmul.f32 %v2478, %v772
    %v4622 = vadd.f32 %v4558, %v4590
    %v4623 = vadd.f32 %v4559, %v4591
    %v4624 = vadd.f32 %v4560, %v4592
    %v4625 = vadd.f32 %v4561, %v4593
    %v4626 = vadd.f32 %v4562, %v4594
    %v4627 = vadd.f32 %v4563, %v4595
    %v4628 = vadd.f32 %v4564, %v4596
    %v4629 = vadd.f32 %v4565, %v4597
    %v4630 = vadd.f32 %v4566, %v4598
    %v4631 = vadd.f32 %v4567, %v4599
    %v4632 = vadd.f32 %v4568, %v4600
    %v4633 = vadd.f32 %v4569, %v4601
    %v4634 = vadd.f32 %v4570, %v4602
    %v4635 = vadd.f32 %v4571, %v4603
    %v4636 = vadd.f32 %v4572, %v4604
    %v4637 = vadd.f32 %v4573, %v4605
    %v4638 = vadd.f32 %v4574, %v4606
    %v4639 = vadd.f32 %v4575, %v4607
    %v4640 = vadd.f32 %v4576, %v4608
    %v4641 = vadd.f32 %v4577, %v4609
    %v4642 = vadd.f32 %v4578, %v4610
    %v4643 = vadd.f32 %v4579, %v4611
    %v4644 = vadd.f32 %v4580, %v4612
    %v4645 = vadd.f32 %v4581, %v4613
    %v4646 = vadd.f32 %v4582, %v4614
    %v4647 = vadd.f32 %v4583, %v4615
    %v4648 = vadd.f32 %v4584, %v4616
    %v4649 = vadd.f32 %v4585, %v4617
    %v4650 = vadd.f32 %v4586, %v4618
    %v4651 = vadd.f32 %v4587, %v4619
    %v4652 = vadd.f32 %v4588, %v4620
    %v4653 = vadd.f32 %v4589, %v4621
    %v4654 = vmax.f32 %v4622, %v4626
    %v4655 = vmax.f32 %v4623, %v4627
    %v4656 = vmax.f32 %v4624, %v4628
    %v4657 = vmax.f32 %v4625, %v4629
    %v4658 = vmax.f32 %v4654, %v4630
    %v4659 = vmax.f32 %v4655, %v4631
    %v4660 = vmax.f32 %v4656, %v4632
    %v4661 = vmax.f32 %v4657, %v4633
    %v4662 = vmax.f32 %v4658, %v4634
    %v4663 = vmax.f32 %v4659, %v4635
    %v4664 = vmax.f32 %v4660, %v4636
    %v4665 = vmax.f32 %v4661, %v4637
    %v4666 = vmax.f32 %v4662, %v4638
    %v4667 = vmax.f32 %v4663, %v4639
    %v4668 = vmax.f32 %v4664, %v4640
    %v4669 = vmax.f32 %v4665, %v4641
    %v4670 = vmax.f32 %v4666, %v4642
    %v4671 = vmax.f32 %v4667, %v4643
    %v4672 = vmax.f32 %v4668, %v4644
    %v4673 = vmax.f32 %v4669, %v4645
    %v4674 = vmax.f32 %v4670, %v4646
    %v4675 = vmax.f32 %v4671, %v4647
    %v4676 = vmax.f32 %v4672, %v4648
    %v4677 = vmax.f32 %v4673, %v4649
    %v4678 = vmax.f32 %v4674, %v4650
    %v4679 = vmax.f32 %v4675, %v4651
    %v4680 = vmax.f32 %v4676, %v4652
    %v4681 = vmax.f32 %v4677, %v4653
    %v4682 = vmax.f32 %v4678, %v4679
    %v4683 = vmax.f32 %v4680, %v4681
    %v4684 = vmax.f32 %v4682, %v4683
    %v4685 = vsub.f32 %v4622, %v4684
    %v4686 = vsub.f32 %v4623, %v4684
    %v4687 = vsub.f32 %v4624, %v4684
    %v4688 = vsub.f32 %v4625, %v4684
    %v4689 = vsub.f32 %v4626, %v4684
    %v4690 = vsub.f32 %v4627, %v4684
    %v4691 = vsub.f32 %v4628, %v4684
    %v4692 = vsub.f32 %v4629, %v4684
    %v4693 = vsub.f32 %v4630, %v4684
    %v4694 = vsub.f32 %v4631, %v4684
    %v4695 = vsub.f32 %v4632, %v4684
    %v4696 = vsub.f32 %v4633, %v4684
    %v4697 = vsub.f32 %v4634, %v4684
    %v4698 = vsub.f32 %v4635, %v4684
    %v4699 = vsub.f32 %v4636, %v4684
    %v4700 = vsub.f32 %v4637, %v4684
    %v4701 = vsub.f32 %v4638, %v4684
    %v4702 = vsub.f32 %v4639, %v4684
    %v4703 = vsub.f32 %v4640, %v4684
    %v4704 = vsub.f32 %v4641, %v4684
    %v4705 = vsub.f32 %v4642, %v4684
    %v4706 = vsub.f32 %v4643, %v4684
    %v4707 = vsub.f32 %v4644, %v4684
    %v4708 = vsub.f32 %v4645, %v4684
    %v4709 = vsub.f32 %v4646, %v4684
    %v4710 = vsub.f32 %v4647, %v4684
    %v4711 = vsub.f32 %v4648, %v4684
    %v4712 = vsub.f32 %v4649, %v4684
    %v4713 = vsub.f32 %v4650, %v4684
    %v4714 = vsub.f32 %v4651, %v4684
    %v4715 = vsub.f32 %v4652, %v4684
    %v4716 = vsub.f32 %v4653, %v4684
    %v4717 = vmul.f32 %v4685, 1.442695
    %v4718 = vpow.pop %v4717
    %v4719 = vmul.f32 %v4686, 1.442695
    %v4720 = vpow.pop %v4719
    %v4721 = vmul.f32 %v4687, 1.442695
    %v4722 = vpow.pop %v4721
    %v4723 = vmul.f32 %v4688, 1.442695
    %v4724 = vpow.pop %v4723
    %v4725 = vmul.f32 %v4689, 1.442695
    %v4726 = vpow.pop %v4725
    %v4727 = vmul.f32 %v4690, 1.442695
    %v4728 = vpow.pop %v4727
    %v4729 = vmul.f32 %v4691, 1.442695
    %v4730 = vpow.pop %v4729
    %v4731 = vmul.f32 %v4692, 1.442695
    %v4732 = vpow.pop %v4731
    %v4733 = vmul.f32 %v4693, 1.442695
    %v4734 = vpow.pop %v4733
    %v4735 = vmul.f32 %v4694, 1.442695
    %v4736 = vpow.pop %v4735
    %v4737 = vmul.f32 %v4695, 1.442695
    %v4738 = vpow.pop %v4737
    %v4739 = vmul.f32 %v4696, 1.442695
    %v4740 = vpow.pop %v4739
    %v4741 = vmul.f32 %v4697, 1.442695
    %v4742 = vpow.pop %v4741
    %v4743 = vmul.f32 %v4698, 1.442695
    %v4744 = vpow.pop %v4743
    %v4745 = vmul.f32 %v4699, 1.442695
    %v4746 = vpow.pop %v4745
    %v4747 = vmul.f32 %v4700, 1.442695
    %v4748 = vpow.pop %v4747
    %v4749 = vmul.f32 %v4701, 1.442695
    %v4750 = vpow.pop %v4749
    %v4751 = vmul.f32 %v4702, 1.442695
    %v4752 = vpow.pop %v4751
    %v4753 = vmul.f32 %v4703, 1.442695
    %v4754 = vpow.pop %v4753
    %v4755 = vmul.f32 %v4704, 1.442695
    %v4756 = vpow.pop %v4755
    %v4757 = vmul.f32 %v4705, 1.442695
    %v4758 = vpow.pop %v4757
    %v4759 = vmul.f32 %v4706, 1.442695
    %v4760 = vpow.pop %v4759
    %v4761 = vmul.f32 %v4707, 1.442695
    %v4762 = vpow.pop %v4761
    %v4763 = vmul.f32 %v4708, 1.442695
    %v4764 = vpow.pop %v4763
    %v4765 = vmul.f32 %v4709, 1.442695
    %v4766 = vpow.pop %v4765
    %v4767 = vmul.f32 %v4710, 1.442695
    %v4768 = vpow.pop %v4767
    %v4769 = vmul.f32 %v4711, 1.442695
    %v4770 = vpow.pop %v4769
    %v4771 = vmul.f32 %v4712, 1.442695
    %v4772 = vpow.pop %v4771
    %v4773 = vmul.f32 %v4713, 1.442695
    %v4774 = vpow.pop %v4773
    %v4775 = vmul.f32 %v4714, 1.442695
    %v4776 = vpow.pop %v4775
    %v4777 = vmul.f32 %v4715, 1.442695
    %v4778 = vpow.pop %v4777
    %v4779 = vmul.f32 %v4716, 1.442695
    %v4780 = vpow.pop %v4779
    %v4781 = vadd.f32 %v4718, %v4720
    %v4782 = vadd.f32 %v4781, %v4722
    %v4783 = vadd.f32 %v4782, %v4724
    %v4784 = vadd.f32 %v4783, %v4726
    %v4785 = vadd.f32 %v4784, %v4728
    %v4786 = vadd.f32 %v4785, %v4730
    %v4787 = vadd.f32 %v4786, %v4732
    %v4788 = vadd.f32 %v4787, %v4734
    %v4789 = vadd.f32 %v4788, %v4736
    %v4790 = vadd.f32 %v4789, %v4738
    %v4791 = vadd.f32 %v4790, %v4740
    %v4792 = vadd.f32 %v4791, %v4742
    %v4793 = vadd.f32 %v4792, %v4744
    %v4794 = vadd.f32 %v4793, %v4746
    %v4795 = vadd.f32 %v4794, %v4748
    %v4796 = vadd.f32 %v4795, %v4750
    %v4797 = vadd.f32 %v4796, %v4752
    %v4798 = vadd.f32 %v4797, %v4754
    %v4799 = vadd.f32 %v4798, %v4756
    %v4800 = vadd.f32 %v4799, %v4758
    %v4801 = vadd.f32 %v4800, %v4760
    %v4802 = vadd.f32 %v4801, %v4762
    %v4803 = vadd.f32 %v4802, %v4764
    %v4804 = vadd.f32 %v4803, %v4766
    %v4805 = vadd.f32 %v4804, %v4768
    %v4806 = vadd.f32 %v4805, %v4770
    %v4807 = vadd.f32 %v4806, %v4772
    %v4808 = vadd.f32 %v4807, %v4774
    %v4809 = vadd.f32 %v4808, %v4776
    %v4810 = vadd.f32 %v4809, %v4778
    %v4811 = vadd.f32 %v4810, %v4780
    %v4812 = vrcp.pop %v4811
    %v4813 = vmul.f32 %v4718, %v2937
    %v4814 = vmul.f32 %v4720, %v2941
    %v4815 = vmul.f32 %v4722, %v2945
    %v4816 = vmul.f32 %v4724, %v2949
    %v4817 = vmul.f32 %v4726, %v2953
    %v4818 = vmul.f32 %v4728, %v2957
    %v4819 = vmul.f32 %v4730, %v2961
    %v4820 = vmul.f32 %v4732, %v2965
    %v4821 = vmul.f32 %v4734, %v2969
    %v4822 = vmul.f32 %v4736, %v2973
    %v4823 = vmul.f32 %v4738, %v2977
    %v4824 = vmul.f32 %v4740, %v2981
    %v4825 = vmul.f32 %v4742, %v2985
    %v4826 = vmul.f32 %v4744, %v2989
    %v4827 = vmul.f32 %v4746, %v2993
    %v4828 = vmul.f32 %v4748, %v2997
    %v4829 = vmul.f32 %v4750, %v3001
    %v4830 = vmul.f32 %v4752, %v3005
    %v4831 = vmul.f32 %v4754, %v3009
    %v4832 = vmul.f32 %v4756, %v3013
    %v4833 = vmul.f32 %v4758, %v3017
    %v4834 = vmul.f32 %v4760, %v3021
    %v4835 = vmul.f32 %v4762, %v3025
    %v4836 = vmul.f32 %v4764, %v3029
    %v4837 = vmul.f32 %v4766, %v3033
    %v4838 = vmul.f32 %v4768, %v3037
    %v4839 = vmul.f32 %v4770, %v3041
    %v4840 = vmul.f32 %v4772, %v3045
    %v4841 = vmul.f32 %v4774, %v3049
    %v4842 = vmul.f32 %v4776, %v3053
    %v4843 = vmul.f32 %v4778, %v3057
    %v4844 = vmul.f32 %v4780, %v3061
    %v4845 = vadd.f32 %v4813, %v4814
    %v4846 = vadd.f32 %v4845, %v4815
    %v4847 = vadd.f32 %v4846, %v4816
    %v4848 = vadd.f32 %v4847, %v4817
    %v4849 = vadd.f32 %v4848, %v4818
    %v4850 = vadd.f32 %v4849, %v4819
    %v4851 = vadd.f32 %v4850, %v4820
    %v4852 = vadd.f32 %v4851, %v4821
    %v4853 = vadd.f32 %v4852, %v4822
    %v4854 = vadd.f32 %v4853, %v4823
    %v4855 = vadd.f32 %v4854, %v4824
    %v4856 = vadd.f32 %v4855, %v4825
    %v4857 = vadd.f32 %v4856, %v4826
    %v4858 = vadd.f32 %v4857, %v4827
    %v4859 = vadd.f32 %v4858, %v4828
    %v4860 = vadd.f32 %v4859, %v4829
    %v4861 = vadd.f32 %v4860, %v4830
    %v4862 = vadd.f32 %v4861, %v4831
    %v4863 = vadd.f32 %v4862, %v4832
    %v4864 = vadd.f32 %v4863, %v4833
    %v4865 = vadd.f32 %v4864, %v4834
    %v4866 = vadd.f32 %v4865, %v4835
    %v4867 = vadd.f32 %v4866, %v4836
    %v4868 = vadd.f32 %v4867, %v4837
    %v4869 = vadd.f32 %v4868, %v4838
    %v4870 = vadd.f32 %v4869, %v4839
    %v4871 = vadd.f32 %v4870, %v4840
    %v4872 = vadd.f32 %v4871, %v4841
    %v4873 = vadd.f32 %v4872, %v4842
    %v4874 = vadd.f32 %v4873, %v4843
    %v4875 = vadd.f32 %v4874, %v4844
    %v4876 = vmul.f32 %v4875, %v4812
    %v4877 = vmul.f32 %v4718, %v3361
    %v4878 = vmul.f32 %v4720, %v3365
    %v4879 = vmul.f32 %v4722, %v3369
    %v4880 = vmul.f32 %v4724, %v3373
    %v4881 = vmul.f32 %v4726, %v3377
    %v4882 = vmul.f32 %v4728, %v3381
    %v4883 = vmul.f32 %v4730, %v3385
    %v4884 = vmul.f32 %v4732, %v3389
    %v4885 = vmul.f32 %v4734, %v3393
    %v4886 = vmul.f32 %v4736, %v3397
    %v4887 = vmul.f32 %v4738, %v3401
    %v4888 = vmul.f32 %v4740, %v3405
    %v4889 = vmul.f32 %v4742, %v3409
    %v4890 = vmul.f32 %v4744, %v3413
    %v4891 = vmul.f32 %v4746, %v3417
    %v4892 = vmul.f32 %v4748, %v3421
    %v4893 = vmul.f32 %v4750, %v3425
    %v4894 = vmul.f32 %v4752, %v3429
    %v4895 = vmul.f32 %v4754, %v3433
    %v4896 = vmul.f32 %v4756, %v3437
    %v4897 = vmul.f32 %v4758, %v3441
    %v4898 = vmul.f32 %v4760, %v3445
    %v4899 = vmul.f32 %v4762, %v3449
    %v4900 = vmul.f32 %v4764, %v3453
    %v4901 = vmul.f32 %v4766, %v3457
    %v4902 = vmul.f32 %v4768, %v3461
    %v4903 = vmul.f32 %v4770, %v3465
    %v4904 = vmul.f32 %v4772, %v3469
    %v4905 = vmul.f32 %v4774, %v3473
    %v4906 = vmul.f32 %v4776, %v3477
    %v4907 = vmul.f32 %v4778, %v3481
    %v4908 = vmul.f32 %v4780, %v3485
    %v4909 = vadd.f32 %v4877, %v4878
    %v4910 = vadd.f32 %v4909, %v4879
    %v4911 = vadd.f32 %v4910, %v4880
    %v4912 = vadd.f32 %v4911, %v4881
    %v4913 = vadd.f32 %v4912, %v4882
    %v4914 = vadd.f32 %v4913, %v4883
    %v4915 = vadd.f32 %v4914, %v4884
    %v4916 = vadd.f32 %v4915, %v4885
    %v4917 = vadd.f32 %v4916, %v4886
    %v4918 = vadd.f32 %v4917, %v4887
    %v4919 = vadd.f32 %v4918, %v4888
    %v4920 = vadd.f32 %v4919, %v4889
    %v4921 = vadd.f32 %v4920, %v4890
    %v4922 = vadd.f32 %v4921, %v4891
    %v4923 = vadd.f32 %v4922, %v4892
    %v4924 = vadd.f32 %v4923, %v4893
    %v4925 = vadd.f32 %v4924, %v4894
    %v4926 = vadd.f32 %v4925, %v4895
    %v4927 = vadd.f32 %v4926, %v4896
    %v4928 = vadd.f32 %v4927, %v4897
    %v4929 = vadd.f32 %v4928, %v4898
    %v4930 = vadd.f32 %v4929, %v4899
    %v4931 = vadd.f32 %v4930, %v4900
    %v4932 = vadd.f32 %v4931, %v4901
    %v4933 = vadd.f32 %v4932, %v4902
    %v4934 = vadd.f32 %v4933, %v4903
    %v4935 = vadd.f32 %v4934, %v4904
    %v4936 = vadd.f32 %v4935, %v4905
    %v4937 = vadd.f32 %v4936, %v4906
    %v4938 = vadd.f32 %v4937, %v4907
    %v4939 = vadd.f32 %v4938, %v4908
    %v4940 = vmul.f32 %v4939, %v4812
    %v4941 = vmul.f32 %v4718, %v3785
    %v4942 = vmul.f32 %v4720, %v3789
    %v4943 = vmul.f32 %v4722, %v3793
    %v4944 = vmul.f32 %v4724, %v3797
    %v4945 = vmul.f32 %v4726, %v3801
    %v4946 = vmul.f32 %v4728, %v3805
    %v4947 = vmul.f32 %v4730, %v3809
    %v4948 = vmul.f32 %v4732, %v3813
    %v4949 = vmul.f32 %v4734, %v3817
    %v4950 = vmul.f32 %v4736, %v3821
    %v4951 = vmul.f32 %v4738, %v3825
    %v4952 = vmul.f32 %v4740, %v3829
    %v4953 = vmul.f32 %v4742, %v3833
    %v4954 = vmul.f32 %v4744, %v3837
    %v4955 = vmul.f32 %v4746, %v3841
    %v4956 = vmul.f32 %v4748, %v3845
    %v4957 = vmul.f32 %v4750, %v3849
    %v4958 = vmul.f32 %v4752, %v3853
    %v4959 = vmul.f32 %v4754, %v3857
    %v4960 = vmul.f32 %v4756, %v3861
    %v4961 = vmul.f32 %v4758, %v3865
    %v4962 = vmul.f32 %v4760, %v3869
    %v4963 = vmul.f32 %v4762, %v3873
    %v4964 = vmul.f32 %v4764, %v3877
    %v4965 = vmul.f32 %v4766, %v3881
    %v4966 = vmul.f32 %v4768, %v3885
    %v4967 = vmul.f32 %v4770, %v3889
    %v4968 = vmul.f32 %v4772, %v3893
    %v4969 = vmul.f32 %v4774, %v3897
    %v4970 = vmul.f32 %v4776, %v3901
    %v4971 = vmul.f32 %v4778, %v3905
    %v4972 = vmul.f32 %v4780, %v3909
    %v4973 = vadd.f32 %v4941, %v4942
    %v4974 = vadd.f32 %v4973, %v4943
    %v4975 = vadd.f32 %v4974, %v4944
    %v4976 = vadd.f32 %v4975, %v4945
    %v4977 = vadd.f32 %v4976, %v4946
    %v4978 = vadd.f32 %v4977, %v4947
    %v4979 = vadd.f32 %v4978, %v4948
    %v4980 = vadd.f32 %v4979, %v4949
    %v4981 = vadd.f32 %v4980, %v4950
    %v4982 = vadd.f32 %v4981, %v4951
    %v4983 = vadd.f32 %v4982, %v4952
    %v4984 = vadd.f32 %v4983, %v4953
    %v4985 = vadd.f32 %v4984, %v4954
    %v4986 = vadd.f32 %v4985, %v4955
    %v4987 = vadd.f32 %v4986, %v4956
    %v4988 = vadd.f32 %v4987, %v4957
    %v4989 = vadd.f32 %v4988, %v4958
    %v4990 = vadd.f32 %v4989, %v4959
    %v4991 = vadd.f32 %v4990, %v4960
    %v4992 = vadd.f32 %v4991, %v4961
    %v4993 = vadd.f32 %v4992, %v4962
    %v4994 = vadd.f32 %v4993, %v4963
    %v4995 = vadd.f32 %v4994, %v4964
    %v4996 = vadd.f32 %v4995, %v4965
    %v4997 = vadd.f32 %v4996, %v4966
    %v4998 = vadd.f32 %v4997, %v4967
    %v4999 = vadd.f32 %v4998, %v4968
    %v5000 = vadd.f32 %v4999, %v4969
    %v5001 = vadd.f32 %v5000, %v4970
    %v5002 = vadd.f32 %v5001, %v4971
    %v5003 = vadd.f32 %v5002, %v4972
    %v5004 = vmul.f32 %v5003, %v4812
    %v5005 = vmul.f32 %v4718, %v4209
    %v5006 = vmul.f32 %v4720, %v4213
    %v5007 = vmul.f32 %v4722, %v4217
    %v5008 = vmul.f32 %v4724, %v4221
    %v5009 = vmul.f32 %v4726, %v4225
    %v5010 = vmul.f32 %v4728, %v4229
    %v5011 = vmul.f32 %v4730, %v4233
    %v5012 = vmul.f32 %v4732, %v4237
    %v5013 = vmul.f32 %v4734, %v4241
    %v5014 = vmul.f32 %v4736, %v4245
    %v5015 = vmul.f32 %v4738, %v4249
    %v5016 = vmul.f32 %v4740, %v4253
    %v5017 = vmul.f32 %v4742, %v4257
    %v5018 = vmul.f32 %v4744, %v4261
    %v5019 = vmul.f32 %v4746, %v4265
    %v5020 = vmul.f32 %v4748, %v4269
    %v5021 = vmul.f32 %v4750, %v4273
    %v5022 = vmul.f32 %v4752, %v4277
    %v5023 = vmul.f32 %v4754, %v4281
    %v5024 = vmul.f32 %v4756, %v4285
    %v5025 = vmul.f32 %v4758, %v4289
    %v5026 = vmul.f32 %v4760, %v4293
    %v5027 = vmul.f32 %v4762, %v4297
    %v5028 = vmul.f32 %v4764, %v4301
    %v5029 = vmul.f32 %v4766, %v4305
    %v5030 = vmul.f32 %v4768, %v4309
    %v5031 = vmul.f32 %v4770, %v4313
    %v5032 = vmul.f32 %v4772, %v4317
    %v5033 = vmul.f32 %v4774, %v4321
    %v5034 = vmul.f32 %v4776, %v4325
    %v5035 = vmul.f32 %v4778, %v4329
    %v5036 = vmul.f32 %v4780, %v4333
    %v5037 = vadd.f32 %v5005, %v5006
    %v5038 = vadd.f32 %v5037, %v5007
    %v5039 = vadd.f32 %v5038, %v5008
    %v5040 = vadd.f32 %v5039, %v5009
    %v5041 = vadd.f32 %v5040, %v5010
    %v5042 = vadd.f32 %v5041, %v5011
    %v5043 = vadd.f32 %v5042, %v5012
    %v5044 = vadd.f32 %v5043, %v5013
    %v5045 = vadd.f32 %v5044, %v5014
    %v5046 = vadd.f32 %v5045, %v5015
    %v5047 = vadd.f32 %v5046, %v5016
    %v5048 = vadd.f32 %v5047, %v5017
    %v5049 = vadd.f32 %v5048, %v5018
    %v5050 = vadd.f32 %v5049, %v5019
    %v5051 = vadd.f32 %v5050, %v5020
    %v5052 = vadd.f32 %v5051, %v5021
    %v5053 = vadd.f32 %v5052, %v5022
    %v5054 = vadd.f32 %v5053, %v5023
    %v5055 = vadd.f32 %v5054, %v5024
    %v5056 = vadd.f32 %v5055, %v5025
    %v5057 = vadd.f32 %v5056, %v5026
    %v5058 = vadd.f32 %v5057, %v5027
    %v5059 = vadd.f32 %v5058, %v5028
    %v5060 = vadd.f32 %v5059, %v5029
    %v5061 = vadd.f32 %v5060, %v5030
    %v5062 = vadd.f32 %v5061, %v5031
    %v5063 = vadd.f32 %v5062, %v5032
    %v5064 = vadd.f32 %v5063, %v5033
    %v5065 = vadd.f32 %v5064, %v5034
    %v5066 = vadd.f32 %v5065, %v5035
    %v5067 = vadd.f32 %v5066, %v5036
    %v5068 = vmul.f32 %v5067, %v4812
    %v5069 = vmul.f32 %v1114, %v729
    %v5070 = vmul.f32 %v1118, %v729
    %v5071 = vmul.f32 %v1122, %v729
    %v5072 = vmul.f32 %v1126, %v729
    %v5073 = vmul.f32 %v1130, %v729
    %v5074 = vmul.f32 %v1134, %v729
    %v5075 = vmul.f32 %v1138, %v729
    %v5076 = vmul.f32 %v1142, %v729
    %v5077 = vmul.f32 %v1146, %v729
    %v5078 = vmul.f32 %v1150, %v729
    %v5079 = vmul.f32 %v1154, %v729
    %v5080 = vmul.f32 %v1158, %v729
    %v5081 = vmul.f32 %v1162, %v729
    %v5082 = vmul.f32 %v1166, %v729
    %v5083 = vmul.f32 %v1170, %v729
    %v5084 = vmul.f32 %v1174, %v729
    %v5085 = vmul.f32 %v1178, %v729
    %v5086 = vmul.f32 %v1182, %v729
    %v5087 = vmul.f32 %v1186, %v729
    %v5088 = vmul.f32 %v1190, %v729
    %v5089 = vmul.f32 %v1194, %v729
    %v5090 = vmul.f32 %v1198, %v729
    %v5091 = vmul.f32 %v1202, %v729
    %v5092 = vmul.f32 %v1206, %v729
    %v5093 = vmul.f32 %v1210, %v729
    %v5094 = vmul.f32 %v1214, %v729
    %v5095 = vmul.f32 %v1218, %v729
    %v5096 = vmul.f32 %v1222, %v729
    %v5097 = vmul.f32 %v1226, %v729
    %v5098 = vmul.f32 %v1230, %v729
    %v5099 = vmul.f32 %v1234, %v729
    %v5100 = vmul.f32 %v1238, %v729
    %v5101 = vmul.f32 %v1506, %v745
    %v5102 = vmul.f32 %v1510, %v745
    %v5103 = vmul.f32 %v1514, %v745
    %v5104 = vmul.f32 %v1518, %v745
    %v5105 = vmul.f32 %v1522, %v745
    %v5106 = vmul.f32 %v1526, %v745
    %v5107 = vmul.f32 %v1530, %v745
    %v5108 = vmul.f32 %v1534, %v745
    %v5109 = vmul.f32 %v1538, %v745
    %v5110 = vmul.f32 %v1542, %v745
    %v5111 = vmul.f32 %v1546, %v745
    %v5112 = vmul.f32 %v1550, %v745
    %v5113 = vmul.f32 %v1554, %v745
    %v5114 = vmul.f32 %v1558, %v745
    %v5115 = vmul.f32 %v1562, %v745
    %v5116 = vmul.f32 %v1566, %v745
    %v5117 = vmul.f32 %v1570, %v745
    %v5118 = vmul.f32 %v1574, %v745
    %v5119 = vmul.f32 %v1578, %v745
    %v5120 = vmul.f32 %v1582, %v745
    %v5121 = vmul.f32 %v1586, %v745
    %v5122 = vmul.f32 %v1590, %v745
    %v5123 = vmul.f32 %v1594, %v745
    %v5124 = vmul.f32 %v1598, %v745
    %v5125 = vmul.f32 %v1602, %v745
    %v5126 = vmul.f32 %v1606, %v745
    %v5127 = vmul.f32 %v1610, %v745
    %v5128 = vmul.f32 %v1614, %v745
    %v5129 = vmul.f32 %v1618, %v745
    %v5130 = vmul.f32 %v1622, %v745
    %v5131 = vmul.f32 %v1626, %v745
    %v5132 = vmul.f32 %v1630, %v745
    %v5133 = vadd.f32 %v5069, %v5101
    %v5134 = vadd.f32 %v5070, %v5102
    %v5135 = vadd.f32 %v5071, %v5103
    %v5136 = vadd.f32 %v5072, %v5104
    %v5137 = vadd.f32 %v5073, %v5105
    %v5138 = vadd.f32 %v5074, %v5106
    %v5139 = vadd.f32 %v5075, %v5107
    %v5140 = vadd.f32 %v5076, %v5108
    %v5141 = vadd.f32 %v5077, %v5109
    %v5142 = vadd.f32 %v5078, %v5110
    %v5143 = vadd.f32 %v5079, %v5111
    %v5144 = vadd.f32 %v5080, %v5112
    %v5145 = vadd.f32 %v5081, %v5113
    %v5146 = vadd.f32 %v5082, %v5114
    %v5147 = vadd.f32 %v5083, %v5115
    %v5148 = vadd.f32 %v5084, %v5116
    %v5149 = vadd.f32 %v5085, %v5117
    %v5150 = vadd.f32 %v5086, %v5118
    %v5151 = vadd.f32 %v5087, %v5119
    %v5152 = vadd.f32 %v5088, %v5120
    %v5153 = vadd.f32 %v5089, %v5121
    %v5154 = vadd.f32 %v5090, %v5122
    %v5155 = vadd.f32 %v5091, %v5123
    %v5156 = vadd.f32 %v5092, %v5124
    %v5157 = vadd.f32 %v5093, %v5125
    %v5158 = vadd.f32 %v5094, %v5126
    %v5159 = vadd.f32 %v5095, %v5127
    %v5160 = vadd.f32 %v5096, %v5128
    %v5161 = vadd.f32 %v5097, %v5129
    %v5162 = vadd.f32 %v5098, %v5130
    %v5163 = vadd.f32 %v5099, %v5131
    %v5164 = vadd.f32 %v5100, %v5132
    %v5165 = vmul.f32 %v1930, %v761
    %v5166 = vmul.f32 %v1934, %v761
    %v5167 = vmul.f32 %v1938, %v761
    %v5168 = vmul.f32 %v1942, %v761
    %v5169 = vmul.f32 %v1946, %v761
    %v5170 = vmul.f32 %v1950, %v761
    %v5171 = vmul.f32 %v1954, %v761
    %v5172 = vmul.f32 %v1958, %v761
    %v5173 = vmul.f32 %v1962, %v761
    %v5174 = vmul.f32 %v1966, %v761
    %v5175 = vmul.f32 %v1970, %v761
    %v5176 = vmul.f32 %v1974, %v761
    %v5177 = vmul.f32 %v1978, %v761
    %v5178 = vmul.f32 %v1982, %v761
    %v5179 = vmul.f32 %v1986, %v761
    %v5180 = vmul.f32 %v1990, %v761
    %v5181 = vmul.f32 %v1994, %v761
    %v5182 = vmul.f32 %v1998, %v761
    %v5183 = vmul.f32 %v2002, %v761
    %v5184 = vmul.f32 %v2006, %v761
    %v5185 = vmul.f32 %v2010, %v761
    %v5186 = vmul.f32 %v2014, %v761
    %v5187 = vmul.f32 %v2018, %v761
    %v5188 = vmul.f32 %v2022, %v761
    %v5189 = vmul.f32 %v2026, %v761
    %v5190 = vmul.f32 %v2030, %v761
    %v5191 = vmul.f32 %v2034, %v761
    %v5192 = vmul.f32 %v2038, %v761
    %v5193 = vmul.f32 %v2042, %v761
    %v5194 = vmul.f32 %v2046, %v761
    %v5195 = vmul.f32 %v2050, %v761
    %v5196 = vmul.f32 %v2054, %v761
    %v5197 = vadd.f32 %v5133, %v5165
    %v5198 = vadd.f32 %v5134, %v5166
    %v5199 = vadd.f32 %v5135, %v5167
    %v5200 = vadd.f32 %v5136, %v5168
    %v5201 = vadd.f32 %v5137, %v5169
    %v5202 = vadd.f32 %v5138, %v5170
    %v5203 = vadd.f32 %v5139, %v5171
    %v5204 = vadd.f32 %v5140, %v5172
    %v5205 = vadd.f32 %v5141, %v5173
    %v5206 = vadd.f32 %v5142, %v5174
    %v5207 = vadd.f32 %v5143, %v5175
    %v5208 = vadd.f32 %v5144, %v5176
    %v5209 = vadd.f32 %v5145, %v5177
    %v5210 = vadd.f32 %v5146, %v5178
    %v5211 = vadd.f32 %v5147, %v5179
    %v5212 = vadd.f32 %v5148, %v5180
    %v5213 = vadd.f32 %v5149, %v5181
    %v5214 = vadd.f32 %v5150, %v5182
    %v5215 = vadd.f32 %v5151, %v5183
    %v5216 = vadd.f32 %v5152, %v5184
    %v5217 = vadd.f32 %v5153, %v5185
    %v5218 = vadd.f32 %v5154, %v5186
    %v5219 = vadd.f32 %v5155, %v5187
    %v5220 = vadd.f32 %v5156, %v5188
    %v5221 = vadd.f32 %v5157, %v5189
    %v5222 = vadd.f32 %v5158, %v5190
    %v5223 = vadd.f32 %v5159, %v5191
    %v5224 = vadd.f32 %v5160, %v5192
    %v5225 = vadd.f32 %v5161, %v5193
    %v5226 = vadd.f32 %v5162, %v5194
    %v5227 = vadd.f32 %v5163, %v5195
    %v5228 = vadd.f32 %v5164, %v5196
    %v5229 = vmul.f32 %v2354, %v777
    %v5230 = vmul.f32 %v2358, %v777
    %v5231 = vmul.f32 %v2362, %v777
    %v5232 = vmul.f32 %v2366, %v777
    %v5233 = vmul.f32 %v2370, %v777
    %v5234 = vmul.f32 %v2374, %v777
    %v5235 = vmul.f32 %v2378, %v777
    %v5236 = vmul.f32 %v2382, %v777
    %v5237 = vmul.f32 %v2386, %v777
    %v5238 = vmul.f32 %v2390, %v777
    %v5239 = vmul.f32 %v2394, %v777
    %v5240 = vmul.f32 %v2398, %v777
    %v5241 = vmul.f32 %v2402, %v777
    %v5242 = vmul.f32 %v2406, %v777
    %v5243 = vmul.f32 %v2410, %v777
    %v5244 = vmul.f32 %v2414, %v777
    %v5245 = vmul.f32 %v2418, %v777
    %v5246 = vmul.f32 %v2422, %v777
    %v5247 = vmul.f32 %v2426, %v777
    %v5248 = vmul.f32 %v2430, %v777
    %v5249 = vmul.f32 %v2434, %v777
    %v5250 = vmul.f32 %v2438, %v777
    %v5251 = vmul.f32 %v2442, %v777
    %v5252 = vmul.f32 %v2446, %v777
    %v5253 = vmul.f32 %v2450, %v777
    %v5254 = vmul.f32 %v2454, %v777
    %v5255 = vmul.f32 %v2458, %v777
    %v5256 = vmul.f32 %v2462, %v777
    %v5257 = vmul.f32 %v2466, %v777
    %v5258 = vmul.f32 %v2470, %v777
    %v5259 = vmul.f32 %v2474, %v777
    %v5260 = vmul.f32 %v2478, %v777
    %v5261 = vadd.f32 %v5197, %v5229
    %v5262 = vadd.f32 %v5198, %v5230
    %v5263 = vadd.f32 %v5199, %v5231
    %v5264 = vadd.f32 %v5200, %v5232
    %v5265 = vadd.f32 %v5201, %v5233
    %v5266 = vadd.f32 %v5202, %v5234
    %v5267 = vadd.f32 %v5203, %v5235
    %v5268 = vadd.f32 %v5204, %v5236
    %v5269 = vadd.f32 %v5205, %v5237
    %v5270 = vadd.f32 %v5206, %v5238
    %v5271 = vadd.f32 %v5207, %v5239
    %v5272 = vadd.f32 %v5208, %v5240
    %v5273 = vadd.f32 %v5209, %v5241
    %v5274 = vadd.f32 %v5210, %v5242
    %v5275 = vadd.f32 %v5211, %v5243
    %v5276 = vadd.f32 %v5212, %v5244
    %v5277 = vadd.f32 %v5213, %v5245
    %v5278 = vadd.f32 %v5214, %v5246
    %v5279 = vadd.f32 %v5215, %v5247
    %v5280 = vadd.f32 %v5216, %v5248
    %v5281 = vadd.f32 %v5217, %v5249
    %v5282 = vadd.f32 %v5218, %v5250
    %v5283 = vadd.f32 %v5219, %v5251
    %v5284 = vadd.f32 %v5220, %v5252
    %v5285 = vadd.f32 %v5221, %v5253
    %v5286 = vadd.f32 %v5222, %v5254
    %v5287 = vadd.f32 %v5223, %v5255
    %v5288 = vadd.f32 %v5224, %v5256
    %v5289 = vadd.f32 %v5225, %v5257
    %v5290 = vadd.f32 %v5226, %v5258
    %v5291 = vadd.f32 %v5227, %v5259
    %v5292 = vadd.f32 %v5228, %v5260
    %v5293 = vmax.f32 %v5261, %v5265
    %v5294 = vmax.f32 %v5262, %v5266
    %v5295 = vmax.f32 %v5263, %v5267
    %v5296 = vmax.f32 %v5264, %v5268
    %v5297 = vmax.f32 %v5293, %v5269
    %v5298 = vmax.f32 %v5294, %v5270
    %v5299 = vmax.f32 %v5295, %v5271
    %v5300 = vmax.f32 %v5296, %v5272
    %v5301 = vmax.f32 %v5297, %v5273
    %v5302 = vmax.f32 %v5298, %v5274
    %v5303 = vmax.f32 %v5299, %v5275
    %v5304 = vmax.f32 %v5300, %v5276
    %v5305 = vmax.f32 %v5301, %v5277
    %v5306 = vmax.f32 %v5302, %v5278
    %v5307 = vmax.f32 %v5303, %v5279
    %v5308 = vmax.f32 %v5304, %v5280
    %v5309 = vmax.f32 %v5305, %v5281
    %v5310 = vmax.f32 %v5306, %v5282
    %v5311 = vmax.f32 %v5307, %v5283
    %v5312 = vmax.f32 %v5308, %v5284
    %v5313 = vmax.f32 %v5309, %v5285
    %v5314 = vmax.f32 %v5310, %v5286
    %v5315 = vmax.f32 %v5311, %v5287
    %v5316 = vmax.f32 %v5312, %v5288
    %v5317 = vmax.f32 %v5313, %v5289
    %v5318 = vmax.f32 %v5314, %v5290
    %v5319 = vmax.f32 %v5315, %v5291
    %v5320 = vmax.f32 %v5316, %v5292
    %v5321 = vmax.f32 %v5317, %v5318
    %v5322 = vmax.f32 %v5319, %v5320
    %v5323 = vmax.f32 %v5321, %v5322
    %v5324 = vsub.f32 %v5261, %v5323
    %v5325 = vsub.f32 %v5262, %v5323
    %v5326 = vsub.f32 %v5263, %v5323
    %v5327 = vsub.f32 %v5264, %v5323
    %v5328 = vsub.f32 %v5265, %v5323
    %v5329 = vsub.f32 %v5266, %v5323
    %v5330 = vsub.f32 %v5267, %v5323
    %v5331 = vsub.f32 %v5268, %v5323
    %v5332 = vsub.f32 %v5269, %v5323
    %v5333 = vsub.f32 %v5270, %v5323
    %v5334 = vsub.f32 %v5271, %v5323
    %v5335 = vsub.f32 %v5272, %v5323
    %v5336 = vsub.f32 %v5273, %v5323
    %v5337 = vsub.f32 %v5274, %v5323
    %v5338 = vsub.f32 %v5275, %v5323
    %v5339 = vsub.f32 %v5276, %v5323
    %v5340 = vsub.f32 %v5277, %v5323
    %v5341 = vsub.f32 %v5278, %v5323
    %v5342 = vsub.f32 %v5279, %v5323
    %v5343 = vsub.f32 %v5280, %v5323
    %v5344 = vsub.f32 %v5281, %v5323
    %v5345 = vsub.f32 %v5282, %v5323
    %v5346 = vsub.f32 %v5283, %v5323
    %v5347 = vsub.f32 %v5284, %v5323
    %v5348 = vsub.f32 %v5285, %v5323
    %v5349 = vsub.f32 %v5286, %v5323
    %v5350 = vsub.f32 %v5287, %v5323
    %v5351 = vsub.f32 %v5288, %v5323
    %v5352 = vsub.f32 %v5289, %v5323
    %v5353 = vsub.f32 %v5290, %v5323
    %v5354 = vsub.f32 %v5291, %v5323
    %v5355 = vsub.f32 %v5292, %v5323
    %v5356 = vmul.f32 %v5324, 1.442695
    %v5357 = vpow.pop %v5356
    %v5358 = vmul.f32 %v5325, 1.442695
    %v5359 = vpow.pop %v5358
    %v5360 = vmul.f32 %v5326, 1.442695
    %v5361 = vpow.pop %v5360
    %v5362 = vmul.f32 %v5327, 1.442695
    %v5363 = vpow.pop %v5362
    %v5364 = vmul.f32 %v5328, 1.442695
    %v5365 = vpow.pop %v5364
    %v5366 = vmul.f32 %v5329, 1.442695
    %v5367 = vpow.pop %v5366
    %v5368 = vmul.f32 %v5330, 1.442695
    %v5369 = vpow.pop %v5368
    %v5370 = vmul.f32 %v5331, 1.442695
    %v5371 = vpow.pop %v5370
    %v5372 = vmul.f32 %v5332, 1.442695
    %v5373 = vpow.pop %v5372
    %v5374 = vmul.f32 %v5333, 1.442695
    %v5375 = vpow.pop %v5374
    %v5376 = vmul.f32 %v5334, 1.442695
    %v5377 = vpow.pop %v5376
    %v5378 = vmul.f32 %v5335, 1.442695
    %v5379 = vpow.pop %v5378
    %v5380 = vmul.f32 %v5336, 1.442695
    %v5381 = vpow.pop %v5380
    %v5382 = vmul.f32 %v5337, 1.442695
    %v5383 = vpow.pop %v5382
    %v5384 = vmul.f32 %v5338, 1.442695
    %v5385 = vpow.pop %v5384
    %v5386 = vmul.f32 %v5339, 1.442695
    %v5387 = vpow.pop %v5386
    %v5388 = vmul.f32 %v5340, 1.442695
    %v5389 = vpow.pop %v5388
    %v5390 = vmul.f32 %v5341, 1.442695
    %v5391 = vpow.pop %v5390
    %v5392 = vmul.f32 %v5342, 1.442695
    %v5393 = vpow.pop %v5392
    %v5394 = vmul.f32 %v5343, 1.442695
    %v5395 = vpow.pop %v5394
    %v5396 = vmul.f32 %v5344, 1.442695
    %v5397 = vpow.pop %v5396
    %v5398 = vmul.f32 %v5345, 1.442695
    %v5399 = vpow.pop %v5398
    %v5400 = vmul.f32 %v5346, 1.442695
    %v5401 = vpow.pop %v5400
    %v5402 = vmul.f32 %v5347, 1.442695
    %v5403 = vpow.pop %v5402
    %v5404 = vmul.f32 %v5348, 1.442695
    %v5405 = vpow.pop %v5404
    %v5406 = vmul.f32 %v5349, 1.442695
    %v5407 = vpow.pop %v5406
    %v5408 = vmul.f32 %v5350, 1.442695
    %v5409 = vpow.pop %v5408
    %v5410 = vmul.f32 %v5351, 1.442695
    %v5411 = vpow.pop %v5410
    %v5412 = vmul.f32 %v5352, 1.442695
    %v5413 = vpow.pop %v5412
    %v5414 = vmul.f32 %v5353, 1.442695
    %v5415 = vpow.pop %v5414
    %v5416 = vmul.f32 %v5354, 1.442695
    %v5417 = vpow.pop %v5416
    %v5418 = vmul.f32 %v5355, 1.442695
    %v5419 = vpow.pop %v5418
    %v5420 = vadd.f32 %v5357, %v5359
    %v5421 = vadd.f32 %v5420, %v5361
    %v5422 = vadd.f32 %v5421, %v5363
    %v5423 = vadd.f32 %v5422, %v5365
    %v5424 = vadd.f32 %v5423, %v5367
    %v5425 = vadd.f32 %v5424, %v5369
    %v5426 = vadd.f32 %v5425, %v5371
    %v5427 = vadd.f32 %v5426, %v5373
    %v5428 = vadd.f32 %v5427, %v5375
    %v5429 = vadd.f32 %v5428, %v5377
    %v5430 = vadd.f32 %v5429, %v5379
    %v5431 = vadd.f32 %v5430, %v5381
    %v5432 = vadd.f32 %v5431, %v5383
    %v5433 = vadd.f32 %v5432, %v5385
    %v5434 = vadd.f32 %v5433, %v5387
    %v5435 = vadd.f32 %v5434, %v5389
    %v5436 = vadd.f32 %v5435, %v5391
    %v5437 = vadd.f32 %v5436, %v5393
    %v5438 = vadd.f32 %v5437, %v5395
    %v5439 = vadd.f32 %v5438, %v5397
    %v5440 = vadd.f32 %v5439, %v5399
    %v5441 = vadd.f32 %v5440, %v5401
    %v5442 = vadd.f32 %v5441, %v5403
    %v5443 = vadd.f32 %v5442, %v5405
    %v5444 = vadd.f32 %v5443, %v5407
    %v5445 = vadd.f32 %v5444, %v5409
    %v5446 = vadd.f32 %v5445, %v5411
    %v5447 = vadd.f32 %v5446, %v5413
    %v5448 = vadd.f32 %v5447, %v5415
    %v5449 = vadd.f32 %v5448, %v5417
    %v5450 = vadd.f32 %v5449, %v5419
    %v5451 = vrcp.pop %v5450
    %v5452 = vmul.f32 %v5357, %v2937
    %v5453 = vmul.f32 %v5359, %v2941
    %v5454 = vmul.f32 %v5361, %v2945
    %v5455 = vmul.f32 %v5363, %v2949
    %v5456 = vmul.f32 %v5365, %v2953
    %v5457 = vmul.f32 %v5367, %v2957
    %v5458 = vmul.f32 %v5369, %v2961
    %v5459 = vmul.f32 %v5371, %v2965
    %v5460 = vmul.f32 %v5373, %v2969
    %v5461 = vmul.f32 %v5375, %v2973
    %v5462 = vmul.f32 %v5377, %v2977
    %v5463 = vmul.f32 %v5379, %v2981
    %v5464 = vmul.f32 %v5381, %v2985
    %v5465 = vmul.f32 %v5383, %v2989
    %v5466 = vmul.f32 %v5385, %v2993
    %v5467 = vmul.f32 %v5387, %v2997
    %v5468 = vmul.f32 %v5389, %v3001
    %v5469 = vmul.f32 %v5391, %v3005
    %v5470 = vmul.f32 %v5393, %v3009
    %v5471 = vmul.f32 %v5395, %v3013
    %v5472 = vmul.f32 %v5397, %v3017
    %v5473 = vmul.f32 %v5399, %v3021
    %v5474 = vmul.f32 %v5401, %v3025
    %v5475 = vmul.f32 %v5403, %v3029
    %v5476 = vmul.f32 %v5405, %v3033
    %v5477 = vmul.f32 %v5407, %v3037
    %v5478 = vmul.f32 %v5409, %v3041
    %v5479 = vmul.f32 %v5411, %v3045
    %v5480 = vmul.f32 %v5413, %v3049
    %v5481 = vmul.f32 %v5415, %v3053
    %v5482 = vmul.f32 %v5417, %v3057
    %v5483 = vmul.f32 %v5419, %v3061
    %v5484 = vadd.f32 %v5452, %v5453
    %v5485 = vadd.f32 %v5484, %v5454
    %v5486 = vadd.f32 %v5485, %v5455
    %v5487 = vadd.f32 %v5486, %v5456
    %v5488 = vadd.f32 %v5487, %v5457
    %v5489 = vadd.f32 %v5488, %v5458
    %v5490 = vadd.f32 %v5489, %v5459
    %v5491 = vadd.f32 %v5490, %v5460
    %v5492 = vadd.f32 %v5491, %v5461
    %v5493 = vadd.f32 %v5492, %v5462
    %v5494 = vadd.f32 %v5493, %v5463
    %v5495 = vadd.f32 %v5494, %v5464
    %v5496 = vadd.f32 %v5495, %v5465
    %v5497 = vadd.f32 %v5496, %v5466
    %v5498 = vadd.f32 %v5497, %v5467
    %v5499 = vadd.f32 %v5498, %v5468
    %v5500 = vadd.f32 %v5499, %v5469
    %v5501 = vadd.f32 %v5500, %v5470
    %v5502 = vadd.f32 %v5501, %v5471
    %v5503 = vadd.f32 %v5502, %v5472
    %v5504 = vadd.f32 %v5503, %v5473
    %v5505 = vadd.f32 %v5504, %v5474
    %v5506 = vadd.f32 %v5505, %v5475
    %v5507 = vadd.f32 %v5506, %v5476
    %v5508 = vadd.f32 %v5507, %v5477
    %v5509 = vadd.f32 %v5508, %v5478
    %v5510 = vadd.f32 %v5509, %v5479
    %v5511 = vadd.f32 %v5510, %v5480
    %v5512 = vadd.f32 %v5511, %v5481
    %v5513 = vadd.f32 %v5512, %v5482
    %v5514 = vadd.f32 %v5513, %v5483
    %v5515 = vmul.f32 %v5514, %v5451
    %v5516 = vmul.f32 %v5357, %v3361
    %v5517 = vmul.f32 %v5359, %v3365
    %v5518 = vmul.f32 %v5361, %v3369
    %v5519 = vmul.f32 %v5363, %v3373
    %v5520 = vmul.f32 %v5365, %v3377
    %v5521 = vmul.f32 %v5367, %v3381
    %v5522 = vmul.f32 %v5369, %v3385
    %v5523 = vmul.f32 %v5371, %v3389
    %v5524 = vmul.f32 %v5373, %v3393
    %v5525 = vmul.f32 %v5375, %v3397
    %v5526 = vmul.f32 %v5377, %v3401
    %v5527 = vmul.f32 %v5379, %v3405
    %v5528 = vmul.f32 %v5381, %v3409
    %v5529 = vmul.f32 %v5383, %v3413
    %v5530 = vmul.f32 %v5385, %v3417
    %v5531 = vmul.f32 %v5387, %v3421
    %v5532 = vmul.f32 %v5389, %v3425
    %v5533 = vmul.f32 %v5391, %v3429
    %v5534 = vmul.f32 %v5393, %v3433
    %v5535 = vmul.f32 %v5395, %v3437
    %v5536 = vmul.f32 %v5397, %v3441
    %v5537 = vmul.f32 %v5399, %v3445
    %v5538 = vmul.f32 %v5401, %v3449
    %v5539 = vmul.f32 %v5403, %v3453
    %v5540 = vmul.f32 %v5405, %v3457
    %v5541 = vmul.f32 %v5407, %v3461
    %v5542 = vmul.f32 %v5409, %v3465
    %v5543 = vmul.f32 %v5411, %v3469
    %v5544 = vmul.f32 %v5413, %v3473
    %v5545 = vmul.f32 %v5415, %v3477
    %v5546 = vmul.f32 %v5417, %v3481
    %v5547 = vmul.f32 %v5419, %v3485
    %v5548 = vadd.f32 %v5516, %v5517
    %v5549 = vadd.f32 %v5548, %v5518
    %v5550 = vadd.f32 %v5549, %v5519
    %v5551 = vadd.f32 %v5550, %v5520
    %v5552 = vadd.f32 %v5551, %v5521
    %v5553 = vadd.f32 %v5552, %v5522
    %v5554 = vadd.f32 %v5553, %v5523
    %v5555 = vadd.f32 %v5554, %v5524
    %v5556 = vadd.f32 %v5555, %v5525
    %v5557 = vadd.f32 %v5556, %v5526
    %v5558 = vadd.f32 %v5557, %v5527
    %v5559 = vadd.f32 %v5558, %v5528
    %v5560 = vadd.f32 %v5559, %v5529
    %v5561 = vadd.f32 %v5560, %v5530
    %v5562 = vadd.f32 %v5561, %v5531
    %v5563 = vadd.f32 %v5562, %v5532
    %v5564 = vadd.f32 %v5563, %v5533
    %v5565 = vadd.f32 %v5564, %v5534
    %v5566 = vadd.f32 %v5565, %v5535
    %v5567 = vadd.f32 %v5566, %v5536
    %v5568 = vadd.f32 %v5567, %v5537
    %v5569 = vadd.f32 %v5568, %v5538
    %v5570 = vadd.f32 %v5569, %v5539
    %v5571 = vadd.f32 %v5570, %v5540
    %v5572 = vadd.f32 %v5571, %v5541
    %v5573 = vadd.f32 %v5572, %v5542
    %v5574 = vadd.f32 %v5573, %v5543
    %v5575 = vadd.f32 %v5574, %v5544
    %v5576 = vadd.f32 %v5575, %v5545
    %v5577 = vadd.f32 %v5576, %v5546
    %v5578 = vadd.f32 %v5577, %v5547
    %v5579 = vmul.f32 %v5578, %v5451
    %v5580 = vmul.f32 %v5357, %v3785
    %v5581 = vmul.f32 %v5359, %v3789
    %v5582 = vmul.f32 %v5361, %v3793
    %v5583 = vmul.f32 %v5363, %v3797
    %v5584 = vmul.f32 %v5365, %v3801
    %v5585 = vmul.f32 %v5367, %v3805
    %v5586 = vmul.f32 %v5369, %v3809
    %v5587 = vmul.f32 %v5371, %v3813
    %v5588 = vmul.f32 %v5373, %v3817
    %v5589 = vmul.f32 %v5375, %v3821
    %v5590 = vmul.f32 %v5377, %v3825
    %v5591 = vmul.f32 %v5379, %v3829
    %v5592 = vmul.f32 %v5381, %v3833
    %v5593 = vmul.f32 %v5383, %v3837
    %v5594 = vmul.f32 %v5385, %v3841
    %v5595 = vmul.f32 %v5387, %v3845
    %v5596 = vmul.f32 %v5389, %v3849
    %v5597 = vmul.f32 %v5391, %v3853
    %v5598 = vmul.f32 %v5393, %v3857
    %v5599 = vmul.f32 %v5395, %v3861
    %v5600 = vmul.f32 %v5397, %v3865
    %v5601 = vmul.f32 %v5399, %v3869
    %v5602 = vmul.f32 %v5401, %v3873
    %v5603 = vmul.f32 %v5403, %v3877
    %v5604 = vmul.f32 %v5405, %v3881
    %v5605 = vmul.f32 %v5407, %v3885
    %v5606 = vmul.f32 %v5409, %v3889
    %v5607 = vmul.f32 %v5411, %v3893
    %v5608 = vmul.f32 %v5413, %v3897
    %v5609 = vmul.f32 %v5415, %v3901
    %v5610 = vmul.f32 %v5417, %v3905
    %v5611 = vmul.f32 %v5419, %v3909
    %v5612 = vadd.f32 %v5580, %v5581
    %v5613 = vadd.f32 %v5612, %v5582
    %v5614 = vadd.f32 %v5613, %v5583
    %v5615 = vadd.f32 %v5614, %v5584
    %v5616 = vadd.f32 %v5615, %v5585
    %v5617 = vadd.f32 %v5616, %v5586
    %v5618 = vadd.f32 %v5617, %v5587
    %v5619 = vadd.f32 %v5618, %v5588
    %v5620 = vadd.f32 %v5619, %v5589
    %v5621 = vadd.f32 %v5620, %v5590
    %v5622 = vadd.f32 %v5621, %v5591
    %v5623 = vadd.f32 %v5622, %v5592
    %v5624 = vadd.f32 %v5623, %v5593
    %v5625 = vadd.f32 %v5624, %v5594
    %v5626 = vadd.f32 %v5625, %v5595
    %v5627 = vadd.f32 %v5626, %v5596
    %v5628 = vadd.f32 %v5627, %v5597
    %v5629 = vadd.f32 %v5628, %v5598
    %v5630 = vadd.f32 %v5629, %v5599
    %v5631 = vadd.f32 %v5630, %v5600
    %v5632 = vadd.f32 %v5631, %v5601
    %v5633 = vadd.f32 %v5632, %v5602
    %v5634 = vadd.f32 %v5633, %v5603
    %v5635 = vadd.f32 %v5634, %v5604
    %v5636 = vadd.f32 %v5635, %v5605
    %v5637 = vadd.f32 %v5636, %v5606
    %v5638 = vadd.f32 %v5637, %v5607
    %v5639 = vadd.f32 %v5638, %v5608
    %v5640 = vadd.f32 %v5639, %v5609
    %v5641 = vadd.f32 %v5640, %v5610
    %v5642 = vadd.f32 %v5641, %v5611
    %v5643 = vmul.f32 %v5642, %v5451
    %v5644 = vmul.f32 %v5357, %v4209
    %v5645 = vmul.f32 %v5359, %v4213
    %v5646 = vmul.f32 %v5361, %v4217
    %v5647 = vmul.f32 %v5363, %v4221
    %v5648 = vmul.f32 %v5365, %v4225
    %v5649 = vmul.f32 %v5367, %v4229
    %v5650 = vmul.f32 %v5369, %v4233
    %v5651 = vmul.f32 %v5371, %v4237
    %v5652 = vmul.f32 %v5373, %v4241
    %v5653 = vmul.f32 %v5375, %v4245
    %v5654 = vmul.f32 %v5377, %v4249
    %v5655 = vmul.f32 %v5379, %v4253
    %v5656 = vmul.f32 %v5381, %v4257
    %v5657 = vmul.f32 %v5383, %v4261
    %v5658 = vmul.f32 %v5385, %v4265
    %v5659 = vmul.f32 %v5387, %v4269
    %v5660 = vmul.f32 %v5389, %v4273
    %v5661 = vmul.f32 %v5391, %v4277
    %v5662 = vmul.f32 %v5393, %v4281
    %v5663 = vmul.f32 %v5395, %v4285
    %v5664 = vmul.f32 %v5397, %v4289
    %v5665 = vmul.f32 %v5399, %v4293
    %v5666 = vmul.f32 %v5401, %v4297
    %v5667 = vmul.f32 %v5403, %v4301
    %v5668 = vmul.f32 %v5405, %v4305
    %v5669 = vmul.f32 %v5407, %v4309
    %v5670 = vmul.f32 %v5409, %v4313
    %v5671 = vmul.f32 %v5411, %v4317
    %v5672 = vmul.f32 %v5413, %v4321
    %v5673 = vmul.f32 %v5415, %v4325
    %v5674 = vmul.f32 %v5417, %v4329
    %v5675 = vmul.f32 %v5419, %v4333
    %v5676 = vadd.f32 %v5644, %v5645
    %v5677 = vadd.f32 %v5676, %v5646
    %v5678 = vadd.f32 %v5677, %v5647
    %v5679 = vadd.f32 %v5678, %v5648
    %v5680 = vadd.f32 %v5679, %v5649
    %v5681 = vadd.f32 %v5680, %v5650
    %v5682 = vadd.f32 %v5681, %v5651
    %v5683 = vadd.f32 %v5682, %v5652
    %v5684 = vadd.f32 %v5683, %v5653
    %v5685 = vadd.f32 %v5684, %v5654
    %v5686 = vadd.f32 %v5685, %v5655
    %v5687 = vadd.f32 %v5686, %v5656
    %v5688 = vadd.f32 %v5687, %v5657
    %v5689 = vadd.f32 %v5688, %v5658
    %v5690 = vadd.f32 %v5689, %v5659
    %v5691 = vadd.f32 %v5690, %v5660
    %v5692 = vadd.f32 %v5691, %v5661
    %v5693 = vadd.f32 %v5692, %v5662
    %v5694 = vadd.f32 %v5693, %v5663
    %v5695 = vadd.f32 %v5694, %v5664
    %v5696 = vadd.f32 %v5695, %v5665
    %v5697 = vadd.f32 %v5696, %v5666
    %v5698 = vadd.f32 %v5697, %v5667
    %v5699 = vadd.f32 %v5698, %v5668
    %v5700 = vadd.f32 %v5699, %v5669
    %v5701 = vadd.f32 %v5700, %v5670
    %v5702 = vadd.f32 %v5701, %v5671
    %v5703 = vadd.f32 %v5702, %v5672
    %v5704 = vadd.f32 %v5703, %v5673
    %v5705 = vadd.f32 %v5704, %v5674
    %v5706 = vadd.f32 %v5705, %v5675
    %v5707 = vmul.f32 %v5706, %v5451
    %v5708 = vmul.f32 %v1114, %v732
    %v5709 = vmul.f32 %v1118, %v732
    %v5710 = vmul.f32 %v1122, %v732
    %v5711 = vmul.f32 %v1126, %v732
    %v5712 = vmul.f32 %v1130, %v732
    %v5713 = vmul.f32 %v1134, %v732
    %v5714 = vmul.f32 %v1138, %v732
    %v5715 = vmul.f32 %v1142, %v732
    %v5716 = vmul.f32 %v1146, %v732
    %v5717 = vmul.f32 %v1150, %v732
    %v5718 = vmul.f32 %v1154, %v732
    %v5719 = vmul.f32 %v1158, %v732
    %v5720 = vmul.f32 %v1162, %v732
    %v5721 = vmul.f32 %v1166, %v732
    %v5722 = vmul.f32 %v1170, %v732
    %v5723 = vmul.f32 %v1174, %v732
    %v5724 = vmul.f32 %v1178, %v732
    %v5725 = vmul.f32 %v1182, %v732
    %v5726 = vmul.f32 %v1186, %v732
    %v5727 = vmul.f32 %v1190, %v732
    %v5728 = vmul.f32 %v1194, %v732
    %v5729 = vmul.f32 %v1198, %v732
    %v5730 = vmul.f32 %v1202, %v732
    %v5731 = vmul.f32 %v1206, %v732
    %v5732 = vmul.f32 %v1210, %v732
    %v5733 = vmul.f32 %v1214, %v732
    %v5734 = vmul.f32 %v1218, %v732
    %v5735 = vmul.f32 %v1222, %v732
    %v5736 = vmul.f32 %v1226, %v732
    %v5737 = vmul.f32 %v1230, %v732
    %v5738 = vmul.f32 %v1234, %v732
    %v5739 = vmul.f32 %v1238, %v732
    %v5740 = vmul.f32 %v1506, %v748
    %v5741 = vmul.f32 %v1510, %v748
    %v5742 = vmul.f32 %v1514, %v748
    %v5743 = vmul.f32 %v1518, %v748
    %v5744 = vmul.f32 %v1522, %v748
    %v5745 = vmul.f32 %v1526, %v748
    %v5746 = vmul.f32 %v1530, %v748
    %v5747 = vmul.f32 %v1534, %v748
    %v5748 = vmul.f32 %v1538, %v748
    %v5749 = vmul.f32 %v1542, %v748
    %v5750 = vmul.f32 %v1546, %v748
    %v5751 = vmul.f32 %v1550, %v748
    %v5752 = vmul.f32 %v1554, %v748
    %v5753 = vmul.f32 %v1558, %v748
    %v5754 = vmul.f32 %v1562, %v748
    %v5755 = vmul.f32 %v1566, %v748
    %v5756 = vmul.f32 %v1570, %v748
    %v5757 = vmul.f32 %v1574, %v748
    %v5758 = vmul.f32 %v1578, %v748
    %v5759 = vmul.f32 %v1582, %v748
    %v5760 = vmul.f32 %v1586, %v748
    %v5761 = vmul.f32 %v1590, %v748
    %v5762 = vmul.f32 %v1594, %v748
    %v5763 = vmul.f32 %v1598, %v748
    %v5764 = vmul.f32 %v1602, %v748
    %v5765 = vmul.f32 %v1606, %v748
    %v5766 = vmul.f32 %v1610, %v748
    %v5767 = vmul.f32 %v1614, %v748
    %v5768 = vmul.f32 %v1618, %v748
    %v5769 = vmul.f32 %v1622, %v748
    %v5770 = vmul.f32 %v1626, %v748
    %v5771 = vmul.f32 %v1630, %v748
    %v5772 = vadd.f32 %v5708, %v5740
    %v5773 = vadd.f32 %v5709, %v5741
    %v5774 = vadd.f32 %v5710, %v5742
    %v5775 = vadd.f32 %v5711, %v5743
    %v5776 = vadd.f32 %v5712, %v5744
    %v5777 = vadd.f32 %v5713, %v5745
    %v5778 = vadd.f32 %v5714, %v5746
    %v5779 = vadd.f32 %v5715, %v5747
    %v5780 = vadd.f32 %v5716, %v5748
    %v5781 = vadd.f32 %v5717, %v5749
    %v5782 = vadd.f32 %v5718, %v5750
    %v5783 = vadd.f32 %v5719, %v5751
    %v5784 = vadd.f32 %v5720, %v5752
    %v5785 = vadd.f32 %v5721, %v5753
    %v5786 = vadd.f32 %v5722, %v5754
    %v5787 = vadd.f32 %v5723, %v5755
    %v5788 = vadd.f32 %v5724, %v5756
    %v5789 = vadd.f32 %v5725, %v5757
    %v5790 = vadd.f32 %v5726, %v5758
    %v5791 = vadd.f32 %v5727, %v5759
    %v5792 = vadd.f32 %v5728, %v5760
    %v5793 = vadd.f32 %v5729, %v5761
    %v5794 = vadd.f32 %v5730, %v5762
    %v5795 = vadd.f32 %v5731, %v5763
    %v5796 = vadd.f32 %v5732, %v5764
    %v5797 = vadd.f32 %v5733, %v5765
    %v5798 = vadd.f32 %v5734, %v5766
    %v5799 = vadd.f32 %v5735, %v5767
    %v5800 = vadd.f32 %v5736, %v5768
    %v5801 = vadd.f32 %v5737, %v5769
    %v5802 = vadd.f32 %v5738, %v5770
    %v5803 = vadd.f32 %v5739, %v5771
    %v5804 = vmul.f32 %v1930, %v764
    %v5805 = vmul.f32 %v1934, %v764
    %v5806 = vmul.f32 %v1938, %v764
    %v5807 = vmul.f32 %v1942, %v764
    %v5808 = vmul.f32 %v1946, %v764
    %v5809 = vmul.f32 %v1950, %v764
    %v5810 = vmul.f32 %v1954, %v764
    %v5811 = vmul.f32 %v1958, %v764
    %v5812 = vmul.f32 %v1962, %v764
    %v5813 = vmul.f32 %v1966, %v764
    %v5814 = vmul.f32 %v1970, %v764
    %v5815 = vmul.f32 %v1974, %v764
    %v5816 = vmul.f32 %v1978, %v764
    %v5817 = vmul.f32 %v1982, %v764
    %v5818 = vmul.f32 %v1986, %v764
    %v5819 = vmul.f32 %v1990, %v764
    %v5820 = vmul.f32 %v1994, %v764
    %v5821 = vmul.f32 %v1998, %v764
    %v5822 = vmul.f32 %v2002, %v764
    %v5823 = vmul.f32 %v2006, %v764
    %v5824 = vmul.f32 %v2010, %v764
    %v5825 = vmul.f32 %v2014, %v764
    %v5826 = vmul.f32 %v2018, %v764
    %v5827 = vmul.f32 %v2022, %v764
    %v5828 = vmul.f32 %v2026, %v764
    %v5829 = vmul.f32 %v2030, %v764
    %v5830 = vmul.f32 %v2034, %v764
    %v5831 = vmul.f32 %v2038, %v764
    %v5832 = vmul.f32 %v2042, %v764
    %v5833 = vmul.f32 %v2046, %v764
    %v5834 = vmul.f32 %v2050, %v764
    %v5835 = vmul.f32 %v2054, %v764
    %v5836 = vadd.f32 %v5772, %v5804
    %v5837 = vadd.f32 %v5773, %v5805
    %v5838 = vadd.f32 %v5774, %v5806
    %v5839 = vadd.f32 %v5775, %v5807
    %v5840 = vadd.f32 %v5776, %v5808
    %v5841 = vadd.f32 %v5777, %v5809
    %v5842 = vadd.f32 %v5778, %v5810
    %v5843 = vadd.f32 %v5779, %v5811
    %v5844 = vadd.f32 %v5780, %v5812
    %v5845 = vadd.f32 %v5781, %v5813
    %v5846 = vadd.f32 %v5782, %v5814
    %v5847 = vadd.f32 %v5783, %v5815
    %v5848 = vadd.f32 %v5784, %v5816
    %v5849 = vadd.f32 %v5785, %v5817
    %v5850 = vadd.f32 %v5786, %v5818
    %v5851 = vadd.f32 %v5787, %v5819
    %v5852 = vadd.f32 %v5788, %v5820
    %v5853 = vadd.f32 %v5789, %v5821
    %v5854 = vadd.f32 %v5790, %v5822
    %v5855 = vadd.f32 %v5791, %v5823
    %v5856 = vadd.f32 %v5792, %v5824
    %v5857 = vadd.f32 %v5793, %v5825
    %v5858 = vadd.f32 %v5794, %v5826
    %v5859 = vadd.f32 %v5795, %v5827
    %v5860 = vadd.f32 %v5796, %v5828
    %v5861 = vadd.f32 %v5797, %v5829
    %v5862 = vadd.f32 %v5798, %v5830
    %v5863 = vadd.f32 %v5799, %v5831
    %v5864 = vadd.f32 %v5800, %v5832
    %v5865 = vadd.f32 %v5801, %v5833
    %v5866 = vadd.f32 %v5802, %v5834
    %v5867 = vadd.f32 %v5803, %v5835
    %v5868 = vmul.f32 %v2354, %v780
    %v5869 = vmul.f32 %v2358, %v780
    %v5870 = vmul.f32 %v2362, %v780
    %v5871 = vmul.f32 %v2366, %v780
    %v5872 = vmul.f32 %v2370, %v780
    %v5873 = vmul.f32 %v2374, %v780
    %v5874 = vmul.f32 %v2378, %v780
    %v5875 = vmul.f32 %v2382, %v780
    %v5876 = vmul.f32 %v2386, %v780
    %v5877 = vmul.f32 %v2390, %v780
    %v5878 = vmul.f32 %v2394, %v780
    %v5879 = vmul.f32 %v2398, %v780
    %v5880 = vmul.f32 %v2402, %v780
    %v5881 = vmul.f32 %v2406, %v780
    %v5882 = vmul.f32 %v2410, %v780
    %v5883 = vmul.f32 %v2414, %v780
    %v5884 = vmul.f32 %v2418, %v780
    %v5885 = vmul.f32 %v2422, %v780
    %v5886 = vmul.f32 %v2426, %v780
    %v5887 = vmul.f32 %v2430, %v780
    %v5888 = vmul.f32 %v2434, %v780
    %v5889 = vmul.f32 %v2438, %v780
    %v5890 = vmul.f32 %v2442, %v780
    %v5891 = vmul.f32 %v2446, %v780
    %v5892 = vmul.f32 %v2450, %v780
    %v5893 = vmul.f32 %v2454, %v780
    %v5894 = vmul.f32 %v2458, %v780
    %v5895 = vmul.f32 %v2462, %v780
    %v5896 = vmul.f32 %v2466, %v780
    %v5897 = vmul.f32 %v2470, %v780
    %v5898 = vmul.f32 %v2474, %v780
    %v5899 = vmul.f32 %v2478, %v780
    %v5900 = vadd.f32 %v5836, %v5868
    %v5901 = vadd.f32 %v5837, %v5869
    %v5902 = vadd.f32 %v5838, %v5870
    %v5903 = vadd.f32 %v5839, %v5871
    %v5904 = vadd.f32 %v5840, %v5872
    %v5905 = vadd.f32 %v5841, %v5873
    %v5906 = vadd.f32 %v5842, %v5874
    %v5907 = vadd.f32 %v5843, %v5875
    %v5908 = vadd.f32 %v5844, %v5876
    %v5909 = vadd.f32 %v5845, %v5877
    %v5910 = vadd.f32 %v5846, %v5878
    %v5911 = vadd.f32 %v5847, %v5879
    %v5912 = vadd.f32 %v5848, %v5880
    %v5913 = vadd.f32 %v5849, %v5881
    %v5914 = vadd.f32 %v5850, %v5882
    %v5915 = vadd.f32 %v5851, %v5883
    %v5916 = vadd.f32 %v5852, %v5884
    %v5917 = vadd.f32 %v5853, %v5885
    %v5918 = vadd.f32 %v5854, %v5886
    %v5919 = vadd.f32 %v5855, %v5887
    %v5920 = vadd.f32 %v5856, %v5888
    %v5921 = vadd.f32 %v5857, %v5889
    %v5922 = vadd.f32 %v5858, %v5890
    %v5923 = vadd.f32 %v5859, %v5891
    %v5924 = vadd.f32 %v5860, %v5892
    %v5925 = vadd.f32 %v5861, %v5893
    %v5926 = vadd.f32 %v5862, %v5894
    %v5927 = vadd.f32 %v5863, %v5895
    %v5928 = vadd.f32 %v5864, %v5896
    %v5929 = vadd.f32 %v5865, %v5897
    %v5930 = vadd.f32 %v5866, %v5898
    %v5931 = vadd.f32 %v5867, %v5899
    %v5932 = vmax.f32 %v5900, %v5904
    %v5933 = vmax.f32 %v5901, %v5905
    %v5934 = vmax.f32 %v5902, %v5906
    %v5935 = vmax.f32 %v5903, %v5907
    %v5936 = vmax.f32 %v5932, %v5908
    %v5937 = vmax.f32 %v5933, %v5909
    %v5938 = vmax.f32 %v5934, %v5910
    %v5939 = vmax.f32 %v5935, %v5911
    %v5940 = vmax.f32 %v5936, %v5912
    %v5941 = vmax.f32 %v5937, %v5913
    %v5942 = vmax.f32 %v5938, %v5914
    %v5943 = vmax.f32 %v5939, %v5915
    %v5944 = vmax.f32 %v5940, %v5916
    %v5945 = vmax.f32 %v5941, %v5917
    %v5946 = vmax.f32 %v5942, %v5918
    %v5947 = vmax.f32 %v5943, %v5919
    %v5948 = vmax.f32 %v5944, %v5920
    %v5949 = vmax.f32 %v5945, %v5921
    %v5950 = vmax.f32 %v5946, %v5922
    %v5951 = vmax.f32 %v5947, %v5923
    %v5952 = vmax.f32 %v5948, %v5924
    %v5953 = vmax.f32 %v5949, %v5925
    %v5954 = vmax.f32 %v5950, %v5926
    %v5955 = vmax.f32 %v5951, %v5927
    %v5956 = vmax.f32 %v5952, %v5928
    %v5957 = vmax.f32 %v5953, %v5929
    %v5958 = vmax.f32 %v5954, %v5930
    %v5959 = vmax.f32 %v5955, %v5931
    %v5960 = vmax.f32 %v5956, %v5957
    %v5961 = vmax.f32 %v5958, %v5959
    %v5962 = vmax.f32 %v5960, %v5961
    %v5963 = vsub.f32 %v5900, %v5962
    %v5964 = vsub.f32 %v5901, %v5962
    %v5965 = vsub.f32 %v5902, %v5962
    %v5966 = vsub.f32 %v5903, %v5962
    %v5967 = vsub.f32 %v5904, %v5962
    %v5968 = vsub.f32 %v5905, %v5962
    %v5969 = vsub.f32 %v5906, %v5962
    %v5970 = vsub.f32 %v5907, %v5962
    %v5971 = vsub.f32 %v5908, %v5962
    %v5972 = vsub.f32 %v5909, %v5962
    %v5973 = vsub.f32 %v5910, %v5962
    %v5974 = vsub.f32 %v5911, %v5962
    %v5975 = vsub.f32 %v5912, %v5962
    %v5976 = vsub.f32 %v5913, %v5962
    %v5977 = vsub.f32 %v5914, %v5962
    %v5978 = vsub.f32 %v5915, %v5962
    %v5979 = vsub.f32 %v5916, %v5962
    %v5980 = vsub.f32 %v5917, %v5962
    %v5981 = vsub.f32 %v5918, %v5962
    %v5982 = vsub.f32 %v5919, %v5962
    %v5983 = vsub.f32 %v5920, %v5962
    %v5984 = vsub.f32 %v5921, %v5962
    %v5985 = vsub.f32 %v5922, %v5962
    %v5986 = vsub.f32 %v5923, %v5962
    %v5987 = vsub.f32 %v5924, %v5962
    %v5988 = vsub.f32 %v5925, %v5962
    %v5989 = vsub.f32 %v5926, %v5962
    %v5990 = vsub.f32 %v5927, %v5962
    %v5991 = vsub.f32 %v5928, %v5962
    %v5992 = vsub.f32 %v5929, %v5962
    %v5993 = vsub.f32 %v5930, %v5962
    %v5994 = vsub.f32 %v5931, %v5962
    %v5995 = vmul.f32 %v5963, 1.442695
    %v5996 = vpow.pop %v5995
    %v5997 = vmul.f32 %v5964, 1.442695
    %v5998 = vpow.pop %v5997
    %v5999 = vmul.f32 %v5965, 1.442695
    %v6000 = vpow.pop %v5999
    %v6001 = vmul.f32 %v5966, 1.442695
    %v6002 = vpow.pop %v6001
    %v6003 = vmul.f32 %v5967, 1.442695
    %v6004 = vpow.pop %v6003
    %v6005 = vmul.f32 %v5968, 1.442695
    %v6006 = vpow.pop %v6005
    %v6007 = vmul.f32 %v5969, 1.442695
    %v6008 = vpow.pop %v6007
    %v6009 = vmul.f32 %v5970, 1.442695
    %v6010 = vpow.pop %v6009
    %v6011 = vmul.f32 %v5971, 1.442695
    %v6012 = vpow.pop %v6011
    %v6013 = vmul.f32 %v5972, 1.442695
    %v6014 = vpow.pop %v6013
    %v6015 = vmul.f32 %v5973, 1.442695
    %v6016 = vpow.pop %v6015
    %v6017 = vmul.f32 %v5974, 1.442695
    %v6018 = vpow.pop %v6017
    %v6019 = vmul.f32 %v5975, 1.442695
    %v6020 = vpow.pop %v6019
    %v6021 = vmul.f32 %v5976, 1.442695
    %v6022 = vpow.pop %v6021
    %v6023 = vmul.f32 %v5977, 1.442695
    %v6024 = vpow.pop %v6023
    %v6025 = vmul.f32 %v5978, 1.442695
    %v6026 = vpow.pop %v6025
    %v6027 = vmul.f32 %v5979, 1.442695
    %v6028 = vpow.pop %v6027
    %v6029 = vmul.f32 %v5980, 1.442695
    %v6030 = vpow.pop %v6029
    %v6031 = vmul.f32 %v5981, 1.442695
    %v6032 = vpow.pop %v6031
    %v6033 = vmul.f32 %v5982, 1.442695
    %v6034 = vpow.pop %v6033
    %v6035 = vmul.f32 %v5983, 1.442695
    %v6036 = vpow.pop %v6035
    %v6037 = vmul.f32 %v5984, 1.442695
    %v6038 = vpow.pop %v6037
    %v6039 = vmul.f32 %v5985, 1.442695
    %v6040 = vpow.pop %v6039
    %v6041 = vmul.f32 %v5986, 1.442695
    %v6042 = vpow.pop %v6041
    %v6043 = vmul.f32 %v5987, 1.442695
    %v6044 = vpow.pop %v6043
    %v6045 = vmul.f32 %v5988, 1.442695
    %v6046 = vpow.pop %v6045
    %v6047 = vmul.f32 %v5989, 1.442695
    %v6048 = vpow.pop %v6047
    %v6049 = vmul.f32 %v5990, 1.442695
    %v6050 = vpow.pop %v6049
    %v6051 = vmul.f32 %v5991, 1.442695
    %v6052 = vpow.pop %v6051
    %v6053 = vmul.f32 %v5992, 1.442695
    %v6054 = vpow.pop %v6053
    %v6055 = vmul.f32 %v5993, 1.442695
    %v6056 = vpow.pop %v6055
    %v6057 = vmul.f32 %v5994, 1.442695
    %v6058 = vpow.pop %v6057
    %v6059 = vadd.f32 %v5996, %v5998
    %v6060 = vadd.f32 %v6059, %v6000
    %v6061 = vadd.f32 %v6060, %v6002
    %v6062 = vadd.f32 %v6061, %v6004
    %v6063 = vadd.f32 %v6062, %v6006
    %v6064 = vadd.f32 %v6063, %v6008
    %v6065 = vadd.f32 %v6064, %v6010
    %v6066 = vadd.f32 %v6065, %v6012
    %v6067 = vadd.f32 %v6066, %v6014
    %v6068 = vadd.f32 %v6067, %v6016
    %v6069 = vadd.f32 %v6068, %v6018
    %v6070 = vadd.f32 %v6069, %v6020
    %v6071 = vadd.f32 %v6070, %v6022
    %v6072 = vadd.f32 %v6071, %v6024
    %v6073 = vadd.f32 %v6072, %v6026
    %v6074 = vadd.f32 %v6073, %v6028
    %v6075 = vadd.f32 %v6074, %v6030
    %v6076 = vadd.f32 %v6075, %v6032
    %v6077 = vadd.f32 %v6076, %v6034
    %v6078 = vadd.f32 %v6077, %v6036
    %v6079 = vadd.f32 %v6078, %v6038
    %v6080 = vadd.f32 %v6079, %v6040
    %v6081 = vadd.f32 %v6080, %v6042
    %v6082 = vadd.f32 %v6081, %v6044
    %v6083 = vadd.f32 %v6082, %v6046
    %v6084 = vadd.f32 %v6083, %v6048
    %v6085 = vadd.f32 %v6084, %v6050
    %v6086 = vadd.f32 %v6085, %v6052
    %v6087 = vadd.f32 %v6086, %v6054
    %v6088 = vadd.f32 %v6087, %v6056
    %v6089 = vadd.f32 %v6088, %v6058
    %v6090 = vrcp.pop %v6089
    %v6091 = vmul.f32 %v5996, %v2937
    %v6092 = vmul.f32 %v5998, %v2941
    %v6093 = vmul.f32 %v6000, %v2945
    %v6094 = vmul.f32 %v6002, %v2949
    %v6095 = vmul.f32 %v6004, %v2953
    %v6096 = vmul.f32 %v6006, %v2957
    %v6097 = vmul.f32 %v6008, %v2961
    %v6098 = vmul.f32 %v6010, %v2965
    %v6099 = vmul.f32 %v6012, %v2969
    %v6100 = vmul.f32 %v6014, %v2973
    %v6101 = vmul.f32 %v6016, %v2977
    %v6102 = vmul.f32 %v6018, %v2981
    %v6103 = vmul.f32 %v6020, %v2985
    %v6104 = vmul.f32 %v6022, %v2989
    %v6105 = vmul.f32 %v6024, %v2993
    %v6106 = vmul.f32 %v6026, %v2997
    %v6107 = vmul.f32 %v6028, %v3001
    %v6108 = vmul.f32 %v6030, %v3005
    %v6109 = vmul.f32 %v6032, %v3009
    %v6110 = vmul.f32 %v6034, %v3013
    %v6111 = vmul.f32 %v6036, %v3017
    %v6112 = vmul.f32 %v6038, %v3021
    %v6113 = vmul.f32 %v6040, %v3025
    %v6114 = vmul.f32 %v6042, %v3029
    %v6115 = vmul.f32 %v6044, %v3033
    %v6116 = vmul.f32 %v6046, %v3037
    %v6117 = vmul.f32 %v6048, %v3041
    %v6118 = vmul.f32 %v6050, %v3045
    %v6119 = vmul.f32 %v6052, %v3049
    %v6120 = vmul.f32 %v6054, %v3053
    %v6121 = vmul.f32 %v6056, %v3057
    %v6122 = vmul.f32 %v6058, %v3061
    %v6123 = vadd.f32 %v6091, %v6092
    %v6124 = vadd.f32 %v6123, %v6093
    %v6125 = vadd.f32 %v6124, %v6094
    %v6126 = vadd.f32 %v6125, %v6095
    %v6127 = vadd.f32 %v6126, %v6096
    %v6128 = vadd.f32 %v6127, %v6097
    %v6129 = vadd.f32 %v6128, %v6098
    %v6130 = vadd.f32 %v6129, %v6099
    %v6131 = vadd.f32 %v6130, %v6100
    %v6132 = vadd.f32 %v6131, %v6101
    %v6133 = vadd.f32 %v6132, %v6102
    %v6134 = vadd.f32 %v6133, %v6103
    %v6135 = vadd.f32 %v6134, %v6104
    %v6136 = vadd.f32 %v6135, %v6105
    %v6137 = vadd.f32 %v6136, %v6106
    %v6138 = vadd.f32 %v6137, %v6107
    %v6139 = vadd.f32 %v6138, %v6108
    %v6140 = vadd.f32 %v6139, %v6109
    %v6141 = vadd.f32 %v6140, %v6110
    %v6142 = vadd.f32 %v6141, %v6111
    %v6143 = vadd.f32 %v6142, %v6112
    %v6144 = vadd.f32 %v6143, %v6113
    %v6145 = vadd.f32 %v6144, %v6114
    %v6146 = vadd.f32 %v6145, %v6115
    %v6147 = vadd.f32 %v6146, %v6116
    %v6148 = vadd.f32 %v6147, %v6117
    %v6149 = vadd.f32 %v6148, %v6118
    %v6150 = vadd.f32 %v6149, %v6119
    %v6151 = vadd.f32 %v6150, %v6120
    %v6152 = vadd.f32 %v6151, %v6121
    %v6153 = vadd.f32 %v6152, %v6122
    %v6154 = vmul.f32 %v6153, %v6090
    %v6155 = vmul.f32 %v5996, %v3361
    %v6156 = vmul.f32 %v5998, %v3365
    %v6157 = vmul.f32 %v6000, %v3369
    %v6158 = vmul.f32 %v6002, %v3373
    %v6159 = vmul.f32 %v6004, %v3377
    %v6160 = vmul.f32 %v6006, %v3381
    %v6161 = vmul.f32 %v6008, %v3385
    %v6162 = vmul.f32 %v6010, %v3389
    %v6163 = vmul.f32 %v6012, %v3393
    %v6164 = vmul.f32 %v6014, %v3397
    %v6165 = vmul.f32 %v6016, %v3401
    %v6166 = vmul.f32 %v6018, %v3405
    %v6167 = vmul.f32 %v6020, %v3409
    %v6168 = vmul.f32 %v6022, %v3413
    %v6169 = vmul.f32 %v6024, %v3417
    %v6170 = vmul.f32 %v6026, %v3421
    %v6171 = vmul.f32 %v6028, %v3425
    %v6172 = vmul.f32 %v6030, %v3429
    %v6173 = vmul.f32 %v6032, %v3433
    %v6174 = vmul.f32 %v6034, %v3437
    %v6175 = vmul.f32 %v6036, %v3441
    %v6176 = vmul.f32 %v6038, %v3445
    %v6177 = vmul.f32 %v6040, %v3449
    %v6178 = vmul.f32 %v6042, %v3453
    %v6179 = vmul.f32 %v6044, %v3457
    %v6180 = vmul.f32 %v6046, %v3461
    %v6181 = vmul.f32 %v6048, %v3465
    %v6182 = vmul.f32 %v6050, %v3469
    %v6183 = vmul.f32 %v6052, %v3473
    %v6184 = vmul.f32 %v6054, %v3477
    %v6185 = vmul.f32 %v6056, %v3481
    %v6186 = vmul.f32 %v6058, %v3485
    %v6187 = vadd.f32 %v6155, %v6156
    %v6188 = vadd.f32 %v6187, %v6157
    %v6189 = vadd.f32 %v6188, %v6158
    %v6190 = vadd.f32 %v6189, %v6159
    %v6191 = vadd.f32 %v6190, %v6160
    %v6192 = vadd.f32 %v6191, %v6161
    %v6193 = vadd.f32 %v6192, %v6162
    %v6194 = vadd.f32 %v6193, %v6163
    %v6195 = vadd.f32 %v6194, %v6164
    %v6196 = vadd.f32 %v6195, %v6165
    %v6197 = vadd.f32 %v6196, %v6166
    %v6198 = vadd.f32 %v6197, %v6167
    %v6199 = vadd.f32 %v6198, %v6168
    %v6200 = vadd.f32 %v6199, %v6169
    %v6201 = vadd.f32 %v6200, %v6170
    %v6202 = vadd.f32 %v6201, %v6171
    %v6203 = vadd.f32 %v6202, %v6172
    %v6204 = vadd.f32 %v6203, %v6173
    %v6205 = vadd.f32 %v6204, %v6174
    %v6206 = vadd.f32 %v6205, %v6175
    %v6207 = vadd.f32 %v6206, %v6176
    %v6208 = vadd.f32 %v6207, %v6177
    %v6209 = vadd.f32 %v6208, %v6178
    %v6210 = vadd.f32 %v6209, %v6179
    %v6211 = vadd.f32 %v6210, %v6180
    %v6212 = vadd.f32 %v6211, %v6181
    %v6213 = vadd.f32 %v6212, %v6182
    %v6214 = vadd.f32 %v6213, %v6183
    %v6215 = vadd.f32 %v6214, %v6184
    %v6216 = vadd.f32 %v6215, %v6185
    %v6217 = vadd.f32 %v6216, %v6186
    %v6218 = vmul.f32 %v6217, %v6090
    %v6219 = vmul.f32 %v5996, %v3785
    %v6220 = vmul.f32 %v5998, %v3789
    %v6221 = vmul.f32 %v6000, %v3793
    %v6222 = vmul.f32 %v6002, %v3797
    %v6223 = vmul.f32 %v6004, %v3801
    %v6224 = vmul.f32 %v6006, %v3805
    %v6225 = vmul.f32 %v6008, %v3809
    %v6226 = vmul.f32 %v6010, %v3813
    %v6227 = vmul.f32 %v6012, %v3817
    %v6228 = vmul.f32 %v6014, %v3821
    %v6229 = vmul.f32 %v6016, %v3825
    %v6230 = vmul.f32 %v6018, %v3829
    %v6231 = vmul.f32 %v6020, %v3833
    %v6232 = vmul.f32 %v6022, %v3837
    %v6233 = vmul.f32 %v6024, %v3841
    %v6234 = vmul.f32 %v6026, %v3845
    %v6235 = vmul.f32 %v6028, %v3849
    %v6236 = vmul.f32 %v6030, %v3853
    %v6237 = vmul.f32 %v6032, %v3857
    %v6238 = vmul.f32 %v6034, %v3861
    %v6239 = vmul.f32 %v6036, %v3865
    %v6240 = vmul.f32 %v6038, %v3869
    %v6241 = vmul.f32 %v6040, %v3873
    %v6242 = vmul.f32 %v6042, %v3877
    %v6243 = vmul.f32 %v6044, %v3881
    %v6244 = vmul.f32 %v6046, %v3885
    %v6245 = vmul.f32 %v6048, %v3889
    %v6246 = vmul.f32 %v6050, %v3893
    %v6247 = vmul.f32 %v6052, %v3897
    %v6248 = vmul.f32 %v6054, %v3901
    %v6249 = vmul.f32 %v6056, %v3905
    %v6250 = vmul.f32 %v6058, %v3909
    %v6251 = vadd.f32 %v6219, %v6220
    %v6252 = vadd.f32 %v6251, %v6221
    %v6253 = vadd.f32 %v6252, %v6222
    %v6254 = vadd.f32 %v6253, %v6223
    %v6255 = vadd.f32 %v6254, %v6224
    %v6256 = vadd.f32 %v6255, %v6225
    %v6257 = vadd.f32 %v6256, %v6226
    %v6258 = vadd.f32 %v6257, %v6227
    %v6259 = vadd.f32 %v6258, %v6228
    %v6260 = vadd.f32 %v6259, %v6229
    %v6261 = vadd.f32 %v6260, %v6230
    %v6262 = vadd.f32 %v6261, %v6231
    %v6263 = vadd.f32 %v6262, %v6232
    %v6264 = vadd.f32 %v6263, %v6233
    %v6265 = vadd.f32 %v6264, %v6234
    %v6266 = vadd.f32 %v6265, %v6235
    %v6267 = vadd.f32 %v6266, %v6236
    %v6268 = vadd.f32 %v6267, %v6237
    %v6269 = vadd.f32 %v6268, %v6238
    %v6270 = vadd.f32 %v6269, %v6239
    %v6271 = vadd.f32 %v6270, %v6240
    %v6272 = vadd.f32 %v6271, %v6241
    %v6273 = vadd.f32 %v6272, %v6242
    %v6274 = vadd.f32 %v6273, %v6243
    %v6275 = vadd.f32 %v6274, %v6244
    %v6276 = vadd.f32 %v6275, %v6245
    %v6277 = vadd.f32 %v6276, %v6246
    %v6278 = vadd.f32 %v6277, %v6247
    %v6279 = vadd.f32 %v6278, %v6248
    %v6280 = vadd.f32 %v6279, %v6249
    %v6281 = vadd.f32 %v6280, %v6250
    %v6282 = vmul.f32 %v6281, %v6090
    %v6283 = vmul.f32 %v5996, %v4209
    %v6284 = vmul.f32 %v5998, %v4213
    %v6285 = vmul.f32 %v6000, %v4217
    %v6286 = vmul.f32 %v6002, %v4221
    %v6287 = vmul.f32 %v6004, %v4225
    %v6288 = vmul.f32 %v6006, %v4229
    %v6289 = vmul.f32 %v6008, %v4233
    %v6290 = vmul.f32 %v6010, %v4237
    %v6291 = vmul.f32 %v6012, %v4241
    %v6292 = vmul.f32 %v6014, %v4245
    %v6293 = vmul.f32 %v6016, %v4249
    %v6294 = vmul.f32 %v6018, %v4253
    %v6295 = vmul.f32 %v6020, %v4257
    %v6296 = vmul.f32 %v6022, %v4261
    %v6297 = vmul.f32 %v6024, %v4265
    %v6298 = vmul.f32 %v6026, %v4269
    %v6299 = vmul.f32 %v6028, %v4273
    %v6300 = vmul.f32 %v6030, %v4277
    %v6301 = vmul.f32 %v6032, %v4281
    %v6302 = vmul.f32 %v6034, %v4285
    %v6303 = vmul.f32 %v6036, %v4289
    %v6304 = vmul.f32 %v6038, %v4293
    %v6305 = vmul.f32 %v6040, %v4297
    %v6306 = vmul.f32 %v6042, %v4301
    %v6307 = vmul.f32 %v6044, %v4305
    %v6308 = vmul.f32 %v6046, %v4309
    %v6309 = vmul.f32 %v6048, %v4313
    %v6310 = vmul.f32 %v6050, %v4317
    %v6311 = vmul.f32 %v6052, %v4321
    %v6312 = vmul.f32 %v6054, %v4325
    %v6313 = vmul.f32 %v6056, %v4329
    %v6314 = vmul.f32 %v6058, %v4333
    %v6315 = vadd.f32 %v6283, %v6284
    %v6316 = vadd.f32 %v6315, %v6285
    %v6317 = vadd.f32 %v6316, %v6286
    %v6318 = vadd.f32 %v6317, %v6287
    %v6319 = vadd.f32 %v6318, %v6288
    %v6320 = vadd.f32 %v6319, %v6289
    %v6321 = vadd.f32 %v6320, %v6290
    %v6322 = vadd.f32 %v6321, %v6291
    %v6323 = vadd.f32 %v6322, %v6292
    %v6324 = vadd.f32 %v6323, %v6293
    %v6325 = vadd.f32 %v6324, %v6294
    %v6326 = vadd.f32 %v6325, %v6295
    %v6327 = vadd.f32 %v6326, %v6296
    %v6328 = vadd.f32 %v6327, %v6297
    %v6329 = vadd.f32 %v6328, %v6298
    %v6330 = vadd.f32 %v6329, %v6299
    %v6331 = vadd.f32 %v6330, %v6300
    %v6332 = vadd.f32 %v6331, %v6301
    %v6333 = vadd.f32 %v6332, %v6302
    %v6334 = vadd.f32 %v6333, %v6303
    %v6335 = vadd.f32 %v6334, %v6304
    %v6336 = vadd.f32 %v6335, %v6305
    %v6337 = vadd.f32 %v6336, %v6306
    %v6338 = vadd.f32 %v6337, %v6307
    %v6339 = vadd.f32 %v6338, %v6308
    %v6340 = vadd.f32 %v6339, %v6309
    %v6341 = vadd.f32 %v6340, %v6310
    %v6342 = vadd.f32 %v6341, %v6311
    %v6343 = vadd.f32 %v6342, %v6312
    %v6344 = vadd.f32 %v6343, %v6313
    %v6345 = vadd.f32 %v6344, %v6314
    %v6346 = vmul.f32 %v6345, %v6090
    %v6347 = vld [vmem:[%s2] sm:$0xf]
    %v6348 = vld [vmem:[%s2 + $0x4] sm:$0xf]
    %v6349 = vld [vmem:[%s2 + $0x8] sm:$0xf]
    %v6350 = vld [vmem:[%s2 + $0xc] sm:$0xf]
    %v6351 = vld [vmem:[%s2 + $0x10] sm:$0xf]
    %v6352 = vld [vmem:[%s2 + $0x14] sm:$0xf]
    %v6353 = vld [vmem:[%s2 + $0x18] sm:$0xf]
    %v6354 = vld [vmem:[%s2 + $0x1c] sm:$0xf]
    %v6355 = vld [vmem:[%s2 + $0x20] sm:$0xf]
    %v6356 = vld [vmem:[%s2 + $0x24] sm:$0xf]
    %v6357 = vld [vmem:[%s2 + $0x28] sm:$0xf]
    %v6358 = vld [vmem:[%s2 + $0x2c] sm:$0xf]
    %v6359 = vld [vmem:[%s2 + $0x30] sm:$0xf]
    %v6360 = vld [vmem:[%s2 + $0x34] sm:$0xf]
    %v6361 = vld [vmem:[%s2 + $0x38] sm:$0xf]
    %v6362 = vld [vmem:[%s2 + $0x3c] sm:$0xf]
    %v6363 = vpack.c.bf16 %v4876, %v3157
    %v6364 = vpack.c.bf16 %v6154, %v5515
    %v6365 = vpack.c.bf16 %v4940, %v3581
    %v6366 = vpack.c.bf16 %v6218, %v5579
    %v6367 = vpack.c.bf16 %v5004, %v4005
    %v6368 = vpack.c.bf16 %v6282, %v5643
    %v6369 = vpack.c.bf16 %v5068, %v4429
    %v6370 = vpack.c.bf16 %v6346, %v5707
    %6371 = vset.pattern.permute.xlu0 1
    %6372 = vperm.xlu0 %6371, %v101
    %v6373 = vpop.permute.xlu0 %6372
    %6375 = vset.pattern.permute.xlu0 1
    %6376 = vperm.xlu0 %6375, %v102
    %v6377 = vpop.permute.xlu0 %6376
    %6379 = vset.pattern.permute.xlu0 1
    %6380 = vperm.xlu0 %6379, %v103
    %v6381 = vpop.permute.xlu0 %6380
    %6383 = vset.pattern.permute.xlu0 1
    %6384 = vperm.xlu0 %6383, %v104
    %v6385 = vpop.permute.xlu0 %6384
    %6387 = vset.pattern.permute.xlu0 1
    %6388 = vperm.xlu0 %6387, %v105
    %v6389 = vpop.permute.xlu0 %6388
    %6391 = vset.pattern.permute.xlu0 1
    %6392 = vperm.xlu0 %6391, %v106
    %v6393 = vpop.permute.xlu0 %6392
    %6395 = vset.pattern.permute.xlu0 1
    %6396 = vperm.xlu0 %6395, %v107
    %v6397 = vpop.permute.xlu0 %6396
    %6399 = vset.pattern.permute.xlu0 1
    %6400 = vperm.xlu0 %6399, %v108
    %v6401 = vpop.permute.xlu0 %6400
    %6403 = vset.pattern.permute.xlu0 1
    %6404 = vperm.xlu0 %6403, %v109
    %v6405 = vpop.permute.xlu0 %6404
    %6407 = vset.pattern.permute.xlu0 1
    %6408 = vperm.xlu0 %6407, %v110
    %v6409 = vpop.permute.xlu0 %6408
    %6411 = vset.pattern.permute.xlu0 1
    %6412 = vperm.xlu0 %6411, %v111
    %v6413 = vpop.permute.xlu0 %6412
    %6415 = vset.pattern.permute.xlu0 1
    %6416 = vperm.xlu0 %6415, %v112
    %v6417 = vpop.permute.xlu0 %6416
    %6419 = vset.pattern.permute.xlu0 1
    %6420 = vperm.xlu0 %6419, %v113
    %v6421 = vpop.permute.xlu0 %6420
    %6423 = vset.pattern.permute.xlu0 1
    %6424 = vperm.xlu0 %6423, %v114
    %v6425 = vpop.permute.xlu0 %6424
    %6427 = vset.pattern.permute.xlu0 1
    %6428 = vperm.xlu0 %6427, %v115
    %v6429 = vpop.permute.xlu0 %6428
    %6431 = vset.pattern.permute.xlu0 1
    %6432 = vperm.xlu0 %6431, %v116
    %v6433 = vpop.permute.xlu0 %6432
    %v6451 = vunpack.c.l.b16 %v6347
    %v6452 = vunpack.c.l.b16 %v6348
    %v6453 = vunpack.c.l.b16 %v6349
    %v6454 = vunpack.c.l.b16 %v6350
    %v6455 = vunpack.c.l.b16 %v6351
    %v6456 = vunpack.c.l.b16 %v6352
    %v6457 = vunpack.c.l.b16 %v6353
    %v6458 = vunpack.c.l.b16 %v6354
    %v6459 = vunpack.c.l.b16 %v6355
    %v6460 = vunpack.c.l.b16 %v6356
    %v6461 = vunpack.c.l.b16 %v6357
    %v6462 = vunpack.c.l.b16 %v6358
    %v6463 = vunpack.c.l.b16 %v6359
    %v6464 = vunpack.c.l.b16 %v6360
    %v6465 = vunpack.c.l.b16 %v6361
    %v6466 = vunpack.c.l.b16 %v6362
    %v6467 = vpack.c.b16 %v6452, %v6451
    %v6468 = vpack.c.b16 %v6454, %v6453
    %v6469 = vpack.c.b16 %v6456, %v6455
    %v6470 = vpack.c.b16 %v6458, %v6457
    %v6471 = vpack.c.b16 %v6460, %v6459
    %v6472 = vpack.c.b16 %v6462, %v6461
    %v6473 = vpack.c.b16 %v6464, %v6463
    %v6474 = vpack.c.b16 %v6466, %v6465
    %6483 = vmatprep.subr.bf16.mxu0 0
    %6484 = vmatpush1.bf16.msra.mxu0 %v6363
    %6485 = vmatprep.subr.bf16.mxu0 0
    %6486 = vmatpush1.bf16.msra.mxu0 %v6364
    %6487 = vmatprep.subr.bf16.mxu0 0
    %6488 = vmatpush1.bf16.msra.mxu0 %v6365
    %6489 = vmatprep.subr.bf16.mxu0 0
    %6490 = vmatpush1.bf16.msra.mxu0 %v6366
    %6491 = vmatprep.subr.bf16.mxu0 0
    %6492 = vmatpush1.bf16.msra.mxu0 %v6367
    %6493 = vmatprep.subr.bf16.mxu0 0
    %6494 = vmatpush1.bf16.msra.mxu0 %v6368
    %6495 = vmatprep.subr.bf16.mxu0 0
    %6496 = vmatpush1.bf16.msra.mxu0 %v6369
    %6497 = vmatprep.subr.bf16.mxu0 0
    %6498 = vmatpush1.bf16.msra.mxu0 %v6370
    %6499 = vmatprep.subr.bf16.mxu0 0
    %6500 = vmatpush1.bf16.msra.mxu0 0
    %6501 = vmatprep.subr.bf16.mxu0 0
    %6502 = vmatpush1.bf16.msra.mxu0 0
    %6503 = vmatprep.subr.bf16.mxu0 0
    %6504 = vmatpush1.bf16.msra.mxu0 0
    %6505 = vmatprep.subr.bf16.mxu0 0
    %6506 = vmatpush1.bf16.msra.mxu0 0
    %6507 = vmatprep.subr.bf16.mxu0 0
    %6508 = vmatpush1.bf16.msra.mxu0 0
    %6509 = vmatprep.subr.bf16.mxu0 0
    %6510 = vmatpush1.bf16.msra.mxu0 0
    %6511 = vmatprep.subr.bf16.mxu0 0
    %6512 = vmatpush1.bf16.msra.mxu0 0
    %6513 = vmatprep.subr.bf16.mxu0 0
    %6514 = vmatpush1.bf16.msra.mxu0 0
    %6515 = vmatprep.mubr.bf16.mxu0 0
    %6516 = vmatmul.mubr.bf16.gmra.mrb[0].mxu0 %v6467
    %v6517 = vpop.f32.mrb[0].mxu0
    %v6518 = vadd.f32 %v6373, %v6517
    %v6519 = vpop.f32.mrb[0].mxu0
    %v6520 = vpop.f32.mrb[0].mxu0
    %v6521 = vadd.f32 %v6377, %v6520
    %v6522 = vpop.f32.mrb[0].mxu0
    %6523 = vmatprep.mubr.bf16.mxu0 0
    %6524 = vmatmul.mubr.bf16.gmra.mrb[0].mxu0 %v6468
    %v6525 = vpop.f32.mrb[0].mxu0
    %v6526 = vadd.f32 %v6381, %v6525
    %v6527 = vpop.f32.mrb[0].mxu0
    %v6528 = vpop.f32.mrb[0].mxu0
    %v6529 = vadd.f32 %v6385, %v6528
    %v6530 = vpop.f32.mrb[0].mxu0
    %6531 = vmatprep.mubr.bf16.mxu0 0
    %6532 = vmatmul.mubr.bf16.gmra.mrb[0].mxu0 %v6469
    %v6533 = vpop.f32.mrb[0].mxu0
    %v6534 = vadd.f32 %v6389, %v6533
    %v6535 = vpop.f32.mrb[0].mxu0
    %v6536 = vpop.f32.mrb[0].mxu0
    %v6537 = vadd.f32 %v6393, %v6536
    %v6538 = vpop.f32.mrb[0].mxu0
    %6539 = vmatprep.mubr.bf16.mxu0 0
    %6540 = vmatmul.mubr.bf16.gmra.mrb[0].mxu0 %v6470
    %v6541 = vpop.f32.mrb[0].mxu0
    %v6542 = vadd.f32 %v6397, %v6541
    %v6543 = vpop.f32.mrb[0].mxu0
    %v6544 = vpop.f32.mrb[0].mxu0
    %v6545 = vadd.f32 %v6401, %v6544
    %v6546 = vpop.f32.mrb[0].mxu0
    %6547 = vmatprep.mubr.bf16.mxu0 0
    %6548 = vmatmul.mubr.bf16.gmra.mrb[0].mxu0 %v6471
    %v6549 = vpop.f32.mrb[0].mxu0
    %v6550 = vadd.f32 %v6405, %v6549
    %v6551 = vpop.f32.mrb[0].mxu0
    %v6552 = vpop.f32.mrb[0].mxu0
    %v6553 = vadd.f32 %v6409, %v6552
    %v6554 = vpop.f32.mrb[0].mxu0
    %6555 = vmatprep.mubr.bf16.mxu0 0
    %6556 = vmatmul.mubr.bf16.gmra.mrb[0].mxu0 %v6472
    %v6557 = vpop.f32.mrb[0].mxu0
    %v6558 = vadd.f32 %v6413, %v6557
    %v6559 = vpop.f32.mrb[0].mxu0
    %v6560 = vpop.f32.mrb[0].mxu0
    %v6561 = vadd.f32 %v6417, %v6560
    %v6562 = vpop.f32.mrb[0].mxu0
    %6563 = vmatprep.mubr.bf16.mxu0 0
    %6564 = vmatmul.mubr.bf16.gmra.mrb[0].mxu0 %v6473
    %v6565 = vpop.f32.mrb[0].mxu0
    %v6566 = vadd.f32 %v6421, %v6565
    %v6567 = vpop.f32.mrb[0].mxu0
    %v6568 = vpop.f32.mrb[0].mxu0
    %v6569 = vadd.f32 %v6425, %v6568
    %v6570 = vpop.f32.mrb[0].mxu0
    %6571 = vmatprep.mubr.bf16.mxu0 0
    %6572 = vmatmul.mubr.bf16.gmra.mrb[0].mxu0 %v6474
    %v6573 = vpop.f32.mrb[0].mxu0
    %v6574 = vadd.f32 %v6429, %v6573
    %v6575 = vpop.f32.mrb[0].mxu0
    %v6576 = vpop.f32.mrb[0].mxu0
    %v6577 = vadd.f32 %v6433, %v6576
    %v6578 = vpop.f32.mrb[0].mxu0
    %6579 = vdwg.mxu0
    %v6580 = vadd.f32 %v85, %v6518
    %v6581 = vadd.f32 %v86, %v6521
    %v6582 = vadd.f32 %v87, %v6526
    %v6583 = vadd.f32 %v88, %v6529
    %v6584 = vadd.f32 %v89, %v6534
    %v6585 = vadd.f32 %v90, %v6537
    %v6586 = vadd.f32 %v91, %v6542
    %v6587 = vadd.f32 %v92, %v6545
    %v6588 = vadd.f32 %v93, %v6550
    %v6589 = vadd.f32 %v94, %v6553
    %v6590 = vadd.f32 %v95, %v6558
    %v6591 = vadd.f32 %v96, %v6561
    %v6592 = vadd.f32 %v97, %v6566
    %v6593 = vadd.f32 %v98, %v6569
    %v6594 = vadd.f32 %v99, %v6574
    %v6595 = vadd.f32 %v100, %v6577
    %v6596 = vadd.f32 %v6580, %v6581
    %v6597 = vadd.f32 %v6596, %v6582
    %v6598 = vadd.f32 %v6597, %v6583
    %v6599 = vadd.f32 %v6598, %v6584
    %v6600 = vadd.f32 %v6599, %v6585
    %v6601 = vadd.f32 %v6600, %v6586
    %v6602 = vadd.f32 %v6601, %v6587
    %v6603 = vadd.f32 %v6602, %v6588
    %v6604 = vadd.f32 %v6603, %v6589
    %v6605 = vadd.f32 %v6604, %v6590
    %v6606 = vadd.f32 %v6605, %v6591
    %v6607 = vadd.f32 %v6606, %v6592
    %v6608 = vadd.f32 %v6607, %v6593
    %v6609 = vadd.f32 %v6608, %v6594
    %v6610 = vadd.f32 %v6609, %v6595
    %v6611 = vrot.slane %v6610, 4
    %v6612 = vadd.f32 %v6610, %v6611
    %v6613 = vrot.slane %v6612, 2
    %v6614 = vadd.f32 %v6612, %v6613
    %v6615 = vrot.slane %v6614, 1
    %v6616 = vadd.f32 %v6614, %v6615
    %v6617 = vmul.f32 %v6616, %v170
    %v6618 = vmul.f32 %v6580, %v6580
    %v6619 = vmul.f32 %v6581, %v6581
    %v6620 = vmul.f32 %v6582, %v6582
    %v6621 = vmul.f32 %v6583, %v6583
    %v6622 = vmul.f32 %v6584, %v6584
    %v6623 = vmul.f32 %v6585, %v6585
    %v6624 = vmul.f32 %v6586, %v6586
    %v6625 = vmul.f32 %v6587, %v6587
    %v6626 = vmul.f32 %v6588, %v6588
    %v6627 = vmul.f32 %v6589, %v6589
    %v6628 = vmul.f32 %v6590, %v6590
    %v6629 = vmul.f32 %v6591, %v6591
    %v6630 = vmul.f32 %v6592, %v6592
    %v6631 = vmul.f32 %v6593, %v6593
    %v6632 = vmul.f32 %v6594, %v6594
    %v6633 = vmul.f32 %v6595, %v6595
    %v6634 = vadd.f32 %v6618, %v6619
    %v6635 = vadd.f32 %v6634, %v6620
    %v6636 = vadd.f32 %v6635, %v6621
    %v6637 = vadd.f32 %v6636, %v6622
    %v6638 = vadd.f32 %v6637, %v6623
    %v6639 = vadd.f32 %v6638, %v6624
    %v6640 = vadd.f32 %v6639, %v6625
    %v6641 = vadd.f32 %v6640, %v6626
    %v6642 = vadd.f32 %v6641, %v6627
    %v6643 = vadd.f32 %v6642, %v6628
    %v6644 = vadd.f32 %v6643, %v6629
    %v6645 = vadd.f32 %v6644, %v6630
    %v6646 = vadd.f32 %v6645, %v6631
    %v6647 = vadd.f32 %v6646, %v6632
    %v6648 = vadd.f32 %v6647, %v6633
    %v6649 = vrot.slane %v6648, 4
    %v6650 = vadd.f32 %v6648, %v6649
    %v6651 = vrot.slane %v6650, 2
    %v6652 = vadd.f32 %v6650, %v6651
    %v6653 = vrot.slane %v6652, 1
    %v6654 = vadd.f32 %v6652, %v6653
    %v6655 = vmul.f32 %v6654, %v170
    %v6656 = vsub.f32 %v6580, %v6617
    %v6657 = vsub.f32 %v6581, %v6617
    %v6658 = vsub.f32 %v6582, %v6617
    %v6659 = vsub.f32 %v6583, %v6617
    %v6660 = vsub.f32 %v6584, %v6617
    %v6661 = vsub.f32 %v6585, %v6617
    %v6662 = vsub.f32 %v6586, %v6617
    %v6663 = vsub.f32 %v6587, %v6617
    %v6664 = vsub.f32 %v6588, %v6617
    %v6665 = vsub.f32 %v6589, %v6617
    %v6666 = vsub.f32 %v6590, %v6617
    %v6667 = vsub.f32 %v6591, %v6617
    %v6668 = vsub.f32 %v6592, %v6617
    %v6669 = vsub.f32 %v6593, %v6617
    %v6670 = vsub.f32 %v6594, %v6617
    %v6671 = vsub.f32 %v6595, %v6617
    %v6672 = vmul.f32 %v6617, %v6617
    %v6673 = vsub.f32 %v6655, %v6672
    %v6674 = vadd.f32 %v6673, 1e-05
    %v6675 = vrsqrt.pop %v6674
    %v6676 = vmul.f32 %v6656, %v6675
    %v6677 = vmul.f32 %v6657, %v6675
    %v6678 = vmul.f32 %v6658, %v6675
    %v6679 = vmul.f32 %v6659, %v6675
    %v6680 = vmul.f32 %v6660, %v6675
    %v6681 = vmul.f32 %v6661, %v6675
    %v6682 = vmul.f32 %v6662, %v6675
    %v6683 = vmul.f32 %v6663, %v6675
    %v6684 = vmul.f32 %v6664, %v6675
    %v6685 = vmul.f32 %v6665, %v6675
    %v6686 = vmul.f32 %v6666, %v6675
    %v6687 = vmul.f32 %v6667, %v6675
    %v6688 = vmul.f32 %v6668, %v6675
    %v6689 = vmul.f32 %v6669, %v6675
    %v6690 = vmul.f32 %v6670, %v6675
    %v6691 = vmul.f32 %v6671, %v6675
    %v6692 = vld [vmem:[#allocation2] sm:$0xf]
    %v6693 = vld [vmem:[#allocation2 + $0x4] sm:$0xf]
    %v6694 = vld [vmem:[#allocation2 + $0x8] sm:$0xf]
    %v6695 = vld [vmem:[#allocation2 + $0xc] sm:$0xf]
    %v6696 = vld [vmem:[#allocation2 + $0x10] sm:$0xf]
    %v6697 = vld [vmem:[#allocation2 + $0x14] sm:$0xf]
    %v6698 = vld [vmem:[#allocation2 + $0x18] sm:$0xf]
    %v6699 = vld [vmem:[#allocation2 + $0x1c] sm:$0xf]
    %v6700 = vld [vmem:[#allocation2 + $0x20] sm:$0xf]
    %v6701 = vld [vmem:[#allocation2 + $0x24] sm:$0xf]
    %v6702 = vld [vmem:[#allocation2 + $0x28] sm:$0xf]
    %v6703 = vld [vmem:[#allocation2 + $0x2c] sm:$0xf]
    %v6704 = vld [vmem:[#allocation2 + $0x30] sm:$0xf]
    %v6705 = vld [vmem:[#allocation2 + $0x34] sm:$0xf]
    %v6706 = vld [vmem:[#allocation2 + $0x38] sm:$0xf]
    %v6707 = vld [vmem:[#allocation2 + $0x3c] sm:$0xf]
    %v6708 = vld [vmem:[#allocation2 + $0x40] sm:$0xf]
    %v6709 = vld [vmem:[#allocation2 + $0x44] sm:$0xf]
    %v6710 = vld [vmem:[#allocation2 + $0x48] sm:$0xf]
    %v6711 = vld [vmem:[#allocation2 + $0x4c] sm:$0xf]
    %v6712 = vld [vmem:[#allocation2 + $0x50] sm:$0xf]
    %v6713 = vld [vmem:[#allocation2 + $0x54] sm:$0xf]
    %v6714 = vld [vmem:[#allocation2 + $0x58] sm:$0xf]
    %v6715 = vld [vmem:[#allocation2 + $0x5c] sm:$0xf]
    %v6716 = vld [vmem:[#allocation2 + $0x60] sm:$0xf]
    %v6717 = vld [vmem:[#allocation2 + $0x64] sm:$0xf]
    %v6718 = vld [vmem:[#allocation2 + $0x68] sm:$0xf]
    %v6719 = vld [vmem:[#allocation2 + $0x6c] sm:$0xf]
    %v6720 = vld [vmem:[#allocation2 + $0x70] sm:$0xf]
    %v6721 = vld [vmem:[#allocation2 + $0x74] sm:$0xf]
    %v6722 = vld [vmem:[#allocation2 + $0x78] sm:$0xf]
    %v6723 = vld [vmem:[#allocation2 + $0x7c] sm:$0xf]
    %v6724 = vpack.c.bf16 %v6677, %v6676
    %v6725 = vpack.c.bf16 %v6679, %v6678
    %v6726 = vpack.c.bf16 %v6681, %v6680
    %v6727 = vpack.c.bf16 %v6683, %v6682
    %v6728 = vpack.c.bf16 %v6685, %v6684
    %v6729 = vpack.c.bf16 %v6687, %v6686
    %v6730 = vpack.c.bf16 %v6689, %v6688
    %v6731 = vpack.c.bf16 %v6691, %v6690
    %6732 = vset.pattern.permute.xlu0 1
    %6733 = vperm.xlu0 %6732, %v117
    %v6734 = vpop.permute.xlu0 %6733
    %6736 = vset.pattern.permute.xlu0 1
    %6737 = vperm.xlu0 %6736, %v118
    %v6738 = vpop.permute.xlu0 %6737
    %6740 = vset.pattern.permute.xlu0 1
    %6741 = vperm.xlu0 %6740, %v119
    %v6742 = vpop.permute.xlu0 %6741
    %6744 = vset.pattern.permute.xlu0 1
    %6745 = vperm.xlu0 %6744, %v120
    %v6746 = vpop.permute.xlu0 %6745
    %6748 = vset.pattern.permute.xlu0 1
    %6749 = vperm.xlu0 %6748, %v121
    %v6750 = vpop.permute.xlu0 %6749
    %6752 = vset.pattern.permute.xlu0 1
    %6753 = vperm.xlu0 %6752, %v122
    %v6754 = vpop.permute.xlu0 %6753
    %6756 = vset.pattern.permute.xlu0 1
    %6757 = vperm.xlu0 %6756, %v123
    %v6758 = vpop.permute.xlu0 %6757
    %6760 = vset.pattern.permute.xlu0 1
    %6761 = vperm.xlu0 %6760, %v124
    %v6762 = vpop.permute.xlu0 %6761
    %6764 = vset.pattern.permute.xlu0 1
    %6765 = vperm.xlu0 %6764, %v125
    %v6766 = vpop.permute.xlu0 %6765
    %6768 = vset.pattern.permute.xlu0 1
    %6769 = vperm.xlu0 %6768, %v126
    %v6770 = vpop.permute.xlu0 %6769
    %6772 = vset.pattern.permute.xlu0 1
    %6773 = vperm.xlu0 %6772, %v127
    %v6774 = vpop.permute.xlu0 %6773
    %6776 = vset.pattern.permute.xlu0 1
    %6777 = vperm.xlu0 %6776, %v128
    %v6778 = vpop.permute.xlu0 %6777
    %6780 = vset.pattern.permute.xlu0 1
    %6781 = vperm.xlu0 %6780, %v129
    %v6782 = vpop.permute.xlu0 %6781
    %6784 = vset.pattern.permute.xlu0 1
    %6785 = vperm.xlu0 %6784, %v130
    %v6786 = vpop.permute.xlu0 %6785
    %6788 = vset.pattern.permute.xlu0 1
    %6789 = vperm.xlu0 %6788, %v131
    %v6790 = vpop.permute.xlu0 %6789
    %6792 = vset.pattern.permute.xlu0 1
    %6793 = vperm.xlu0 %6792, %v132
    %v6794 = vpop.permute.xlu0 %6793
    %6796 = vset.pattern.permute.xlu0 1
    %6797 = vperm.xlu0 %6796, %v133
    %v6798 = vpop.permute.xlu0 %6797
    %6800 = vset.pattern.permute.xlu0 1
    %6801 = vperm.xlu0 %6800, %v134
    %v6802 = vpop.permute.xlu0 %6801
    %6804 = vset.pattern.permute.xlu0 1
    %6805 = vperm.xlu0 %6804, %v135
    %v6806 = vpop.permute.xlu0 %6805
    %6808 = vset.pattern.permute.xlu0 1
    %6809 = vperm.xlu0 %6808, %v136
    %v6810 = vpop.permute.xlu0 %6809
    %6812 = vset.pattern.permute.xlu0 1
    %6813 = vperm.xlu0 %6812, %v137
    %v6814 = vpop.permute.xlu0 %6813
    %6816 = vset.pattern.permute.xlu0 1
    %6817 = vperm.xlu0 %6816, %v138
    %v6818 = vpop.permute.xlu0 %6817
    %6820 = vset.pattern.permute.xlu0 1
    %6821 = vperm.xlu0 %6820, %v139
    %v6822 = vpop.permute.xlu0 %6821
    %6824 = vset.pattern.permute.xlu0 1
    %6825 = vperm.xlu0 %6824, %v140
    %v6826 = vpop.permute.xlu0 %6825
    %6828 = vset.pattern.permute.xlu0 1
    %6829 = vperm.xlu0 %6828, %v141
    %v6830 = vpop.permute.xlu0 %6829
    %6832 = vset.pattern.permute.xlu0 1
    %6833 = vperm.xlu0 %6832, %v142
    %v6834 = vpop.permute.xlu0 %6833
    %6836 = vset.pattern.permute.xlu0 1
    %6837 = vperm.xlu0 %6836, %v143
    %v6838 = vpop.permute.xlu0 %6837
    %6840 = vset.pattern.permute.xlu0 1
    %6841 = vperm.xlu0 %6840, %v144
    %v6842 = vpop.permute.xlu0 %6841
    %6844 = vset.pattern.permute.xlu0 1
    %6845 = vperm.xlu0 %6844, %v145
    %v6846 = vpop.permute.xlu0 %6845
    %6848 = vset.pattern.permute.xlu0 1
    %6849 = vperm.xlu0 %6848, %v146
    %v6850 = vpop.permute.xlu0 %6849
    %6852 = vset.pattern.permute.xlu0 1
    %6853 = vperm.xlu0 %6852, %v147
    %v6854 = vpop.permute.xlu0 %6853
    %6856 = vset.pattern.permute.xlu0 1
    %6857 = vperm.xlu0 %6856, %v148
    %v6858 = vpop.permute.xlu0 %6857
    %v6892 = vunpack.c.l.b16 %v6692
    %v6893 = vunpack.c.l.b16 %v6693
    %v6894 = vunpack.c.l.b16 %v6694
    %v6895 = vunpack.c.l.b16 %v6695
    %v6896 = vunpack.c.l.b16 %v6696
    %v6897 = vunpack.c.l.b16 %v6697
    %v6898 = vunpack.c.l.b16 %v6698
    %v6899 = vunpack.c.l.b16 %v6699
    %v6900 = vunpack.c.l.b16 %v6700
    %v6901 = vunpack.c.l.b16 %v6701
    %v6902 = vunpack.c.l.b16 %v6702
    %v6903 = vunpack.c.l.b16 %v6703
    %v6904 = vunpack.c.l.b16 %v6704
    %v6905 = vunpack.c.l.b16 %v6705
    %v6906 = vunpack.c.l.b16 %v6706
    %v6907 = vunpack.c.l.b16 %v6707
    %v6908 = vunpack.c.l.b16 %v6708
    %v6909 = vunpack.c.l.b16 %v6709
    %v6910 = vunpack.c.l.b16 %v6710
    %v6911 = vunpack.c.l.b16 %v6711
    %v6912 = vunpack.c.l.b16 %v6712
    %v6913 = vunpack.c.l.b16 %v6713
    %v6914 = vunpack.c.l.b16 %v6714
    %v6915 = vunpack.c.l.b16 %v6715
    %v6916 = vunpack.c.l.b16 %v6716
    %v6917 = vunpack.c.l.b16 %v6717
    %v6918 = vunpack.c.l.b16 %v6718
    %v6919 = vunpack.c.l.b16 %v6719
    %v6920 = vunpack.c.l.b16 %v6720
    %v6921 = vunpack.c.l.b16 %v6721
    %v6922 = vunpack.c.l.b16 %v6722
    %v6923 = vunpack.c.l.b16 %v6723
    %v6924 = vpack.c.b16 %v6893, %v6892
    %v6925 = vpack.c.b16 %v6895, %v6894
    %v6926 = vpack.c.b16 %v6897, %v6896
    %v6927 = vpack.c.b16 %v6899, %v6898
    %v6928 = vpack.c.b16 %v6901, %v6900
    %v6929 = vpack.c.b16 %v6903, %v6902
    %v6930 = vpack.c.b16 %v6905, %v6904
    %v6931 = vpack.c.b16 %v6907, %v6906
    %v6932 = vpack.c.b16 %v6909, %v6908
    %v6933 = vpack.c.b16 %v6911, %v6910
    %v6934 = vpack.c.b16 %v6913, %v6912
    %v6935 = vpack.c.b16 %v6915, %v6914
    %v6936 = vpack.c.b16 %v6917, %v6916
    %v6937 = vpack.c.b16 %v6919, %v6918
    %v6938 = vpack.c.b16 %v6921, %v6920
    %v6939 = vpack.c.b16 %v6923, %v6922
    %6956 = vmatprep.subr.bf16.mxu0 0
    %6957 = vmatpush1.bf16.msra.mxu0 %v6724
    %6958 = vmatprep.subr.bf16.mxu0 0
    %6959 = vmatpush1.bf16.msra.mxu0 %v6725
    %6960 = vmatprep.subr.bf16.mxu0 0
    %6961 = vmatpush1.bf16.msra.mxu0 %v6726
    %6962 = vmatprep.subr.bf16.mxu0 0
    %6963 = vmatpush1.bf16.msra.mxu0 %v6727
    %6964 = vmatprep.subr.bf16.mxu0 0
    %6965 = vmatpush1.bf16.msra.mxu0 %v6728
    %6966 = vmatprep.subr.bf16.mxu0 0
    %6967 = vmatpush1.bf16.msra.mxu0 %v6729
    %6968 = vmatprep.subr.bf16.mxu0 0
    %6969 = vmatpush1.bf16.msra.mxu0 %v6730
    %6970 = vmatprep.subr.bf16.mxu0 0
    %6971 = vmatpush1.bf16.msra.mxu0 %v6731
    %6972 = vmatprep.subr.bf16.mxu0 0
    %6973 = vmatpush1.bf16.msra.mxu0 0
    %6974 = vmatprep.subr.bf16.mxu0 0
    %6975 = vmatpush1.bf16.msra.mxu0 0
    %6976 = vmatprep.subr.bf16.mxu0 0
    %6977 = vmatpush1.bf16.msra.mxu0 0
    %6978 = vmatprep.subr.bf16.mxu0 0
    %6979 = vmatpush1.bf16.msra.mxu0 0
    %6980 = vmatprep.subr.bf16.mxu0 0
    %6981 = vmatpush1.bf16.msra.mxu0 0
    %6982 = vmatprep.subr.bf16.mxu0 0
    %6983 = vmatpush1.bf16.msra.mxu0 0
    %6984 = vmatprep.subr.bf16.mxu0 0
    %6985 = vmatpush1.bf16.msra.mxu0 0
    %6986 = vmatprep.subr.bf16.mxu0 0
    %6987 = vmatpush1.bf16.msra.mxu0 0
    %6988 = vmatprep.mubr.bf16.mxu0 0
    %6989 = vmatmul.mubr.bf16.gmra.mrb[0].mxu0 %v6924
    %v6990 = vpop.f32.mrb[0].mxu0
    %v6991 = vadd.f32 %v6734, %v6990
    %v6992 = vpop.f32.mrb[0].mxu0
    %v6993 = vpop.f32.mrb[0].mxu0
    %v6994 = vadd.f32 %v6738, %v6993
    %v6995 = vpop.f32.mrb[0].mxu0
    %6996 = vmatprep.mubr.bf16.mxu0 0
    %6997 = vmatmul.mubr.bf16.gmra.mrb[0].mxu0 %v6925
    %v6998 = vpop.f32.mrb[0].mxu0
    %v6999 = vadd.f32 %v6742, %v6998
    %v7000 = vpop.f32.mrb[0].mxu0
    %v7001 = vpop.f32.mrb[0].mxu0
    %v7002 = vadd.f32 %v6746, %v7001
    %v7003 = vpop.f32.mrb[0].mxu0
    %7004 = vmatprep.mubr.bf16.mxu0 0
    %7005 = vmatmul.mubr.bf16.gmra.mrb[0].mxu0 %v6926
    %v7006 = vpop.f32.mrb[0].mxu0
    %v7007 = vadd.f32 %v6750, %v7006
    %v7008 = vpop.f32.mrb[0].mxu0
    %v7009 = vpop.f32.mrb[0].mxu0
    %v7010 = vadd.f32 %v6754, %v7009
    %v7011 = vpop.f32.mrb[0].mxu0
    %7012 = vmatprep.mubr.bf16.mxu0 0
    %7013 = vmatmul.mubr.bf16.gmra.mrb[0].mxu0 %v6927
    %v7014 = vpop.f32.mrb[0].mxu0
    %v7015 = vadd.f32 %v6758, %v7014
    %v7016 = vpop.f32.mrb[0].mxu0
    %v7017 = vpop.f32.mrb[0].mxu0
    %v7018 = vadd.f32 %v6762, %v7017
    %v7019 = vpop.f32.mrb[0].mxu0
    %7020 = vmatprep.mubr.bf16.mxu0 0
    %7021 = vmatmul.mubr.bf16.gmra.mrb[0].mxu0 %v6928
    %v7022 = vpop.f32.mrb[0].mxu0
    %v7023 = vadd.f32 %v6766, %v7022
    %v7024 = vpop.f32.mrb[0].mxu0
    %v7025 = vpop.f32.mrb[0].mxu0
    %v7026 = vadd.f32 %v6770, %v7025
    %v7027 = vpop.f32.mrb[0].mxu0
    %7028 = vmatprep.mubr.bf16.mxu0 0
    %7029 = vmatmul.mubr.bf16.gmra.mrb[0].mxu0 %v6929
    %v7030 = vpop.f32.mrb[0].mxu0
    %v7031 = vadd.f32 %v6774, %v7030
    %v7032 = vpop.f32.mrb[0].mxu0
    %v7033 = vpop.f32.mrb[0].mxu0
    %v7034 = vadd.f32 %v6778, %v7033
    %v7035 = vpop.f32.mrb[0].mxu0
    %7036 = vmatprep.mubr.bf16.mxu0 0
    %7037 = vmatmul.mubr.bf16.gmra.mrb[0].mxu0 %v6930
    %v7038 = vpop.f32.mrb[0].mxu0
    %v7039 = vadd.f32 %v6782, %v7038
    %v7040 = vpop.f32.mrb[0].mxu0
    %v7041 = vpop.f32.mrb[0].mxu0
    %v7042 = vadd.f32 %v6786, %v7041
    %v7043 = vpop.f32.mrb[0].mxu0
    %7044 = vmatprep.mubr.bf16.mxu0 0
    %7045 = vmatmul.mubr.bf16.gmra.mrb[0].mxu0 %v6931
    %v7046 = vpop.f32.mrb[0].mxu0
    %v7047 = vadd.f32 %v6790, %v7046
    %v7048 = vpop.f32.mrb[0].mxu0
    %v7049 = vpop.f32.mrb[0].mxu0
    %v7050 = vadd.f32 %v6794, %v7049
    %v7051 = vpop.f32.mrb[0].mxu0
    %7052 = vmatprep.mubr.bf16.mxu0 0
    %7053 = vmatmul.mubr.bf16.gmra.mrb[0].mxu0 %v6932
    %v7054 = vpop.f32.mrb[0].mxu0
    %v7055 = vadd.f32 %v6798, %v7054
    %v7056 = vpop.f32.mrb[0].mxu0
    %v7057 = vpop.f32.mrb[0].mxu0
    %v7058 = vadd.f32 %v6802, %v7057
    %v7059 = vpop.f32.mrb[0].mxu0
    %7060 = vmatprep.mubr.bf16.mxu0 0
    %7061 = vmatmul.mubr.bf16.gmra.mrb[0].mxu0 %v6933
    %v7062 = vpop.f32.mrb[0].mxu0
    %v7063 = vadd.f32 %v6806, %v7062
    %v7064 = vpop.f32.mrb[0].mxu0
    %v7065 = vpop.f32.mrb[0].mxu0
    %v7066 = vadd.f32 %v6810, %v7065
    %v7067 = vpop.f32.mrb[0].mxu0
    %7068 = vmatprep.mubr.bf16.mxu0 0
    %7069 = vmatmul.mubr.bf16.gmra.mrb[0].mxu0 %v6934
    %v7070 = vpop.f32.mrb[0].mxu0
    %v7071 = vadd.f32 %v6814, %v7070
    %v7072 = vpop.f32.mrb[0].mxu0
    %v7073 = vpop.f32.mrb[0].mxu0
    %v7074 = vadd.f32 %v6818, %v7073
    %v7075 = vpop.f32.mrb[0].mxu0
    %7076 = vmatprep.mubr.bf16.mxu0 0
    %7077 = vmatmul.mubr.bf16.gmra.mrb[0].mxu0 %v6935
    %v7078 = vpop.f32.mrb[0].mxu0
    %v7079 = vadd.f32 %v6822, %v7078
    %v7080 = vpop.f32.mrb[0].mxu0
    %v7081 = vpop.f32.mrb[0].mxu0
    %v7082 = vadd.f32 %v6826, %v7081
    %v7083 = vpop.f32.mrb[0].mxu0
    %7084 = vmatprep.mubr.bf16.mxu0 0
    %7085 = vmatmul.mubr.bf16.gmra.mrb[0].mxu0 %v6936
    %v7086 = vpop.f32.mrb[0].mxu0
    %v7087 = vadd.f32 %v6830, %v7086
    %v7088 = vpop.f32.mrb[0].mxu0
    %v7089 = vpop.f32.mrb[0].mxu0
    %v7090 = vadd.f32 %v6834, %v7089
    %v7091 = vpop.f32.mrb[0].mxu0
    %7092 = vmatprep.mubr.bf16.mxu0 0
    %7093 = vmatmul.mubr.bf16.gmra.mrb[0].mxu0 %v6937
    %v7094 = vpop.f32.mrb[0].mxu0
    %v7095 = vadd.f32 %v6838, %v7094
    %v7096 = vpop.f32.mrb[0].mxu0
    %v7097 = vpop.f32.mrb[0].mxu0
    %v7098 = vadd.f32 %v6842, %v7097
    %v7099 = vpop.f32.mrb[0].mxu0
    %7100 = vmatprep.mubr.bf16.mxu0 0
    %7101 = vmatmul.mubr.bf16.gmra.mrb[0].mxu0 %v6938
    %v7102 = vpop.f32.mrb[0].mxu0
    %v7103 = vadd.f32 %v6846, %v7102
    %v7104 = vpop.f32.mrb[0].mxu0
    %v7105 = vpop.f32.mrb[0].mxu0
    %v7106 = vadd.f32 %v6850, %v7105
    %v7107 = vpop.f32.mrb[0].mxu0
    %7108 = vmatprep.mubr.bf16.mxu0 0
    %7109 = vmatmul.mubr.bf16.gmra.mrb[0].mxu0 %v6939
    %v7110 = vpop.f32.mrb[0].mxu0
    %v7111 = vadd.f32 %v6854, %v7110
    %v7112 = vpop.f32.mrb[0].mxu0
    %v7113 = vpop.f32.mrb[0].mxu0
    %v7114 = vadd.f32 %v6858, %v7113
    %v7115 = vpop.f32.mrb[0].mxu0
    %7116 = vdwg.mxu0
    %v7117 = vmax.f32 %v6991, 0.0
    %v7118 = vmax.f32 %v6994, 0.0
    %v7119 = vmax.f32 %v6999, 0.0
    %v7120 = vmax.f32 %v7002, 0.0
    %v7121 = vmax.f32 %v7007, 0.0
    %v7122 = vmax.f32 %v7010, 0.0
    %v7123 = vmax.f32 %v7015, 0.0
    %v7124 = vmax.f32 %v7018, 0.0
    %v7125 = vmax.f32 %v7023, 0.0
    %v7126 = vmax.f32 %v7026, 0.0
    %v7127 = vmax.f32 %v7031, 0.0
    %v7128 = vmax.f32 %v7034, 0.0
    %v7129 = vmax.f32 %v7039, 0.0
    %v7130 = vmax.f32 %v7042, 0.0
    %v7131 = vmax.f32 %v7047, 0.0
    %v7132 = vmax.f32 %v7050, 0.0
    %v7133 = vmax.f32 %v7055, 0.0
    %v7134 = vmax.f32 %v7058, 0.0
    %v7135 = vmax.f32 %v7063, 0.0
    %v7136 = vmax.f32 %v7066, 0.0
    %v7137 = vmax.f32 %v7071, 0.0
    %v7138 = vmax.f32 %v7074, 0.0
    %v7139 = vmax.f32 %v7079, 0.0
    %v7140 = vmax.f32 %v7082, 0.0
    %v7141 = vmax.f32 %v7087, 0.0
    %v7142 = vmax.f32 %v7090, 0.0
    %v7143 = vmax.f32 %v7095, 0.0
    %v7144 = vmax.f32 %v7098, 0.0
    %v7145 = vmax.f32 %v7103, 0.0
    %v7146 = vmax.f32 %v7106, 0.0
    %v7147 = vmax.f32 %v7111, 0.0
    %v7148 = vmax.f32 %v7114, 0.0
    %v7149 = vld [vmem:[#allocation5] sm:$0xff]
    %v7150 = vld [vmem:[#allocation5 + $0x8] sm:$0xff]
    %v7151 = vld [vmem:[#allocation5 + $0x10] sm:$0xff]
    %v7152 = vld [vmem:[#allocation5 + $0x18] sm:$0xff]
    %v7153 = vld [vmem:[#allocation5 + $0x20] sm:$0xff]
    %v7154 = vld [vmem:[#allocation5 + $0x28] sm:$0xff]
    %v7155 = vld [vmem:[#allocation5 + $0x30] sm:$0xff]
    %v7156 = vld [vmem:[#allocation5 + $0x38] sm:$0xff]
    %v7157 = vld [vmem:[#allocation5 + $0x40] sm:$0xff]
    %v7158 = vld [vmem:[#allocation5 + $0x48] sm:$0xff]
    %v7159 = vld [vmem:[#allocation5 + $0x50] sm:$0xff]
    %v7160 = vld [vmem:[#allocation5 + $0x58] sm:$0xff]
    %v7161 = vld [vmem:[#allocation5 + $0x60] sm:$0xff]
    %v7162 = vld [vmem:[#allocation5 + $0x68] sm:$0xff]
    %v7163 = vld [vmem:[#allocation5 + $0x70] sm:$0xff]
    %v7164 = vld [vmem:[#allocation5 + $0x78] sm:$0xff]
    %v7165 = vpack.c.bf16 %v7118, %v7117
    %v7166 = vpack.c.bf16 %v7120, %v7119
    %v7167 = vpack.c.bf16 %v7122, %v7121
    %v7168 = vpack.c.bf16 %v7124, %v7123
    %v7169 = vpack.c.bf16 %v7126, %v7125
    %v7170 = vpack.c.bf16 %v7128, %v7127
    %v7171 = vpack.c.bf16 %v7130, %v7129
    %v7172 = vpack.c.bf16 %v7132, %v7131
    %v7173 = vpack.c.bf16 %v7134, %v7133
    %v7174 = vpack.c.bf16 %v7136, %v7135
    %v7175 = vpack.c.bf16 %v7138, %v7137
    %v7176 = vpack.c.bf16 %v7140, %v7139
    %v7177 = vpack.c.bf16 %v7142, %v7141
    %v7178 = vpack.c.bf16 %v7144, %v7143
    %v7179 = vpack.c.bf16 %v7146, %v7145
    %v7180 = vpack.c.bf16 %v7148, %v7147
    %7181 = vset.pattern.permute.xlu0 2
    %7182 = vperm.xlu0 %7181, %v101
    %v7183 = vpop.permute.xlu0 %7182
    %7185 = vset.pattern.permute.xlu0 2
    %7186 = vperm.xlu0 %7185, %v102
    %v7187 = vpop.permute.xlu0 %7186
    %7189 = vset.pattern.permute.xlu0 2
    %7190 = vperm.xlu0 %7189, %v103
    %v7191 = vpop.permute.xlu0 %7190
    %7193 = vset.pattern.permute.xlu0 2
    %7194 = vperm.xlu0 %7193, %v104
    %v7195 = vpop.permute.xlu0 %7194
    %7197 = vset.pattern.permute.xlu0 2
    %7198 = vperm.xlu0 %7197, %v105
    %v7199 = vpop.permute.xlu0 %7198
    %7201 = vset.pattern.permute.xlu0 2
    %7202 = vperm.xlu0 %7201, %v106
    %v7203 = vpop.permute.xlu0 %7202
    %7205 = vset.pattern.permute.xlu0 2
    %7206 = vperm.xlu0 %7205, %v107
    %v7207 = vpop.permute.xlu0 %7206
    %7209 = vset.pattern.permute.xlu0 2
    %7210 = vperm.xlu0 %7209, %v108
    %v7211 = vpop.permute.xlu0 %7210
    %7213 = vset.pattern.permute.xlu0 2
    %7214 = vperm.xlu0 %7213, %v109
    %v7215 = vpop.permute.xlu0 %7214
    %7217 = vset.pattern.permute.xlu0 2
    %7218 = vperm.xlu0 %7217, %v110
    %v7219 = vpop.permute.xlu0 %7218
    %7221 = vset.pattern.permute.xlu0 2
    %7222 = vperm.xlu0 %7221, %v111
    %v7223 = vpop.permute.xlu0 %7222
    %7225 = vset.pattern.permute.xlu0 2
    %7226 = vperm.xlu0 %7225, %v112
    %v7227 = vpop.permute.xlu0 %7226
    %7229 = vset.pattern.permute.xlu0 2
    %7230 = vperm.xlu0 %7229, %v113
    %v7231 = vpop.permute.xlu0 %7230
    %7233 = vset.pattern.permute.xlu0 2
    %7234 = vperm.xlu0 %7233, %v114
    %v7235 = vpop.permute.xlu0 %7234
    %7237 = vset.pattern.permute.xlu0 2
    %7238 = vperm.xlu0 %7237, %v115
    %v7239 = vpop.permute.xlu0 %7238
    %7241 = vset.pattern.permute.xlu0 2
    %7242 = vperm.xlu0 %7241, %v116
    %v7243 = vpop.permute.xlu0 %7242
    %v7261 = vunpack.c.l.b16 %v7149
    %v7262 = vunpack.c.h.b16 %v7149
    %v7263 = vunpack.c.l.b16 %v7150
    %v7264 = vunpack.c.h.b16 %v7150
    %v7265 = vunpack.c.l.b16 %v7151
    %v7266 = vunpack.c.h.b16 %v7151
    %v7267 = vunpack.c.l.b16 %v7152
    %v7268 = vunpack.c.h.b16 %v7152
    %v7269 = vunpack.c.l.b16 %v7153
    %v7270 = vunpack.c.h.b16 %v7153
    %v7271 = vunpack.c.l.b16 %v7154
    %v7272 = vunpack.c.h.b16 %v7154
    %v7273 = vunpack.c.l.b16 %v7155
    %v7274 = vunpack.c.h.b16 %v7155
    %v7275 = vunpack.c.l.b16 %v7156
    %v7276 = vunpack.c.h.b16 %v7156
    %v7277 = vunpack.c.l.b16 %v7157
    %v7278 = vunpack.c.h.b16 %v7157
    %v7279 = vunpack.c.l.b16 %v7158
    %v7280 = vunpack.c.h.b16 %v7158
    %v7281 = vunpack.c.l.b16 %v7159
    %v7282 = vunpack.c.h.b16 %v7159
    %v7283 = vunpack.c.l.b16 %v7160
    %v7284 = vunpack.c.h.b16 %v7160
    %v7285 = vunpack.c.l.b16 %v7161
    %v7286 = vunpack.c.h.b16 %v7161
    %v7287 = vunpack.c.l.b16 %v7162
    %v7288 = vunpack.c.h.b16 %v7162
    %v7289 = vunpack.c.l.b16 %v7163
    %v7290 = vunpack.c.h.b16 %v7163
    %v7291 = vunpack.c.l.b16 %v7164
    %v7292 = vunpack.c.h.b16 %v7164
    %v7293 = vpack.c.b16 %v7263, %v7261
    %v7294 = vpack.c.b16 %v7264, %v7262
    %v7295 = vpack.c.b16 %v7267, %v7265
    %v7296 = vpack.c.b16 %v7268, %v7266
    %v7297 = vpack.c.b16 %v7271, %v7269
    %v7298 = vpack.c.b16 %v7272, %v7270
    %v7299 = vpack.c.b16 %v7275, %v7273
    %v7300 = vpack.c.b16 %v7276, %v7274
    %v7301 = vpack.c.b16 %v7279, %v7277
    %v7302 = vpack.c.b16 %v7280, %v7278
    %v7303 = vpack.c.b16 %v7283, %v7281
    %v7304 = vpack.c.b16 %v7284, %v7282
    %v7305 = vpack.c.b16 %v7287, %v7285
    %v7306 = vpack.c.b16 %v7288, %v7286
    %v7307 = vpack.c.b16 %v7291, %v7289
    %v7308 = vpack.c.b16 %v7292, %v7290
    %7325 = vmatprep.subr.bf16.mxu0 0
    %7326 = vmatpush1.bf16.msra.mxu0 %v7165
    %7327 = vmatprep.subr.bf16.mxu0 0
    %7328 = vmatpush1.bf16.msra.mxu0 %v7166
    %7329 = vmatprep.subr.bf16.mxu0 0
    %7330 = vmatpush1.bf16.msra.mxu0 %v7167
    %7331 = vmatprep.subr.bf16.mxu0 0
    %7332 = vmatpush1.bf16.msra.mxu0 %v7168
    %7333 = vmatprep.subr.bf16.mxu0 0
    %7334 = vmatpush1.bf16.msra.mxu0 %v7169
    %7335 = vmatprep.subr.bf16.mxu0 0
    %7336 = vmatpush1.bf16.msra.mxu0 %v7170
    %7337 = vmatprep.subr.bf16.mxu0 0
    %7338 = vmatpush1.bf16.msra.mxu0 %v7171
    %7339 = vmatprep.subr.bf16.mxu0 0
    %7340 = vmatpush1.bf16.msra.mxu0 %v7172
    %7341 = vmatprep.subr.bf16.mxu0 0
    %7342 = vmatpush1.bf16.msra.mxu0 %v7173
    %7343 = vmatprep.subr.bf16.mxu0 0
    %7344 = vmatpush1.bf16.msra.mxu0 %v7174
    %7345 = vmatprep.subr.bf16.mxu0 0
    %7346 = vmatpush1.bf16.msra.mxu0 %v7175
    %7347 = vmatprep.subr.bf16.mxu0 0
    %7348 = vmatpush1.bf16.msra.mxu0 %v7176
    %7349 = vmatprep.subr.bf16.mxu0 0
    %7350 = vmatpush1.bf16.msra.mxu0 %v7177
    %7351 = vmatprep.subr.bf16.mxu0 0
    %7352 = vmatpush1.bf16.msra.mxu0 %v7178
    %7353 = vmatprep.subr.bf16.mxu0 0
    %7354 = vmatpush1.bf16.msra.mxu0 %v7179
    %7355 = vmatprep.subr.bf16.mxu0 0
    %7356 = vmatpush1.bf16.msra.mxu0 %v7180
    %7357 = vmatprep.mubr.bf16.mxu0 %v7294
    %7358 = vmatmul.mubr.bf16.gmra.mrb[0].mxu0 %v7293
    %v7359 = vpop.f32.mrb[0].mxu0
    %v7360 = vadd.f32 %v7183, %v7359
    %v7361 = vpop.f32.mrb[0].mxu0
    %v7362 = vpop.f32.mrb[0].mxu0
    %v7363 = vadd.f32 %v7187, %v7362
    %v7364 = vpop.f32.mrb[0].mxu0
    %7365 = vmatprep.mubr.bf16.mxu0 %v7296
    %7366 = vmatmul.mubr.bf16.gmra.mrb[0].mxu0 %v7295
    %v7367 = vpop.f32.mrb[0].mxu0
    %v7368 = vadd.f32 %v7191, %v7367
    %v7369 = vpop.f32.mrb[0].mxu0
    %v7370 = vpop.f32.mrb[0].mxu0
    %v7371 = vadd.f32 %v7195, %v7370
    %v7372 = vpop.f32.mrb[0].mxu0
    %7373 = vmatprep.mubr.bf16.mxu0 %v7298
    %7374 = vmatmul.mubr.bf16.gmra.mrb[0].mxu0 %v7297
    %v7375 = vpop.f32.mrb[0].mxu0
    %v7376 = vadd.f32 %v7199, %v7375
    %v7377 = vpop.f32.mrb[0].mxu0
    %v7378 = vpop.f32.mrb[0].mxu0
    %v7379 = vadd.f32 %v7203, %v7378
    %v7380 = vpop.f32.mrb[0].mxu0
    %7381 = vmatprep.mubr.bf16.mxu0 %v7300
    %7382 = vmatmul.mubr.bf16.gmra.mrb[0].mxu0 %v7299
    %v7383 = vpop.f32.mrb[0].mxu0
    %v7384 = vadd.f32 %v7207, %v7383
    %v7385 = vpop.f32.mrb[0].mxu0
    %v7386 = vpop.f32.mrb[0].mxu0
    %v7387 = vadd.f32 %v7211, %v7386
    %v7388 = vpop.f32.mrb[0].mxu0
    %7389 = vmatprep.mubr.bf16.mxu0 %v7302
    %7390 = vmatmul.mubr.bf16.gmra.mrb[0].mxu0 %v7301
    %v7391 = vpop.f32.mrb[0].mxu0
    %v7392 = vadd.f32 %v7215, %v7391
    %v7393 = vpop.f32.mrb[0].mxu0
    %v7394 = vpop.f32.mrb[0].mxu0
    %v7395 = vadd.f32 %v7219, %v7394
    %v7396 = vpop.f32.mrb[0].mxu0
    %7397 = vmatprep.mubr.bf16.mxu0 %v7304
    %7398 = vmatmul.mubr.bf16.gmra.mrb[0].mxu0 %v7303
    %v7399 = vpop.f32.mrb[0].mxu0
    %v7400 = vadd.f32 %v7223, %v7399
    %v7401 = vpop.f32.mrb[0].mxu0
    %v7402 = vpop.f32.mrb[0].mxu0
    %v7403 = vadd.f32 %v7227, %v7402
    %v7404 = vpop.f32.mrb[0].mxu0
    %7405 = vmatprep.mubr.bf16.mxu0 %v7306
    %7406 = vmatmul.mubr.bf16.gmra.mrb[0].mxu0 %v7305
    %v7407 = vpop.f32.mrb[0].mxu0
    %v7408 = vadd.f32 %v7231, %v7407
    %v7409 = vpop.f32.mrb[0].mxu0
    %v7410 = vpop.f32.mrb[0].mxu0
    %v7411 = vadd.f32 %v7235, %v7410
    %v7412 = vpop.f32.mrb[0].mxu0
    %7413 = vmatprep.mubr.bf16.mxu0 %v7308
    %7414 = vmatmul.mubr.bf16.gmra.mrb[0].mxu0 %v7307
    %v7415 = vpop.f32.mrb[0].mxu0
    %v7416 = vadd.f32 %v7239, %v7415
    %v7417 = vpop.f32.mrb[0].mxu0
    %v7418 = vpop.f32.mrb[0].mxu0
    %v7419 = vadd.f32 %v7243, %v7418
    %v7420 = vpop.f32.mrb[0].mxu0
    %7421 = vdwg.mxu0
    %v7422 = vadd.f32 %v85, %v7360
    %v7423 = vadd.f32 %v86, %v7363
    %v7424 = vadd.f32 %v87, %v7368
    %v7425 = vadd.f32 %v88, %v7371
    %v7426 = vadd.f32 %v89, %v7376
    %v7427 = vadd.f32 %v90, %v7379
    %v7428 = vadd.f32 %v91, %v7384
    %v7429 = vadd.f32 %v92, %v7387
    %v7430 = vadd.f32 %v93, %v7392
    %v7431 = vadd.f32 %v94, %v7395
    %v7432 = vadd.f32 %v95, %v7400
    %v7433 = vadd.f32 %v96, %v7403
    %v7434 = vadd.f32 %v97, %v7408
    %v7435 = vadd.f32 %v98, %v7411
    %v7436 = vadd.f32 %v99, %v7416
    %v7437 = vadd.f32 %v100, %v7419
    %7438 = vxpose.xlu0.b32.start [1/16] %v7422, 128
    %7439 = vxpose.xlu0.b32.cont [2/16] %v7423, 128
    %7440 = vxpose.xlu0.b32.cont [3/16] %v7424, 128
    %7441 = vxpose.xlu0.b32.cont [4/16] %v7425, 128
    %7442 = vxpose.xlu0.b32.cont [5/16] %v7426, 128
    %7443 = vxpose.xlu0.b32.cont [6/16] %v7427, 128
    %7444 = vxpose.xlu0.b32.cont [7/16] %v7428, 128
    %7445 = vxpose.xlu0.b32.cont [8/16] %v7429, 128
    %7446 = vxpose.xlu0.b32.cont [9/16] %v7430, 128
    %7447 = vxpose.xlu0.b32.cont [10/16] %v7431, 128
    %7448 = vxpose.xlu0.b32.cont [11/16] %v7432, 128
    %7449 = vxpose.xlu0.b32.cont [12/16] %v7433, 128
    %7450 = vxpose.xlu0.b32.cont [13/16] %v7434, 128
    %7451 = vxpose.xlu0.b32.cont [14/16] %v7435, 128
    %7452 = vxpose.xlu0.b32.cont [15/16] %v7436, 128
    %7453 = vxpose.xlu0.b32.end [16/16] %v7437, 128
    %v7454 = vpop.trf.xlu0
    %v7455 = vpop.trf.xlu0
    %v7456 = vpop.trf.xlu0
    %v7457 = vpop.trf.xlu0
    %v7458 = vpop.trf.xlu0
    %v7459 = vpop.trf.xlu0
    %v7460 = vpop.trf.xlu0
    %v7461 = vpop.trf.xlu0
    %v7462 = vpop.trf.xlu0
    %v7463 = vpop.trf.xlu0
    %v7464 = vpop.trf.xlu0
    %v7465 = vpop.trf.xlu0
    %v7466 = vpop.trf.xlu0
    %v7467 = vpop.trf.xlu0
    %v7468 = vpop.trf.xlu0
    %v7469 = vpop.trf.xlu0
    %7470 = vst [vmem:[#allocation7] sm:$0xff] %v7454
    %7471 = vst [vmem:[#allocation7 + $0x8] sm:$0xff] %v7455
    %7472 = vst [vmem:[#allocation7 + $0x10] sm:$0xff] %v7456
    %7473 = vst [vmem:[#allocation7 + $0x18] sm:$0xff] %v7457
    %7474 = vst [vmem:[#allocation7 + $0x20] sm:$0xff] %v7458
    %7475 = vst [vmem:[#allocation7 + $0x28] sm:$0xff] %v7459
    %7476 = vst [vmem:[#allocation7 + $0x30] sm:$0xff] %v7460
    %7477 = vst [vmem:[#allocation7 + $0x38] sm:$0xff] %v7461
    %7478 = vst [vmem:[#allocation7 + $0x40] sm:$0xff] %v7462
    %7479 = vst [vmem:[#allocation7 + $0x48] sm:$0xff] %v7463
    %7480 = vst [vmem:[#allocation7 + $0x50] sm:$0xff] %v7464
    %7481 = vst [vmem:[#allocation7 + $0x58] sm:$0xff] %v7465
    %7482 = vst [vmem:[#allocation7 + $0x60] sm:$0xff] %v7466
    %7483 = vst [vmem:[#allocation7 + $0x68] sm:$0xff] %v7467
    %7484 = vst [vmem:[#allocation7 + $0x70] sm:$0xff] %v7468
    %7485 = vst [vmem:[#allocation7 + $0x78] sm:$0xff] %v7469
    // Predicated region
    $region34: #{tpu_custom_call.1} parent=1 // pred_check
      _
    $region35: #{tpu_custom_call.1} parent=1 // pred_check_branch
      %7487 = sbr.rel (0) target = $region37
    $region36: #{tpu_custom_call.1} parent=1 // pred_region
      %s7489 = ssub.s32 2048, 2048
      %7490 = vsyncadd [#allocation4], %s7489
      %s7491 = sshll.u32 [#allocation7], 4
      %s7492 = int_to_ptr.vmem [resolvable:$true] %s7491
      %7497 = dma.vmem_to_hbm [thread:$0]  %s7492, 2048, %s6, [#allocation4], 128, 128, 8
    $region37: #{tpu_custom_call.1} parent=1 // pred_fallthru
      _
    // Predicated region
    $region38: #{tpu_custom_call.1} parent=1 // pred_check
      _
    $region39: #{tpu_custom_call.1} parent=1 // pred_check_branch
      %7499 = sbr.rel (0) target = $region41
    $region40: #{tpu_custom_call.1} parent=1 // pred_region
      %7500 = dma.done [#allocation4], 2048
    $region41: #{tpu_custom_call.1} parent=1 // pred_fallthru
      _
    %7501 = vsyncpa [#allocation3], 1
    %7502 = vsyncpa [#allocation6], 1
    %7503 = vsyncpa [#allocation4], 1

</llo_original>
